<compile_context>
chip_gen: v5e
topology: v5e:2x2
jax: 0.10.0
libtpu: 0.0.40
codegen_flags: <defaults>
</compile_context>

<pallas_src>
import jax
import jax.numpy as jnp
from jax.experimental import pallas as pl
from jax.experimental.pallas import tpu as pltpu


def _fused_add_relu_conv1x1_kernel(x1_ref, x2_ref, w_ref, o_ref, x_bf16):
    # x1_ref, x2_ref: (C_in, HW) f32 resident activations (constant block idx).
    # w_ref:          (TC, C_in) bf16 streamed weight tile (double-buffered).
    # o_ref:          (TC, HW)  f32 output tile.
    # x_bf16:         (C_in, HW) bf16 persistent scratch, filled once.
    @pl.when(pl.program_id(0) == 0)
    def _():
        # add + ReLU on the VPU, cast once to bf16 for the MXU.
        x_bf16[...] = jnp.maximum(x1_ref[...] + x2_ref[...], 0.0).astype(
            jnp.bfloat16
        )

    # 1x1 conv == matmul on the MXU: bf16 x bf16 -> f32 accumulate.
    o_ref[...] = jnp.dot(
        w_ref[...], x_bf16[...], preferred_element_type=jnp.float32
    ).astype(o_ref.dtype)


def _pick_c_out_tile(c_out: int, preferred: int) -> int:
    """Largest divisor of c_out that is <= preferred and sublane-aligned (%8)."""
    if c_out <= preferred:
        return c_out
    for tc in range(preferred, 7, -1):
        if c_out % tc == 0 and tc % 8 == 0:
            return tc
    return c_out  # fallback: single block (still correct)


def fused_add_relu_conv1x1(x330, x322, weight, *, c_out_tile=512):
    """x330, x322: (1, C_in, H, W) float32.  weight: (C_out, C_in, 1, 1) float32."""
    N, C_in, H, W = x330.shape
    C_out = weight.shape[0]
    HW = H * W
    # The (C_in, H*W) reshape is only data-movement-free for N=1 (module spec).
    assert N == 1, "kernel wrapper assumes N=1 (as in the source module)"

    # Free reshapes — no XLA transposes / copies.
    a = x330.reshape(C_in, HW)
    b = x322.reshape(C_in, HW)
    # One-time weight prep (would be folded into the checkpoint in a model):
    # (C_out, C_in, 1, 1) f32 -> (C_out, C_in) bf16.  The kernel is HBM-bound on
    # this stream, so bf16 halves the dominant traffic on every TPU generation.
    w = weight.reshape(C_out, C_in).astype(jnp.bfloat16)

    tc = _pick_c_out_tile(C_out, c_out_tile)
    grid = (C_out // tc,)

    out_flat = pl.pallas_call(
        _fused_add_relu_conv1x1_kernel,
        out_shape=jax.ShapeDtypeStruct((C_out, HW), jnp.float32),
        grid_spec=pltpu.PrefetchScalarGridSpec(
            num_scalar_prefetch=0,
            grid=grid,
            in_specs=[
                # Activations: constant block index -> DMA'd once, kept resident.
                pl.BlockSpec((C_in, HW), lambda j: (0, 0)),
                pl.BlockSpec((C_in, HW), lambda j: (0, 0)),
                # Weight: stream 2 MiB bf16 (512 x 2048) tiles, double-buffered.
                pl.BlockSpec((tc, C_in), lambda j: (j, 0)),
            ],
            out_specs=pl.BlockSpec((tc, HW), lambda j: (j, 0)),
            scratch_shapes=[pltpu.VMEM((C_in, HW), jnp.bfloat16)],
        ),
        compiler_params=pltpu.CompilerParams(
            # Scratch carries relu(a+b) across grid steps -> sequential axis.
            dimension_semantics=("arbitrary",),
        ),
    )(a, b, w)

    # (C_out, H*W) -> (1, C_out, H, W): free reshape.
    return out_flat.reshape(N, C_out, H, W)


if __name__ == "__main__":
    # Shapes implied by the module's forward: (1, 2048, 7, 7) inputs,
    # Conv2d(2048 -> 1024, kernel 1x1, no bias).
    N, C_in, H, W = 1, 2048, 7, 7
    C_out = 1024

    key = jax.random.PRNGKey(0)
    k1, k2, k3 = jax.random.split(key, 3)
    x330 = jax.random.normal(k1, (N, C_in, H, W), dtype=jnp.float32)
    x322 = jax.random.normal(k2, (N, C_in, H, W), dtype=jnp.float32)
    # Deterministic, kaiming-ish scaled weight (fan_in = C_in * 1 * 1).
    weight = jax.random.normal(k3, (C_out, C_in, 1, 1), dtype=jnp.float32) * (
        1.0 / jnp.sqrt(jnp.float32(C_in))
    )

    out = fused_add_relu_conv1x1(x330, x322, weight)
    out = jax.block_until_ready(out)
    assert out.shape == (N, C_out, H, W), out.shape

    # Pure-JAX references.
    x_relu = jnp.maximum(x330 + x322, 0.0)
    w2 = weight.reshape(C_out, C_in)
    # (a) numerics-matched reference: same bf16 operand rounding, f32 accumulate.
    ref_bf16 = jnp.einsum(
        "nchw,oc->nohw",
        x_relu.astype(jnp.bfloat16),
        w2.astype(jnp.bfloat16),
        preferred_element_type=jnp.float32,
    )
    # (b) the module's full-f32 math; bf16 operand rounding costs ~4e-3 abs here.
    ref_f32 = jnp.einsum("nchw,oc->nohw", x_relu, w2)

    assert jnp.allclose(out, ref_bf16, atol=2e-3, rtol=2e-3), "mismatch vs bf16 ref"
    assert jnp.allclose(out, ref_f32, atol=6e-2, rtol=6e-2), "mismatch vs f32 ref"

    print("KERNEL_OK")
</pallas_src>

<mosaic_0001>
module attributes {stable_mosaic.version = 11 : i64} {
  func.func @_fused_add_relu_conv1x1_kernel(%arg0: i32, %arg1: memref<2048x49xf32, #tpu.memory_space<vmem>>, %arg2: memref<2048x49xf32, #tpu.memory_space<vmem>>, %arg3: memref<512x2048xbf16, #tpu.memory_space<vmem>>, %arg4: memref<512x49xf32, #tpu.memory_space<vmem>>, %arg5: memref<2048x49xbf16, #tpu.memory_space<vmem>>) attributes {dimension_semantics = [#tpu.dimension_semantics<arbitrary>], iteration_bounds = array<i64: 2>, scalar_prefetch = 0 : i64, scratch_operands = 1 : i64, tpu.core_type = #tpu.core_type<tc>, window_params = [{pipeline_mode = #tpu.pipeline_mode<synchronous>, transform_indices = @transform_0, window_bounds = array<i64: 2048, 49>}, {pipeline_mode = #tpu.pipeline_mode<synchronous>, transform_indices = @transform_1, window_bounds = array<i64: 2048, 49>}, {transform_indices = @transform_2, window_bounds = array<i64: 512, 2048>}, {transform_indices = @transform_3, window_bounds = array<i64: 512, 49>}]} {
    %c0_i32 = arith.constant 0 : i32
    %0 = arith.cmpi eq, %arg0, %c0_i32 : i32
    %1 = arith.extui %0 : i1 to i32
    %c0_i32_0 = arith.constant 0 : i32
    %2 = arith.cmpi ne, %1, %c0_i32_0 : i32
    scf.if %2 {
      %c0_6 = arith.constant 0 : index
      %c0_7 = arith.constant 0 : index
      %7 = vector.load %arg1[%c0_6, %c0_7] : memref<2048x49xf32, #tpu.memory_space<vmem>>, vector<2048x49xf32>
      %c0_8 = arith.constant 0 : index
      %c0_9 = arith.constant 0 : index
      %8 = vector.load %arg2[%c0_8, %c0_9] : memref<2048x49xf32, #tpu.memory_space<vmem>>, vector<2048x49xf32>
      %9 = arith.addf %7, %8 : vector<2048x49xf32>
      %cst_10 = arith.constant 0.000000e+00 : f32
      %10 = vector.broadcast %cst_10 : f32 to vector<2048x49xf32>
      %11 = arith.maximumf %9, %10 : vector<2048x49xf32>
      %12 = arith.truncf %11 : vector<2048x49xf32> to vector<2048x49xbf16>
      %c0_11 = arith.constant 0 : index
      %c0_12 = arith.constant 0 : index
      %13 = vector.load %arg5[%c0_11, %c0_12] : memref<2048x49xbf16, #tpu.memory_space<vmem>>, vector<2048x49xbf16>
      tpu.vector_store %arg5[%c0_11, %c0_12], %12 {strides = array<i32>} : memref<2048x49xbf16, #tpu.memory_space<vmem>>, vector<2048x49xbf16>,
    } else {
    }
    %c0 = arith.constant 0 : index
    %c0_1 = arith.constant 0 : index
    %3 = vector.load %arg3[%c0, %c0_1] : memref<512x2048xbf16, #tpu.memory_space<vmem>>, vector<512x2048xbf16>
    %c0_2 = arith.constant 0 : index
    %c0_3 = arith.constant 0 : index
    %4 = vector.load %arg5[%c0_2, %c0_3] : memref<2048x49xbf16, #tpu.memory_space<vmem>>, vector<2048x49xbf16>
    %cst = arith.constant dense<0.000000e+00> : vector<512x49xf32>
    %5 = tpu.matmul %3, %4, %cst {dimension_numbers = #tpu.dot_dimension_numbers<[1], [0], [0], [1], [0, 0, 1, 1], [], []>} : vector<512x2048xbf16>, vector<2048x49xbf16>, vector<512x49xf32> -> vector<512x49xf32>
    %c0_4 = arith.constant 0 : index
    %c0_5 = arith.constant 0 : index
    %6 = vector.load %arg4[%c0_4, %c0_5] : memref<512x49xf32, #tpu.memory_space<vmem>>, vector<512x49xf32>
    tpu.vector_store %arg4[%c0_4, %c0_5], %5 {strides = array<i32>} : memref<512x49xf32, #tpu.memory_space<vmem>>, vector<512x49xf32>,
    return
  }
  func.func @transform_0(%arg0: i32) -> (i32, i32) {
    %c0_i32 = arith.constant 0 : i32
    %c0_i32_0 = arith.constant 0 : i32
    %c0_i32_1 = arith.constant 0 : i32
    return %c0_i32, %c0_i32_0 : i32, i32
  }
  func.func @transform_1(%arg0: i32) -> (i32, i32) {
    %c0_i32 = arith.constant 0 : i32
    %c0_i32_0 = arith.constant 0 : i32
    %c0_i32_1 = arith.constant 0 : i32
    return %c0_i32, %c0_i32_0 : i32, i32
  }
  func.func @transform_2(%arg0: i32) -> (i32, i32) {
    %c0_i32 = arith.constant 0 : i32
    %c0_i32_0 = arith.constant 0 : i32
    return %arg0, %c0_i32 : i32, i32
  }
  func.func @transform_3(%arg0: i32) -> (i32, i32) {
    %c0_i32 = arith.constant 0 : i32
    %c0_i32_0 = arith.constant 0 : i32
    return %arg0, %c0_i32 : i32, i32
  }
}

</mosaic_0001>

<llo_original>
// kernel: tpu_custom_call.1
$region0: #{tpu_custom_call.1}
  #allocation0 [shape = 'u32[]', space=smem, size = 0x4, offset = 0x4, fixed_abs, tag = 'smem constant byte address 0x4 - core index']
  #allocation1 [shape = 'u32[72,128]{1,0:T(1,128)}', space=vmem, size = 0x9000, scoped, tag = 'internal scratch']
  #allocation2 [shape = 'bf16[2048,49]{1,0:T(8,128)(2,1)}', space=vmem, size = 0x80000, scoped, tag = 'scratch operand']
  %s0 = inlined_call_operand.vmem [shape: f32[2048,49], index: 0, kind: input, shape index: {}]
  %s1 = inlined_call_operand.vmem [shape: f32[2048,49], index: 1, kind: input, shape index: {}]
  %s2 = inlined_call_operand.hbm [shape: bf16[1024,2048], index: 2, kind: input, shape index: {}]
  %s3 = inlined_call_operand.vmem [shape: f32[1024,49], index: 3, kind: output, shape index: {}]
  %s4 = sld [smem:[#allocation0]]
  $region53: #{tpu_custom_call.1} parent=0
    _
  %s6 = ssub.s32 1, %s4
  %s7 = scalar_select 0, %s6, %s4
  $region1: #{tpu_custom_call.1} parent=0
    #allocation3 [shape = 'u8[4194304]{0}', space=vmem, size = 0x400000, scoped, tag = 'input window, operand 2']
    #allocation4 [shape = 's32[2]{0}', space=sflag, size = 0x8, scoped, tag = 'scoped memory for tpu_custom_call.1']
    %8 = vsyncpa [#allocation4], 0
    %s9 = scalar_lea.sflag [#allocation4], 1
    %10 = vsyncpa %s9, 0
    loop: start=0, step=1, limit=4
    $region2: #{tpu_custom_call.1} parent=1 // loop_pre_header
      _
    $region3: #{tpu_custom_call.1} parent=1 // loop_header
      %s12 = sphi 0, %s16
      %p13 = scmp.ge.s32.totalorder %s12, 4
      %s20 = sphi 0, %s20
      %s22 = sphi 0, %s20
      %s23 = sphi 0, %s22
      %s37 = sphi 0, %s23
      %s41 = sphi 0, %s41
      %s43 = sphi 0, %s41
      %s44 = sphi 0, %s43
      %s58 = sphi 0, %s44
      %s64 = sphi 0, %s66
      %s67 = sphi 0, %s64
      %s68 = sphi 0, %s67
      %s84 = sphi 0, %s68
      %s90 = sphi 0, %s92
      %s93 = sphi 0, %s90
      %s94 = sphi 0, %s93
      %s110 = sphi 0, %s94
    $region4: #{tpu_custom_call.1} parent=1 // loop_header_branch
      %15 = sbr.rel (%p13) target = $region8
    $region5: #{tpu_custom_call.1} parent=1 // loop_body
      %s17 = ssub.s32 %s12, 1
      %s18 = ssub.s32 %s12, 2
      %s19 = sadd.s32 %s12, 1
      %s21 = sadd.s32 %s20, 1
      %p24 = scmp.eq.s32.totalorder %s12, 1
      %p25 = scmp.ne.s32.totalorder %s20, %s22
      %p26 = scmp.eq.s32.totalorder %s12, 0
      %p27 = por %p25, %p26
      %p28 = scmp.ne.s32.totalorder %s20, %s22
      %p29 = scmp.eq.s32.totalorder %s17, 1
      %p30 = por %p28, %p29
      %p31 = scmp.ne.s32.totalorder %s22, %s23
      %p32 = scmp.eq.s32.totalorder %s17, 0
      %p33 = por %p31, %p32
      %p34 = scmp.ne.s32.totalorder %s22, %s23
      %p35 = scmp.eq.s32.totalorder %s18, 1
      %p36 = por %p34, %p35
      %p38 = scmp.ne.s32.totalorder %s23, %s37
      %p39 = scmp.eq.s32.totalorder %s18, 0
      %p40 = por %p38, %p39
      %s42 = sadd.s32 %s41, 1
      %p45 = scmp.eq.s32.totalorder %s12, 1
      %p46 = scmp.ne.s32.totalorder %s41, %s43
      %p47 = scmp.eq.s32.totalorder %s12, 0
      %p48 = por %p46, %p47
      %p49 = scmp.ne.s32.totalorder %s41, %s43
      %p50 = scmp.eq.s32.totalorder %s17, 1
      %p51 = por %p49, %p50
      %p52 = scmp.ne.s32.totalorder %s43, %s44
      %p53 = scmp.eq.s32.totalorder %s17, 0
      %p54 = por %p52, %p53
      %p55 = scmp.ne.s32.totalorder %s43, %s44
      %p56 = scmp.eq.s32.totalorder %s18, 1
      %p57 = por %p55, %p56
      %p59 = scmp.ne.s32.totalorder %s44, %s58
      %p60 = scmp.eq.s32.totalorder %s18, 0
      %p61 = por %p59, %p60
      %s62 = ssub.s32 %s12, %s19
      %p63 = scmp.eq.s32.totalorder %s62, 0
      %s65 = sadd.s32 %s64, 1
      %s66 = scalar_select %p63, %s64, %s65
      %p69 = pneg %p63
      %p70 = scmp.eq.s32.totalorder %s12, 1
      %p71 = por %p69, %p70
      %p72 = scmp.ne.s32.totalorder %s64, %s67
      %p73 = scmp.eq.s32.totalorder %s12, 0
      %p74 = por %p72, %p73
      %p75 = scmp.ne.s32.totalorder %s64, %s67
      %p76 = scmp.eq.s32.totalorder %s17, 1
      %p77 = por %p75, %p76
      %p78 = scmp.ne.s32.totalorder %s67, %s68
      %p79 = scmp.eq.s32.totalorder %s17, 0
      %p80 = por %p78, %p79
      %p81 = scmp.ne.s32.totalorder %s67, %s68
      %p82 = scmp.eq.s32.totalorder %s18, 1
      %p83 = por %p81, %p82
      %p85 = scmp.ne.s32.totalorder %s68, %s84
      %p86 = scmp.eq.s32.totalorder %s18, 0
      %p87 = por %p85, %p86
      %s88 = ssub.s32 %s12, %s19
      %p89 = scmp.eq.s32.totalorder %s88, 0
      %s91 = sadd.s32 %s90, 1
      %s92 = scalar_select %p89, %s90, %s91
      %p95 = pneg %p89
      %p96 = scmp.eq.s32.totalorder %s12, 1
      %p97 = por %p95, %p96
      %p98 = scmp.ne.s32.totalorder %s90, %s93
      %p99 = scmp.eq.s32.totalorder %s12, 0
      %p100 = por %p98, %p99
      %p101 = scmp.ne.s32.totalorder %s90, %s93
      %p102 = scmp.eq.s32.totalorder %s17, 1
      %p103 = por %p101, %p102
      %p104 = scmp.ne.s32.totalorder %s93, %s94
      %p105 = scmp.eq.s32.totalorder %s17, 0
      %p106 = por %p104, %p105
      %p107 = scmp.ne.s32.totalorder %s93, %s94
      %p108 = scmp.eq.s32.totalorder %s18, 1
      %p109 = por %p107, %p108
      %p111 = scmp.ne.s32.totalorder %s94, %s110
      %p112 = scmp.eq.s32.totalorder %s18, 0
      %p113 = por %p111, %p112
      %p114 = scmp.le.s32.totalorder 1, %s12
      %p115 = scmp.lt.s32.totalorder %s12, 3
      %p116 = pnand %p114, %p115
      %p117 = pneg %p116
      // Predicated region
      $region9: #{tpu_custom_call.1} parent=5 // pred_check
        _
      $region10: #{tpu_custom_call.1} parent=5 // pred_check_branch
        %119 = sbr.rel (%p116) target = $region12
      $region11: #{tpu_custom_call.1} parent=5 // pred_region
        %s120 = ssub.s32 %s12, 1
        // Predicated region
        $region13: #{tpu_custom_call.1} parent=11 // pred_check
          %p121 = pneg %p33
        $region14: #{tpu_custom_call.1} parent=11 // pred_check_branch
          %123 = sbr.rel (%p121) target = $region16
        $region15: #{tpu_custom_call.1} parent=11 // pred_region
          _
        $region16: #{tpu_custom_call.1} parent=11 // pred_fallthru
          _
        // Predicated region
        $region17: #{tpu_custom_call.1} parent=11 // pred_check
          %p124 = pneg %p54
        $region18: #{tpu_custom_call.1} parent=11 // pred_check_branch
          %126 = sbr.rel (%p124) target = $region20
        $region19: #{tpu_custom_call.1} parent=11 // pred_region
          _
        $region20: #{tpu_custom_call.1} parent=11 // pred_fallthru
          _
      $region12: #{tpu_custom_call.1} parent=5 // pred_fallthru
        _
      %p127 = scmp.lt.s32.totalorder %s12, 2
      // Predicated region
      $region21: #{tpu_custom_call.1} parent=5 // pred_check
        %p128 = pneg %p127
      $region22: #{tpu_custom_call.1} parent=5 // pred_check_branch
        %130 = sbr.rel (%p128) target = $region24
      $region23: #{tpu_custom_call.1} parent=5 // pred_region
        // Predicated region
        $region25: #{tpu_custom_call.1} parent=23 // pred_check
          %p131 = pneg %p74
        $region26: #{tpu_custom_call.1} parent=23 // pred_check_branch
          %133 = sbr.rel (%p131) target = $region28
        $region27: #{tpu_custom_call.1} parent=23 // pred_region
          %s134 = sand.u32 %s64, 1
          %s135 = scalar_lea.sflag [#allocation4], %s134
          %s136 = sand.u32 %s64, 1
          %s137 = smul.addr %s136, 4096
          %s138 = scalar_lea.vmem [#allocation3], %s137
          %s139 = smul.u32 64, %s12
          %141 = vsyncadd %s135, 0
          %s142 = smul.addr %s139, 16
          %s143 = smul.addr %s142, 4
          %s144 = scalar_lea.hbm %s2, %s143
          %s145 = sshll.u32 %s144, 4
          %s146 = int_to_ptr.hbm [resolvable:$true] %s145
          %s147 = sshll.u32 %s138, 4
          %s148 = int_to_ptr.vmem [resolvable:$true] %s147
          %153 = dma.hbm_to_vmem [thread:$0]  %s146, 65536, %s148, %s135, 1024, 1024, 64
        $region28: #{tpu_custom_call.1} parent=23 // pred_fallthru
          _
      $region24: #{tpu_custom_call.1} parent=5 // pred_fallthru
        _
      %p154 = scmp.le.s32.totalorder 1, %s12
      %p155 = scmp.lt.s32.totalorder %s12, 3
      %p156 = pnand %p154, %p155
      %p157 = pneg %p156
      // Predicated region
      $region29: #{tpu_custom_call.1} parent=5 // pred_check
        _
      $region30: #{tpu_custom_call.1} parent=5 // pred_check_branch
        %159 = sbr.rel (%p156) target = $region32
      $region31: #{tpu_custom_call.1} parent=5 // pred_region
        %s160 = ssub.s32 %s12, 1
        %s161 = sand.u32 %s67, 1
        %s162 = scalar_lea.sflag [#allocation4], %s161
        %s163 = sand.u32 %s67, 1
        %s164 = smul.addr %s163, 4096
        %s165 = scalar_lea.vmem [#allocation3], %s164
        // Predicated region
        $region33: #{tpu_custom_call.1} parent=31 // pred_check
          %p166 = pneg %p80
        $region34: #{tpu_custom_call.1} parent=31 // pred_check_branch
          %168 = sbr.rel (%p166) target = $region36
        $region35: #{tpu_custom_call.1} parent=31 // pred_region
          %170 = dma.done %s162, 65536
        $region36: #{tpu_custom_call.1} parent=31 // pred_fallthru
          _
        %p171 = pneg %p33
        %p172 = pneg %p30
        %p173 = pneg %p54
        %p174 = pneg %p51
        %s175 = sand.u32 %s67, 1
        %s176 = scalar_lea.sflag [#allocation4], %s175
        %s177 = sand.u32 %s67, 1
        %s178 = smul.addr %s177, 4096
        %s179 = scalar_lea.vmem [#allocation3], %s178
        %p180 = pneg %p80
        %p181 = pneg %p77
        %p182 = pneg %p106
        %p183 = pneg %p103
        %s184 = smul.u32 64, %s17
        %p185 = scmp.lt.s32.totalorder %s184, 127
        %s186 = scalar_select %p185, %s184, 127
        %s187 = smul.addr %s186, 8
        %s188 = scalar_lea.vmem %s3, %s187
        %s189 = smul.u32 64, %s17
        %s190 = smul.u32 64, %s17
        %p191 = scmp.lt.s32.totalorder %s190, 127
        %s192 = scalar_select %p191, %s190, 127
        %s193 = smul.addr %s192, 8
        %s194 = scalar_lea.vmem %s3, %s193
        %s195 = smul.u32 64, %s17
        %p196 = scmp.eq.s32.totalorder %s17, 0
        // Predicated region
        $region37: #{tpu_custom_call.1} parent=31 // pred_check
          %p197 = pneg %p196
        $region38: #{tpu_custom_call.1} parent=31 // pred_check_branch
          %199 = sbr.rel (%p197) target = $region40
        $region39: #{tpu_custom_call.1} parent=31 // pred_region
          %v200 = vld [vmem:[%s0] sm:$0xff]
          %v201 = vld [vmem:[%s0 + $0x8] sm:$0xff]
          %v202 = vld [vmem:[%s0 + $0x10] sm:$0xff]
          %v203 = vld [vmem:[%s0 + $0x18] sm:$0xff]
          %v204 = vld [vmem:[%s0 + $0x20] sm:$0xff]
          %v205 = vld [vmem:[%s0 + $0x28] sm:$0xff]
          %v206 = vld [vmem:[%s0 + $0x30] sm:$0xff]
          %v207 = vld [vmem:[%s0 + $0x38] sm:$0xff]
          %v208 = vld [vmem:[%s0 + $0x40] sm:$0xff]
          %v209 = vld [vmem:[%s0 + $0x48] sm:$0xff]
          %v210 = vld [vmem:[%s0 + $0x50] sm:$0xff]
          %v211 = vld [vmem:[%s0 + $0x58] sm:$0xff]
          %v212 = vld [vmem:[%s0 + $0x60] sm:$0xff]
          %v213 = vld [vmem:[%s0 + $0x68] sm:$0xff]
          %v214 = vld [vmem:[%s0 + $0x70] sm:$0xff]
          %v215 = vld [vmem:[%s0 + $0x78] sm:$0xff]
          %v216 = vld [vmem:[%s0 + $0x80] sm:$0xff]
          %v217 = vld [vmem:[%s0 + $0x88] sm:$0xff]
          %v218 = vld [vmem:[%s0 + $0x90] sm:$0xff]
          %v219 = vld [vmem:[%s0 + $0x98] sm:$0xff]
          %v220 = vld [vmem:[%s0 + $0xa0] sm:$0xff]
          %v221 = vld [vmem:[%s0 + $0xa8] sm:$0xff]
          %v222 = vld [vmem:[%s0 + $0xb0] sm:$0xff]
          %v223 = vld [vmem:[%s0 + $0xb8] sm:$0xff]
          %v224 = vld [vmem:[%s0 + $0xc0] sm:$0xff]
          %v225 = vld [vmem:[%s0 + $0xc8] sm:$0xff]
          %v226 = vld [vmem:[%s0 + $0xd0] sm:$0xff]
          %v227 = vld [vmem:[%s0 + $0xd8] sm:$0xff]
          %v228 = vld [vmem:[%s0 + $0xe0] sm:$0xff]
          %v229 = vld [vmem:[%s0 + $0xe8] sm:$0xff]
          %v230 = vld [vmem:[%s0 + $0xf0] sm:$0xff]
          %v231 = vld [vmem:[%s0 + $0xf8] sm:$0xff]
          %v232 = vld [vmem:[%s0 + $0x100] sm:$0xff]
          %v233 = vld [vmem:[%s0 + $0x108] sm:$0xff]
          %v234 = vld [vmem:[%s0 + $0x110] sm:$0xff]
          %v235 = vld [vmem:[%s0 + $0x118] sm:$0xff]
          %v236 = vld [vmem:[%s0 + $0x120] sm:$0xff]
          %v237 = vld [vmem:[%s0 + $0x128] sm:$0xff]
          %v238 = vld [vmem:[%s0 + $0x130] sm:$0xff]
          %v239 = vld [vmem:[%s0 + $0x138] sm:$0xff]
          %v240 = vld [vmem:[%s0 + $0x140] sm:$0xff]
          %v241 = vld [vmem:[%s0 + $0x148] sm:$0xff]
          %v242 = vld [vmem:[%s0 + $0x150] sm:$0xff]
          %v243 = vld [vmem:[%s0 + $0x158] sm:$0xff]
          %v244 = vld [vmem:[%s0 + $0x160] sm:$0xff]
          %v245 = vld [vmem:[%s0 + $0x168] sm:$0xff]
          %v246 = vld [vmem:[%s0 + $0x170] sm:$0xff]
          %v247 = vld [vmem:[%s0 + $0x178] sm:$0xff]
          %v248 = vld [vmem:[%s0 + $0x180] sm:$0xff]
          %v249 = vld [vmem:[%s0 + $0x188] sm:$0xff]
          %v250 = vld [vmem:[%s0 + $0x190] sm:$0xff]
          %v251 = vld [vmem:[%s0 + $0x198] sm:$0xff]
          %v252 = vld [vmem:[%s0 + $0x1a0] sm:$0xff]
          %v253 = vld [vmem:[%s0 + $0x1a8] sm:$0xff]
          %v254 = vld [vmem:[%s0 + $0x1b0] sm:$0xff]
          %v255 = vld [vmem:[%s0 + $0x1b8] sm:$0xff]
          %v256 = vld [vmem:[%s0 + $0x1c0] sm:$0xff]
          %v257 = vld [vmem:[%s0 + $0x1c8] sm:$0xff]
          %v258 = vld [vmem:[%s0 + $0x1d0] sm:$0xff]
          %v259 = vld [vmem:[%s0 + $0x1d8] sm:$0xff]
          %v260 = vld [vmem:[%s0 + $0x1e0] sm:$0xff]
          %v261 = vld [vmem:[%s0 + $0x1e8] sm:$0xff]
          %v262 = vld [vmem:[%s0 + $0x1f0] sm:$0xff]
          %v263 = vld [vmem:[%s0 + $0x1f8] sm:$0xff]
          %v264 = vld [vmem:[%s0 + $0x200] sm:$0xff]
          %v265 = vld [vmem:[%s0 + $0x208] sm:$0xff]
          %v266 = vld [vmem:[%s0 + $0x210] sm:$0xff]
          %v267 = vld [vmem:[%s0 + $0x218] sm:$0xff]
          %v268 = vld [vmem:[%s0 + $0x220] sm:$0xff]
          %v269 = vld [vmem:[%s0 + $0x228] sm:$0xff]
          %v270 = vld [vmem:[%s0 + $0x230] sm:$0xff]
          %v271 = vld [vmem:[%s0 + $0x238] sm:$0xff]
          %v272 = vld [vmem:[%s0 + $0x240] sm:$0xff]
          %v273 = vld [vmem:[%s0 + $0x248] sm:$0xff]
          %v274 = vld [vmem:[%s0 + $0x250] sm:$0xff]
          %v275 = vld [vmem:[%s0 + $0x258] sm:$0xff]
          %v276 = vld [vmem:[%s0 + $0x260] sm:$0xff]
          %v277 = vld [vmem:[%s0 + $0x268] sm:$0xff]
          %v278 = vld [vmem:[%s0 + $0x270] sm:$0xff]
          %v279 = vld [vmem:[%s0 + $0x278] sm:$0xff]
          %v280 = vld [vmem:[%s0 + $0x280] sm:$0xff]
          %v281 = vld [vmem:[%s0 + $0x288] sm:$0xff]
          %v282 = vld [vmem:[%s0 + $0x290] sm:$0xff]
          %v283 = vld [vmem:[%s0 + $0x298] sm:$0xff]
          %v284 = vld [vmem:[%s0 + $0x2a0] sm:$0xff]
          %v285 = vld [vmem:[%s0 + $0x2a8] sm:$0xff]
          %v286 = vld [vmem:[%s0 + $0x2b0] sm:$0xff]
          %v287 = vld [vmem:[%s0 + $0x2b8] sm:$0xff]
          %v288 = vld [vmem:[%s0 + $0x2c0] sm:$0xff]
          %v289 = vld [vmem:[%s0 + $0x2c8] sm:$0xff]
          %v290 = vld [vmem:[%s0 + $0x2d0] sm:$0xff]
          %v291 = vld [vmem:[%s0 + $0x2d8] sm:$0xff]
          %v292 = vld [vmem:[%s0 + $0x2e0] sm:$0xff]
          %v293 = vld [vmem:[%s0 + $0x2e8] sm:$0xff]
          %v294 = vld [vmem:[%s0 + $0x2f0] sm:$0xff]
          %v295 = vld [vmem:[%s0 + $0x2f8] sm:$0xff]
          %v296 = vld [vmem:[%s0 + $0x300] sm:$0xff]
          %v297 = vld [vmem:[%s0 + $0x308] sm:$0xff]
          %v298 = vld [vmem:[%s0 + $0x310] sm:$0xff]
          %v299 = vld [vmem:[%s0 + $0x318] sm:$0xff]
          %v300 = vld [vmem:[%s0 + $0x320] sm:$0xff]
          %v301 = vld [vmem:[%s0 + $0x328] sm:$0xff]
          %v302 = vld [vmem:[%s0 + $0x330] sm:$0xff]
          %v303 = vld [vmem:[%s0 + $0x338] sm:$0xff]
          %v304 = vld [vmem:[%s0 + $0x340] sm:$0xff]
          %v305 = vld [vmem:[%s0 + $0x348] sm:$0xff]
          %v306 = vld [vmem:[%s0 + $0x350] sm:$0xff]
          %v307 = vld [vmem:[%s0 + $0x358] sm:$0xff]
          %v308 = vld [vmem:[%s0 + $0x360] sm:$0xff]
          %v309 = vld [vmem:[%s0 + $0x368] sm:$0xff]
          %v310 = vld [vmem:[%s0 + $0x370] sm:$0xff]
          %v311 = vld [vmem:[%s0 + $0x378] sm:$0xff]
          %v312 = vld [vmem:[%s0 + $0x380] sm:$0xff]
          %v313 = vld [vmem:[%s0 + $0x388] sm:$0xff]
          %v314 = vld [vmem:[%s0 + $0x390] sm:$0xff]
          %v315 = vld [vmem:[%s0 + $0x398] sm:$0xff]
          %v316 = vld [vmem:[%s0 + $0x3a0] sm:$0xff]
          %v317 = vld [vmem:[%s0 + $0x3a8] sm:$0xff]
          %v318 = vld [vmem:[%s0 + $0x3b0] sm:$0xff]
          %v319 = vld [vmem:[%s0 + $0x3b8] sm:$0xff]
          %v320 = vld [vmem:[%s0 + $0x3c0] sm:$0xff]
          %v321 = vld [vmem:[%s0 + $0x3c8] sm:$0xff]
          %v322 = vld [vmem:[%s0 + $0x3d0] sm:$0xff]
          %v323 = vld [vmem:[%s0 + $0x3d8] sm:$0xff]
          %v324 = vld [vmem:[%s0 + $0x3e0] sm:$0xff]
          %v325 = vld [vmem:[%s0 + $0x3e8] sm:$0xff]
          %v326 = vld [vmem:[%s0 + $0x3f0] sm:$0xff]
          %v327 = vld [vmem:[%s0 + $0x3f8] sm:$0xff]
          %v328 = vld [vmem:[%s0 + $0x400] sm:$0xff]
          %v329 = vld [vmem:[%s0 + $0x408] sm:$0xff]
          %v330 = vld [vmem:[%s0 + $0x410] sm:$0xff]
          %v331 = vld [vmem:[%s0 + $0x418] sm:$0xff]
          %v332 = vld [vmem:[%s0 + $0x420] sm:$0xff]
          %v333 = vld [vmem:[%s0 + $0x428] sm:$0xff]
          %v334 = vld [vmem:[%s0 + $0x430] sm:$0xff]
          %v335 = vld [vmem:[%s0 + $0x438] sm:$0xff]
          %v336 = vld [vmem:[%s0 + $0x440] sm:$0xff]
          %v337 = vld [vmem:[%s0 + $0x448] sm:$0xff]
          %v338 = vld [vmem:[%s0 + $0x450] sm:$0xff]
          %v339 = vld [vmem:[%s0 + $0x458] sm:$0xff]
          %v340 = vld [vmem:[%s0 + $0x460] sm:$0xff]
          %v341 = vld [vmem:[%s0 + $0x468] sm:$0xff]
          %v342 = vld [vmem:[%s0 + $0x470] sm:$0xff]
          %v343 = vld [vmem:[%s0 + $0x478] sm:$0xff]
          %v344 = vld [vmem:[%s0 + $0x480] sm:$0xff]
          %v345 = vld [vmem:[%s0 + $0x488] sm:$0xff]
          %v346 = vld [vmem:[%s0 + $0x490] sm:$0xff]
          %v347 = vld [vmem:[%s0 + $0x498] sm:$0xff]
          %v348 = vld [vmem:[%s0 + $0x4a0] sm:$0xff]
          %v349 = vld [vmem:[%s0 + $0x4a8] sm:$0xff]
          %v350 = vld [vmem:[%s0 + $0x4b0] sm:$0xff]
          %v351 = vld [vmem:[%s0 + $0x4b8] sm:$0xff]
          %v352 = vld [vmem:[%s0 + $0x4c0] sm:$0xff]
          %v353 = vld [vmem:[%s0 + $0x4c8] sm:$0xff]
          %v354 = vld [vmem:[%s0 + $0x4d0] sm:$0xff]
          %v355 = vld [vmem:[%s0 + $0x4d8] sm:$0xff]
          %v356 = vld [vmem:[%s0 + $0x4e0] sm:$0xff]
          %v357 = vld [vmem:[%s0 + $0x4e8] sm:$0xff]
          %v358 = vld [vmem:[%s0 + $0x4f0] sm:$0xff]
          %v359 = vld [vmem:[%s0 + $0x4f8] sm:$0xff]
          %v360 = vld [vmem:[%s0 + $0x500] sm:$0xff]
          %v361 = vld [vmem:[%s0 + $0x508] sm:$0xff]
          %v362 = vld [vmem:[%s0 + $0x510] sm:$0xff]
          %v363 = vld [vmem:[%s0 + $0x518] sm:$0xff]
          %v364 = vld [vmem:[%s0 + $0x520] sm:$0xff]
          %v365 = vld [vmem:[%s0 + $0x528] sm:$0xff]
          %v366 = vld [vmem:[%s0 + $0x530] sm:$0xff]
          %v367 = vld [vmem:[%s0 + $0x538] sm:$0xff]
          %v368 = vld [vmem:[%s0 + $0x540] sm:$0xff]
          %v369 = vld [vmem:[%s0 + $0x548] sm:$0xff]
          %v370 = vld [vmem:[%s0 + $0x550] sm:$0xff]
          %v371 = vld [vmem:[%s0 + $0x558] sm:$0xff]
          %v372 = vld [vmem:[%s0 + $0x560] sm:$0xff]
          %v373 = vld [vmem:[%s0 + $0x568] sm:$0xff]
          %v374 = vld [vmem:[%s0 + $0x570] sm:$0xff]
          %v375 = vld [vmem:[%s0 + $0x578] sm:$0xff]
          %v376 = vld [vmem:[%s0 + $0x580] sm:$0xff]
          %v377 = vld [vmem:[%s0 + $0x588] sm:$0xff]
          %v378 = vld [vmem:[%s0 + $0x590] sm:$0xff]
          %v379 = vld [vmem:[%s0 + $0x598] sm:$0xff]
          %v380 = vld [vmem:[%s0 + $0x5a0] sm:$0xff]
          %v381 = vld [vmem:[%s0 + $0x5a8] sm:$0xff]
          %v382 = vld [vmem:[%s0 + $0x5b0] sm:$0xff]
          %v383 = vld [vmem:[%s0 + $0x5b8] sm:$0xff]
          %v384 = vld [vmem:[%s0 + $0x5c0] sm:$0xff]
          %v385 = vld [vmem:[%s0 + $0x5c8] sm:$0xff]
          %v386 = vld [vmem:[%s0 + $0x5d0] sm:$0xff]
          %v387 = vld [vmem:[%s0 + $0x5d8] sm:$0xff]
          %v388 = vld [vmem:[%s0 + $0x5e0] sm:$0xff]
          %v389 = vld [vmem:[%s0 + $0x5e8] sm:$0xff]
          %v390 = vld [vmem:[%s0 + $0x5f0] sm:$0xff]
          %v391 = vld [vmem:[%s0 + $0x5f8] sm:$0xff]
          %v392 = vld [vmem:[%s0 + $0x600] sm:$0xff]
          %v393 = vld [vmem:[%s0 + $0x608] sm:$0xff]
          %v394 = vld [vmem:[%s0 + $0x610] sm:$0xff]
          %v395 = vld [vmem:[%s0 + $0x618] sm:$0xff]
          %v396 = vld [vmem:[%s0 + $0x620] sm:$0xff]
          %v397 = vld [vmem:[%s0 + $0x628] sm:$0xff]
          %v398 = vld [vmem:[%s0 + $0x630] sm:$0xff]
          %v399 = vld [vmem:[%s0 + $0x638] sm:$0xff]
          %v400 = vld [vmem:[%s0 + $0x640] sm:$0xff]
          %v401 = vld [vmem:[%s0 + $0x648] sm:$0xff]
          %v402 = vld [vmem:[%s0 + $0x650] sm:$0xff]
          %v403 = vld [vmem:[%s0 + $0x658] sm:$0xff]
          %v404 = vld [vmem:[%s0 + $0x660] sm:$0xff]
          %v405 = vld [vmem:[%s0 + $0x668] sm:$0xff]
          %v406 = vld [vmem:[%s0 + $0x670] sm:$0xff]
          %v407 = vld [vmem:[%s0 + $0x678] sm:$0xff]
          %v408 = vld [vmem:[%s0 + $0x680] sm:$0xff]
          %v409 = vld [vmem:[%s0 + $0x688] sm:$0xff]
          %v410 = vld [vmem:[%s0 + $0x690] sm:$0xff]
          %v411 = vld [vmem:[%s0 + $0x698] sm:$0xff]
          %v412 = vld [vmem:[%s0 + $0x6a0] sm:$0xff]
          %v413 = vld [vmem:[%s0 + $0x6a8] sm:$0xff]
          %v414 = vld [vmem:[%s0 + $0x6b0] sm:$0xff]
          %v415 = vld [vmem:[%s0 + $0x6b8] sm:$0xff]
          %v416 = vld [vmem:[%s0 + $0x6c0] sm:$0xff]
          %v417 = vld [vmem:[%s0 + $0x6c8] sm:$0xff]
          %v418 = vld [vmem:[%s0 + $0x6d0] sm:$0xff]
          %v419 = vld [vmem:[%s0 + $0x6d8] sm:$0xff]
          %v420 = vld [vmem:[%s0 + $0x6e0] sm:$0xff]
          %v421 = vld [vmem:[%s0 + $0x6e8] sm:$0xff]
          %v422 = vld [vmem:[%s0 + $0x6f0] sm:$0xff]
          %v423 = vld [vmem:[%s0 + $0x6f8] sm:$0xff]
          %v424 = vld [vmem:[%s0 + $0x700] sm:$0xff]
          %v425 = vld [vmem:[%s0 + $0x708] sm:$0xff]
          %v426 = vld [vmem:[%s0 + $0x710] sm:$0xff]
          %v427 = vld [vmem:[%s0 + $0x718] sm:$0xff]
          %v428 = vld [vmem:[%s0 + $0x720] sm:$0xff]
          %v429 = vld [vmem:[%s0 + $0x728] sm:$0xff]
          %v430 = vld [vmem:[%s0 + $0x730] sm:$0xff]
          %v431 = vld [vmem:[%s0 + $0x738] sm:$0xff]
          %v432 = vld [vmem:[%s0 + $0x740] sm:$0xff]
          %v433 = vld [vmem:[%s0 + $0x748] sm:$0xff]
          %v434 = vld [vmem:[%s0 + $0x750] sm:$0xff]
          %v435 = vld [vmem:[%s0 + $0x758] sm:$0xff]
          %v436 = vld [vmem:[%s0 + $0x760] sm:$0xff]
          %v437 = vld [vmem:[%s0 + $0x768] sm:$0xff]
          %v438 = vld [vmem:[%s0 + $0x770] sm:$0xff]
          %v439 = vld [vmem:[%s0 + $0x778] sm:$0xff]
          %v440 = vld [vmem:[%s0 + $0x780] sm:$0xff]
          %v441 = vld [vmem:[%s0 + $0x788] sm:$0xff]
          %v442 = vld [vmem:[%s0 + $0x790] sm:$0xff]
          %v443 = vld [vmem:[%s0 + $0x798] sm:$0xff]
          %v444 = vld [vmem:[%s0 + $0x7a0] sm:$0xff]
          %v445 = vld [vmem:[%s0 + $0x7a8] sm:$0xff]
          %v446 = vld [vmem:[%s0 + $0x7b0] sm:$0xff]
          %v447 = vld [vmem:[%s0 + $0x7b8] sm:$0xff]
          %v448 = vld [vmem:[%s0 + $0x7c0] sm:$0xff]
          %v449 = vld [vmem:[%s0 + $0x7c8] sm:$0xff]
          %v450 = vld [vmem:[%s0 + $0x7d0] sm:$0xff]
          %v451 = vld [vmem:[%s0 + $0x7d8] sm:$0xff]
          %v452 = vld [vmem:[%s0 + $0x7e0] sm:$0xff]
          %v453 = vld [vmem:[%s0 + $0x7e8] sm:$0xff]
          %v454 = vld [vmem:[%s0 + $0x7f0] sm:$0xff]
          %v455 = vld [vmem:[%s0 + $0x7f8] sm:$0xff]
          %v456 = vld [vmem:[%s1] sm:$0xff]
          %v457 = vld [vmem:[%s1 + $0x8] sm:$0xff]
          %v458 = vld [vmem:[%s1 + $0x10] sm:$0xff]
          %v459 = vld [vmem:[%s1 + $0x18] sm:$0xff]
          %v460 = vld [vmem:[%s1 + $0x20] sm:$0xff]
          %v461 = vld [vmem:[%s1 + $0x28] sm:$0xff]
          %v462 = vld [vmem:[%s1 + $0x30] sm:$0xff]
          %v463 = vld [vmem:[%s1 + $0x38] sm:$0xff]
          %v464 = vld [vmem:[%s1 + $0x40] sm:$0xff]
          %v465 = vld [vmem:[%s1 + $0x48] sm:$0xff]
          %v466 = vld [vmem:[%s1 + $0x50] sm:$0xff]
          %v467 = vld [vmem:[%s1 + $0x58] sm:$0xff]
          %v468 = vld [vmem:[%s1 + $0x60] sm:$0xff]
          %v469 = vld [vmem:[%s1 + $0x68] sm:$0xff]
          %v470 = vld [vmem:[%s1 + $0x70] sm:$0xff]
          %v471 = vld [vmem:[%s1 + $0x78] sm:$0xff]
          %v472 = vld [vmem:[%s1 + $0x80] sm:$0xff]
          %v473 = vld [vmem:[%s1 + $0x88] sm:$0xff]
          %v474 = vld [vmem:[%s1 + $0x90] sm:$0xff]
          %v475 = vld [vmem:[%s1 + $0x98] sm:$0xff]
          %v476 = vld [vmem:[%s1 + $0xa0] sm:$0xff]
          %v477 = vld [vmem:[%s1 + $0xa8] sm:$0xff]
          %v478 = vld [vmem:[%s1 + $0xb0] sm:$0xff]
          %v479 = vld [vmem:[%s1 + $0xb8] sm:$0xff]
          %v480 = vld [vmem:[%s1 + $0xc0] sm:$0xff]
          %v481 = vld [vmem:[%s1 + $0xc8] sm:$0xff]
          %v482 = vld [vmem:[%s1 + $0xd0] sm:$0xff]
          %v483 = vld [vmem:[%s1 + $0xd8] sm:$0xff]
          %v484 = vld [vmem:[%s1 + $0xe0] sm:$0xff]
          %v485 = vld [vmem:[%s1 + $0xe8] sm:$0xff]
          %v486 = vld [vmem:[%s1 + $0xf0] sm:$0xff]
          %v487 = vld [vmem:[%s1 + $0xf8] sm:$0xff]
          %v488 = vld [vmem:[%s1 + $0x100] sm:$0xff]
          %v489 = vld [vmem:[%s1 + $0x108] sm:$0xff]
          %v490 = vld [vmem:[%s1 + $0x110] sm:$0xff]
          %v491 = vld [vmem:[%s1 + $0x118] sm:$0xff]
          %v492 = vld [vmem:[%s1 + $0x120] sm:$0xff]
          %v493 = vld [vmem:[%s1 + $0x128] sm:$0xff]
          %v494 = vld [vmem:[%s1 + $0x130] sm:$0xff]
          %v495 = vld [vmem:[%s1 + $0x138] sm:$0xff]
          %v496 = vld [vmem:[%s1 + $0x140] sm:$0xff]
          %v497 = vld [vmem:[%s1 + $0x148] sm:$0xff]
          %v498 = vld [vmem:[%s1 + $0x150] sm:$0xff]
          %v499 = vld [vmem:[%s1 + $0x158] sm:$0xff]
          %v500 = vld [vmem:[%s1 + $0x160] sm:$0xff]
          %v501 = vld [vmem:[%s1 + $0x168] sm:$0xff]
          %v502 = vld [vmem:[%s1 + $0x170] sm:$0xff]
          %v503 = vld [vmem:[%s1 + $0x178] sm:$0xff]
          %v504 = vld [vmem:[%s1 + $0x180] sm:$0xff]
          %v505 = vld [vmem:[%s1 + $0x188] sm:$0xff]
          %v506 = vld [vmem:[%s1 + $0x190] sm:$0xff]
          %v507 = vld [vmem:[%s1 + $0x198] sm:$0xff]
          %v508 = vld [vmem:[%s1 + $0x1a0] sm:$0xff]
          %v509 = vld [vmem:[%s1 + $0x1a8] sm:$0xff]
          %v510 = vld [vmem:[%s1 + $0x1b0] sm:$0xff]
          %v511 = vld [vmem:[%s1 + $0x1b8] sm:$0xff]
          %v512 = vld [vmem:[%s1 + $0x1c0] sm:$0xff]
          %v513 = vld [vmem:[%s1 + $0x1c8] sm:$0xff]
          %v514 = vld [vmem:[%s1 + $0x1d0] sm:$0xff]
          %v515 = vld [vmem:[%s1 + $0x1d8] sm:$0xff]
          %v516 = vld [vmem:[%s1 + $0x1e0] sm:$0xff]
          %v517 = vld [vmem:[%s1 + $0x1e8] sm:$0xff]
          %v518 = vld [vmem:[%s1 + $0x1f0] sm:$0xff]
          %v519 = vld [vmem:[%s1 + $0x1f8] sm:$0xff]
          %v520 = vld [vmem:[%s1 + $0x200] sm:$0xff]
          %v521 = vld [vmem:[%s1 + $0x208] sm:$0xff]
          %v522 = vld [vmem:[%s1 + $0x210] sm:$0xff]
          %v523 = vld [vmem:[%s1 + $0x218] sm:$0xff]
          %v524 = vld [vmem:[%s1 + $0x220] sm:$0xff]
          %v525 = vld [vmem:[%s1 + $0x228] sm:$0xff]
          %v526 = vld [vmem:[%s1 + $0x230] sm:$0xff]
          %v527 = vld [vmem:[%s1 + $0x238] sm:$0xff]
          %v528 = vld [vmem:[%s1 + $0x240] sm:$0xff]
          %v529 = vld [vmem:[%s1 + $0x248] sm:$0xff]
          %v530 = vld [vmem:[%s1 + $0x250] sm:$0xff]
          %v531 = vld [vmem:[%s1 + $0x258] sm:$0xff]
          %v532 = vld [vmem:[%s1 + $0x260] sm:$0xff]
          %v533 = vld [vmem:[%s1 + $0x268] sm:$0xff]
          %v534 = vld [vmem:[%s1 + $0x270] sm:$0xff]
          %v535 = vld [vmem:[%s1 + $0x278] sm:$0xff]
          %v536 = vld [vmem:[%s1 + $0x280] sm:$0xff]
          %v537 = vld [vmem:[%s1 + $0x288] sm:$0xff]
          %v538 = vld [vmem:[%s1 + $0x290] sm:$0xff]
          %v539 = vld [vmem:[%s1 + $0x298] sm:$0xff]
          %v540 = vld [vmem:[%s1 + $0x2a0] sm:$0xff]
          %v541 = vld [vmem:[%s1 + $0x2a8] sm:$0xff]
          %v542 = vld [vmem:[%s1 + $0x2b0] sm:$0xff]
          %v543 = vld [vmem:[%s1 + $0x2b8] sm:$0xff]
          %v544 = vld [vmem:[%s1 + $0x2c0] sm:$0xff]
          %v545 = vld [vmem:[%s1 + $0x2c8] sm:$0xff]
          %v546 = vld [vmem:[%s1 + $0x2d0] sm:$0xff]
          %v547 = vld [vmem:[%s1 + $0x2d8] sm:$0xff]
          %v548 = vld [vmem:[%s1 + $0x2e0] sm:$0xff]
          %v549 = vld [vmem:[%s1 + $0x2e8] sm:$0xff]
          %v550 = vld [vmem:[%s1 + $0x2f0] sm:$0xff]
          %v551 = vld [vmem:[%s1 + $0x2f8] sm:$0xff]
          %v552 = vld [vmem:[%s1 + $0x300] sm:$0xff]
          %v553 = vld [vmem:[%s1 + $0x308] sm:$0xff]
          %v554 = vld [vmem:[%s1 + $0x310] sm:$0xff]
          %v555 = vld [vmem:[%s1 + $0x318] sm:$0xff]
          %v556 = vld [vmem:[%s1 + $0x320] sm:$0xff]
          %v557 = vld [vmem:[%s1 + $0x328] sm:$0xff]
          %v558 = vld [vmem:[%s1 + $0x330] sm:$0xff]
          %v559 = vld [vmem:[%s1 + $0x338] sm:$0xff]
          %v560 = vld [vmem:[%s1 + $0x340] sm:$0xff]
          %v561 = vld [vmem:[%s1 + $0x348] sm:$0xff]
          %v562 = vld [vmem:[%s1 + $0x350] sm:$0xff]
          %v563 = vld [vmem:[%s1 + $0x358] sm:$0xff]
          %v564 = vld [vmem:[%s1 + $0x360] sm:$0xff]
          %v565 = vld [vmem:[%s1 + $0x368] sm:$0xff]
          %v566 = vld [vmem:[%s1 + $0x370] sm:$0xff]
          %v567 = vld [vmem:[%s1 + $0x378] sm:$0xff]
          %v568 = vld [vmem:[%s1 + $0x380] sm:$0xff]
          %v569 = vld [vmem:[%s1 + $0x388] sm:$0xff]
          %v570 = vld [vmem:[%s1 + $0x390] sm:$0xff]
          %v571 = vld [vmem:[%s1 + $0x398] sm:$0xff]
          %v572 = vld [vmem:[%s1 + $0x3a0] sm:$0xff]
          %v573 = vld [vmem:[%s1 + $0x3a8] sm:$0xff]
          %v574 = vld [vmem:[%s1 + $0x3b0] sm:$0xff]
          %v575 = vld [vmem:[%s1 + $0x3b8] sm:$0xff]
          %v576 = vld [vmem:[%s1 + $0x3c0] sm:$0xff]
          %v577 = vld [vmem:[%s1 + $0x3c8] sm:$0xff]
          %v578 = vld [vmem:[%s1 + $0x3d0] sm:$0xff]
          %v579 = vld [vmem:[%s1 + $0x3d8] sm:$0xff]
          %v580 = vld [vmem:[%s1 + $0x3e0] sm:$0xff]
          %v581 = vld [vmem:[%s1 + $0x3e8] sm:$0xff]
          %v582 = vld [vmem:[%s1 + $0x3f0] sm:$0xff]
          %v583 = vld [vmem:[%s1 + $0x3f8] sm:$0xff]
          %v584 = vld [vmem:[%s1 + $0x400] sm:$0xff]
          %v585 = vld [vmem:[%s1 + $0x408] sm:$0xff]
          %v586 = vld [vmem:[%s1 + $0x410] sm:$0xff]
          %v587 = vld [vmem:[%s1 + $0x418] sm:$0xff]
          %v588 = vld [vmem:[%s1 + $0x420] sm:$0xff]
          %v589 = vld [vmem:[%s1 + $0x428] sm:$0xff]
          %v590 = vld [vmem:[%s1 + $0x430] sm:$0xff]
          %v591 = vld [vmem:[%s1 + $0x438] sm:$0xff]
          %v592 = vld [vmem:[%s1 + $0x440] sm:$0xff]
          %v593 = vld [vmem:[%s1 + $0x448] sm:$0xff]
          %v594 = vld [vmem:[%s1 + $0x450] sm:$0xff]
          %v595 = vld [vmem:[%s1 + $0x458] sm:$0xff]
          %v596 = vld [vmem:[%s1 + $0x460] sm:$0xff]
          %v597 = vld [vmem:[%s1 + $0x468] sm:$0xff]
          %v598 = vld [vmem:[%s1 + $0x470] sm:$0xff]
          %v599 = vld [vmem:[%s1 + $0x478] sm:$0xff]
          %v600 = vld [vmem:[%s1 + $0x480] sm:$0xff]
          %v601 = vld [vmem:[%s1 + $0x488] sm:$0xff]
          %v602 = vld [vmem:[%s1 + $0x490] sm:$0xff]
          %v603 = vld [vmem:[%s1 + $0x498] sm:$0xff]
          %v604 = vld [vmem:[%s1 + $0x4a0] sm:$0xff]
          %v605 = vld [vmem:[%s1 + $0x4a8] sm:$0xff]
          %v606 = vld [vmem:[%s1 + $0x4b0] sm:$0xff]
          %v607 = vld [vmem:[%s1 + $0x4b8] sm:$0xff]
          %v608 = vld [vmem:[%s1 + $0x4c0] sm:$0xff]
          %v609 = vld [vmem:[%s1 + $0x4c8] sm:$0xff]
          %v610 = vld [vmem:[%s1 + $0x4d0] sm:$0xff]
          %v611 = vld [vmem:[%s1 + $0x4d8] sm:$0xff]
          %v612 = vld [vmem:[%s1 + $0x4e0] sm:$0xff]
          %v613 = vld [vmem:[%s1 + $0x4e8] sm:$0xff]
          %v614 = vld [vmem:[%s1 + $0x4f0] sm:$0xff]
          %v615 = vld [vmem:[%s1 + $0x4f8] sm:$0xff]
          %v616 = vld [vmem:[%s1 + $0x500] sm:$0xff]
          %v617 = vld [vmem:[%s1 + $0x508] sm:$0xff]
          %v618 = vld [vmem:[%s1 + $0x510] sm:$0xff]
          %v619 = vld [vmem:[%s1 + $0x518] sm:$0xff]
          %v620 = vld [vmem:[%s1 + $0x520] sm:$0xff]
          %v621 = vld [vmem:[%s1 + $0x528] sm:$0xff]
          %v622 = vld [vmem:[%s1 + $0x530] sm:$0xff]
          %v623 = vld [vmem:[%s1 + $0x538] sm:$0xff]
          %v624 = vld [vmem:[%s1 + $0x540] sm:$0xff]
          %v625 = vld [vmem:[%s1 + $0x548] sm:$0xff]
          %v626 = vld [vmem:[%s1 + $0x550] sm:$0xff]
          %v627 = vld [vmem:[%s1 + $0x558] sm:$0xff]
          %v628 = vld [vmem:[%s1 + $0x560] sm:$0xff]
          %v629 = vld [vmem:[%s1 + $0x568] sm:$0xff]
          %v630 = vld [vmem:[%s1 + $0x570] sm:$0xff]
          %v631 = vld [vmem:[%s1 + $0x578] sm:$0xff]
          %v632 = vld [vmem:[%s1 + $0x580] sm:$0xff]
          %v633 = vld [vmem:[%s1 + $0x588] sm:$0xff]
          %v634 = vld [vmem:[%s1 + $0x590] sm:$0xff]
          %v635 = vld [vmem:[%s1 + $0x598] sm:$0xff]
          %v636 = vld [vmem:[%s1 + $0x5a0] sm:$0xff]
          %v637 = vld [vmem:[%s1 + $0x5a8] sm:$0xff]
          %v638 = vld [vmem:[%s1 + $0x5b0] sm:$0xff]
          %v639 = vld [vmem:[%s1 + $0x5b8] sm:$0xff]
          %v640 = vld [vmem:[%s1 + $0x5c0] sm:$0xff]
          %v641 = vld [vmem:[%s1 + $0x5c8] sm:$0xff]
          %v642 = vld [vmem:[%s1 + $0x5d0] sm:$0xff]
          %v643 = vld [vmem:[%s1 + $0x5d8] sm:$0xff]
          %v644 = vld [vmem:[%s1 + $0x5e0] sm:$0xff]
          %v645 = vld [vmem:[%s1 + $0x5e8] sm:$0xff]
          %v646 = vld [vmem:[%s1 + $0x5f0] sm:$0xff]
          %v647 = vld [vmem:[%s1 + $0x5f8] sm:$0xff]
          %v648 = vld [vmem:[%s1 + $0x600] sm:$0xff]
          %v649 = vld [vmem:[%s1 + $0x608] sm:$0xff]
          %v650 = vld [vmem:[%s1 + $0x610] sm:$0xff]
          %v651 = vld [vmem:[%s1 + $0x618] sm:$0xff]
          %v652 = vld [vmem:[%s1 + $0x620] sm:$0xff]
          %v653 = vld [vmem:[%s1 + $0x628] sm:$0xff]
          %v654 = vld [vmem:[%s1 + $0x630] sm:$0xff]
          %v655 = vld [vmem:[%s1 + $0x638] sm:$0xff]
          %v656 = vld [vmem:[%s1 + $0x640] sm:$0xff]
          %v657 = vld [vmem:[%s1 + $0x648] sm:$0xff]
          %v658 = vld [vmem:[%s1 + $0x650] sm:$0xff]
          %v659 = vld [vmem:[%s1 + $0x658] sm:$0xff]
          %v660 = vld [vmem:[%s1 + $0x660] sm:$0xff]
          %v661 = vld [vmem:[%s1 + $0x668] sm:$0xff]
          %v662 = vld [vmem:[%s1 + $0x670] sm:$0xff]
          %v663 = vld [vmem:[%s1 + $0x678] sm:$0xff]
          %v664 = vld [vmem:[%s1 + $0x680] sm:$0xff]
          %v665 = vld [vmem:[%s1 + $0x688] sm:$0xff]
          %v666 = vld [vmem:[%s1 + $0x690] sm:$0xff]
          %v667 = vld [vmem:[%s1 + $0x698] sm:$0xff]
          %v668 = vld [vmem:[%s1 + $0x6a0] sm:$0xff]
          %v669 = vld [vmem:[%s1 + $0x6a8] sm:$0xff]
          %v670 = vld [vmem:[%s1 + $0x6b0] sm:$0xff]
          %v671 = vld [vmem:[%s1 + $0x6b8] sm:$0xff]
          %v672 = vld [vmem:[%s1 + $0x6c0] sm:$0xff]
          %v673 = vld [vmem:[%s1 + $0x6c8] sm:$0xff]
          %v674 = vld [vmem:[%s1 + $0x6d0] sm:$0xff]
          %v675 = vld [vmem:[%s1 + $0x6d8] sm:$0xff]
          %v676 = vld [vmem:[%s1 + $0x6e0] sm:$0xff]
          %v677 = vld [vmem:[%s1 + $0x6e8] sm:$0xff]
          %v678 = vld [vmem:[%s1 + $0x6f0] sm:$0xff]
          %v679 = vld [vmem:[%s1 + $0x6f8] sm:$0xff]
          %v680 = vld [vmem:[%s1 + $0x700] sm:$0xff]
          %v681 = vld [vmem:[%s1 + $0x708] sm:$0xff]
          %v682 = vld [vmem:[%s1 + $0x710] sm:$0xff]
          %v683 = vld [vmem:[%s1 + $0x718] sm:$0xff]
          %v684 = vld [vmem:[%s1 + $0x720] sm:$0xff]
          %v685 = vld [vmem:[%s1 + $0x728] sm:$0xff]
          %v686 = vld [vmem:[%s1 + $0x730] sm:$0xff]
          %v687 = vld [vmem:[%s1 + $0x738] sm:$0xff]
          %v688 = vld [vmem:[%s1 + $0x740] sm:$0xff]
          %v689 = vld [vmem:[%s1 + $0x748] sm:$0xff]
          %v690 = vld [vmem:[%s1 + $0x750] sm:$0xff]
          %v691 = vld [vmem:[%s1 + $0x758] sm:$0xff]
          %v692 = vld [vmem:[%s1 + $0x760] sm:$0xff]
          %v693 = vld [vmem:[%s1 + $0x768] sm:$0xff]
          %v694 = vld [vmem:[%s1 + $0x770] sm:$0xff]
          %v695 = vld [vmem:[%s1 + $0x778] sm:$0xff]
          %v696 = vld [vmem:[%s1 + $0x780] sm:$0xff]
          %v697 = vld [vmem:[%s1 + $0x788] sm:$0xff]
          %v698 = vld [vmem:[%s1 + $0x790] sm:$0xff]
          %v699 = vld [vmem:[%s1 + $0x798] sm:$0xff]
          %v700 = vld [vmem:[%s1 + $0x7a0] sm:$0xff]
          %v701 = vld [vmem:[%s1 + $0x7a8] sm:$0xff]
          %v702 = vld [vmem:[%s1 + $0x7b0] sm:$0xff]
          %v703 = vld [vmem:[%s1 + $0x7b8] sm:$0xff]
          %v704 = vld [vmem:[%s1 + $0x7c0] sm:$0xff]
          %v705 = vld [vmem:[%s1 + $0x7c8] sm:$0xff]
          %v706 = vld [vmem:[%s1 + $0x7d0] sm:$0xff]
          %v707 = vld [vmem:[%s1 + $0x7d8] sm:$0xff]
          %v708 = vld [vmem:[%s1 + $0x7e0] sm:$0xff]
          %v709 = vld [vmem:[%s1 + $0x7e8] sm:$0xff]
          %v710 = vld [vmem:[%s1 + $0x7f0] sm:$0xff]
          %v711 = vld [vmem:[%s1 + $0x7f8] sm:$0xff]
          %v712 = vadd.f32 %v200, %v456
          %v713 = vadd.f32 %v201, %v457
          %v714 = vadd.f32 %v202, %v458
          %v715 = vadd.f32 %v203, %v459
          %v716 = vadd.f32 %v204, %v460
          %v717 = vadd.f32 %v205, %v461
          %v718 = vadd.f32 %v206, %v462
          %v719 = vadd.f32 %v207, %v463
          %v720 = vadd.f32 %v208, %v464
          %v721 = vadd.f32 %v209, %v465
          %v722 = vadd.f32 %v210, %v466
          %v723 = vadd.f32 %v211, %v467
          %v724 = vadd.f32 %v212, %v468
          %v725 = vadd.f32 %v213, %v469
          %v726 = vadd.f32 %v214, %v470
          %v727 = vadd.f32 %v215, %v471
          %v728 = vadd.f32 %v216, %v472
          %v729 = vadd.f32 %v217, %v473
          %v730 = vadd.f32 %v218, %v474
          %v731 = vadd.f32 %v219, %v475
          %v732 = vadd.f32 %v220, %v476
          %v733 = vadd.f32 %v221, %v477
          %v734 = vadd.f32 %v222, %v478
          %v735 = vadd.f32 %v223, %v479
          %v736 = vadd.f32 %v224, %v480
          %v737 = vadd.f32 %v225, %v481
          %v738 = vadd.f32 %v226, %v482
          %v739 = vadd.f32 %v227, %v483
          %v740 = vadd.f32 %v228, %v484
          %v741 = vadd.f32 %v229, %v485
          %v742 = vadd.f32 %v230, %v486
          %v743 = vadd.f32 %v231, %v487
          %v744 = vadd.f32 %v232, %v488
          %v745 = vadd.f32 %v233, %v489
          %v746 = vadd.f32 %v234, %v490
          %v747 = vadd.f32 %v235, %v491
          %v748 = vadd.f32 %v236, %v492
          %v749 = vadd.f32 %v237, %v493
          %v750 = vadd.f32 %v238, %v494
          %v751 = vadd.f32 %v239, %v495
          %v752 = vadd.f32 %v240, %v496
          %v753 = vadd.f32 %v241, %v497
          %v754 = vadd.f32 %v242, %v498
          %v755 = vadd.f32 %v243, %v499
          %v756 = vadd.f32 %v244, %v500
          %v757 = vadd.f32 %v245, %v501
          %v758 = vadd.f32 %v246, %v502
          %v759 = vadd.f32 %v247, %v503
          %v760 = vadd.f32 %v248, %v504
          %v761 = vadd.f32 %v249, %v505
          %v762 = vadd.f32 %v250, %v506
          %v763 = vadd.f32 %v251, %v507
          %v764 = vadd.f32 %v252, %v508
          %v765 = vadd.f32 %v253, %v509
          %v766 = vadd.f32 %v254, %v510
          %v767 = vadd.f32 %v255, %v511
          %v768 = vadd.f32 %v256, %v512
          %v769 = vadd.f32 %v257, %v513
          %v770 = vadd.f32 %v258, %v514
          %v771 = vadd.f32 %v259, %v515
          %v772 = vadd.f32 %v260, %v516
          %v773 = vadd.f32 %v261, %v517
          %v774 = vadd.f32 %v262, %v518
          %v775 = vadd.f32 %v263, %v519
          %v776 = vadd.f32 %v264, %v520
          %v777 = vadd.f32 %v265, %v521
          %v778 = vadd.f32 %v266, %v522
          %v779 = vadd.f32 %v267, %v523
          %v780 = vadd.f32 %v268, %v524
          %v781 = vadd.f32 %v269, %v525
          %v782 = vadd.f32 %v270, %v526
          %v783 = vadd.f32 %v271, %v527
          %v784 = vadd.f32 %v272, %v528
          %v785 = vadd.f32 %v273, %v529
          %v786 = vadd.f32 %v274, %v530
          %v787 = vadd.f32 %v275, %v531
          %v788 = vadd.f32 %v276, %v532
          %v789 = vadd.f32 %v277, %v533
          %v790 = vadd.f32 %v278, %v534
          %v791 = vadd.f32 %v279, %v535
          %v792 = vadd.f32 %v280, %v536
          %v793 = vadd.f32 %v281, %v537
          %v794 = vadd.f32 %v282, %v538
          %v795 = vadd.f32 %v283, %v539
          %v796 = vadd.f32 %v284, %v540
          %v797 = vadd.f32 %v285, %v541
          %v798 = vadd.f32 %v286, %v542
          %v799 = vadd.f32 %v287, %v543
          %v800 = vadd.f32 %v288, %v544
          %v801 = vadd.f32 %v289, %v545
          %v802 = vadd.f32 %v290, %v546
          %v803 = vadd.f32 %v291, %v547
          %v804 = vadd.f32 %v292, %v548
          %v805 = vadd.f32 %v293, %v549
          %v806 = vadd.f32 %v294, %v550
          %v807 = vadd.f32 %v295, %v551
          %v808 = vadd.f32 %v296, %v552
          %v809 = vadd.f32 %v297, %v553
          %v810 = vadd.f32 %v298, %v554
          %v811 = vadd.f32 %v299, %v555
          %v812 = vadd.f32 %v300, %v556
          %v813 = vadd.f32 %v301, %v557
          %v814 = vadd.f32 %v302, %v558
          %v815 = vadd.f32 %v303, %v559
          %v816 = vadd.f32 %v304, %v560
          %v817 = vadd.f32 %v305, %v561
          %v818 = vadd.f32 %v306, %v562
          %v819 = vadd.f32 %v307, %v563
          %v820 = vadd.f32 %v308, %v564
          %v821 = vadd.f32 %v309, %v565
          %v822 = vadd.f32 %v310, %v566
          %v823 = vadd.f32 %v311, %v567
          %v824 = vadd.f32 %v312, %v568
          %v825 = vadd.f32 %v313, %v569
          %v826 = vadd.f32 %v314, %v570
          %v827 = vadd.f32 %v315, %v571
          %v828 = vadd.f32 %v316, %v572
          %v829 = vadd.f32 %v317, %v573
          %v830 = vadd.f32 %v318, %v574
          %v831 = vadd.f32 %v319, %v575
          %v832 = vadd.f32 %v320, %v576
          %v833 = vadd.f32 %v321, %v577
          %v834 = vadd.f32 %v322, %v578
          %v835 = vadd.f32 %v323, %v579
          %v836 = vadd.f32 %v324, %v580
          %v837 = vadd.f32 %v325, %v581
          %v838 = vadd.f32 %v326, %v582
          %v839 = vadd.f32 %v327, %v583
          %v840 = vadd.f32 %v328, %v584
          %v841 = vadd.f32 %v329, %v585
          %v842 = vadd.f32 %v330, %v586
          %v843 = vadd.f32 %v331, %v587
          %v844 = vadd.f32 %v332, %v588
          %v845 = vadd.f32 %v333, %v589
          %v846 = vadd.f32 %v334, %v590
          %v847 = vadd.f32 %v335, %v591
          %v848 = vadd.f32 %v336, %v592
          %v849 = vadd.f32 %v337, %v593
          %v850 = vadd.f32 %v338, %v594
          %v851 = vadd.f32 %v339, %v595
          %v852 = vadd.f32 %v340, %v596
          %v853 = vadd.f32 %v341, %v597
          %v854 = vadd.f32 %v342, %v598
          %v855 = vadd.f32 %v343, %v599
          %v856 = vadd.f32 %v344, %v600
          %v857 = vadd.f32 %v345, %v601
          %v858 = vadd.f32 %v346, %v602
          %v859 = vadd.f32 %v347, %v603
          %v860 = vadd.f32 %v348, %v604
          %v861 = vadd.f32 %v349, %v605
          %v862 = vadd.f32 %v350, %v606
          %v863 = vadd.f32 %v351, %v607
          %v864 = vadd.f32 %v352, %v608
          %v865 = vadd.f32 %v353, %v609
          %v866 = vadd.f32 %v354, %v610
          %v867 = vadd.f32 %v355, %v611
          %v868 = vadd.f32 %v356, %v612
          %v869 = vadd.f32 %v357, %v613
          %v870 = vadd.f32 %v358, %v614
          %v871 = vadd.f32 %v359, %v615
          %v872 = vadd.f32 %v360, %v616
          %v873 = vadd.f32 %v361, %v617
          %v874 = vadd.f32 %v362, %v618
          %v875 = vadd.f32 %v363, %v619
          %v876 = vadd.f32 %v364, %v620
          %v877 = vadd.f32 %v365, %v621
          %v878 = vadd.f32 %v366, %v622
          %v879 = vadd.f32 %v367, %v623
          %v880 = vadd.f32 %v368, %v624
          %v881 = vadd.f32 %v369, %v625
          %v882 = vadd.f32 %v370, %v626
          %v883 = vadd.f32 %v371, %v627
          %v884 = vadd.f32 %v372, %v628
          %v885 = vadd.f32 %v373, %v629
          %v886 = vadd.f32 %v374, %v630
          %v887 = vadd.f32 %v375, %v631
          %v888 = vadd.f32 %v376, %v632
          %v889 = vadd.f32 %v377, %v633
          %v890 = vadd.f32 %v378, %v634
          %v891 = vadd.f32 %v379, %v635
          %v892 = vadd.f32 %v380, %v636
          %v893 = vadd.f32 %v381, %v637
          %v894 = vadd.f32 %v382, %v638
          %v895 = vadd.f32 %v383, %v639
          %v896 = vadd.f32 %v384, %v640
          %v897 = vadd.f32 %v385, %v641
          %v898 = vadd.f32 %v386, %v642
          %v899 = vadd.f32 %v387, %v643
          %v900 = vadd.f32 %v388, %v644
          %v901 = vadd.f32 %v389, %v645
          %v902 = vadd.f32 %v390, %v646
          %v903 = vadd.f32 %v391, %v647
          %v904 = vadd.f32 %v392, %v648
          %v905 = vadd.f32 %v393, %v649
          %v906 = vadd.f32 %v394, %v650
          %v907 = vadd.f32 %v395, %v651
          %v908 = vadd.f32 %v396, %v652
          %v909 = vadd.f32 %v397, %v653
          %v910 = vadd.f32 %v398, %v654
          %v911 = vadd.f32 %v399, %v655
          %v912 = vadd.f32 %v400, %v656
          %v913 = vadd.f32 %v401, %v657
          %v914 = vadd.f32 %v402, %v658
          %v915 = vadd.f32 %v403, %v659
          %v916 = vadd.f32 %v404, %v660
          %v917 = vadd.f32 %v405, %v661
          %v918 = vadd.f32 %v406, %v662
          %v919 = vadd.f32 %v407, %v663
          %v920 = vadd.f32 %v408, %v664
          %v921 = vadd.f32 %v409, %v665
          %v922 = vadd.f32 %v410, %v666
          %v923 = vadd.f32 %v411, %v667
          %v924 = vadd.f32 %v412, %v668
          %v925 = vadd.f32 %v413, %v669
          %v926 = vadd.f32 %v414, %v670
          %v927 = vadd.f32 %v415, %v671
          %v928 = vadd.f32 %v416, %v672
          %v929 = vadd.f32 %v417, %v673
          %v930 = vadd.f32 %v418, %v674
          %v931 = vadd.f32 %v419, %v675
          %v932 = vadd.f32 %v420, %v676
          %v933 = vadd.f32 %v421, %v677
          %v934 = vadd.f32 %v422, %v678
          %v935 = vadd.f32 %v423, %v679
          %v936 = vadd.f32 %v424, %v680
          %v937 = vadd.f32 %v425, %v681
          %v938 = vadd.f32 %v426, %v682
          %v939 = vadd.f32 %v427, %v683
          %v940 = vadd.f32 %v428, %v684
          %v941 = vadd.f32 %v429, %v685
          %v942 = vadd.f32 %v430, %v686
          %v943 = vadd.f32 %v431, %v687
          %v944 = vadd.f32 %v432, %v688
          %v945 = vadd.f32 %v433, %v689
          %v946 = vadd.f32 %v434, %v690
          %v947 = vadd.f32 %v435, %v691
          %v948 = vadd.f32 %v436, %v692
          %v949 = vadd.f32 %v437, %v693
          %v950 = vadd.f32 %v438, %v694
          %v951 = vadd.f32 %v439, %v695
          %v952 = vadd.f32 %v440, %v696
          %v953 = vadd.f32 %v441, %v697
          %v954 = vadd.f32 %v442, %v698
          %v955 = vadd.f32 %v443, %v699
          %v956 = vadd.f32 %v444, %v700
          %v957 = vadd.f32 %v445, %v701
          %v958 = vadd.f32 %v446, %v702
          %v959 = vadd.f32 %v447, %v703
          %v960 = vadd.f32 %v448, %v704
          %v961 = vadd.f32 %v449, %v705
          %v962 = vadd.f32 %v450, %v706
          %v963 = vadd.f32 %v451, %v707
          %v964 = vadd.f32 %v452, %v708
          %v965 = vadd.f32 %v453, %v709
          %v966 = vadd.f32 %v454, %v710
          %v967 = vadd.f32 %v455, %v711
          %v968 = vmax.f32 %v712, 0.0
          %v969 = vmax.f32 %v713, 0.0
          %v970 = vmax.f32 %v714, 0.0
          %v971 = vmax.f32 %v715, 0.0
          %v972 = vmax.f32 %v716, 0.0
          %v973 = vmax.f32 %v717, 0.0
          %v974 = vmax.f32 %v718, 0.0
          %v975 = vmax.f32 %v719, 0.0
          %v976 = vmax.f32 %v720, 0.0
          %v977 = vmax.f32 %v721, 0.0
          %v978 = vmax.f32 %v722, 0.0
          %v979 = vmax.f32 %v723, 0.0
          %v980 = vmax.f32 %v724, 0.0
          %v981 = vmax.f32 %v725, 0.0
          %v982 = vmax.f32 %v726, 0.0
          %v983 = vmax.f32 %v727, 0.0
          %v984 = vmax.f32 %v728, 0.0
          %v985 = vmax.f32 %v729, 0.0
          %v986 = vmax.f32 %v730, 0.0
          %v987 = vmax.f32 %v731, 0.0
          %v988 = vmax.f32 %v732, 0.0
          %v989 = vmax.f32 %v733, 0.0
          %v990 = vmax.f32 %v734, 0.0
          %v991 = vmax.f32 %v735, 0.0
          %v992 = vmax.f32 %v736, 0.0
          %v993 = vmax.f32 %v737, 0.0
          %v994 = vmax.f32 %v738, 0.0
          %v995 = vmax.f32 %v739, 0.0
          %v996 = vmax.f32 %v740, 0.0
          %v997 = vmax.f32 %v741, 0.0
          %v998 = vmax.f32 %v742, 0.0
          %v999 = vmax.f32 %v743, 0.0
          %v1000 = vmax.f32 %v744, 0.0
          %v1001 = vmax.f32 %v745, 0.0
          %v1002 = vmax.f32 %v746, 0.0
          %v1003 = vmax.f32 %v747, 0.0
          %v1004 = vmax.f32 %v748, 0.0
          %v1005 = vmax.f32 %v749, 0.0
          %v1006 = vmax.f32 %v750, 0.0
          %v1007 = vmax.f32 %v751, 0.0
          %v1008 = vmax.f32 %v752, 0.0
          %v1009 = vmax.f32 %v753, 0.0
          %v1010 = vmax.f32 %v754, 0.0
          %v1011 = vmax.f32 %v755, 0.0
          %v1012 = vmax.f32 %v756, 0.0
          %v1013 = vmax.f32 %v757, 0.0
          %v1014 = vmax.f32 %v758, 0.0
          %v1015 = vmax.f32 %v759, 0.0
          %v1016 = vmax.f32 %v760, 0.0
          %v1017 = vmax.f32 %v761, 0.0
          %v1018 = vmax.f32 %v762, 0.0
          %v1019 = vmax.f32 %v763, 0.0
          %v1020 = vmax.f32 %v764, 0.0
          %v1021 = vmax.f32 %v765, 0.0
          %v1022 = vmax.f32 %v766, 0.0
          %v1023 = vmax.f32 %v767, 0.0
          %v1024 = vmax.f32 %v768, 0.0
          %v1025 = vmax.f32 %v769, 0.0
          %v1026 = vmax.f32 %v770, 0.0
          %v1027 = vmax.f32 %v771, 0.0
          %v1028 = vmax.f32 %v772, 0.0
          %v1029 = vmax.f32 %v773, 0.0
          %v1030 = vmax.f32 %v774, 0.0
          %v1031 = vmax.f32 %v775, 0.0
          %v1032 = vmax.f32 %v776, 0.0
          %v1033 = vmax.f32 %v777, 0.0
          %v1034 = vmax.f32 %v778, 0.0
          %v1035 = vmax.f32 %v779, 0.0
          %v1036 = vmax.f32 %v780, 0.0
          %v1037 = vmax.f32 %v781, 0.0
          %v1038 = vmax.f32 %v782, 0.0
          %v1039 = vmax.f32 %v783, 0.0
          %v1040 = vmax.f32 %v784, 0.0
          %v1041 = vmax.f32 %v785, 0.0
          %v1042 = vmax.f32 %v786, 0.0
          %v1043 = vmax.f32 %v787, 0.0
          %v1044 = vmax.f32 %v788, 0.0
          %v1045 = vmax.f32 %v789, 0.0
          %v1046 = vmax.f32 %v790, 0.0
          %v1047 = vmax.f32 %v791, 0.0
          %v1048 = vmax.f32 %v792, 0.0
          %v1049 = vmax.f32 %v793, 0.0
          %v1050 = vmax.f32 %v794, 0.0
          %v1051 = vmax.f32 %v795, 0.0
          %v1052 = vmax.f32 %v796, 0.0
          %v1053 = vmax.f32 %v797, 0.0
          %v1054 = vmax.f32 %v798, 0.0
          %v1055 = vmax.f32 %v799, 0.0
          %v1056 = vmax.f32 %v800, 0.0
          %v1057 = vmax.f32 %v801, 0.0
          %v1058 = vmax.f32 %v802, 0.0
          %v1059 = vmax.f32 %v803, 0.0
          %v1060 = vmax.f32 %v804, 0.0
          %v1061 = vmax.f32 %v805, 0.0
          %v1062 = vmax.f32 %v806, 0.0
          %v1063 = vmax.f32 %v807, 0.0
          %v1064 = vmax.f32 %v808, 0.0
          %v1065 = vmax.f32 %v809, 0.0
          %v1066 = vmax.f32 %v810, 0.0
          %v1067 = vmax.f32 %v811, 0.0
          %v1068 = vmax.f32 %v812, 0.0
          %v1069 = vmax.f32 %v813, 0.0
          %v1070 = vmax.f32 %v814, 0.0
          %v1071 = vmax.f32 %v815, 0.0
          %v1072 = vmax.f32 %v816, 0.0
          %v1073 = vmax.f32 %v817, 0.0
          %v1074 = vmax.f32 %v818, 0.0
          %v1075 = vmax.f32 %v819, 0.0
          %v1076 = vmax.f32 %v820, 0.0
          %v1077 = vmax.f32 %v821, 0.0
          %v1078 = vmax.f32 %v822, 0.0
          %v1079 = vmax.f32 %v823, 0.0
          %v1080 = vmax.f32 %v824, 0.0
          %v1081 = vmax.f32 %v825, 0.0
          %v1082 = vmax.f32 %v826, 0.0
          %v1083 = vmax.f32 %v827, 0.0
          %v1084 = vmax.f32 %v828, 0.0
          %v1085 = vmax.f32 %v829, 0.0
          %v1086 = vmax.f32 %v830, 0.0
          %v1087 = vmax.f32 %v831, 0.0
          %v1088 = vmax.f32 %v832, 0.0
          %v1089 = vmax.f32 %v833, 0.0
          %v1090 = vmax.f32 %v834, 0.0
          %v1091 = vmax.f32 %v835, 0.0
          %v1092 = vmax.f32 %v836, 0.0
          %v1093 = vmax.f32 %v837, 0.0
          %v1094 = vmax.f32 %v838, 0.0
          %v1095 = vmax.f32 %v839, 0.0
          %v1096 = vmax.f32 %v840, 0.0
          %v1097 = vmax.f32 %v841, 0.0
          %v1098 = vmax.f32 %v842, 0.0
          %v1099 = vmax.f32 %v843, 0.0
          %v1100 = vmax.f32 %v844, 0.0
          %v1101 = vmax.f32 %v845, 0.0
          %v1102 = vmax.f32 %v846, 0.0
          %v1103 = vmax.f32 %v847, 0.0
          %v1104 = vmax.f32 %v848, 0.0
          %v1105 = vmax.f32 %v849, 0.0
          %v1106 = vmax.f32 %v850, 0.0
          %v1107 = vmax.f32 %v851, 0.0
          %v1108 = vmax.f32 %v852, 0.0
          %v1109 = vmax.f32 %v853, 0.0
          %v1110 = vmax.f32 %v854, 0.0
          %v1111 = vmax.f32 %v855, 0.0
          %v1112 = vmax.f32 %v856, 0.0
          %v1113 = vmax.f32 %v857, 0.0
          %v1114 = vmax.f32 %v858, 0.0
          %v1115 = vmax.f32 %v859, 0.0
          %v1116 = vmax.f32 %v860, 0.0
          %v1117 = vmax.f32 %v861, 0.0
          %v1118 = vmax.f32 %v862, 0.0
          %v1119 = vmax.f32 %v863, 0.0
          %v1120 = vmax.f32 %v864, 0.0
          %v1121 = vmax.f32 %v865, 0.0
          %v1122 = vmax.f32 %v866, 0.0
          %v1123 = vmax.f32 %v867, 0.0
          %v1124 = vmax.f32 %v868, 0.0
          %v1125 = vmax.f32 %v869, 0.0
          %v1126 = vmax.f32 %v870, 0.0
          %v1127 = vmax.f32 %v871, 0.0
          %v1128 = vmax.f32 %v872, 0.0
          %v1129 = vmax.f32 %v873, 0.0
          %v1130 = vmax.f32 %v874, 0.0
          %v1131 = vmax.f32 %v875, 0.0
          %v1132 = vmax.f32 %v876, 0.0
          %v1133 = vmax.f32 %v877, 0.0
          %v1134 = vmax.f32 %v878, 0.0
          %v1135 = vmax.f32 %v879, 0.0
          %v1136 = vmax.f32 %v880, 0.0
          %v1137 = vmax.f32 %v881, 0.0
          %v1138 = vmax.f32 %v882, 0.0
          %v1139 = vmax.f32 %v883, 0.0
          %v1140 = vmax.f32 %v884, 0.0
          %v1141 = vmax.f32 %v885, 0.0
          %v1142 = vmax.f32 %v886, 0.0
          %v1143 = vmax.f32 %v887, 0.0
          %v1144 = vmax.f32 %v888, 0.0
          %v1145 = vmax.f32 %v889, 0.0
          %v1146 = vmax.f32 %v890, 0.0
          %v1147 = vmax.f32 %v891, 0.0
          %v1148 = vmax.f32 %v892, 0.0
          %v1149 = vmax.f32 %v893, 0.0
          %v1150 = vmax.f32 %v894, 0.0
          %v1151 = vmax.f32 %v895, 0.0
          %v1152 = vmax.f32 %v896, 0.0
          %v1153 = vmax.f32 %v897, 0.0
          %v1154 = vmax.f32 %v898, 0.0
          %v1155 = vmax.f32 %v899, 0.0
          %v1156 = vmax.f32 %v900, 0.0
          %v1157 = vmax.f32 %v901, 0.0
          %v1158 = vmax.f32 %v902, 0.0
          %v1159 = vmax.f32 %v903, 0.0
          %v1160 = vmax.f32 %v904, 0.0
          %v1161 = vmax.f32 %v905, 0.0
          %v1162 = vmax.f32 %v906, 0.0
          %v1163 = vmax.f32 %v907, 0.0
          %v1164 = vmax.f32 %v908, 0.0
          %v1165 = vmax.f32 %v909, 0.0
          %v1166 = vmax.f32 %v910, 0.0
          %v1167 = vmax.f32 %v911, 0.0
          %v1168 = vmax.f32 %v912, 0.0
          %v1169 = vmax.f32 %v913, 0.0
          %v1170 = vmax.f32 %v914, 0.0
          %v1171 = vmax.f32 %v915, 0.0
          %v1172 = vmax.f32 %v916, 0.0
          %v1173 = vmax.f32 %v917, 0.0
          %v1174 = vmax.f32 %v918, 0.0
          %v1175 = vmax.f32 %v919, 0.0
          %v1176 = vmax.f32 %v920, 0.0
          %v1177 = vmax.f32 %v921, 0.0
          %v1178 = vmax.f32 %v922, 0.0
          %v1179 = vmax.f32 %v923, 0.0
          %v1180 = vmax.f32 %v924, 0.0
          %v1181 = vmax.f32 %v925, 0.0
          %v1182 = vmax.f32 %v926, 0.0
          %v1183 = vmax.f32 %v927, 0.0
          %v1184 = vmax.f32 %v928, 0.0
          %v1185 = vmax.f32 %v929, 0.0
          %v1186 = vmax.f32 %v930, 0.0
          %v1187 = vmax.f32 %v931, 0.0
          %v1188 = vmax.f32 %v932, 0.0
          %v1189 = vmax.f32 %v933, 0.0
          %v1190 = vmax.f32 %v934, 0.0
          %v1191 = vmax.f32 %v935, 0.0
          %v1192 = vmax.f32 %v936, 0.0
          %v1193 = vmax.f32 %v937, 0.0
          %v1194 = vmax.f32 %v938, 0.0
          %v1195 = vmax.f32 %v939, 0.0
          %v1196 = vmax.f32 %v940, 0.0
          %v1197 = vmax.f32 %v941, 0.0
          %v1198 = vmax.f32 %v942, 0.0
          %v1199 = vmax.f32 %v943, 0.0
          %v1200 = vmax.f32 %v944, 0.0
          %v1201 = vmax.f32 %v945, 0.0
          %v1202 = vmax.f32 %v946, 0.0
          %v1203 = vmax.f32 %v947, 0.0
          %v1204 = vmax.f32 %v948, 0.0
          %v1205 = vmax.f32 %v949, 0.0
          %v1206 = vmax.f32 %v950, 0.0
          %v1207 = vmax.f32 %v951, 0.0
          %v1208 = vmax.f32 %v952, 0.0
          %v1209 = vmax.f32 %v953, 0.0
          %v1210 = vmax.f32 %v954, 0.0
          %v1211 = vmax.f32 %v955, 0.0
          %v1212 = vmax.f32 %v956, 0.0
          %v1213 = vmax.f32 %v957, 0.0
          %v1214 = vmax.f32 %v958, 0.0
          %v1215 = vmax.f32 %v959, 0.0
          %v1216 = vmax.f32 %v960, 0.0
          %v1217 = vmax.f32 %v961, 0.0
          %v1218 = vmax.f32 %v962, 0.0
          %v1219 = vmax.f32 %v963, 0.0
          %v1220 = vmax.f32 %v964, 0.0
          %v1221 = vmax.f32 %v965, 0.0
          %v1222 = vmax.f32 %v966, 0.0
          %v1223 = vmax.f32 %v967, 0.0
          %v1224 = vpack.c.bf16 %v968, %v968
          %v1225 = vpack.c.bf16 %v969, %v969
          %v1226 = vpack.c.bf16 %v970, %v970
          %v1227 = vpack.c.bf16 %v971, %v971
          %v1228 = vpack.c.bf16 %v972, %v972
          %v1229 = vpack.c.bf16 %v973, %v973
          %v1230 = vpack.c.bf16 %v974, %v974
          %v1231 = vpack.c.bf16 %v975, %v975
          %v1232 = vpack.c.bf16 %v976, %v976
          %v1233 = vpack.c.bf16 %v977, %v977
          %v1234 = vpack.c.bf16 %v978, %v978
          %v1235 = vpack.c.bf16 %v979, %v979
          %v1236 = vpack.c.bf16 %v980, %v980
          %v1237 = vpack.c.bf16 %v981, %v981
          %v1238 = vpack.c.bf16 %v982, %v982
          %v1239 = vpack.c.bf16 %v983, %v983
          %v1240 = vpack.c.bf16 %v984, %v984
          %v1241 = vpack.c.bf16 %v985, %v985
          %v1242 = vpack.c.bf16 %v986, %v986
          %v1243 = vpack.c.bf16 %v987, %v987
          %v1244 = vpack.c.bf16 %v988, %v988
          %v1245 = vpack.c.bf16 %v989, %v989
          %v1246 = vpack.c.bf16 %v990, %v990
          %v1247 = vpack.c.bf16 %v991, %v991
          %v1248 = vpack.c.bf16 %v992, %v992
          %v1249 = vpack.c.bf16 %v993, %v993
          %v1250 = vpack.c.bf16 %v994, %v994
          %v1251 = vpack.c.bf16 %v995, %v995
          %v1252 = vpack.c.bf16 %v996, %v996
          %v1253 = vpack.c.bf16 %v997, %v997
          %v1254 = vpack.c.bf16 %v998, %v998
          %v1255 = vpack.c.bf16 %v999, %v999
          %v1256 = vpack.c.bf16 %v1000, %v1000
          %v1257 = vpack.c.bf16 %v1001, %v1001
          %v1258 = vpack.c.bf16 %v1002, %v1002
          %v1259 = vpack.c.bf16 %v1003, %v1003
          %v1260 = vpack.c.bf16 %v1004, %v1004
          %v1261 = vpack.c.bf16 %v1005, %v1005
          %v1262 = vpack.c.bf16 %v1006, %v1006
          %v1263 = vpack.c.bf16 %v1007, %v1007
          %v1264 = vpack.c.bf16 %v1008, %v1008
          %v1265 = vpack.c.bf16 %v1009, %v1009
          %v1266 = vpack.c.bf16 %v1010, %v1010
          %v1267 = vpack.c.bf16 %v1011, %v1011
          %v1268 = vpack.c.bf16 %v1012, %v1012
          %v1269 = vpack.c.bf16 %v1013, %v1013
          %v1270 = vpack.c.bf16 %v1014, %v1014
          %v1271 = vpack.c.bf16 %v1015, %v1015
          %v1272 = vpack.c.bf16 %v1016, %v1016
          %v1273 = vpack.c.bf16 %v1017, %v1017
          %v1274 = vpack.c.bf16 %v1018, %v1018
          %v1275 = vpack.c.bf16 %v1019, %v1019
          %v1276 = vpack.c.bf16 %v1020, %v1020
          %v1277 = vpack.c.bf16 %v1021, %v1021
          %v1278 = vpack.c.bf16 %v1022, %v1022
          %v1279 = vpack.c.bf16 %v1023, %v1023
          %v1280 = vpack.c.bf16 %v1024, %v1024
          %v1281 = vpack.c.bf16 %v1025, %v1025
          %v1282 = vpack.c.bf16 %v1026, %v1026
          %v1283 = vpack.c.bf16 %v1027, %v1027
          %v1284 = vpack.c.bf16 %v1028, %v1028
          %v1285 = vpack.c.bf16 %v1029, %v1029
          %v1286 = vpack.c.bf16 %v1030, %v1030
          %v1287 = vpack.c.bf16 %v1031, %v1031
          %v1288 = vpack.c.bf16 %v1032, %v1032
          %v1289 = vpack.c.bf16 %v1033, %v1033
          %v1290 = vpack.c.bf16 %v1034, %v1034
          %v1291 = vpack.c.bf16 %v1035, %v1035
          %v1292 = vpack.c.bf16 %v1036, %v1036
          %v1293 = vpack.c.bf16 %v1037, %v1037
          %v1294 = vpack.c.bf16 %v1038, %v1038
          %v1295 = vpack.c.bf16 %v1039, %v1039
          %v1296 = vpack.c.bf16 %v1040, %v1040
          %v1297 = vpack.c.bf16 %v1041, %v1041
          %v1298 = vpack.c.bf16 %v1042, %v1042
          %v1299 = vpack.c.bf16 %v1043, %v1043
          %v1300 = vpack.c.bf16 %v1044, %v1044
          %v1301 = vpack.c.bf16 %v1045, %v1045
          %v1302 = vpack.c.bf16 %v1046, %v1046
          %v1303 = vpack.c.bf16 %v1047, %v1047
          %v1304 = vpack.c.bf16 %v1048, %v1048
          %v1305 = vpack.c.bf16 %v1049, %v1049
          %v1306 = vpack.c.bf16 %v1050, %v1050
          %v1307 = vpack.c.bf16 %v1051, %v1051
          %v1308 = vpack.c.bf16 %v1052, %v1052
          %v1309 = vpack.c.bf16 %v1053, %v1053
          %v1310 = vpack.c.bf16 %v1054, %v1054
          %v1311 = vpack.c.bf16 %v1055, %v1055
          %v1312 = vpack.c.bf16 %v1056, %v1056
          %v1313 = vpack.c.bf16 %v1057, %v1057
          %v1314 = vpack.c.bf16 %v1058, %v1058
          %v1315 = vpack.c.bf16 %v1059, %v1059
          %v1316 = vpack.c.bf16 %v1060, %v1060
          %v1317 = vpack.c.bf16 %v1061, %v1061
          %v1318 = vpack.c.bf16 %v1062, %v1062
          %v1319 = vpack.c.bf16 %v1063, %v1063
          %v1320 = vpack.c.bf16 %v1064, %v1064
          %v1321 = vpack.c.bf16 %v1065, %v1065
          %v1322 = vpack.c.bf16 %v1066, %v1066
          %v1323 = vpack.c.bf16 %v1067, %v1067
          %v1324 = vpack.c.bf16 %v1068, %v1068
          %v1325 = vpack.c.bf16 %v1069, %v1069
          %v1326 = vpack.c.bf16 %v1070, %v1070
          %v1327 = vpack.c.bf16 %v1071, %v1071
          %v1328 = vpack.c.bf16 %v1072, %v1072
          %v1329 = vpack.c.bf16 %v1073, %v1073
          %v1330 = vpack.c.bf16 %v1074, %v1074
          %v1331 = vpack.c.bf16 %v1075, %v1075
          %v1332 = vpack.c.bf16 %v1076, %v1076
          %v1333 = vpack.c.bf16 %v1077, %v1077
          %v1334 = vpack.c.bf16 %v1078, %v1078
          %v1335 = vpack.c.bf16 %v1079, %v1079
          %v1336 = vpack.c.bf16 %v1080, %v1080
          %v1337 = vpack.c.bf16 %v1081, %v1081
          %v1338 = vpack.c.bf16 %v1082, %v1082
          %v1339 = vpack.c.bf16 %v1083, %v1083
          %v1340 = vpack.c.bf16 %v1084, %v1084
          %v1341 = vpack.c.bf16 %v1085, %v1085
          %v1342 = vpack.c.bf16 %v1086, %v1086
          %v1343 = vpack.c.bf16 %v1087, %v1087
          %v1344 = vpack.c.bf16 %v1088, %v1088
          %v1345 = vpack.c.bf16 %v1089, %v1089
          %v1346 = vpack.c.bf16 %v1090, %v1090
          %v1347 = vpack.c.bf16 %v1091, %v1091
          %v1348 = vpack.c.bf16 %v1092, %v1092
          %v1349 = vpack.c.bf16 %v1093, %v1093
          %v1350 = vpack.c.bf16 %v1094, %v1094
          %v1351 = vpack.c.bf16 %v1095, %v1095
          %v1352 = vpack.c.bf16 %v1096, %v1096
          %v1353 = vpack.c.bf16 %v1097, %v1097
          %v1354 = vpack.c.bf16 %v1098, %v1098
          %v1355 = vpack.c.bf16 %v1099, %v1099
          %v1356 = vpack.c.bf16 %v1100, %v1100
          %v1357 = vpack.c.bf16 %v1101, %v1101
          %v1358 = vpack.c.bf16 %v1102, %v1102
          %v1359 = vpack.c.bf16 %v1103, %v1103
          %v1360 = vpack.c.bf16 %v1104, %v1104
          %v1361 = vpack.c.bf16 %v1105, %v1105
          %v1362 = vpack.c.bf16 %v1106, %v1106
          %v1363 = vpack.c.bf16 %v1107, %v1107
          %v1364 = vpack.c.bf16 %v1108, %v1108
          %v1365 = vpack.c.bf16 %v1109, %v1109
          %v1366 = vpack.c.bf16 %v1110, %v1110
          %v1367 = vpack.c.bf16 %v1111, %v1111
          %v1368 = vpack.c.bf16 %v1112, %v1112
          %v1369 = vpack.c.bf16 %v1113, %v1113
          %v1370 = vpack.c.bf16 %v1114, %v1114
          %v1371 = vpack.c.bf16 %v1115, %v1115
          %v1372 = vpack.c.bf16 %v1116, %v1116
          %v1373 = vpack.c.bf16 %v1117, %v1117
          %v1374 = vpack.c.bf16 %v1118, %v1118
          %v1375 = vpack.c.bf16 %v1119, %v1119
          %v1376 = vpack.c.bf16 %v1120, %v1120
          %v1377 = vpack.c.bf16 %v1121, %v1121
          %v1378 = vpack.c.bf16 %v1122, %v1122
          %v1379 = vpack.c.bf16 %v1123, %v1123
          %v1380 = vpack.c.bf16 %v1124, %v1124
          %v1381 = vpack.c.bf16 %v1125, %v1125
          %v1382 = vpack.c.bf16 %v1126, %v1126
          %v1383 = vpack.c.bf16 %v1127, %v1127
          %v1384 = vpack.c.bf16 %v1128, %v1128
          %v1385 = vpack.c.bf16 %v1129, %v1129
          %v1386 = vpack.c.bf16 %v1130, %v1130
          %v1387 = vpack.c.bf16 %v1131, %v1131
          %v1388 = vpack.c.bf16 %v1132, %v1132
          %v1389 = vpack.c.bf16 %v1133, %v1133
          %v1390 = vpack.c.bf16 %v1134, %v1134
          %v1391 = vpack.c.bf16 %v1135, %v1135
          %v1392 = vpack.c.bf16 %v1136, %v1136
          %v1393 = vpack.c.bf16 %v1137, %v1137
          %v1394 = vpack.c.bf16 %v1138, %v1138
          %v1395 = vpack.c.bf16 %v1139, %v1139
          %v1396 = vpack.c.bf16 %v1140, %v1140
          %v1397 = vpack.c.bf16 %v1141, %v1141
          %v1398 = vpack.c.bf16 %v1142, %v1142
          %v1399 = vpack.c.bf16 %v1143, %v1143
          %v1400 = vpack.c.bf16 %v1144, %v1144
          %v1401 = vpack.c.bf16 %v1145, %v1145
          %v1402 = vpack.c.bf16 %v1146, %v1146
          %v1403 = vpack.c.bf16 %v1147, %v1147
          %v1404 = vpack.c.bf16 %v1148, %v1148
          %v1405 = vpack.c.bf16 %v1149, %v1149
          %v1406 = vpack.c.bf16 %v1150, %v1150
          %v1407 = vpack.c.bf16 %v1151, %v1151
          %v1408 = vpack.c.bf16 %v1152, %v1152
          %v1409 = vpack.c.bf16 %v1153, %v1153
          %v1410 = vpack.c.bf16 %v1154, %v1154
          %v1411 = vpack.c.bf16 %v1155, %v1155
          %v1412 = vpack.c.bf16 %v1156, %v1156
          %v1413 = vpack.c.bf16 %v1157, %v1157
          %v1414 = vpack.c.bf16 %v1158, %v1158
          %v1415 = vpack.c.bf16 %v1159, %v1159
          %v1416 = vpack.c.bf16 %v1160, %v1160
          %v1417 = vpack.c.bf16 %v1161, %v1161
          %v1418 = vpack.c.bf16 %v1162, %v1162
          %v1419 = vpack.c.bf16 %v1163, %v1163
          %v1420 = vpack.c.bf16 %v1164, %v1164
          %v1421 = vpack.c.bf16 %v1165, %v1165
          %v1422 = vpack.c.bf16 %v1166, %v1166
          %v1423 = vpack.c.bf16 %v1167, %v1167
          %v1424 = vpack.c.bf16 %v1168, %v1168
          %v1425 = vpack.c.bf16 %v1169, %v1169
          %v1426 = vpack.c.bf16 %v1170, %v1170
          %v1427 = vpack.c.bf16 %v1171, %v1171
          %v1428 = vpack.c.bf16 %v1172, %v1172
          %v1429 = vpack.c.bf16 %v1173, %v1173
          %v1430 = vpack.c.bf16 %v1174, %v1174
          %v1431 = vpack.c.bf16 %v1175, %v1175
          %v1432 = vpack.c.bf16 %v1176, %v1176
          %v1433 = vpack.c.bf16 %v1177, %v1177
          %v1434 = vpack.c.bf16 %v1178, %v1178
          %v1435 = vpack.c.bf16 %v1179, %v1179
          %v1436 = vpack.c.bf16 %v1180, %v1180
          %v1437 = vpack.c.bf16 %v1181, %v1181
          %v1438 = vpack.c.bf16 %v1182, %v1182
          %v1439 = vpack.c.bf16 %v1183, %v1183
          %v1440 = vpack.c.bf16 %v1184, %v1184
          %v1441 = vpack.c.bf16 %v1185, %v1185
          %v1442 = vpack.c.bf16 %v1186, %v1186
          %v1443 = vpack.c.bf16 %v1187, %v1187
          %v1444 = vpack.c.bf16 %v1188, %v1188
          %v1445 = vpack.c.bf16 %v1189, %v1189
          %v1446 = vpack.c.bf16 %v1190, %v1190
          %v1447 = vpack.c.bf16 %v1191, %v1191
          %v1448 = vpack.c.bf16 %v1192, %v1192
          %v1449 = vpack.c.bf16 %v1193, %v1193
          %v1450 = vpack.c.bf16 %v1194, %v1194
          %v1451 = vpack.c.bf16 %v1195, %v1195
          %v1452 = vpack.c.bf16 %v1196, %v1196
          %v1453 = vpack.c.bf16 %v1197, %v1197
          %v1454 = vpack.c.bf16 %v1198, %v1198
          %v1455 = vpack.c.bf16 %v1199, %v1199
          %v1456 = vpack.c.bf16 %v1200, %v1200
          %v1457 = vpack.c.bf16 %v1201, %v1201
          %v1458 = vpack.c.bf16 %v1202, %v1202
          %v1459 = vpack.c.bf16 %v1203, %v1203
          %v1460 = vpack.c.bf16 %v1204, %v1204
          %v1461 = vpack.c.bf16 %v1205, %v1205
          %v1462 = vpack.c.bf16 %v1206, %v1206
          %v1463 = vpack.c.bf16 %v1207, %v1207
          %v1464 = vpack.c.bf16 %v1208, %v1208
          %v1465 = vpack.c.bf16 %v1209, %v1209
          %v1466 = vpack.c.bf16 %v1210, %v1210
          %v1467 = vpack.c.bf16 %v1211, %v1211
          %v1468 = vpack.c.bf16 %v1212, %v1212
          %v1469 = vpack.c.bf16 %v1213, %v1213
          %v1470 = vpack.c.bf16 %v1214, %v1214
          %v1471 = vpack.c.bf16 %v1215, %v1215
          %v1472 = vpack.c.bf16 %v1216, %v1216
          %v1473 = vpack.c.bf16 %v1217, %v1217
          %v1474 = vpack.c.bf16 %v1218, %v1218
          %v1475 = vpack.c.bf16 %v1219, %v1219
          %v1476 = vpack.c.bf16 %v1220, %v1220
          %v1477 = vpack.c.bf16 %v1221, %v1221
          %v1478 = vpack.c.bf16 %v1222, %v1222
          %v1479 = vpack.c.bf16 %v1223, %v1223
          %vm1480 = vcmask 396288
          %1481 = vst.msk [vmem:[#allocation2] sm:$0xf] %vm1480, %v1224
          %1482 = vst.msk [vmem:[#allocation2 + $0x4] sm:$0xf] %vm1480, %v1225
          %1483 = vst.msk [vmem:[#allocation2 + $0x8] sm:$0xf] %vm1480, %v1226
          %1484 = vst.msk [vmem:[#allocation2 + $0xc] sm:$0xf] %vm1480, %v1227
          %1485 = vst.msk [vmem:[#allocation2 + $0x10] sm:$0xf] %vm1480, %v1228
          %1486 = vst.msk [vmem:[#allocation2 + $0x14] sm:$0xf] %vm1480, %v1229
          %1487 = vst.msk [vmem:[#allocation2 + $0x18] sm:$0xf] %vm1480, %v1230
          %1488 = vst.msk [vmem:[#allocation2 + $0x1c] sm:$0xf] %vm1480, %v1231
          %1489 = vst.msk [vmem:[#allocation2 + $0x20] sm:$0xf] %vm1480, %v1232
          %1490 = vst.msk [vmem:[#allocation2 + $0x24] sm:$0xf] %vm1480, %v1233
          %1491 = vst.msk [vmem:[#allocation2 + $0x28] sm:$0xf] %vm1480, %v1234
          %1492 = vst.msk [vmem:[#allocation2 + $0x2c] sm:$0xf] %vm1480, %v1235
          %1493 = vst.msk [vmem:[#allocation2 + $0x30] sm:$0xf] %vm1480, %v1236
          %1494 = vst.msk [vmem:[#allocation2 + $0x34] sm:$0xf] %vm1480, %v1237
          %1495 = vst.msk [vmem:[#allocation2 + $0x38] sm:$0xf] %vm1480, %v1238
          %1496 = vst.msk [vmem:[#allocation2 + $0x3c] sm:$0xf] %vm1480, %v1239
          %1497 = vst.msk [vmem:[#allocation2 + $0x40] sm:$0xf] %vm1480, %v1240
          %1498 = vst.msk [vmem:[#allocation2 + $0x44] sm:$0xf] %vm1480, %v1241
          %1499 = vst.msk [vmem:[#allocation2 + $0x48] sm:$0xf] %vm1480, %v1242
          %1500 = vst.msk [vmem:[#allocation2 + $0x4c] sm:$0xf] %vm1480, %v1243
          %1501 = vst.msk [vmem:[#allocation2 + $0x50] sm:$0xf] %vm1480, %v1244
          %1502 = vst.msk [vmem:[#allocation2 + $0x54] sm:$0xf] %vm1480, %v1245
          %1503 = vst.msk [vmem:[#allocation2 + $0x58] sm:$0xf] %vm1480, %v1246
          %1504 = vst.msk [vmem:[#allocation2 + $0x5c] sm:$0xf] %vm1480, %v1247
          %1505 = vst.msk [vmem:[#allocation2 + $0x60] sm:$0xf] %vm1480, %v1248
          %1506 = vst.msk [vmem:[#allocation2 + $0x64] sm:$0xf] %vm1480, %v1249
          %1507 = vst.msk [vmem:[#allocation2 + $0x68] sm:$0xf] %vm1480, %v1250
          %1508 = vst.msk [vmem:[#allocation2 + $0x6c] sm:$0xf] %vm1480, %v1251
          %1509 = vst.msk [vmem:[#allocation2 + $0x70] sm:$0xf] %vm1480, %v1252
          %1510 = vst.msk [vmem:[#allocation2 + $0x74] sm:$0xf] %vm1480, %v1253
          %1511 = vst.msk [vmem:[#allocation2 + $0x78] sm:$0xf] %vm1480, %v1254
          %1512 = vst.msk [vmem:[#allocation2 + $0x7c] sm:$0xf] %vm1480, %v1255
          %1513 = vst.msk [vmem:[#allocation2 + $0x80] sm:$0xf] %vm1480, %v1256
          %1514 = vst.msk [vmem:[#allocation2 + $0x84] sm:$0xf] %vm1480, %v1257
          %1515 = vst.msk [vmem:[#allocation2 + $0x88] sm:$0xf] %vm1480, %v1258
          %1516 = vst.msk [vmem:[#allocation2 + $0x8c] sm:$0xf] %vm1480, %v1259
          %1517 = vst.msk [vmem:[#allocation2 + $0x90] sm:$0xf] %vm1480, %v1260
          %1518 = vst.msk [vmem:[#allocation2 + $0x94] sm:$0xf] %vm1480, %v1261
          %1519 = vst.msk [vmem:[#allocation2 + $0x98] sm:$0xf] %vm1480, %v1262
          %1520 = vst.msk [vmem:[#allocation2 + $0x9c] sm:$0xf] %vm1480, %v1263
          %1521 = vst.msk [vmem:[#allocation2 + $0xa0] sm:$0xf] %vm1480, %v1264
          %1522 = vst.msk [vmem:[#allocation2 + $0xa4] sm:$0xf] %vm1480, %v1265
          %1523 = vst.msk [vmem:[#allocation2 + $0xa8] sm:$0xf] %vm1480, %v1266
          %1524 = vst.msk [vmem:[#allocation2 + $0xac] sm:$0xf] %vm1480, %v1267
          %1525 = vst.msk [vmem:[#allocation2 + $0xb0] sm:$0xf] %vm1480, %v1268
          %1526 = vst.msk [vmem:[#allocation2 + $0xb4] sm:$0xf] %vm1480, %v1269
          %1527 = vst.msk [vmem:[#allocation2 + $0xb8] sm:$0xf] %vm1480, %v1270
          %1528 = vst.msk [vmem:[#allocation2 + $0xbc] sm:$0xf] %vm1480, %v1271
          %1529 = vst.msk [vmem:[#allocation2 + $0xc0] sm:$0xf] %vm1480, %v1272
          %1530 = vst.msk [vmem:[#allocation2 + $0xc4] sm:$0xf] %vm1480, %v1273
          %1531 = vst.msk [vmem:[#allocation2 + $0xc8] sm:$0xf] %vm1480, %v1274
          %1532 = vst.msk [vmem:[#allocation2 + $0xcc] sm:$0xf] %vm1480, %v1275
          %1533 = vst.msk [vmem:[#allocation2 + $0xd0] sm:$0xf] %vm1480, %v1276
          %1534 = vst.msk [vmem:[#allocation2 + $0xd4] sm:$0xf] %vm1480, %v1277
          %1535 = vst.msk [vmem:[#allocation2 + $0xd8] sm:$0xf] %vm1480, %v1278
          %1536 = vst.msk [vmem:[#allocation2 + $0xdc] sm:$0xf] %vm1480, %v1279
          %1537 = vst.msk [vmem:[#allocation2 + $0xe0] sm:$0xf] %vm1480, %v1280
          %1538 = vst.msk [vmem:[#allocation2 + $0xe4] sm:$0xf] %vm1480, %v1281
          %1539 = vst.msk [vmem:[#allocation2 + $0xe8] sm:$0xf] %vm1480, %v1282
          %1540 = vst.msk [vmem:[#allocation2 + $0xec] sm:$0xf] %vm1480, %v1283
          %1541 = vst.msk [vmem:[#allocation2 + $0xf0] sm:$0xf] %vm1480, %v1284
          %1542 = vst.msk [vmem:[#allocation2 + $0xf4] sm:$0xf] %vm1480, %v1285
          %1543 = vst.msk [vmem:[#allocation2 + $0xf8] sm:$0xf] %vm1480, %v1286
          %1544 = vst.msk [vmem:[#allocation2 + $0xfc] sm:$0xf] %vm1480, %v1287
          %1545 = vst.msk [vmem:[#allocation2 + $0x100] sm:$0xf] %vm1480, %v1288
          %1546 = vst.msk [vmem:[#allocation2 + $0x104] sm:$0xf] %vm1480, %v1289
          %1547 = vst.msk [vmem:[#allocation2 + $0x108] sm:$0xf] %vm1480, %v1290
          %1548 = vst.msk [vmem:[#allocation2 + $0x10c] sm:$0xf] %vm1480, %v1291
          %1549 = vst.msk [vmem:[#allocation2 + $0x110] sm:$0xf] %vm1480, %v1292
          %1550 = vst.msk [vmem:[#allocation2 + $0x114] sm:$0xf] %vm1480, %v1293
          %1551 = vst.msk [vmem:[#allocation2 + $0x118] sm:$0xf] %vm1480, %v1294
          %1552 = vst.msk [vmem:[#allocation2 + $0x11c] sm:$0xf] %vm1480, %v1295
          %1553 = vst.msk [vmem:[#allocation2 + $0x120] sm:$0xf] %vm1480, %v1296
          %1554 = vst.msk [vmem:[#allocation2 + $0x124] sm:$0xf] %vm1480, %v1297
          %1555 = vst.msk [vmem:[#allocation2 + $0x128] sm:$0xf] %vm1480, %v1298
          %1556 = vst.msk [vmem:[#allocation2 + $0x12c] sm:$0xf] %vm1480, %v1299
          %1557 = vst.msk [vmem:[#allocation2 + $0x130] sm:$0xf] %vm1480, %v1300
          %1558 = vst.msk [vmem:[#allocation2 + $0x134] sm:$0xf] %vm1480, %v1301
          %1559 = vst.msk [vmem:[#allocation2 + $0x138] sm:$0xf] %vm1480, %v1302
          %1560 = vst.msk [vmem:[#allocation2 + $0x13c] sm:$0xf] %vm1480, %v1303
          %1561 = vst.msk [vmem:[#allocation2 + $0x140] sm:$0xf] %vm1480, %v1304
          %1562 = vst.msk [vmem:[#allocation2 + $0x144] sm:$0xf] %vm1480, %v1305
          %1563 = vst.msk [vmem:[#allocation2 + $0x148] sm:$0xf] %vm1480, %v1306
          %1564 = vst.msk [vmem:[#allocation2 + $0x14c] sm:$0xf] %vm1480, %v1307
          %1565 = vst.msk [vmem:[#allocation2 + $0x150] sm:$0xf] %vm1480, %v1308
          %1566 = vst.msk [vmem:[#allocation2 + $0x154] sm:$0xf] %vm1480, %v1309
          %1567 = vst.msk [vmem:[#allocation2 + $0x158] sm:$0xf] %vm1480, %v1310
          %1568 = vst.msk [vmem:[#allocation2 + $0x15c] sm:$0xf] %vm1480, %v1311
          %1569 = vst.msk [vmem:[#allocation2 + $0x160] sm:$0xf] %vm1480, %v1312
          %1570 = vst.msk [vmem:[#allocation2 + $0x164] sm:$0xf] %vm1480, %v1313
          %1571 = vst.msk [vmem:[#allocation2 + $0x168] sm:$0xf] %vm1480, %v1314
          %1572 = vst.msk [vmem:[#allocation2 + $0x16c] sm:$0xf] %vm1480, %v1315
          %1573 = vst.msk [vmem:[#allocation2 + $0x170] sm:$0xf] %vm1480, %v1316
          %1574 = vst.msk [vmem:[#allocation2 + $0x174] sm:$0xf] %vm1480, %v1317
          %1575 = vst.msk [vmem:[#allocation2 + $0x178] sm:$0xf] %vm1480, %v1318
          %1576 = vst.msk [vmem:[#allocation2 + $0x17c] sm:$0xf] %vm1480, %v1319
          %1577 = vst.msk [vmem:[#allocation2 + $0x180] sm:$0xf] %vm1480, %v1320
          %1578 = vst.msk [vmem:[#allocation2 + $0x184] sm:$0xf] %vm1480, %v1321
          %1579 = vst.msk [vmem:[#allocation2 + $0x188] sm:$0xf] %vm1480, %v1322
          %1580 = vst.msk [vmem:[#allocation2 + $0x18c] sm:$0xf] %vm1480, %v1323
          %1581 = vst.msk [vmem:[#allocation2 + $0x190] sm:$0xf] %vm1480, %v1324
          %1582 = vst.msk [vmem:[#allocation2 + $0x194] sm:$0xf] %vm1480, %v1325
          %1583 = vst.msk [vmem:[#allocation2 + $0x198] sm:$0xf] %vm1480, %v1326
          %1584 = vst.msk [vmem:[#allocation2 + $0x19c] sm:$0xf] %vm1480, %v1327
          %1585 = vst.msk [vmem:[#allocation2 + $0x1a0] sm:$0xf] %vm1480, %v1328
          %1586 = vst.msk [vmem:[#allocation2 + $0x1a4] sm:$0xf] %vm1480, %v1329
          %1587 = vst.msk [vmem:[#allocation2 + $0x1a8] sm:$0xf] %vm1480, %v1330
          %1588 = vst.msk [vmem:[#allocation2 + $0x1ac] sm:$0xf] %vm1480, %v1331
          %1589 = vst.msk [vmem:[#allocation2 + $0x1b0] sm:$0xf] %vm1480, %v1332
          %1590 = vst.msk [vmem:[#allocation2 + $0x1b4] sm:$0xf] %vm1480, %v1333
          %1591 = vst.msk [vmem:[#allocation2 + $0x1b8] sm:$0xf] %vm1480, %v1334
          %1592 = vst.msk [vmem:[#allocation2 + $0x1bc] sm:$0xf] %vm1480, %v1335
          %1593 = vst.msk [vmem:[#allocation2 + $0x1c0] sm:$0xf] %vm1480, %v1336
          %1594 = vst.msk [vmem:[#allocation2 + $0x1c4] sm:$0xf] %vm1480, %v1337
          %1595 = vst.msk [vmem:[#allocation2 + $0x1c8] sm:$0xf] %vm1480, %v1338
          %1596 = vst.msk [vmem:[#allocation2 + $0x1cc] sm:$0xf] %vm1480, %v1339
          %1597 = vst.msk [vmem:[#allocation2 + $0x1d0] sm:$0xf] %vm1480, %v1340
          %1598 = vst.msk [vmem:[#allocation2 + $0x1d4] sm:$0xf] %vm1480, %v1341
          %1599 = vst.msk [vmem:[#allocation2 + $0x1d8] sm:$0xf] %vm1480, %v1342
          %1600 = vst.msk [vmem:[#allocation2 + $0x1dc] sm:$0xf] %vm1480, %v1343
          %1601 = vst.msk [vmem:[#allocation2 + $0x1e0] sm:$0xf] %vm1480, %v1344
          %1602 = vst.msk [vmem:[#allocation2 + $0x1e4] sm:$0xf] %vm1480, %v1345
          %1603 = vst.msk [vmem:[#allocation2 + $0x1e8] sm:$0xf] %vm1480, %v1346
          %1604 = vst.msk [vmem:[#allocation2 + $0x1ec] sm:$0xf] %vm1480, %v1347
          %1605 = vst.msk [vmem:[#allocation2 + $0x1f0] sm:$0xf] %vm1480, %v1348
          %1606 = vst.msk [vmem:[#allocation2 + $0x1f4] sm:$0xf] %vm1480, %v1349
          %1607 = vst.msk [vmem:[#allocation2 + $0x1f8] sm:$0xf] %vm1480, %v1350
          %1608 = vst.msk [vmem:[#allocation2 + $0x1fc] sm:$0xf] %vm1480, %v1351
          %1609 = vst.msk [vmem:[#allocation2 + $0x200] sm:$0xf] %vm1480, %v1352
          %1610 = vst.msk [vmem:[#allocation2 + $0x204] sm:$0xf] %vm1480, %v1353
          %1611 = vst.msk [vmem:[#allocation2 + $0x208] sm:$0xf] %vm1480, %v1354
          %1612 = vst.msk [vmem:[#allocation2 + $0x20c] sm:$0xf] %vm1480, %v1355
          %1613 = vst.msk [vmem:[#allocation2 + $0x210] sm:$0xf] %vm1480, %v1356
          %1614 = vst.msk [vmem:[#allocation2 + $0x214] sm:$0xf] %vm1480, %v1357
          %1615 = vst.msk [vmem:[#allocation2 + $0x218] sm:$0xf] %vm1480, %v1358
          %1616 = vst.msk [vmem:[#allocation2 + $0x21c] sm:$0xf] %vm1480, %v1359
          %1617 = vst.msk [vmem:[#allocation2 + $0x220] sm:$0xf] %vm1480, %v1360
          %1618 = vst.msk [vmem:[#allocation2 + $0x224] sm:$0xf] %vm1480, %v1361
          %1619 = vst.msk [vmem:[#allocation2 + $0x228] sm:$0xf] %vm1480, %v1362
          %1620 = vst.msk [vmem:[#allocation2 + $0x22c] sm:$0xf] %vm1480, %v1363
          %1621 = vst.msk [vmem:[#allocation2 + $0x230] sm:$0xf] %vm1480, %v1364
          %1622 = vst.msk [vmem:[#allocation2 + $0x234] sm:$0xf] %vm1480, %v1365
          %1623 = vst.msk [vmem:[#allocation2 + $0x238] sm:$0xf] %vm1480, %v1366
          %1624 = vst.msk [vmem:[#allocation2 + $0x23c] sm:$0xf] %vm1480, %v1367
          %1625 = vst.msk [vmem:[#allocation2 + $0x240] sm:$0xf] %vm1480, %v1368
          %1626 = vst.msk [vmem:[#allocation2 + $0x244] sm:$0xf] %vm1480, %v1369
          %1627 = vst.msk [vmem:[#allocation2 + $0x248] sm:$0xf] %vm1480, %v1370
          %1628 = vst.msk [vmem:[#allocation2 + $0x24c] sm:$0xf] %vm1480, %v1371
          %1629 = vst.msk [vmem:[#allocation2 + $0x250] sm:$0xf] %vm1480, %v1372
          %1630 = vst.msk [vmem:[#allocation2 + $0x254] sm:$0xf] %vm1480, %v1373
          %1631 = vst.msk [vmem:[#allocation2 + $0x258] sm:$0xf] %vm1480, %v1374
          %1632 = vst.msk [vmem:[#allocation2 + $0x25c] sm:$0xf] %vm1480, %v1375
          %1633 = vst.msk [vmem:[#allocation2 + $0x260] sm:$0xf] %vm1480, %v1376
          %1634 = vst.msk [vmem:[#allocation2 + $0x264] sm:$0xf] %vm1480, %v1377
          %1635 = vst.msk [vmem:[#allocation2 + $0x268] sm:$0xf] %vm1480, %v1378
          %1636 = vst.msk [vmem:[#allocation2 + $0x26c] sm:$0xf] %vm1480, %v1379
          %1637 = vst.msk [vmem:[#allocation2 + $0x270] sm:$0xf] %vm1480, %v1380
          %1638 = vst.msk [vmem:[#allocation2 + $0x274] sm:$0xf] %vm1480, %v1381
          %1639 = vst.msk [vmem:[#allocation2 + $0x278] sm:$0xf] %vm1480, %v1382
          %1640 = vst.msk [vmem:[#allocation2 + $0x27c] sm:$0xf] %vm1480, %v1383
          %1641 = vst.msk [vmem:[#allocation2 + $0x280] sm:$0xf] %vm1480, %v1384
          %1642 = vst.msk [vmem:[#allocation2 + $0x284] sm:$0xf] %vm1480, %v1385
          %1643 = vst.msk [vmem:[#allocation2 + $0x288] sm:$0xf] %vm1480, %v1386
          %1644 = vst.msk [vmem:[#allocation2 + $0x28c] sm:$0xf] %vm1480, %v1387
          %1645 = vst.msk [vmem:[#allocation2 + $0x290] sm:$0xf] %vm1480, %v1388
          %1646 = vst.msk [vmem:[#allocation2 + $0x294] sm:$0xf] %vm1480, %v1389
          %1647 = vst.msk [vmem:[#allocation2 + $0x298] sm:$0xf] %vm1480, %v1390
          %1648 = vst.msk [vmem:[#allocation2 + $0x29c] sm:$0xf] %vm1480, %v1391
          %1649 = vst.msk [vmem:[#allocation2 + $0x2a0] sm:$0xf] %vm1480, %v1392
          %1650 = vst.msk [vmem:[#allocation2 + $0x2a4] sm:$0xf] %vm1480, %v1393
          %1651 = vst.msk [vmem:[#allocation2 + $0x2a8] sm:$0xf] %vm1480, %v1394
          %1652 = vst.msk [vmem:[#allocation2 + $0x2ac] sm:$0xf] %vm1480, %v1395
          %1653 = vst.msk [vmem:[#allocation2 + $0x2b0] sm:$0xf] %vm1480, %v1396
          %1654 = vst.msk [vmem:[#allocation2 + $0x2b4] sm:$0xf] %vm1480, %v1397
          %1655 = vst.msk [vmem:[#allocation2 + $0x2b8] sm:$0xf] %vm1480, %v1398
          %1656 = vst.msk [vmem:[#allocation2 + $0x2bc] sm:$0xf] %vm1480, %v1399
          %1657 = vst.msk [vmem:[#allocation2 + $0x2c0] sm:$0xf] %vm1480, %v1400
          %1658 = vst.msk [vmem:[#allocation2 + $0x2c4] sm:$0xf] %vm1480, %v1401
          %1659 = vst.msk [vmem:[#allocation2 + $0x2c8] sm:$0xf] %vm1480, %v1402
          %1660 = vst.msk [vmem:[#allocation2 + $0x2cc] sm:$0xf] %vm1480, %v1403
          %1661 = vst.msk [vmem:[#allocation2 + $0x2d0] sm:$0xf] %vm1480, %v1404
          %1662 = vst.msk [vmem:[#allocation2 + $0x2d4] sm:$0xf] %vm1480, %v1405
          %1663 = vst.msk [vmem:[#allocation2 + $0x2d8] sm:$0xf] %vm1480, %v1406
          %1664 = vst.msk [vmem:[#allocation2 + $0x2dc] sm:$0xf] %vm1480, %v1407
          %1665 = vst.msk [vmem:[#allocation2 + $0x2e0] sm:$0xf] %vm1480, %v1408
          %1666 = vst.msk [vmem:[#allocation2 + $0x2e4] sm:$0xf] %vm1480, %v1409
          %1667 = vst.msk [vmem:[#allocation2 + $0x2e8] sm:$0xf] %vm1480, %v1410
          %1668 = vst.msk [vmem:[#allocation2 + $0x2ec] sm:$0xf] %vm1480, %v1411
          %1669 = vst.msk [vmem:[#allocation2 + $0x2f0] sm:$0xf] %vm1480, %v1412
          %1670 = vst.msk [vmem:[#allocation2 + $0x2f4] sm:$0xf] %vm1480, %v1413
          %1671 = vst.msk [vmem:[#allocation2 + $0x2f8] sm:$0xf] %vm1480, %v1414
          %1672 = vst.msk [vmem:[#allocation2 + $0x2fc] sm:$0xf] %vm1480, %v1415
          %1673 = vst.msk [vmem:[#allocation2 + $0x300] sm:$0xf] %vm1480, %v1416
          %1674 = vst.msk [vmem:[#allocation2 + $0x304] sm:$0xf] %vm1480, %v1417
          %1675 = vst.msk [vmem:[#allocation2 + $0x308] sm:$0xf] %vm1480, %v1418
          %1676 = vst.msk [vmem:[#allocation2 + $0x30c] sm:$0xf] %vm1480, %v1419
          %1677 = vst.msk [vmem:[#allocation2 + $0x310] sm:$0xf] %vm1480, %v1420
          %1678 = vst.msk [vmem:[#allocation2 + $0x314] sm:$0xf] %vm1480, %v1421
          %1679 = vst.msk [vmem:[#allocation2 + $0x318] sm:$0xf] %vm1480, %v1422
          %1680 = vst.msk [vmem:[#allocation2 + $0x31c] sm:$0xf] %vm1480, %v1423
          %1681 = vst.msk [vmem:[#allocation2 + $0x320] sm:$0xf] %vm1480, %v1424
          %1682 = vst.msk [vmem:[#allocation2 + $0x324] sm:$0xf] %vm1480, %v1425
          %1683 = vst.msk [vmem:[#allocation2 + $0x328] sm:$0xf] %vm1480, %v1426
          %1684 = vst.msk [vmem:[#allocation2 + $0x32c] sm:$0xf] %vm1480, %v1427
          %1685 = vst.msk [vmem:[#allocation2 + $0x330] sm:$0xf] %vm1480, %v1428
          %1686 = vst.msk [vmem:[#allocation2 + $0x334] sm:$0xf] %vm1480, %v1429
          %1687 = vst.msk [vmem:[#allocation2 + $0x338] sm:$0xf] %vm1480, %v1430
          %1688 = vst.msk [vmem:[#allocation2 + $0x33c] sm:$0xf] %vm1480, %v1431
          %1689 = vst.msk [vmem:[#allocation2 + $0x340] sm:$0xf] %vm1480, %v1432
          %1690 = vst.msk [vmem:[#allocation2 + $0x344] sm:$0xf] %vm1480, %v1433
          %1691 = vst.msk [vmem:[#allocation2 + $0x348] sm:$0xf] %vm1480, %v1434
          %1692 = vst.msk [vmem:[#allocation2 + $0x34c] sm:$0xf] %vm1480, %v1435
          %1693 = vst.msk [vmem:[#allocation2 + $0x350] sm:$0xf] %vm1480, %v1436
          %1694 = vst.msk [vmem:[#allocation2 + $0x354] sm:$0xf] %vm1480, %v1437
          %1695 = vst.msk [vmem:[#allocation2 + $0x358] sm:$0xf] %vm1480, %v1438
          %1696 = vst.msk [vmem:[#allocation2 + $0x35c] sm:$0xf] %vm1480, %v1439
          %1697 = vst.msk [vmem:[#allocation2 + $0x360] sm:$0xf] %vm1480, %v1440
          %1698 = vst.msk [vmem:[#allocation2 + $0x364] sm:$0xf] %vm1480, %v1441
          %1699 = vst.msk [vmem:[#allocation2 + $0x368] sm:$0xf] %vm1480, %v1442
          %1700 = vst.msk [vmem:[#allocation2 + $0x36c] sm:$0xf] %vm1480, %v1443
          %1701 = vst.msk [vmem:[#allocation2 + $0x370] sm:$0xf] %vm1480, %v1444
          %1702 = vst.msk [vmem:[#allocation2 + $0x374] sm:$0xf] %vm1480, %v1445
          %1703 = vst.msk [vmem:[#allocation2 + $0x378] sm:$0xf] %vm1480, %v1446
          %1704 = vst.msk [vmem:[#allocation2 + $0x37c] sm:$0xf] %vm1480, %v1447
          %1705 = vst.msk [vmem:[#allocation2 + $0x380] sm:$0xf] %vm1480, %v1448
          %1706 = vst.msk [vmem:[#allocation2 + $0x384] sm:$0xf] %vm1480, %v1449
          %1707 = vst.msk [vmem:[#allocation2 + $0x388] sm:$0xf] %vm1480, %v1450
          %1708 = vst.msk [vmem:[#allocation2 + $0x38c] sm:$0xf] %vm1480, %v1451
          %1709 = vst.msk [vmem:[#allocation2 + $0x390] sm:$0xf] %vm1480, %v1452
          %1710 = vst.msk [vmem:[#allocation2 + $0x394] sm:$0xf] %vm1480, %v1453
          %1711 = vst.msk [vmem:[#allocation2 + $0x398] sm:$0xf] %vm1480, %v1454
          %1712 = vst.msk [vmem:[#allocation2 + $0x39c] sm:$0xf] %vm1480, %v1455
          %1713 = vst.msk [vmem:[#allocation2 + $0x3a0] sm:$0xf] %vm1480, %v1456
          %1714 = vst.msk [vmem:[#allocation2 + $0x3a4] sm:$0xf] %vm1480, %v1457
          %1715 = vst.msk [vmem:[#allocation2 + $0x3a8] sm:$0xf] %vm1480, %v1458
          %1716 = vst.msk [vmem:[#allocation2 + $0x3ac] sm:$0xf] %vm1480, %v1459
          %1717 = vst.msk [vmem:[#allocation2 + $0x3b0] sm:$0xf] %vm1480, %v1460
          %1718 = vst.msk [vmem:[#allocation2 + $0x3b4] sm:$0xf] %vm1480, %v1461
          %1719 = vst.msk [vmem:[#allocation2 + $0x3b8] sm:$0xf] %vm1480, %v1462
          %1720 = vst.msk [vmem:[#allocation2 + $0x3bc] sm:$0xf] %vm1480, %v1463
          %1721 = vst.msk [vmem:[#allocation2 + $0x3c0] sm:$0xf] %vm1480, %v1464
          %1722 = vst.msk [vmem:[#allocation2 + $0x3c4] sm:$0xf] %vm1480, %v1465
          %1723 = vst.msk [vmem:[#allocation2 + $0x3c8] sm:$0xf] %vm1480, %v1466
          %1724 = vst.msk [vmem:[#allocation2 + $0x3cc] sm:$0xf] %vm1480, %v1467
          %1725 = vst.msk [vmem:[#allocation2 + $0x3d0] sm:$0xf] %vm1480, %v1468
          %1726 = vst.msk [vmem:[#allocation2 + $0x3d4] sm:$0xf] %vm1480, %v1469
          %1727 = vst.msk [vmem:[#allocation2 + $0x3d8] sm:$0xf] %vm1480, %v1470
          %1728 = vst.msk [vmem:[#allocation2 + $0x3dc] sm:$0xf] %vm1480, %v1471
          %1729 = vst.msk [vmem:[#allocation2 + $0x3e0] sm:$0xf] %vm1480, %v1472
          %1730 = vst.msk [vmem:[#allocation2 + $0x3e4] sm:$0xf] %vm1480, %v1473
          %1731 = vst.msk [vmem:[#allocation2 + $0x3e8] sm:$0xf] %vm1480, %v1474
          %1732 = vst.msk [vmem:[#allocation2 + $0x3ec] sm:$0xf] %vm1480, %v1475
          %1733 = vst.msk [vmem:[#allocation2 + $0x3f0] sm:$0xf] %vm1480, %v1476
          %1734 = vst.msk [vmem:[#allocation2 + $0x3f4] sm:$0xf] %vm1480, %v1477
          %1735 = vst.msk [vmem:[#allocation2 + $0x3f8] sm:$0xf] %vm1480, %v1478
          %1736 = vst.msk [vmem:[#allocation2 + $0x3fc] sm:$0xf] %vm1480, %v1479
        $region40: #{tpu_custom_call.1} parent=31 // pred_fallthru
          _
        %v1737 = vld [vmem:[%s165] sm:$0xff]
        %v1738 = vld [vmem:[%s165 + $0x8] sm:$0xff]
        %v1739 = vld [vmem:[%s165 + $0x10] sm:$0xff]
        %v1740 = vld [vmem:[%s165 + $0x18] sm:$0xff]
        %v1741 = vld [vmem:[%s165 + $0x20] sm:$0xff]
        %v1742 = vld [vmem:[%s165 + $0x28] sm:$0xff]
        %v1743 = vld [vmem:[%s165 + $0x30] sm:$0xff]
        %v1744 = vld [vmem:[%s165 + $0x38] sm:$0xff]
        %v1745 = vld [vmem:[%s165 + $0x40] sm:$0xff]
        %v1746 = vld [vmem:[%s165 + $0x48] sm:$0xff]
        %v1747 = vld [vmem:[%s165 + $0x50] sm:$0xff]
        %v1748 = vld [vmem:[%s165 + $0x58] sm:$0xff]
        %v1749 = vld [vmem:[%s165 + $0x60] sm:$0xff]
        %v1750 = vld [vmem:[%s165 + $0x68] sm:$0xff]
        %v1751 = vld [vmem:[%s165 + $0x70] sm:$0xff]
        %v1752 = vld [vmem:[%s165 + $0x78] sm:$0xff]
        %v1753 = vld [vmem:[%s165 + $0x80] sm:$0xff]
        %v1754 = vld [vmem:[%s165 + $0x88] sm:$0xff]
        %v1755 = vld [vmem:[%s165 + $0x90] sm:$0xff]
        %v1756 = vld [vmem:[%s165 + $0x98] sm:$0xff]
        %v1757 = vld [vmem:[%s165 + $0xa0] sm:$0xff]
        %v1758 = vld [vmem:[%s165 + $0xa8] sm:$0xff]
        %v1759 = vld [vmem:[%s165 + $0xb0] sm:$0xff]
        %v1760 = vld [vmem:[%s165 + $0xb8] sm:$0xff]
        %v1761 = vld [vmem:[%s165 + $0xc0] sm:$0xff]
        %v1762 = vld [vmem:[%s165 + $0xc8] sm:$0xff]
        %v1763 = vld [vmem:[%s165 + $0xd0] sm:$0xff]
        %v1764 = vld [vmem:[%s165 + $0xd8] sm:$0xff]
        %v1765 = vld [vmem:[%s165 + $0xe0] sm:$0xff]
        %v1766 = vld [vmem:[%s165 + $0xe8] sm:$0xff]
        %v1767 = vld [vmem:[%s165 + $0xf0] sm:$0xff]
        %v1768 = vld [vmem:[%s165 + $0xf8] sm:$0xff]
        %v1769 = vld [vmem:[%s165 + $0x100] sm:$0xff]
        %v1770 = vld [vmem:[%s165 + $0x108] sm:$0xff]
        %v1771 = vld [vmem:[%s165 + $0x110] sm:$0xff]
        %v1772 = vld [vmem:[%s165 + $0x118] sm:$0xff]
        %v1773 = vld [vmem:[%s165 + $0x120] sm:$0xff]
        %v1774 = vld [vmem:[%s165 + $0x128] sm:$0xff]
        %v1775 = vld [vmem:[%s165 + $0x130] sm:$0xff]
        %v1776 = vld [vmem:[%s165 + $0x138] sm:$0xff]
        %v1777 = vld [vmem:[%s165 + $0x140] sm:$0xff]
        %v1778 = vld [vmem:[%s165 + $0x148] sm:$0xff]
        %v1779 = vld [vmem:[%s165 + $0x150] sm:$0xff]
        %v1780 = vld [vmem:[%s165 + $0x158] sm:$0xff]
        %v1781 = vld [vmem:[%s165 + $0x160] sm:$0xff]
        %v1782 = vld [vmem:[%s165 + $0x168] sm:$0xff]
        %v1783 = vld [vmem:[%s165 + $0x170] sm:$0xff]
        %v1784 = vld [vmem:[%s165 + $0x178] sm:$0xff]
        %v1785 = vld [vmem:[%s165 + $0x180] sm:$0xff]
        %v1786 = vld [vmem:[%s165 + $0x188] sm:$0xff]
        %v1787 = vld [vmem:[%s165 + $0x190] sm:$0xff]
        %v1788 = vld [vmem:[%s165 + $0x198] sm:$0xff]
        %v1789 = vld [vmem:[%s165 + $0x1a0] sm:$0xff]
        %v1790 = vld [vmem:[%s165 + $0x1a8] sm:$0xff]
        %v1791 = vld [vmem:[%s165 + $0x1b0] sm:$0xff]
        %v1792 = vld [vmem:[%s165 + $0x1b8] sm:$0xff]
        %v1793 = vld [vmem:[%s165 + $0x1c0] sm:$0xff]
        %v1794 = vld [vmem:[%s165 + $0x1c8] sm:$0xff]
        %v1795 = vld [vmem:[%s165 + $0x1d0] sm:$0xff]
        %v1796 = vld [vmem:[%s165 + $0x1d8] sm:$0xff]
        %v1797 = vld [vmem:[%s165 + $0x1e0] sm:$0xff]
        %v1798 = vld [vmem:[%s165 + $0x1e8] sm:$0xff]
        %v1799 = vld [vmem:[%s165 + $0x1f0] sm:$0xff]
        %v1800 = vld [vmem:[%s165 + $0x1f8] sm:$0xff]
        %v1801 = vld [vmem:[%s165 + $0x200] sm:$0xff]
        %v1802 = vld [vmem:[%s165 + $0x208] sm:$0xff]
        %v1803 = vld [vmem:[%s165 + $0x210] sm:$0xff]
        %v1804 = vld [vmem:[%s165 + $0x218] sm:$0xff]
        %v1805 = vld [vmem:[%s165 + $0x220] sm:$0xff]
        %v1806 = vld [vmem:[%s165 + $0x228] sm:$0xff]
        %v1807 = vld [vmem:[%s165 + $0x230] sm:$0xff]
        %v1808 = vld [vmem:[%s165 + $0x238] sm:$0xff]
        %v1809 = vld [vmem:[%s165 + $0x240] sm:$0xff]
        %v1810 = vld [vmem:[%s165 + $0x248] sm:$0xff]
        %v1811 = vld [vmem:[%s165 + $0x250] sm:$0xff]
        %v1812 = vld [vmem:[%s165 + $0x258] sm:$0xff]
        %v1813 = vld [vmem:[%s165 + $0x260] sm:$0xff]
        %v1814 = vld [vmem:[%s165 + $0x268] sm:$0xff]
        %v1815 = vld [vmem:[%s165 + $0x270] sm:$0xff]
        %v1816 = vld [vmem:[%s165 + $0x278] sm:$0xff]
        %v1817 = vld [vmem:[%s165 + $0x280] sm:$0xff]
        %v1818 = vld [vmem:[%s165 + $0x288] sm:$0xff]
        %v1819 = vld [vmem:[%s165 + $0x290] sm:$0xff]
        %v1820 = vld [vmem:[%s165 + $0x298] sm:$0xff]
        %v1821 = vld [vmem:[%s165 + $0x2a0] sm:$0xff]
        %v1822 = vld [vmem:[%s165 + $0x2a8] sm:$0xff]
        %v1823 = vld [vmem:[%s165 + $0x2b0] sm:$0xff]
        %v1824 = vld [vmem:[%s165 + $0x2b8] sm:$0xff]
        %v1825 = vld [vmem:[%s165 + $0x2c0] sm:$0xff]
        %v1826 = vld [vmem:[%s165 + $0x2c8] sm:$0xff]
        %v1827 = vld [vmem:[%s165 + $0x2d0] sm:$0xff]
        %v1828 = vld [vmem:[%s165 + $0x2d8] sm:$0xff]
        %v1829 = vld [vmem:[%s165 + $0x2e0] sm:$0xff]
        %v1830 = vld [vmem:[%s165 + $0x2e8] sm:$0xff]
        %v1831 = vld [vmem:[%s165 + $0x2f0] sm:$0xff]
        %v1832 = vld [vmem:[%s165 + $0x2f8] sm:$0xff]
        %v1833 = vld [vmem:[%s165 + $0x300] sm:$0xff]
        %v1834 = vld [vmem:[%s165 + $0x308] sm:$0xff]
        %v1835 = vld [vmem:[%s165 + $0x310] sm:$0xff]
        %v1836 = vld [vmem:[%s165 + $0x318] sm:$0xff]
        %v1837 = vld [vmem:[%s165 + $0x320] sm:$0xff]
        %v1838 = vld [vmem:[%s165 + $0x328] sm:$0xff]
        %v1839 = vld [vmem:[%s165 + $0x330] sm:$0xff]
        %v1840 = vld [vmem:[%s165 + $0x338] sm:$0xff]
        %v1841 = vld [vmem:[%s165 + $0x340] sm:$0xff]
        %v1842 = vld [vmem:[%s165 + $0x348] sm:$0xff]
        %v1843 = vld [vmem:[%s165 + $0x350] sm:$0xff]
        %v1844 = vld [vmem:[%s165 + $0x358] sm:$0xff]
        %v1845 = vld [vmem:[%s165 + $0x360] sm:$0xff]
        %v1846 = vld [vmem:[%s165 + $0x368] sm:$0xff]
        %v1847 = vld [vmem:[%s165 + $0x370] sm:$0xff]
        %v1848 = vld [vmem:[%s165 + $0x378] sm:$0xff]
        %v1849 = vld [vmem:[%s165 + $0x380] sm:$0xff]
        %v1850 = vld [vmem:[%s165 + $0x388] sm:$0xff]
        %v1851 = vld [vmem:[%s165 + $0x390] sm:$0xff]
        %v1852 = vld [vmem:[%s165 + $0x398] sm:$0xff]
        %v1853 = vld [vmem:[%s165 + $0x3a0] sm:$0xff]
        %v1854 = vld [vmem:[%s165 + $0x3a8] sm:$0xff]
        %v1855 = vld [vmem:[%s165 + $0x3b0] sm:$0xff]
        %v1856 = vld [vmem:[%s165 + $0x3b8] sm:$0xff]
        %v1857 = vld [vmem:[%s165 + $0x3c0] sm:$0xff]
        %v1858 = vld [vmem:[%s165 + $0x3c8] sm:$0xff]
        %v1859 = vld [vmem:[%s165 + $0x3d0] sm:$0xff]
        %v1860 = vld [vmem:[%s165 + $0x3d8] sm:$0xff]
        %v1861 = vld [vmem:[%s165 + $0x3e0] sm:$0xff]
        %v1862 = vld [vmem:[%s165 + $0x3e8] sm:$0xff]
        %v1863 = vld [vmem:[%s165 + $0x3f0] sm:$0xff]
        %v1864 = vld [vmem:[%s165 + $0x3f8] sm:$0xff]
        %v1865 = vld [vmem:[%s165 + $0x400] sm:$0xff]
        %v1866 = vld [vmem:[%s165 + $0x408] sm:$0xff]
        %v1867 = vld [vmem:[%s165 + $0x410] sm:$0xff]
        %v1868 = vld [vmem:[%s165 + $0x418] sm:$0xff]
        %v1869 = vld [vmem:[%s165 + $0x420] sm:$0xff]
        %v1870 = vld [vmem:[%s165 + $0x428] sm:$0xff]
        %v1871 = vld [vmem:[%s165 + $0x430] sm:$0xff]
        %v1872 = vld [vmem:[%s165 + $0x438] sm:$0xff]
        %v1873 = vld [vmem:[%s165 + $0x440] sm:$0xff]
        %v1874 = vld [vmem:[%s165 + $0x448] sm:$0xff]
        %v1875 = vld [vmem:[%s165 + $0x450] sm:$0xff]
        %v1876 = vld [vmem:[%s165 + $0x458] sm:$0xff]
        %v1877 = vld [vmem:[%s165 + $0x460] sm:$0xff]
        %v1878 = vld [vmem:[%s165 + $0x468] sm:$0xff]
        %v1879 = vld [vmem:[%s165 + $0x470] sm:$0xff]
        %v1880 = vld [vmem:[%s165 + $0x478] sm:$0xff]
        %v1881 = vld [vmem:[%s165 + $0x480] sm:$0xff]
        %v1882 = vld [vmem:[%s165 + $0x488] sm:$0xff]
        %v1883 = vld [vmem:[%s165 + $0x490] sm:$0xff]
        %v1884 = vld [vmem:[%s165 + $0x498] sm:$0xff]
        %v1885 = vld [vmem:[%s165 + $0x4a0] sm:$0xff]
        %v1886 = vld [vmem:[%s165 + $0x4a8] sm:$0xff]
        %v1887 = vld [vmem:[%s165 + $0x4b0] sm:$0xff]
        %v1888 = vld [vmem:[%s165 + $0x4b8] sm:$0xff]
        %v1889 = vld [vmem:[%s165 + $0x4c0] sm:$0xff]
        %v1890 = vld [vmem:[%s165 + $0x4c8] sm:$0xff]
        %v1891 = vld [vmem:[%s165 + $0x4d0] sm:$0xff]
        %v1892 = vld [vmem:[%s165 + $0x4d8] sm:$0xff]
        %v1893 = vld [vmem:[%s165 + $0x4e0] sm:$0xff]
        %v1894 = vld [vmem:[%s165 + $0x4e8] sm:$0xff]
        %v1895 = vld [vmem:[%s165 + $0x4f0] sm:$0xff]
        %v1896 = vld [vmem:[%s165 + $0x4f8] sm:$0xff]
        %v1897 = vld [vmem:[%s165 + $0x500] sm:$0xff]
        %v1898 = vld [vmem:[%s165 + $0x508] sm:$0xff]
        %v1899 = vld [vmem:[%s165 + $0x510] sm:$0xff]
        %v1900 = vld [vmem:[%s165 + $0x518] sm:$0xff]
        %v1901 = vld [vmem:[%s165 + $0x520] sm:$0xff]
        %v1902 = vld [vmem:[%s165 + $0x528] sm:$0xff]
        %v1903 = vld [vmem:[%s165 + $0x530] sm:$0xff]
        %v1904 = vld [vmem:[%s165 + $0x538] sm:$0xff]
        %v1905 = vld [vmem:[%s165 + $0x540] sm:$0xff]
        %v1906 = vld [vmem:[%s165 + $0x548] sm:$0xff]
        %v1907 = vld [vmem:[%s165 + $0x550] sm:$0xff]
        %v1908 = vld [vmem:[%s165 + $0x558] sm:$0xff]
        %v1909 = vld [vmem:[%s165 + $0x560] sm:$0xff]
        %v1910 = vld [vmem:[%s165 + $0x568] sm:$0xff]
        %v1911 = vld [vmem:[%s165 + $0x570] sm:$0xff]
        %v1912 = vld [vmem:[%s165 + $0x578] sm:$0xff]
        %v1913 = vld [vmem:[%s165 + $0x580] sm:$0xff]
        %v1914 = vld [vmem:[%s165 + $0x588] sm:$0xff]
        %v1915 = vld [vmem:[%s165 + $0x590] sm:$0xff]
        %v1916 = vld [vmem:[%s165 + $0x598] sm:$0xff]
        %v1917 = vld [vmem:[%s165 + $0x5a0] sm:$0xff]
        %v1918 = vld [vmem:[%s165 + $0x5a8] sm:$0xff]
        %v1919 = vld [vmem:[%s165 + $0x5b0] sm:$0xff]
        %v1920 = vld [vmem:[%s165 + $0x5b8] sm:$0xff]
        %v1921 = vld [vmem:[%s165 + $0x5c0] sm:$0xff]
        %v1922 = vld [vmem:[%s165 + $0x5c8] sm:$0xff]
        %v1923 = vld [vmem:[%s165 + $0x5d0] sm:$0xff]
        %v1924 = vld [vmem:[%s165 + $0x5d8] sm:$0xff]
        %v1925 = vld [vmem:[%s165 + $0x5e0] sm:$0xff]
        %v1926 = vld [vmem:[%s165 + $0x5e8] sm:$0xff]
        %v1927 = vld [vmem:[%s165 + $0x5f0] sm:$0xff]
        %v1928 = vld [vmem:[%s165 + $0x5f8] sm:$0xff]
        %v1929 = vld [vmem:[%s165 + $0x600] sm:$0xff]
        %v1930 = vld [vmem:[%s165 + $0x608] sm:$0xff]
        %v1931 = vld [vmem:[%s165 + $0x610] sm:$0xff]
        %v1932 = vld [vmem:[%s165 + $0x618] sm:$0xff]
        %v1933 = vld [vmem:[%s165 + $0x620] sm:$0xff]
        %v1934 = vld [vmem:[%s165 + $0x628] sm:$0xff]
        %v1935 = vld [vmem:[%s165 + $0x630] sm:$0xff]
        %v1936 = vld [vmem:[%s165 + $0x638] sm:$0xff]
        %v1937 = vld [vmem:[%s165 + $0x640] sm:$0xff]
        %v1938 = vld [vmem:[%s165 + $0x648] sm:$0xff]
        %v1939 = vld [vmem:[%s165 + $0x650] sm:$0xff]
        %v1940 = vld [vmem:[%s165 + $0x658] sm:$0xff]
        %v1941 = vld [vmem:[%s165 + $0x660] sm:$0xff]
        %v1942 = vld [vmem:[%s165 + $0x668] sm:$0xff]
        %v1943 = vld [vmem:[%s165 + $0x670] sm:$0xff]
        %v1944 = vld [vmem:[%s165 + $0x678] sm:$0xff]
        %v1945 = vld [vmem:[%s165 + $0x680] sm:$0xff]
        %v1946 = vld [vmem:[%s165 + $0x688] sm:$0xff]
        %v1947 = vld [vmem:[%s165 + $0x690] sm:$0xff]
        %v1948 = vld [vmem:[%s165 + $0x698] sm:$0xff]
        %v1949 = vld [vmem:[%s165 + $0x6a0] sm:$0xff]
        %v1950 = vld [vmem:[%s165 + $0x6a8] sm:$0xff]
        %v1951 = vld [vmem:[%s165 + $0x6b0] sm:$0xff]
        %v1952 = vld [vmem:[%s165 + $0x6b8] sm:$0xff]
        %v1953 = vld [vmem:[%s165 + $0x6c0] sm:$0xff]
        %v1954 = vld [vmem:[%s165 + $0x6c8] sm:$0xff]
        %v1955 = vld [vmem:[%s165 + $0x6d0] sm:$0xff]
        %v1956 = vld [vmem:[%s165 + $0x6d8] sm:$0xff]
        %v1957 = vld [vmem:[%s165 + $0x6e0] sm:$0xff]
        %v1958 = vld [vmem:[%s165 + $0x6e8] sm:$0xff]
        %v1959 = vld [vmem:[%s165 + $0x6f0] sm:$0xff]
        %v1960 = vld [vmem:[%s165 + $0x6f8] sm:$0xff]
        %v1961 = vld [vmem:[%s165 + $0x700] sm:$0xff]
        %v1962 = vld [vmem:[%s165 + $0x708] sm:$0xff]
        %v1963 = vld [vmem:[%s165 + $0x710] sm:$0xff]
        %v1964 = vld [vmem:[%s165 + $0x718] sm:$0xff]
        %v1965 = vld [vmem:[%s165 + $0x720] sm:$0xff]
        %v1966 = vld [vmem:[%s165 + $0x728] sm:$0xff]
        %v1967 = vld [vmem:[%s165 + $0x730] sm:$0xff]
        %v1968 = vld [vmem:[%s165 + $0x738] sm:$0xff]
        %v1969 = vld [vmem:[%s165 + $0x740] sm:$0xff]
        %v1970 = vld [vmem:[%s165 + $0x748] sm:$0xff]
        %v1971 = vld [vmem:[%s165 + $0x750] sm:$0xff]
        %v1972 = vld [vmem:[%s165 + $0x758] sm:$0xff]
        %v1973 = vld [vmem:[%s165 + $0x760] sm:$0xff]
        %v1974 = vld [vmem:[%s165 + $0x768] sm:$0xff]
        %v1975 = vld [vmem:[%s165 + $0x770] sm:$0xff]
        %v1976 = vld [vmem:[%s165 + $0x778] sm:$0xff]
        %v1977 = vld [vmem:[%s165 + $0x780] sm:$0xff]
        %v1978 = vld [vmem:[%s165 + $0x788] sm:$0xff]
        %v1979 = vld [vmem:[%s165 + $0x790] sm:$0xff]
        %v1980 = vld [vmem:[%s165 + $0x798] sm:$0xff]
        %v1981 = vld [vmem:[%s165 + $0x7a0] sm:$0xff]
        %v1982 = vld [vmem:[%s165 + $0x7a8] sm:$0xff]
        %v1983 = vld [vmem:[%s165 + $0x7b0] sm:$0xff]
        %v1984 = vld [vmem:[%s165 + $0x7b8] sm:$0xff]
        %v1985 = vld [vmem:[%s165 + $0x7c0] sm:$0xff]
        %v1986 = vld [vmem:[%s165 + $0x7c8] sm:$0xff]
        %v1987 = vld [vmem:[%s165 + $0x7d0] sm:$0xff]
        %v1988 = vld [vmem:[%s165 + $0x7d8] sm:$0xff]
        %v1989 = vld [vmem:[%s165 + $0x7e0] sm:$0xff]
        %v1990 = vld [vmem:[%s165 + $0x7e8] sm:$0xff]
        %v1991 = vld [vmem:[%s165 + $0x7f0] sm:$0xff]
        %v1992 = vld [vmem:[%s165 + $0x7f8] sm:$0xff]
        %v1993 = vld [vmem:[%s165 + $0x800] sm:$0xff]
        %v1994 = vld [vmem:[%s165 + $0x808] sm:$0xff]
        %v1995 = vld [vmem:[%s165 + $0x810] sm:$0xff]
        %v1996 = vld [vmem:[%s165 + $0x818] sm:$0xff]
        %v1997 = vld [vmem:[%s165 + $0x820] sm:$0xff]
        %v1998 = vld [vmem:[%s165 + $0x828] sm:$0xff]
        %v1999 = vld [vmem:[%s165 + $0x830] sm:$0xff]
        %v2000 = vld [vmem:[%s165 + $0x838] sm:$0xff]
        %v2001 = vld [vmem:[%s165 + $0x840] sm:$0xff]
        %v2002 = vld [vmem:[%s165 + $0x848] sm:$0xff]
        %v2003 = vld [vmem:[%s165 + $0x850] sm:$0xff]
        %v2004 = vld [vmem:[%s165 + $0x858] sm:$0xff]
        %v2005 = vld [vmem:[%s165 + $0x860] sm:$0xff]
        %v2006 = vld [vmem:[%s165 + $0x868] sm:$0xff]
        %v2007 = vld [vmem:[%s165 + $0x870] sm:$0xff]
        %v2008 = vld [vmem:[%s165 + $0x878] sm:$0xff]
        %v2009 = vld [vmem:[%s165 + $0x880] sm:$0xff]
        %v2010 = vld [vmem:[%s165 + $0x888] sm:$0xff]
        %v2011 = vld [vmem:[%s165 + $0x890] sm:$0xff]
        %v2012 = vld [vmem:[%s165 + $0x898] sm:$0xff]
        %v2013 = vld [vmem:[%s165 + $0x8a0] sm:$0xff]
        %v2014 = vld [vmem:[%s165 + $0x8a8] sm:$0xff]
        %v2015 = vld [vmem:[%s165 + $0x8b0] sm:$0xff]
        %v2016 = vld [vmem:[%s165 + $0x8b8] sm:$0xff]
        %v2017 = vld [vmem:[%s165 + $0x8c0] sm:$0xff]
        %v2018 = vld [vmem:[%s165 + $0x8c8] sm:$0xff]
        %v2019 = vld [vmem:[%s165 + $0x8d0] sm:$0xff]
        %v2020 = vld [vmem:[%s165 + $0x8d8] sm:$0xff]
        %v2021 = vld [vmem:[%s165 + $0x8e0] sm:$0xff]
        %v2022 = vld [vmem:[%s165 + $0x8e8] sm:$0xff]
        %v2023 = vld [vmem:[%s165 + $0x8f0] sm:$0xff]
        %v2024 = vld [vmem:[%s165 + $0x8f8] sm:$0xff]
        %v2025 = vld [vmem:[%s165 + $0x900] sm:$0xff]
        %v2026 = vld [vmem:[%s165 + $0x908] sm:$0xff]
        %v2027 = vld [vmem:[%s165 + $0x910] sm:$0xff]
        %v2028 = vld [vmem:[%s165 + $0x918] sm:$0xff]
        %v2029 = vld [vmem:[%s165 + $0x920] sm:$0xff]
        %v2030 = vld [vmem:[%s165 + $0x928] sm:$0xff]
        %v2031 = vld [vmem:[%s165 + $0x930] sm:$0xff]
        %v2032 = vld [vmem:[%s165 + $0x938] sm:$0xff]
        %v2033 = vld [vmem:[%s165 + $0x940] sm:$0xff]
        %v2034 = vld [vmem:[%s165 + $0x948] sm:$0xff]
        %v2035 = vld [vmem:[%s165 + $0x950] sm:$0xff]
        %v2036 = vld [vmem:[%s165 + $0x958] sm:$0xff]
        %v2037 = vld [vmem:[%s165 + $0x960] sm:$0xff]
        %v2038 = vld [vmem:[%s165 + $0x968] sm:$0xff]
        %v2039 = vld [vmem:[%s165 + $0x970] sm:$0xff]
        %v2040 = vld [vmem:[%s165 + $0x978] sm:$0xff]
        %v2041 = vld [vmem:[%s165 + $0x980] sm:$0xff]
        %v2042 = vld [vmem:[%s165 + $0x988] sm:$0xff]
        %v2043 = vld [vmem:[%s165 + $0x990] sm:$0xff]
        %v2044 = vld [vmem:[%s165 + $0x998] sm:$0xff]
        %v2045 = vld [vmem:[%s165 + $0x9a0] sm:$0xff]
        %v2046 = vld [vmem:[%s165 + $0x9a8] sm:$0xff]
        %v2047 = vld [vmem:[%s165 + $0x9b0] sm:$0xff]
        %v2048 = vld [vmem:[%s165 + $0x9b8] sm:$0xff]
        %v2049 = vld [vmem:[%s165 + $0x9c0] sm:$0xff]
        %v2050 = vld [vmem:[%s165 + $0x9c8] sm:$0xff]
        %v2051 = vld [vmem:[%s165 + $0x9d0] sm:$0xff]
        %v2052 = vld [vmem:[%s165 + $0x9d8] sm:$0xff]
        %v2053 = vld [vmem:[%s165 + $0x9e0] sm:$0xff]
        %v2054 = vld [vmem:[%s165 + $0x9e8] sm:$0xff]
        %v2055 = vld [vmem:[%s165 + $0x9f0] sm:$0xff]
        %v2056 = vld [vmem:[%s165 + $0x9f8] sm:$0xff]
        %v2057 = vld [vmem:[%s165 + $0xa00] sm:$0xff]
        %v2058 = vld [vmem:[%s165 + $0xa08] sm:$0xff]
        %v2059 = vld [vmem:[%s165 + $0xa10] sm:$0xff]
        %v2060 = vld [vmem:[%s165 + $0xa18] sm:$0xff]
        %v2061 = vld [vmem:[%s165 + $0xa20] sm:$0xff]
        %v2062 = vld [vmem:[%s165 + $0xa28] sm:$0xff]
        %v2063 = vld [vmem:[%s165 + $0xa30] sm:$0xff]
        %v2064 = vld [vmem:[%s165 + $0xa38] sm:$0xff]
        %v2065 = vld [vmem:[%s165 + $0xa40] sm:$0xff]
        %v2066 = vld [vmem:[%s165 + $0xa48] sm:$0xff]
        %v2067 = vld [vmem:[%s165 + $0xa50] sm:$0xff]
        %v2068 = vld [vmem:[%s165 + $0xa58] sm:$0xff]
        %v2069 = vld [vmem:[%s165 + $0xa60] sm:$0xff]
        %v2070 = vld [vmem:[%s165 + $0xa68] sm:$0xff]
        %v2071 = vld [vmem:[%s165 + $0xa70] sm:$0xff]
        %v2072 = vld [vmem:[%s165 + $0xa78] sm:$0xff]
        %v2073 = vld [vmem:[%s165 + $0xa80] sm:$0xff]
        %v2074 = vld [vmem:[%s165 + $0xa88] sm:$0xff]
        %v2075 = vld [vmem:[%s165 + $0xa90] sm:$0xff]
        %v2076 = vld [vmem:[%s165 + $0xa98] sm:$0xff]
        %v2077 = vld [vmem:[%s165 + $0xaa0] sm:$0xff]
        %v2078 = vld [vmem:[%s165 + $0xaa8] sm:$0xff]
        %v2079 = vld [vmem:[%s165 + $0xab0] sm:$0xff]
        %v2080 = vld [vmem:[%s165 + $0xab8] sm:$0xff]
        %v2081 = vld [vmem:[%s165 + $0xac0] sm:$0xff]
        %v2082 = vld [vmem:[%s165 + $0xac8] sm:$0xff]
        %v2083 = vld [vmem:[%s165 + $0xad0] sm:$0xff]
        %v2084 = vld [vmem:[%s165 + $0xad8] sm:$0xff]
        %v2085 = vld [vmem:[%s165 + $0xae0] sm:$0xff]
        %v2086 = vld [vmem:[%s165 + $0xae8] sm:$0xff]
        %v2087 = vld [vmem:[%s165 + $0xaf0] sm:$0xff]
        %v2088 = vld [vmem:[%s165 + $0xaf8] sm:$0xff]
        %v2089 = vld [vmem:[%s165 + $0xb00] sm:$0xff]
        %v2090 = vld [vmem:[%s165 + $0xb08] sm:$0xff]
        %v2091 = vld [vmem:[%s165 + $0xb10] sm:$0xff]
        %v2092 = vld [vmem:[%s165 + $0xb18] sm:$0xff]
        %v2093 = vld [vmem:[%s165 + $0xb20] sm:$0xff]
        %v2094 = vld [vmem:[%s165 + $0xb28] sm:$0xff]
        %v2095 = vld [vmem:[%s165 + $0xb30] sm:$0xff]
        %v2096 = vld [vmem:[%s165 + $0xb38] sm:$0xff]
        %v2097 = vld [vmem:[%s165 + $0xb40] sm:$0xff]
        %v2098 = vld [vmem:[%s165 + $0xb48] sm:$0xff]
        %v2099 = vld [vmem:[%s165 + $0xb50] sm:$0xff]
        %v2100 = vld [vmem:[%s165 + $0xb58] sm:$0xff]
        %v2101 = vld [vmem:[%s165 + $0xb60] sm:$0xff]
        %v2102 = vld [vmem:[%s165 + $0xb68] sm:$0xff]
        %v2103 = vld [vmem:[%s165 + $0xb70] sm:$0xff]
        %v2104 = vld [vmem:[%s165 + $0xb78] sm:$0xff]
        %v2105 = vld [vmem:[%s165 + $0xb80] sm:$0xff]
        %v2106 = vld [vmem:[%s165 + $0xb88] sm:$0xff]
        %v2107 = vld [vmem:[%s165 + $0xb90] sm:$0xff]
        %v2108 = vld [vmem:[%s165 + $0xb98] sm:$0xff]
        %v2109 = vld [vmem:[%s165 + $0xba0] sm:$0xff]
        %v2110 = vld [vmem:[%s165 + $0xba8] sm:$0xff]
        %v2111 = vld [vmem:[%s165 + $0xbb0] sm:$0xff]
        %v2112 = vld [vmem:[%s165 + $0xbb8] sm:$0xff]
        %v2113 = vld [vmem:[%s165 + $0xbc0] sm:$0xff]
        %v2114 = vld [vmem:[%s165 + $0xbc8] sm:$0xff]
        %v2115 = vld [vmem:[%s165 + $0xbd0] sm:$0xff]
        %v2116 = vld [vmem:[%s165 + $0xbd8] sm:$0xff]
        %v2117 = vld [vmem:[%s165 + $0xbe0] sm:$0xff]
        %v2118 = vld [vmem:[%s165 + $0xbe8] sm:$0xff]
        %v2119 = vld [vmem:[%s165 + $0xbf0] sm:$0xff]
        %v2120 = vld [vmem:[%s165 + $0xbf8] sm:$0xff]
        %v2121 = vld [vmem:[%s165 + $0xc00] sm:$0xff]
        %v2122 = vld [vmem:[%s165 + $0xc08] sm:$0xff]
        %v2123 = vld [vmem:[%s165 + $0xc10] sm:$0xff]
        %v2124 = vld [vmem:[%s165 + $0xc18] sm:$0xff]
        %v2125 = vld [vmem:[%s165 + $0xc20] sm:$0xff]
        %v2126 = vld [vmem:[%s165 + $0xc28] sm:$0xff]
        %v2127 = vld [vmem:[%s165 + $0xc30] sm:$0xff]
        %v2128 = vld [vmem:[%s165 + $0xc38] sm:$0xff]
        %v2129 = vld [vmem:[%s165 + $0xc40] sm:$0xff]
        %v2130 = vld [vmem:[%s165 + $0xc48] sm:$0xff]
        %v2131 = vld [vmem:[%s165 + $0xc50] sm:$0xff]
        %v2132 = vld [vmem:[%s165 + $0xc58] sm:$0xff]
        %v2133 = vld [vmem:[%s165 + $0xc60] sm:$0xff]
        %v2134 = vld [vmem:[%s165 + $0xc68] sm:$0xff]
        %v2135 = vld [vmem:[%s165 + $0xc70] sm:$0xff]
        %v2136 = vld [vmem:[%s165 + $0xc78] sm:$0xff]
        %v2137 = vld [vmem:[%s165 + $0xc80] sm:$0xff]
        %v2138 = vld [vmem:[%s165 + $0xc88] sm:$0xff]
        %v2139 = vld [vmem:[%s165 + $0xc90] sm:$0xff]
        %v2140 = vld [vmem:[%s165 + $0xc98] sm:$0xff]
        %v2141 = vld [vmem:[%s165 + $0xca0] sm:$0xff]
        %v2142 = vld [vmem:[%s165 + $0xca8] sm:$0xff]
        %v2143 = vld [vmem:[%s165 + $0xcb0] sm:$0xff]
        %v2144 = vld [vmem:[%s165 + $0xcb8] sm:$0xff]
        %v2145 = vld [vmem:[%s165 + $0xcc0] sm:$0xff]
        %v2146 = vld [vmem:[%s165 + $0xcc8] sm:$0xff]
        %v2147 = vld [vmem:[%s165 + $0xcd0] sm:$0xff]
        %v2148 = vld [vmem:[%s165 + $0xcd8] sm:$0xff]
        %v2149 = vld [vmem:[%s165 + $0xce0] sm:$0xff]
        %v2150 = vld [vmem:[%s165 + $0xce8] sm:$0xff]
        %v2151 = vld [vmem:[%s165 + $0xcf0] sm:$0xff]
        %v2152 = vld [vmem:[%s165 + $0xcf8] sm:$0xff]
        %v2153 = vld [vmem:[%s165 + $0xd00] sm:$0xff]
        %v2154 = vld [vmem:[%s165 + $0xd08] sm:$0xff]
        %v2155 = vld [vmem:[%s165 + $0xd10] sm:$0xff]
        %v2156 = vld [vmem:[%s165 + $0xd18] sm:$0xff]
        %v2157 = vld [vmem:[%s165 + $0xd20] sm:$0xff]
        %v2158 = vld [vmem:[%s165 + $0xd28] sm:$0xff]
        %v2159 = vld [vmem:[%s165 + $0xd30] sm:$0xff]
        %v2160 = vld [vmem:[%s165 + $0xd38] sm:$0xff]
        %v2161 = vld [vmem:[%s165 + $0xd40] sm:$0xff]
        %v2162 = vld [vmem:[%s165 + $0xd48] sm:$0xff]
        %v2163 = vld [vmem:[%s165 + $0xd50] sm:$0xff]
        %v2164 = vld [vmem:[%s165 + $0xd58] sm:$0xff]
        %v2165 = vld [vmem:[%s165 + $0xd60] sm:$0xff]
        %v2166 = vld [vmem:[%s165 + $0xd68] sm:$0xff]
        %v2167 = vld [vmem:[%s165 + $0xd70] sm:$0xff]
        %v2168 = vld [vmem:[%s165 + $0xd78] sm:$0xff]
        %v2169 = vld [vmem:[%s165 + $0xd80] sm:$0xff]
        %v2170 = vld [vmem:[%s165 + $0xd88] sm:$0xff]
        %v2171 = vld [vmem:[%s165 + $0xd90] sm:$0xff]
        %v2172 = vld [vmem:[%s165 + $0xd98] sm:$0xff]
        %v2173 = vld [vmem:[%s165 + $0xda0] sm:$0xff]
        %v2174 = vld [vmem:[%s165 + $0xda8] sm:$0xff]
        %v2175 = vld [vmem:[%s165 + $0xdb0] sm:$0xff]
        %v2176 = vld [vmem:[%s165 + $0xdb8] sm:$0xff]
        %v2177 = vld [vmem:[%s165 + $0xdc0] sm:$0xff]
        %v2178 = vld [vmem:[%s165 + $0xdc8] sm:$0xff]
        %v2179 = vld [vmem:[%s165 + $0xdd0] sm:$0xff]
        %v2180 = vld [vmem:[%s165 + $0xdd8] sm:$0xff]
        %v2181 = vld [vmem:[%s165 + $0xde0] sm:$0xff]
        %v2182 = vld [vmem:[%s165 + $0xde8] sm:$0xff]
        %v2183 = vld [vmem:[%s165 + $0xdf0] sm:$0xff]
        %v2184 = vld [vmem:[%s165 + $0xdf8] sm:$0xff]
        %v2185 = vld [vmem:[%s165 + $0xe00] sm:$0xff]
        %v2186 = vld [vmem:[%s165 + $0xe08] sm:$0xff]
        %v2187 = vld [vmem:[%s165 + $0xe10] sm:$0xff]
        %v2188 = vld [vmem:[%s165 + $0xe18] sm:$0xff]
        %v2189 = vld [vmem:[%s165 + $0xe20] sm:$0xff]
        %v2190 = vld [vmem:[%s165 + $0xe28] sm:$0xff]
        %v2191 = vld [vmem:[%s165 + $0xe30] sm:$0xff]
        %v2192 = vld [vmem:[%s165 + $0xe38] sm:$0xff]
        %v2193 = vld [vmem:[%s165 + $0xe40] sm:$0xff]
        %v2194 = vld [vmem:[%s165 + $0xe48] sm:$0xff]
        %v2195 = vld [vmem:[%s165 + $0xe50] sm:$0xff]
        %v2196 = vld [vmem:[%s165 + $0xe58] sm:$0xff]
        %v2197 = vld [vmem:[%s165 + $0xe60] sm:$0xff]
        %v2198 = vld [vmem:[%s165 + $0xe68] sm:$0xff]
        %v2199 = vld [vmem:[%s165 + $0xe70] sm:$0xff]
        %v2200 = vld [vmem:[%s165 + $0xe78] sm:$0xff]
        %v2201 = vld [vmem:[%s165 + $0xe80] sm:$0xff]
        %v2202 = vld [vmem:[%s165 + $0xe88] sm:$0xff]
        %v2203 = vld [vmem:[%s165 + $0xe90] sm:$0xff]
        %v2204 = vld [vmem:[%s165 + $0xe98] sm:$0xff]
        %v2205 = vld [vmem:[%s165 + $0xea0] sm:$0xff]
        %v2206 = vld [vmem:[%s165 + $0xea8] sm:$0xff]
        %v2207 = vld [vmem:[%s165 + $0xeb0] sm:$0xff]
        %v2208 = vld [vmem:[%s165 + $0xeb8] sm:$0xff]
        %v2209 = vld [vmem:[%s165 + $0xec0] sm:$0xff]
        %v2210 = vld [vmem:[%s165 + $0xec8] sm:$0xff]
        %v2211 = vld [vmem:[%s165 + $0xed0] sm:$0xff]
        %v2212 = vld [vmem:[%s165 + $0xed8] sm:$0xff]
        %v2213 = vld [vmem:[%s165 + $0xee0] sm:$0xff]
        %v2214 = vld [vmem:[%s165 + $0xee8] sm:$0xff]
        %v2215 = vld [vmem:[%s165 + $0xef0] sm:$0xff]
        %v2216 = vld [vmem:[%s165 + $0xef8] sm:$0xff]
        %v2217 = vld [vmem:[%s165 + $0xf00] sm:$0xff]
        %v2218 = vld [vmem:[%s165 + $0xf08] sm:$0xff]
        %v2219 = vld [vmem:[%s165 + $0xf10] sm:$0xff]
        %v2220 = vld [vmem:[%s165 + $0xf18] sm:$0xff]
        %v2221 = vld [vmem:[%s165 + $0xf20] sm:$0xff]
        %v2222 = vld [vmem:[%s165 + $0xf28] sm:$0xff]
        %v2223 = vld [vmem:[%s165 + $0xf30] sm:$0xff]
        %v2224 = vld [vmem:[%s165 + $0xf38] sm:$0xff]
        %v2225 = vld [vmem:[%s165 + $0xf40] sm:$0xff]
        %v2226 = vld [vmem:[%s165 + $0xf48] sm:$0xff]
        %v2227 = vld [vmem:[%s165 + $0xf50] sm:$0xff]
        %v2228 = vld [vmem:[%s165 + $0xf58] sm:$0xff]
        %v2229 = vld [vmem:[%s165 + $0xf60] sm:$0xff]
        %v2230 = vld [vmem:[%s165 + $0xf68] sm:$0xff]
        %v2231 = vld [vmem:[%s165 + $0xf70] sm:$0xff]
        %v2232 = vld [vmem:[%s165 + $0xf78] sm:$0xff]
        %v2233 = vld [vmem:[%s165 + $0xf80] sm:$0xff]
        %v2234 = vld [vmem:[%s165 + $0xf88] sm:$0xff]
        %v2235 = vld [vmem:[%s165 + $0xf90] sm:$0xff]
        %v2236 = vld [vmem:[%s165 + $0xf98] sm:$0xff]
        %v2237 = vld [vmem:[%s165 + $0xfa0] sm:$0xff]
        %v2238 = vld [vmem:[%s165 + $0xfa8] sm:$0xff]
        %v2239 = vld [vmem:[%s165 + $0xfb0] sm:$0xff]
        %v2240 = vld [vmem:[%s165 + $0xfb8] sm:$0xff]
        %v2241 = vld [vmem:[%s165 + $0xfc0] sm:$0xff]
        %v2242 = vld [vmem:[%s165 + $0xfc8] sm:$0xff]
        %v2243 = vld [vmem:[%s165 + $0xfd0] sm:$0xff]
        %v2244 = vld [vmem:[%s165 + $0xfd8] sm:$0xff]
        %v2245 = vld [vmem:[%s165 + $0xfe0] sm:$0xff]
        %v2246 = vld [vmem:[%s165 + $0xfe8] sm:$0xff]
        %v2247 = vld [vmem:[%s165 + $0xff0] sm:$0xff]
        %v2248 = vld [vmem:[%s165 + $0xff8] sm:$0xff]
        %v2249 = vld [vmem:[#allocation2] sm:$0xf]
        %v2250 = vld [vmem:[#allocation2 + $0x4] sm:$0xf]
        %v2251 = vld [vmem:[#allocation2 + $0x8] sm:$0xf]
        %v2252 = vld [vmem:[#allocation2 + $0xc] sm:$0xf]
        %v2253 = vld [vmem:[#allocation2 + $0x10] sm:$0xf]
        %v2254 = vld [vmem:[#allocation2 + $0x14] sm:$0xf]
        %v2255 = vld [vmem:[#allocation2 + $0x18] sm:$0xf]
        %v2256 = vld [vmem:[#allocation2 + $0x1c] sm:$0xf]
        %v2257 = vld [vmem:[#allocation2 + $0x20] sm:$0xf]
        %v2258 = vld [vmem:[#allocation2 + $0x24] sm:$0xf]
        %v2259 = vld [vmem:[#allocation2 + $0x28] sm:$0xf]
        %v2260 = vld [vmem:[#allocation2 + $0x2c] sm:$0xf]
        %v2261 = vld [vmem:[#allocation2 + $0x30] sm:$0xf]
        %v2262 = vld [vmem:[#allocation2 + $0x34] sm:$0xf]
        %v2263 = vld [vmem:[#allocation2 + $0x38] sm:$0xf]
        %v2264 = vld [vmem:[#allocation2 + $0x3c] sm:$0xf]
        %v2265 = vld [vmem:[#allocation2 + $0x40] sm:$0xf]
        %v2266 = vld [vmem:[#allocation2 + $0x44] sm:$0xf]
        %v2267 = vld [vmem:[#allocation2 + $0x48] sm:$0xf]
        %v2268 = vld [vmem:[#allocation2 + $0x4c] sm:$0xf]
        %v2269 = vld [vmem:[#allocation2 + $0x50] sm:$0xf]
        %v2270 = vld [vmem:[#allocation2 + $0x54] sm:$0xf]
        %v2271 = vld [vmem:[#allocation2 + $0x58] sm:$0xf]
        %v2272 = vld [vmem:[#allocation2 + $0x5c] sm:$0xf]
        %v2273 = vld [vmem:[#allocation2 + $0x60] sm:$0xf]
        %v2274 = vld [vmem:[#allocation2 + $0x64] sm:$0xf]
        %v2275 = vld [vmem:[#allocation2 + $0x68] sm:$0xf]
        %v2276 = vld [vmem:[#allocation2 + $0x6c] sm:$0xf]
        %v2277 = vld [vmem:[#allocation2 + $0x70] sm:$0xf]
        %v2278 = vld [vmem:[#allocation2 + $0x74] sm:$0xf]
        %v2279 = vld [vmem:[#allocation2 + $0x78] sm:$0xf]
        %v2280 = vld [vmem:[#allocation2 + $0x7c] sm:$0xf]
        %v2281 = vld [vmem:[#allocation2 + $0x80] sm:$0xf]
        %v2282 = vld [vmem:[#allocation2 + $0x84] sm:$0xf]
        %v2283 = vld [vmem:[#allocation2 + $0x88] sm:$0xf]
        %v2284 = vld [vmem:[#allocation2 + $0x8c] sm:$0xf]
        %v2285 = vld [vmem:[#allocation2 + $0x90] sm:$0xf]
        %v2286 = vld [vmem:[#allocation2 + $0x94] sm:$0xf]
        %v2287 = vld [vmem:[#allocation2 + $0x98] sm:$0xf]
        %v2288 = vld [vmem:[#allocation2 + $0x9c] sm:$0xf]
        %v2289 = vld [vmem:[#allocation2 + $0xa0] sm:$0xf]
        %v2290 = vld [vmem:[#allocation2 + $0xa4] sm:$0xf]
        %v2291 = vld [vmem:[#allocation2 + $0xa8] sm:$0xf]
        %v2292 = vld [vmem:[#allocation2 + $0xac] sm:$0xf]
        %v2293 = vld [vmem:[#allocation2 + $0xb0] sm:$0xf]
        %v2294 = vld [vmem:[#allocation2 + $0xb4] sm:$0xf]
        %v2295 = vld [vmem:[#allocation2 + $0xb8] sm:$0xf]
        %v2296 = vld [vmem:[#allocation2 + $0xbc] sm:$0xf]
        %v2297 = vld [vmem:[#allocation2 + $0xc0] sm:$0xf]
        %v2298 = vld [vmem:[#allocation2 + $0xc4] sm:$0xf]
        %v2299 = vld [vmem:[#allocation2 + $0xc8] sm:$0xf]
        %v2300 = vld [vmem:[#allocation2 + $0xcc] sm:$0xf]
        %v2301 = vld [vmem:[#allocation2 + $0xd0] sm:$0xf]
        %v2302 = vld [vmem:[#allocation2 + $0xd4] sm:$0xf]
        %v2303 = vld [vmem:[#allocation2 + $0xd8] sm:$0xf]
        %v2304 = vld [vmem:[#allocation2 + $0xdc] sm:$0xf]
        %v2305 = vld [vmem:[#allocation2 + $0xe0] sm:$0xf]
        %v2306 = vld [vmem:[#allocation2 + $0xe4] sm:$0xf]
        %v2307 = vld [vmem:[#allocation2 + $0xe8] sm:$0xf]
        %v2308 = vld [vmem:[#allocation2 + $0xec] sm:$0xf]
        %v2309 = vld [vmem:[#allocation2 + $0xf0] sm:$0xf]
        %v2310 = vld [vmem:[#allocation2 + $0xf4] sm:$0xf]
        %v2311 = vld [vmem:[#allocation2 + $0xf8] sm:$0xf]
        %v2312 = vld [vmem:[#allocation2 + $0xfc] sm:$0xf]
        %v2313 = vld [vmem:[#allocation2 + $0x100] sm:$0xf]
        %v2314 = vld [vmem:[#allocation2 + $0x104] sm:$0xf]
        %v2315 = vld [vmem:[#allocation2 + $0x108] sm:$0xf]
        %v2316 = vld [vmem:[#allocation2 + $0x10c] sm:$0xf]
        %v2317 = vld [vmem:[#allocation2 + $0x110] sm:$0xf]
        %v2318 = vld [vmem:[#allocation2 + $0x114] sm:$0xf]
        %v2319 = vld [vmem:[#allocation2 + $0x118] sm:$0xf]
        %v2320 = vld [vmem:[#allocation2 + $0x11c] sm:$0xf]
        %v2321 = vld [vmem:[#allocation2 + $0x120] sm:$0xf]
        %v2322 = vld [vmem:[#allocation2 + $0x124] sm:$0xf]
        %v2323 = vld [vmem:[#allocation2 + $0x128] sm:$0xf]
        %v2324 = vld [vmem:[#allocation2 + $0x12c] sm:$0xf]
        %v2325 = vld [vmem:[#allocation2 + $0x130] sm:$0xf]
        %v2326 = vld [vmem:[#allocation2 + $0x134] sm:$0xf]
        %v2327 = vld [vmem:[#allocation2 + $0x138] sm:$0xf]
        %v2328 = vld [vmem:[#allocation2 + $0x13c] sm:$0xf]
        %v2329 = vld [vmem:[#allocation2 + $0x140] sm:$0xf]
        %v2330 = vld [vmem:[#allocation2 + $0x144] sm:$0xf]
        %v2331 = vld [vmem:[#allocation2 + $0x148] sm:$0xf]
        %v2332 = vld [vmem:[#allocation2 + $0x14c] sm:$0xf]
        %v2333 = vld [vmem:[#allocation2 + $0x150] sm:$0xf]
        %v2334 = vld [vmem:[#allocation2 + $0x154] sm:$0xf]
        %v2335 = vld [vmem:[#allocation2 + $0x158] sm:$0xf]
        %v2336 = vld [vmem:[#allocation2 + $0x15c] sm:$0xf]
        %v2337 = vld [vmem:[#allocation2 + $0x160] sm:$0xf]
        %v2338 = vld [vmem:[#allocation2 + $0x164] sm:$0xf]
        %v2339 = vld [vmem:[#allocation2 + $0x168] sm:$0xf]
        %v2340 = vld [vmem:[#allocation2 + $0x16c] sm:$0xf]
        %v2341 = vld [vmem:[#allocation2 + $0x170] sm:$0xf]
        %v2342 = vld [vmem:[#allocation2 + $0x174] sm:$0xf]
        %v2343 = vld [vmem:[#allocation2 + $0x178] sm:$0xf]
        %v2344 = vld [vmem:[#allocation2 + $0x17c] sm:$0xf]
        %v2345 = vld [vmem:[#allocation2 + $0x180] sm:$0xf]
        %v2346 = vld [vmem:[#allocation2 + $0x184] sm:$0xf]
        %v2347 = vld [vmem:[#allocation2 + $0x188] sm:$0xf]
        %v2348 = vld [vmem:[#allocation2 + $0x18c] sm:$0xf]
        %v2349 = vld [vmem:[#allocation2 + $0x190] sm:$0xf]
        %v2350 = vld [vmem:[#allocation2 + $0x194] sm:$0xf]
        %v2351 = vld [vmem:[#allocation2 + $0x198] sm:$0xf]
        %v2352 = vld [vmem:[#allocation2 + $0x19c] sm:$0xf]
        %v2353 = vld [vmem:[#allocation2 + $0x1a0] sm:$0xf]
        %v2354 = vld [vmem:[#allocation2 + $0x1a4] sm:$0xf]
        %v2355 = vld [vmem:[#allocation2 + $0x1a8] sm:$0xf]
        %v2356 = vld [vmem:[#allocation2 + $0x1ac] sm:$0xf]
        %v2357 = vld [vmem:[#allocation2 + $0x1b0] sm:$0xf]
        %v2358 = vld [vmem:[#allocation2 + $0x1b4] sm:$0xf]
        %v2359 = vld [vmem:[#allocation2 + $0x1b8] sm:$0xf]
        %v2360 = vld [vmem:[#allocation2 + $0x1bc] sm:$0xf]
        %v2361 = vld [vmem:[#allocation2 + $0x1c0] sm:$0xf]
        %v2362 = vld [vmem:[#allocation2 + $0x1c4] sm:$0xf]
        %v2363 = vld [vmem:[#allocation2 + $0x1c8] sm:$0xf]
        %v2364 = vld [vmem:[#allocation2 + $0x1cc] sm:$0xf]
        %v2365 = vld [vmem:[#allocation2 + $0x1d0] sm:$0xf]
        %v2366 = vld [vmem:[#allocation2 + $0x1d4] sm:$0xf]
        %v2367 = vld [vmem:[#allocation2 + $0x1d8] sm:$0xf]
        %v2368 = vld [vmem:[#allocation2 + $0x1dc] sm:$0xf]
        %v2369 = vld [vmem:[#allocation2 + $0x1e0] sm:$0xf]
        %v2370 = vld [vmem:[#allocation2 + $0x1e4] sm:$0xf]
        %v2371 = vld [vmem:[#allocation2 + $0x1e8] sm:$0xf]
        %v2372 = vld [vmem:[#allocation2 + $0x1ec] sm:$0xf]
        %v2373 = vld [vmem:[#allocation2 + $0x1f0] sm:$0xf]
        %v2374 = vld [vmem:[#allocation2 + $0x1f4] sm:$0xf]
        %v2375 = vld [vmem:[#allocation2 + $0x1f8] sm:$0xf]
        %v2376 = vld [vmem:[#allocation2 + $0x1fc] sm:$0xf]
        %v2377 = vld [vmem:[#allocation2 + $0x200] sm:$0xf]
        %v2378 = vld [vmem:[#allocation2 + $0x204] sm:$0xf]
        %v2379 = vld [vmem:[#allocation2 + $0x208] sm:$0xf]
        %v2380 = vld [vmem:[#allocation2 + $0x20c] sm:$0xf]
        %v2381 = vld [vmem:[#allocation2 + $0x210] sm:$0xf]
        %v2382 = vld [vmem:[#allocation2 + $0x214] sm:$0xf]
        %v2383 = vld [vmem:[#allocation2 + $0x218] sm:$0xf]
        %v2384 = vld [vmem:[#allocation2 + $0x21c] sm:$0xf]
        %v2385 = vld [vmem:[#allocation2 + $0x220] sm:$0xf]
        %v2386 = vld [vmem:[#allocation2 + $0x224] sm:$0xf]
        %v2387 = vld [vmem:[#allocation2 + $0x228] sm:$0xf]
        %v2388 = vld [vmem:[#allocation2 + $0x22c] sm:$0xf]
        %v2389 = vld [vmem:[#allocation2 + $0x230] sm:$0xf]
        %v2390 = vld [vmem:[#allocation2 + $0x234] sm:$0xf]
        %v2391 = vld [vmem:[#allocation2 + $0x238] sm:$0xf]
        %v2392 = vld [vmem:[#allocation2 + $0x23c] sm:$0xf]
        %v2393 = vld [vmem:[#allocation2 + $0x240] sm:$0xf]
        %v2394 = vld [vmem:[#allocation2 + $0x244] sm:$0xf]
        %v2395 = vld [vmem:[#allocation2 + $0x248] sm:$0xf]
        %v2396 = vld [vmem:[#allocation2 + $0x24c] sm:$0xf]
        %v2397 = vld [vmem:[#allocation2 + $0x250] sm:$0xf]
        %v2398 = vld [vmem:[#allocation2 + $0x254] sm:$0xf]
        %v2399 = vld [vmem:[#allocation2 + $0x258] sm:$0xf]
        %v2400 = vld [vmem:[#allocation2 + $0x25c] sm:$0xf]
        %v2401 = vld [vmem:[#allocation2 + $0x260] sm:$0xf]
        %v2402 = vld [vmem:[#allocation2 + $0x264] sm:$0xf]
        %v2403 = vld [vmem:[#allocation2 + $0x268] sm:$0xf]
        %v2404 = vld [vmem:[#allocation2 + $0x26c] sm:$0xf]
        %v2405 = vld [vmem:[#allocation2 + $0x270] sm:$0xf]
        %v2406 = vld [vmem:[#allocation2 + $0x274] sm:$0xf]
        %v2407 = vld [vmem:[#allocation2 + $0x278] sm:$0xf]
        %v2408 = vld [vmem:[#allocation2 + $0x27c] sm:$0xf]
        %v2409 = vld [vmem:[#allocation2 + $0x280] sm:$0xf]
        %v2410 = vld [vmem:[#allocation2 + $0x284] sm:$0xf]
        %v2411 = vld [vmem:[#allocation2 + $0x288] sm:$0xf]
        %v2412 = vld [vmem:[#allocation2 + $0x28c] sm:$0xf]
        %v2413 = vld [vmem:[#allocation2 + $0x290] sm:$0xf]
        %v2414 = vld [vmem:[#allocation2 + $0x294] sm:$0xf]
        %v2415 = vld [vmem:[#allocation2 + $0x298] sm:$0xf]
        %v2416 = vld [vmem:[#allocation2 + $0x29c] sm:$0xf]
        %v2417 = vld [vmem:[#allocation2 + $0x2a0] sm:$0xf]
        %v2418 = vld [vmem:[#allocation2 + $0x2a4] sm:$0xf]
        %v2419 = vld [vmem:[#allocation2 + $0x2a8] sm:$0xf]
        %v2420 = vld [vmem:[#allocation2 + $0x2ac] sm:$0xf]
        %v2421 = vld [vmem:[#allocation2 + $0x2b0] sm:$0xf]
        %v2422 = vld [vmem:[#allocation2 + $0x2b4] sm:$0xf]
        %v2423 = vld [vmem:[#allocation2 + $0x2b8] sm:$0xf]
        %v2424 = vld [vmem:[#allocation2 + $0x2bc] sm:$0xf]
        %v2425 = vld [vmem:[#allocation2 + $0x2c0] sm:$0xf]
        %v2426 = vld [vmem:[#allocation2 + $0x2c4] sm:$0xf]
        %v2427 = vld [vmem:[#allocation2 + $0x2c8] sm:$0xf]
        %v2428 = vld [vmem:[#allocation2 + $0x2cc] sm:$0xf]
        %v2429 = vld [vmem:[#allocation2 + $0x2d0] sm:$0xf]
        %v2430 = vld [vmem:[#allocation2 + $0x2d4] sm:$0xf]
        %v2431 = vld [vmem:[#allocation2 + $0x2d8] sm:$0xf]
        %v2432 = vld [vmem:[#allocation2 + $0x2dc] sm:$0xf]
        %v2433 = vld [vmem:[#allocation2 + $0x2e0] sm:$0xf]
        %v2434 = vld [vmem:[#allocation2 + $0x2e4] sm:$0xf]
        %v2435 = vld [vmem:[#allocation2 + $0x2e8] sm:$0xf]
        %v2436 = vld [vmem:[#allocation2 + $0x2ec] sm:$0xf]
        %v2437 = vld [vmem:[#allocation2 + $0x2f0] sm:$0xf]
        %v2438 = vld [vmem:[#allocation2 + $0x2f4] sm:$0xf]
        %v2439 = vld [vmem:[#allocation2 + $0x2f8] sm:$0xf]
        %v2440 = vld [vmem:[#allocation2 + $0x2fc] sm:$0xf]
        %v2441 = vld [vmem:[#allocation2 + $0x300] sm:$0xf]
        %v2442 = vld [vmem:[#allocation2 + $0x304] sm:$0xf]
        %v2443 = vld [vmem:[#allocation2 + $0x308] sm:$0xf]
        %v2444 = vld [vmem:[#allocation2 + $0x30c] sm:$0xf]
        %v2445 = vld [vmem:[#allocation2 + $0x310] sm:$0xf]
        %v2446 = vld [vmem:[#allocation2 + $0x314] sm:$0xf]
        %v2447 = vld [vmem:[#allocation2 + $0x318] sm:$0xf]
        %v2448 = vld [vmem:[#allocation2 + $0x31c] sm:$0xf]
        %v2449 = vld [vmem:[#allocation2 + $0x320] sm:$0xf]
        %v2450 = vld [vmem:[#allocation2 + $0x324] sm:$0xf]
        %v2451 = vld [vmem:[#allocation2 + $0x328] sm:$0xf]
        %v2452 = vld [vmem:[#allocation2 + $0x32c] sm:$0xf]
        %v2453 = vld [vmem:[#allocation2 + $0x330] sm:$0xf]
        %v2454 = vld [vmem:[#allocation2 + $0x334] sm:$0xf]
        %v2455 = vld [vmem:[#allocation2 + $0x338] sm:$0xf]
        %v2456 = vld [vmem:[#allocation2 + $0x33c] sm:$0xf]
        %v2457 = vld [vmem:[#allocation2 + $0x340] sm:$0xf]
        %v2458 = vld [vmem:[#allocation2 + $0x344] sm:$0xf]
        %v2459 = vld [vmem:[#allocation2 + $0x348] sm:$0xf]
        %v2460 = vld [vmem:[#allocation2 + $0x34c] sm:$0xf]
        %v2461 = vld [vmem:[#allocation2 + $0x350] sm:$0xf]
        %v2462 = vld [vmem:[#allocation2 + $0x354] sm:$0xf]
        %v2463 = vld [vmem:[#allocation2 + $0x358] sm:$0xf]
        %v2464 = vld [vmem:[#allocation2 + $0x35c] sm:$0xf]
        %v2465 = vld [vmem:[#allocation2 + $0x360] sm:$0xf]
        %v2466 = vld [vmem:[#allocation2 + $0x364] sm:$0xf]
        %v2467 = vld [vmem:[#allocation2 + $0x368] sm:$0xf]
        %v2468 = vld [vmem:[#allocation2 + $0x36c] sm:$0xf]
        %v2469 = vld [vmem:[#allocation2 + $0x370] sm:$0xf]
        %v2470 = vld [vmem:[#allocation2 + $0x374] sm:$0xf]
        %v2471 = vld [vmem:[#allocation2 + $0x378] sm:$0xf]
        %v2472 = vld [vmem:[#allocation2 + $0x37c] sm:$0xf]
        %v2473 = vld [vmem:[#allocation2 + $0x380] sm:$0xf]
        %v2474 = vld [vmem:[#allocation2 + $0x384] sm:$0xf]
        %v2475 = vld [vmem:[#allocation2 + $0x388] sm:$0xf]
        %v2476 = vld [vmem:[#allocation2 + $0x38c] sm:$0xf]
        %v2477 = vld [vmem:[#allocation2 + $0x390] sm:$0xf]
        %v2478 = vld [vmem:[#allocation2 + $0x394] sm:$0xf]
        %v2479 = vld [vmem:[#allocation2 + $0x398] sm:$0xf]
        %v2480 = vld [vmem:[#allocation2 + $0x39c] sm:$0xf]
        %v2481 = vld [vmem:[#allocation2 + $0x3a0] sm:$0xf]
        %v2482 = vld [vmem:[#allocation2 + $0x3a4] sm:$0xf]
        %v2483 = vld [vmem:[#allocation2 + $0x3a8] sm:$0xf]
        %v2484 = vld [vmem:[#allocation2 + $0x3ac] sm:$0xf]
        %v2485 = vld [vmem:[#allocation2 + $0x3b0] sm:$0xf]
        %v2486 = vld [vmem:[#allocation2 + $0x3b4] sm:$0xf]
        %v2487 = vld [vmem:[#allocation2 + $0x3b8] sm:$0xf]
        %v2488 = vld [vmem:[#allocation2 + $0x3bc] sm:$0xf]
        %v2489 = vld [vmem:[#allocation2 + $0x3c0] sm:$0xf]
        %v2490 = vld [vmem:[#allocation2 + $0x3c4] sm:$0xf]
        %v2491 = vld [vmem:[#allocation2 + $0x3c8] sm:$0xf]
        %v2492 = vld [vmem:[#allocation2 + $0x3cc] sm:$0xf]
        %v2493 = vld [vmem:[#allocation2 + $0x3d0] sm:$0xf]
        %v2494 = vld [vmem:[#allocation2 + $0x3d4] sm:$0xf]
        %v2495 = vld [vmem:[#allocation2 + $0x3d8] sm:$0xf]
        %v2496 = vld [vmem:[#allocation2 + $0x3dc] sm:$0xf]
        %v2497 = vld [vmem:[#allocation2 + $0x3e0] sm:$0xf]
        %v2498 = vld [vmem:[#allocation2 + $0x3e4] sm:$0xf]
        %v2499 = vld [vmem:[#allocation2 + $0x3e8] sm:$0xf]
        %v2500 = vld [vmem:[#allocation2 + $0x3ec] sm:$0xf]
        %v2501 = vld [vmem:[#allocation2 + $0x3f0] sm:$0xf]
        %v2502 = vld [vmem:[#allocation2 + $0x3f4] sm:$0xf]
        %v2503 = vld [vmem:[#allocation2 + $0x3f8] sm:$0xf]
        %v2504 = vld [vmem:[#allocation2 + $0x3fc] sm:$0xf]
        %v3017 = vunpack.c.l.b16 %v1737
        %v3018 = vunpack.c.h.b16 %v1737
        %v3019 = vunpack.c.l.b16 %v1738
        %v3020 = vunpack.c.h.b16 %v1738
        %v3021 = vunpack.c.l.b16 %v1739
        %v3022 = vunpack.c.h.b16 %v1739
        %v3023 = vunpack.c.l.b16 %v1740
        %v3024 = vunpack.c.h.b16 %v1740
        %v3025 = vunpack.c.l.b16 %v1741
        %v3026 = vunpack.c.h.b16 %v1741
        %v3027 = vunpack.c.l.b16 %v1742
        %v3028 = vunpack.c.h.b16 %v1742
        %v3029 = vunpack.c.l.b16 %v1743
        %v3030 = vunpack.c.h.b16 %v1743
        %v3031 = vunpack.c.l.b16 %v1744
        %v3032 = vunpack.c.h.b16 %v1744
        %v3033 = vunpack.c.l.b16 %v1745
        %v3034 = vunpack.c.h.b16 %v1745
        %v3035 = vunpack.c.l.b16 %v1746
        %v3036 = vunpack.c.h.b16 %v1746
        %v3037 = vunpack.c.l.b16 %v1747
        %v3038 = vunpack.c.h.b16 %v1747
        %v3039 = vunpack.c.l.b16 %v1748
        %v3040 = vunpack.c.h.b16 %v1748
        %v3041 = vunpack.c.l.b16 %v1749
        %v3042 = vunpack.c.h.b16 %v1749
        %v3043 = vunpack.c.l.b16 %v1750
        %v3044 = vunpack.c.h.b16 %v1750
        %v3045 = vunpack.c.l.b16 %v1751
        %v3046 = vunpack.c.h.b16 %v1751
        %v3047 = vunpack.c.l.b16 %v1752
        %v3048 = vunpack.c.h.b16 %v1752
        %v3049 = vunpack.c.l.b16 %v1753
        %v3050 = vunpack.c.h.b16 %v1753
        %v3051 = vunpack.c.l.b16 %v1754
        %v3052 = vunpack.c.h.b16 %v1754
        %v3053 = vunpack.c.l.b16 %v1755
        %v3054 = vunpack.c.h.b16 %v1755
        %v3055 = vunpack.c.l.b16 %v1756
        %v3056 = vunpack.c.h.b16 %v1756
        %v3057 = vunpack.c.l.b16 %v1757
        %v3058 = vunpack.c.h.b16 %v1757
        %v3059 = vunpack.c.l.b16 %v1758
        %v3060 = vunpack.c.h.b16 %v1758
        %v3061 = vunpack.c.l.b16 %v1759
        %v3062 = vunpack.c.h.b16 %v1759
        %v3063 = vunpack.c.l.b16 %v1760
        %v3064 = vunpack.c.h.b16 %v1760
        %v3065 = vunpack.c.l.b16 %v1761
        %v3066 = vunpack.c.h.b16 %v1761
        %v3067 = vunpack.c.l.b16 %v1762
        %v3068 = vunpack.c.h.b16 %v1762
        %v3069 = vunpack.c.l.b16 %v1763
        %v3070 = vunpack.c.h.b16 %v1763
        %v3071 = vunpack.c.l.b16 %v1764
        %v3072 = vunpack.c.h.b16 %v1764
        %v3073 = vunpack.c.l.b16 %v1765
        %v3074 = vunpack.c.h.b16 %v1765
        %v3075 = vunpack.c.l.b16 %v1766
        %v3076 = vunpack.c.h.b16 %v1766
        %v3077 = vunpack.c.l.b16 %v1767
        %v3078 = vunpack.c.h.b16 %v1767
        %v3079 = vunpack.c.l.b16 %v1768
        %v3080 = vunpack.c.h.b16 %v1768
        %v3081 = vunpack.c.l.b16 %v1769
        %v3082 = vunpack.c.h.b16 %v1769
        %v3083 = vunpack.c.l.b16 %v1770
        %v3084 = vunpack.c.h.b16 %v1770
        %v3085 = vunpack.c.l.b16 %v1771
        %v3086 = vunpack.c.h.b16 %v1771
        %v3087 = vunpack.c.l.b16 %v1772
        %v3088 = vunpack.c.h.b16 %v1772
        %v3089 = vunpack.c.l.b16 %v1773
        %v3090 = vunpack.c.h.b16 %v1773
        %v3091 = vunpack.c.l.b16 %v1774
        %v3092 = vunpack.c.h.b16 %v1774
        %v3093 = vunpack.c.l.b16 %v1775
        %v3094 = vunpack.c.h.b16 %v1775
        %v3095 = vunpack.c.l.b16 %v1776
        %v3096 = vunpack.c.h.b16 %v1776
        %v3097 = vunpack.c.l.b16 %v1777
        %v3098 = vunpack.c.h.b16 %v1777
        %v3099 = vunpack.c.l.b16 %v1778
        %v3100 = vunpack.c.h.b16 %v1778
        %v3101 = vunpack.c.l.b16 %v1779
        %v3102 = vunpack.c.h.b16 %v1779
        %v3103 = vunpack.c.l.b16 %v1780
        %v3104 = vunpack.c.h.b16 %v1780
        %v3105 = vunpack.c.l.b16 %v1781
        %v3106 = vunpack.c.h.b16 %v1781
        %v3107 = vunpack.c.l.b16 %v1782
        %v3108 = vunpack.c.h.b16 %v1782
        %v3109 = vunpack.c.l.b16 %v1783
        %v3110 = vunpack.c.h.b16 %v1783
        %v3111 = vunpack.c.l.b16 %v1784
        %v3112 = vunpack.c.h.b16 %v1784
        %v3113 = vunpack.c.l.b16 %v1785
        %v3114 = vunpack.c.h.b16 %v1785
        %v3115 = vunpack.c.l.b16 %v1786
        %v3116 = vunpack.c.h.b16 %v1786
        %v3117 = vunpack.c.l.b16 %v1787
        %v3118 = vunpack.c.h.b16 %v1787
        %v3119 = vunpack.c.l.b16 %v1788
        %v3120 = vunpack.c.h.b16 %v1788
        %v3121 = vunpack.c.l.b16 %v1789
        %v3122 = vunpack.c.h.b16 %v1789
        %v3123 = vunpack.c.l.b16 %v1790
        %v3124 = vunpack.c.h.b16 %v1790
        %v3125 = vunpack.c.l.b16 %v1791
        %v3126 = vunpack.c.h.b16 %v1791
        %v3127 = vunpack.c.l.b16 %v1792
        %v3128 = vunpack.c.h.b16 %v1792
        %v3129 = vunpack.c.l.b16 %v1793
        %v3130 = vunpack.c.h.b16 %v1793
        %v3131 = vunpack.c.l.b16 %v1794
        %v3132 = vunpack.c.h.b16 %v1794
        %v3133 = vunpack.c.l.b16 %v1795
        %v3134 = vunpack.c.h.b16 %v1795
        %v3135 = vunpack.c.l.b16 %v1796
        %v3136 = vunpack.c.h.b16 %v1796
        %v3137 = vunpack.c.l.b16 %v1797
        %v3138 = vunpack.c.h.b16 %v1797
        %v3139 = vunpack.c.l.b16 %v1798
        %v3140 = vunpack.c.h.b16 %v1798
        %v3141 = vunpack.c.l.b16 %v1799
        %v3142 = vunpack.c.h.b16 %v1799
        %v3143 = vunpack.c.l.b16 %v1800
        %v3144 = vunpack.c.h.b16 %v1800
        %v3145 = vunpack.c.l.b16 %v1801
        %v3146 = vunpack.c.h.b16 %v1801
        %v3147 = vunpack.c.l.b16 %v1802
        %v3148 = vunpack.c.h.b16 %v1802
        %v3149 = vunpack.c.l.b16 %v1803
        %v3150 = vunpack.c.h.b16 %v1803
        %v3151 = vunpack.c.l.b16 %v1804
        %v3152 = vunpack.c.h.b16 %v1804
        %v3153 = vunpack.c.l.b16 %v1805
        %v3154 = vunpack.c.h.b16 %v1805
        %v3155 = vunpack.c.l.b16 %v1806
        %v3156 = vunpack.c.h.b16 %v1806
        %v3157 = vunpack.c.l.b16 %v1807
        %v3158 = vunpack.c.h.b16 %v1807
        %v3159 = vunpack.c.l.b16 %v1808
        %v3160 = vunpack.c.h.b16 %v1808
        %v3161 = vunpack.c.l.b16 %v1809
        %v3162 = vunpack.c.h.b16 %v1809
        %v3163 = vunpack.c.l.b16 %v1810
        %v3164 = vunpack.c.h.b16 %v1810
        %v3165 = vunpack.c.l.b16 %v1811
        %v3166 = vunpack.c.h.b16 %v1811
        %v3167 = vunpack.c.l.b16 %v1812
        %v3168 = vunpack.c.h.b16 %v1812
        %v3169 = vunpack.c.l.b16 %v1813
        %v3170 = vunpack.c.h.b16 %v1813
        %v3171 = vunpack.c.l.b16 %v1814
        %v3172 = vunpack.c.h.b16 %v1814
        %v3173 = vunpack.c.l.b16 %v1815
        %v3174 = vunpack.c.h.b16 %v1815
        %v3175 = vunpack.c.l.b16 %v1816
        %v3176 = vunpack.c.h.b16 %v1816
        %v3177 = vunpack.c.l.b16 %v1817
        %v3178 = vunpack.c.h.b16 %v1817
        %v3179 = vunpack.c.l.b16 %v1818
        %v3180 = vunpack.c.h.b16 %v1818
        %v3181 = vunpack.c.l.b16 %v1819
        %v3182 = vunpack.c.h.b16 %v1819
        %v3183 = vunpack.c.l.b16 %v1820
        %v3184 = vunpack.c.h.b16 %v1820
        %v3185 = vunpack.c.l.b16 %v1821
        %v3186 = vunpack.c.h.b16 %v1821
        %v3187 = vunpack.c.l.b16 %v1822
        %v3188 = vunpack.c.h.b16 %v1822
        %v3189 = vunpack.c.l.b16 %v1823
        %v3190 = vunpack.c.h.b16 %v1823
        %v3191 = vunpack.c.l.b16 %v1824
        %v3192 = vunpack.c.h.b16 %v1824
        %v3193 = vunpack.c.l.b16 %v1825
        %v3194 = vunpack.c.h.b16 %v1825
        %v3195 = vunpack.c.l.b16 %v1826
        %v3196 = vunpack.c.h.b16 %v1826
        %v3197 = vunpack.c.l.b16 %v1827
        %v3198 = vunpack.c.h.b16 %v1827
        %v3199 = vunpack.c.l.b16 %v1828
        %v3200 = vunpack.c.h.b16 %v1828
        %v3201 = vunpack.c.l.b16 %v1829
        %v3202 = vunpack.c.h.b16 %v1829
        %v3203 = vunpack.c.l.b16 %v1830
        %v3204 = vunpack.c.h.b16 %v1830
        %v3205 = vunpack.c.l.b16 %v1831
        %v3206 = vunpack.c.h.b16 %v1831
        %v3207 = vunpack.c.l.b16 %v1832
        %v3208 = vunpack.c.h.b16 %v1832
        %v3209 = vunpack.c.l.b16 %v1833
        %v3210 = vunpack.c.h.b16 %v1833
        %v3211 = vunpack.c.l.b16 %v1834
        %v3212 = vunpack.c.h.b16 %v1834
        %v3213 = vunpack.c.l.b16 %v1835
        %v3214 = vunpack.c.h.b16 %v1835
        %v3215 = vunpack.c.l.b16 %v1836
        %v3216 = vunpack.c.h.b16 %v1836
        %v3217 = vunpack.c.l.b16 %v1837
        %v3218 = vunpack.c.h.b16 %v1837
        %v3219 = vunpack.c.l.b16 %v1838
        %v3220 = vunpack.c.h.b16 %v1838
        %v3221 = vunpack.c.l.b16 %v1839
        %v3222 = vunpack.c.h.b16 %v1839
        %v3223 = vunpack.c.l.b16 %v1840
        %v3224 = vunpack.c.h.b16 %v1840
        %v3225 = vunpack.c.l.b16 %v1841
        %v3226 = vunpack.c.h.b16 %v1841
        %v3227 = vunpack.c.l.b16 %v1842
        %v3228 = vunpack.c.h.b16 %v1842
        %v3229 = vunpack.c.l.b16 %v1843
        %v3230 = vunpack.c.h.b16 %v1843
        %v3231 = vunpack.c.l.b16 %v1844
        %v3232 = vunpack.c.h.b16 %v1844
        %v3233 = vunpack.c.l.b16 %v1845
        %v3234 = vunpack.c.h.b16 %v1845
        %v3235 = vunpack.c.l.b16 %v1846
        %v3236 = vunpack.c.h.b16 %v1846
        %v3237 = vunpack.c.l.b16 %v1847
        %v3238 = vunpack.c.h.b16 %v1847
        %v3239 = vunpack.c.l.b16 %v1848
        %v3240 = vunpack.c.h.b16 %v1848
        %v3241 = vunpack.c.l.b16 %v1849
        %v3242 = vunpack.c.h.b16 %v1849
        %v3243 = vunpack.c.l.b16 %v1850
        %v3244 = vunpack.c.h.b16 %v1850
        %v3245 = vunpack.c.l.b16 %v1851
        %v3246 = vunpack.c.h.b16 %v1851
        %v3247 = vunpack.c.l.b16 %v1852
        %v3248 = vunpack.c.h.b16 %v1852
        %v3249 = vunpack.c.l.b16 %v1853
        %v3250 = vunpack.c.h.b16 %v1853
        %v3251 = vunpack.c.l.b16 %v1854
        %v3252 = vunpack.c.h.b16 %v1854
        %v3253 = vunpack.c.l.b16 %v1855
        %v3254 = vunpack.c.h.b16 %v1855
        %v3255 = vunpack.c.l.b16 %v1856
        %v3256 = vunpack.c.h.b16 %v1856
        %v3257 = vunpack.c.l.b16 %v1857
        %v3258 = vunpack.c.h.b16 %v1857
        %v3259 = vunpack.c.l.b16 %v1858
        %v3260 = vunpack.c.h.b16 %v1858
        %v3261 = vunpack.c.l.b16 %v1859
        %v3262 = vunpack.c.h.b16 %v1859
        %v3263 = vunpack.c.l.b16 %v1860
        %v3264 = vunpack.c.h.b16 %v1860
        %v3265 = vunpack.c.l.b16 %v1861
        %v3266 = vunpack.c.h.b16 %v1861
        %v3267 = vunpack.c.l.b16 %v1862
        %v3268 = vunpack.c.h.b16 %v1862
        %v3269 = vunpack.c.l.b16 %v1863
        %v3270 = vunpack.c.h.b16 %v1863
        %v3271 = vunpack.c.l.b16 %v1864
        %v3272 = vunpack.c.h.b16 %v1864
        %v3273 = vunpack.c.l.b16 %v1865
        %v3274 = vunpack.c.h.b16 %v1865
        %v3275 = vunpack.c.l.b16 %v1866
        %v3276 = vunpack.c.h.b16 %v1866
        %v3277 = vunpack.c.l.b16 %v1867
        %v3278 = vunpack.c.h.b16 %v1867
        %v3279 = vunpack.c.l.b16 %v1868
        %v3280 = vunpack.c.h.b16 %v1868
        %v3281 = vunpack.c.l.b16 %v1869
        %v3282 = vunpack.c.h.b16 %v1869
        %v3283 = vunpack.c.l.b16 %v1870
        %v3284 = vunpack.c.h.b16 %v1870
        %v3285 = vunpack.c.l.b16 %v1871
        %v3286 = vunpack.c.h.b16 %v1871
        %v3287 = vunpack.c.l.b16 %v1872
        %v3288 = vunpack.c.h.b16 %v1872
        %v3289 = vunpack.c.l.b16 %v1873
        %v3290 = vunpack.c.h.b16 %v1873
        %v3291 = vunpack.c.l.b16 %v1874
        %v3292 = vunpack.c.h.b16 %v1874
        %v3293 = vunpack.c.l.b16 %v1875
        %v3294 = vunpack.c.h.b16 %v1875
        %v3295 = vunpack.c.l.b16 %v1876
        %v3296 = vunpack.c.h.b16 %v1876
        %v3297 = vunpack.c.l.b16 %v1877
        %v3298 = vunpack.c.h.b16 %v1877
        %v3299 = vunpack.c.l.b16 %v1878
        %v3300 = vunpack.c.h.b16 %v1878
        %v3301 = vunpack.c.l.b16 %v1879
        %v3302 = vunpack.c.h.b16 %v1879
        %v3303 = vunpack.c.l.b16 %v1880
        %v3304 = vunpack.c.h.b16 %v1880
        %v3305 = vunpack.c.l.b16 %v1881
        %v3306 = vunpack.c.h.b16 %v1881
        %v3307 = vunpack.c.l.b16 %v1882
        %v3308 = vunpack.c.h.b16 %v1882
        %v3309 = vunpack.c.l.b16 %v1883
        %v3310 = vunpack.c.h.b16 %v1883
        %v3311 = vunpack.c.l.b16 %v1884
        %v3312 = vunpack.c.h.b16 %v1884
        %v3313 = vunpack.c.l.b16 %v1885
        %v3314 = vunpack.c.h.b16 %v1885
        %v3315 = vunpack.c.l.b16 %v1886
        %v3316 = vunpack.c.h.b16 %v1886
        %v3317 = vunpack.c.l.b16 %v1887
        %v3318 = vunpack.c.h.b16 %v1887
        %v3319 = vunpack.c.l.b16 %v1888
        %v3320 = vunpack.c.h.b16 %v1888
        %v3321 = vunpack.c.l.b16 %v1889
        %v3322 = vunpack.c.h.b16 %v1889
        %v3323 = vunpack.c.l.b16 %v1890
        %v3324 = vunpack.c.h.b16 %v1890
        %v3325 = vunpack.c.l.b16 %v1891
        %v3326 = vunpack.c.h.b16 %v1891
        %v3327 = vunpack.c.l.b16 %v1892
        %v3328 = vunpack.c.h.b16 %v1892
        %v3329 = vunpack.c.l.b16 %v1893
        %v3330 = vunpack.c.h.b16 %v1893
        %v3331 = vunpack.c.l.b16 %v1894
        %v3332 = vunpack.c.h.b16 %v1894
        %v3333 = vunpack.c.l.b16 %v1895
        %v3334 = vunpack.c.h.b16 %v1895
        %v3335 = vunpack.c.l.b16 %v1896
        %v3336 = vunpack.c.h.b16 %v1896
        %v3337 = vunpack.c.l.b16 %v1897
        %v3338 = vunpack.c.h.b16 %v1897
        %v3339 = vunpack.c.l.b16 %v1898
        %v3340 = vunpack.c.h.b16 %v1898
        %v3341 = vunpack.c.l.b16 %v1899
        %v3342 = vunpack.c.h.b16 %v1899
        %v3343 = vunpack.c.l.b16 %v1900
        %v3344 = vunpack.c.h.b16 %v1900
        %v3345 = vunpack.c.l.b16 %v1901
        %v3346 = vunpack.c.h.b16 %v1901
        %v3347 = vunpack.c.l.b16 %v1902
        %v3348 = vunpack.c.h.b16 %v1902
        %v3349 = vunpack.c.l.b16 %v1903
        %v3350 = vunpack.c.h.b16 %v1903
        %v3351 = vunpack.c.l.b16 %v1904
        %v3352 = vunpack.c.h.b16 %v1904
        %v3353 = vunpack.c.l.b16 %v1905
        %v3354 = vunpack.c.h.b16 %v1905
        %v3355 = vunpack.c.l.b16 %v1906
        %v3356 = vunpack.c.h.b16 %v1906
        %v3357 = vunpack.c.l.b16 %v1907
        %v3358 = vunpack.c.h.b16 %v1907
        %v3359 = vunpack.c.l.b16 %v1908
        %v3360 = vunpack.c.h.b16 %v1908
        %v3361 = vunpack.c.l.b16 %v1909
        %v3362 = vunpack.c.h.b16 %v1909
        %v3363 = vunpack.c.l.b16 %v1910
        %v3364 = vunpack.c.h.b16 %v1910
        %v3365 = vunpack.c.l.b16 %v1911
        %v3366 = vunpack.c.h.b16 %v1911
        %v3367 = vunpack.c.l.b16 %v1912
        %v3368 = vunpack.c.h.b16 %v1912
        %v3369 = vunpack.c.l.b16 %v1913
        %v3370 = vunpack.c.h.b16 %v1913
        %v3371 = vunpack.c.l.b16 %v1914
        %v3372 = vunpack.c.h.b16 %v1914
        %v3373 = vunpack.c.l.b16 %v1915
        %v3374 = vunpack.c.h.b16 %v1915
        %v3375 = vunpack.c.l.b16 %v1916
        %v3376 = vunpack.c.h.b16 %v1916
        %v3377 = vunpack.c.l.b16 %v1917
        %v3378 = vunpack.c.h.b16 %v1917
        %v3379 = vunpack.c.l.b16 %v1918
        %v3380 = vunpack.c.h.b16 %v1918
        %v3381 = vunpack.c.l.b16 %v1919
        %v3382 = vunpack.c.h.b16 %v1919
        %v3383 = vunpack.c.l.b16 %v1920
        %v3384 = vunpack.c.h.b16 %v1920
        %v3385 = vunpack.c.l.b16 %v1921
        %v3386 = vunpack.c.h.b16 %v1921
        %v3387 = vunpack.c.l.b16 %v1922
        %v3388 = vunpack.c.h.b16 %v1922
        %v3389 = vunpack.c.l.b16 %v1923
        %v3390 = vunpack.c.h.b16 %v1923
        %v3391 = vunpack.c.l.b16 %v1924
        %v3392 = vunpack.c.h.b16 %v1924
        %v3393 = vunpack.c.l.b16 %v1925
        %v3394 = vunpack.c.h.b16 %v1925
        %v3395 = vunpack.c.l.b16 %v1926
        %v3396 = vunpack.c.h.b16 %v1926
        %v3397 = vunpack.c.l.b16 %v1927
        %v3398 = vunpack.c.h.b16 %v1927
        %v3399 = vunpack.c.l.b16 %v1928
        %v3400 = vunpack.c.h.b16 %v1928
        %v3401 = vunpack.c.l.b16 %v1929
        %v3402 = vunpack.c.h.b16 %v1929
        %v3403 = vunpack.c.l.b16 %v1930
        %v3404 = vunpack.c.h.b16 %v1930
        %v3405 = vunpack.c.l.b16 %v1931
        %v3406 = vunpack.c.h.b16 %v1931
        %v3407 = vunpack.c.l.b16 %v1932
        %v3408 = vunpack.c.h.b16 %v1932
        %v3409 = vunpack.c.l.b16 %v1933
        %v3410 = vunpack.c.h.b16 %v1933
        %v3411 = vunpack.c.l.b16 %v1934
        %v3412 = vunpack.c.h.b16 %v1934
        %v3413 = vunpack.c.l.b16 %v1935
        %v3414 = vunpack.c.h.b16 %v1935
        %v3415 = vunpack.c.l.b16 %v1936
        %v3416 = vunpack.c.h.b16 %v1936
        %v3417 = vunpack.c.l.b16 %v1937
        %v3418 = vunpack.c.h.b16 %v1937
        %v3419 = vunpack.c.l.b16 %v1938
        %v3420 = vunpack.c.h.b16 %v1938
        %v3421 = vunpack.c.l.b16 %v1939
        %v3422 = vunpack.c.h.b16 %v1939
        %v3423 = vunpack.c.l.b16 %v1940
        %v3424 = vunpack.c.h.b16 %v1940
        %v3425 = vunpack.c.l.b16 %v1941
        %v3426 = vunpack.c.h.b16 %v1941
        %v3427 = vunpack.c.l.b16 %v1942
        %v3428 = vunpack.c.h.b16 %v1942
        %v3429 = vunpack.c.l.b16 %v1943
        %v3430 = vunpack.c.h.b16 %v1943
        %v3431 = vunpack.c.l.b16 %v1944
        %v3432 = vunpack.c.h.b16 %v1944
        %v3433 = vunpack.c.l.b16 %v1945
        %v3434 = vunpack.c.h.b16 %v1945
        %v3435 = vunpack.c.l.b16 %v1946
        %v3436 = vunpack.c.h.b16 %v1946
        %v3437 = vunpack.c.l.b16 %v1947
        %v3438 = vunpack.c.h.b16 %v1947
        %v3439 = vunpack.c.l.b16 %v1948
        %v3440 = vunpack.c.h.b16 %v1948
        %v3441 = vunpack.c.l.b16 %v1949
        %v3442 = vunpack.c.h.b16 %v1949
        %v3443 = vunpack.c.l.b16 %v1950
        %v3444 = vunpack.c.h.b16 %v1950
        %v3445 = vunpack.c.l.b16 %v1951
        %v3446 = vunpack.c.h.b16 %v1951
        %v3447 = vunpack.c.l.b16 %v1952
        %v3448 = vunpack.c.h.b16 %v1952
        %v3449 = vunpack.c.l.b16 %v1953
        %v3450 = vunpack.c.h.b16 %v1953
        %v3451 = vunpack.c.l.b16 %v1954
        %v3452 = vunpack.c.h.b16 %v1954
        %v3453 = vunpack.c.l.b16 %v1955
        %v3454 = vunpack.c.h.b16 %v1955
        %v3455 = vunpack.c.l.b16 %v1956
        %v3456 = vunpack.c.h.b16 %v1956
        %v3457 = vunpack.c.l.b16 %v1957
        %v3458 = vunpack.c.h.b16 %v1957
        %v3459 = vunpack.c.l.b16 %v1958
        %v3460 = vunpack.c.h.b16 %v1958
        %v3461 = vunpack.c.l.b16 %v1959
        %v3462 = vunpack.c.h.b16 %v1959
        %v3463 = vunpack.c.l.b16 %v1960
        %v3464 = vunpack.c.h.b16 %v1960
        %v3465 = vunpack.c.l.b16 %v1961
        %v3466 = vunpack.c.h.b16 %v1961
        %v3467 = vunpack.c.l.b16 %v1962
        %v3468 = vunpack.c.h.b16 %v1962
        %v3469 = vunpack.c.l.b16 %v1963
        %v3470 = vunpack.c.h.b16 %v1963
        %v3471 = vunpack.c.l.b16 %v1964
        %v3472 = vunpack.c.h.b16 %v1964
        %v3473 = vunpack.c.l.b16 %v1965
        %v3474 = vunpack.c.h.b16 %v1965
        %v3475 = vunpack.c.l.b16 %v1966
        %v3476 = vunpack.c.h.b16 %v1966
        %v3477 = vunpack.c.l.b16 %v1967
        %v3478 = vunpack.c.h.b16 %v1967
        %v3479 = vunpack.c.l.b16 %v1968
        %v3480 = vunpack.c.h.b16 %v1968
        %v3481 = vunpack.c.l.b16 %v1969
        %v3482 = vunpack.c.h.b16 %v1969
        %v3483 = vunpack.c.l.b16 %v1970
        %v3484 = vunpack.c.h.b16 %v1970
        %v3485 = vunpack.c.l.b16 %v1971
        %v3486 = vunpack.c.h.b16 %v1971
        %v3487 = vunpack.c.l.b16 %v1972
        %v3488 = vunpack.c.h.b16 %v1972
        %v3489 = vunpack.c.l.b16 %v1973
        %v3490 = vunpack.c.h.b16 %v1973
        %v3491 = vunpack.c.l.b16 %v1974
        %v3492 = vunpack.c.h.b16 %v1974
        %v3493 = vunpack.c.l.b16 %v1975
        %v3494 = vunpack.c.h.b16 %v1975
        %v3495 = vunpack.c.l.b16 %v1976
        %v3496 = vunpack.c.h.b16 %v1976
        %v3497 = vunpack.c.l.b16 %v1977
        %v3498 = vunpack.c.h.b16 %v1977
        %v3499 = vunpack.c.l.b16 %v1978
        %v3500 = vunpack.c.h.b16 %v1978
        %v3501 = vunpack.c.l.b16 %v1979
        %v3502 = vunpack.c.h.b16 %v1979
        %v3503 = vunpack.c.l.b16 %v1980
        %v3504 = vunpack.c.h.b16 %v1980
        %v3505 = vunpack.c.l.b16 %v1981
        %v3506 = vunpack.c.h.b16 %v1981
        %v3507 = vunpack.c.l.b16 %v1982
        %v3508 = vunpack.c.h.b16 %v1982
        %v3509 = vunpack.c.l.b16 %v1983
        %v3510 = vunpack.c.h.b16 %v1983
        %v3511 = vunpack.c.l.b16 %v1984
        %v3512 = vunpack.c.h.b16 %v1984
        %v3513 = vunpack.c.l.b16 %v1985
        %v3514 = vunpack.c.h.b16 %v1985
        %v3515 = vunpack.c.l.b16 %v1986
        %v3516 = vunpack.c.h.b16 %v1986
        %v3517 = vunpack.c.l.b16 %v1987
        %v3518 = vunpack.c.h.b16 %v1987
        %v3519 = vunpack.c.l.b16 %v1988
        %v3520 = vunpack.c.h.b16 %v1988
        %v3521 = vunpack.c.l.b16 %v1989
        %v3522 = vunpack.c.h.b16 %v1989
        %v3523 = vunpack.c.l.b16 %v1990
        %v3524 = vunpack.c.h.b16 %v1990
        %v3525 = vunpack.c.l.b16 %v1991
        %v3526 = vunpack.c.h.b16 %v1991
        %v3527 = vunpack.c.l.b16 %v1992
        %v3528 = vunpack.c.h.b16 %v1992
        %v3529 = vunpack.c.l.b16 %v1993
        %v3530 = vunpack.c.h.b16 %v1993
        %v3531 = vunpack.c.l.b16 %v1994
        %v3532 = vunpack.c.h.b16 %v1994
        %v3533 = vunpack.c.l.b16 %v1995
        %v3534 = vunpack.c.h.b16 %v1995
        %v3535 = vunpack.c.l.b16 %v1996
        %v3536 = vunpack.c.h.b16 %v1996
        %v3537 = vunpack.c.l.b16 %v1997
        %v3538 = vunpack.c.h.b16 %v1997
        %v3539 = vunpack.c.l.b16 %v1998
        %v3540 = vunpack.c.h.b16 %v1998
        %v3541 = vunpack.c.l.b16 %v1999
        %v3542 = vunpack.c.h.b16 %v1999
        %v3543 = vunpack.c.l.b16 %v2000
        %v3544 = vunpack.c.h.b16 %v2000
        %v3545 = vunpack.c.l.b16 %v2001
        %v3546 = vunpack.c.h.b16 %v2001
        %v3547 = vunpack.c.l.b16 %v2002
        %v3548 = vunpack.c.h.b16 %v2002
        %v3549 = vunpack.c.l.b16 %v2003
        %v3550 = vunpack.c.h.b16 %v2003
        %v3551 = vunpack.c.l.b16 %v2004
        %v3552 = vunpack.c.h.b16 %v2004
        %v3553 = vunpack.c.l.b16 %v2005
        %v3554 = vunpack.c.h.b16 %v2005
        %v3555 = vunpack.c.l.b16 %v2006
        %v3556 = vunpack.c.h.b16 %v2006
        %v3557 = vunpack.c.l.b16 %v2007
        %v3558 = vunpack.c.h.b16 %v2007
        %v3559 = vunpack.c.l.b16 %v2008
        %v3560 = vunpack.c.h.b16 %v2008
        %v3561 = vunpack.c.l.b16 %v2009
        %v3562 = vunpack.c.h.b16 %v2009
        %v3563 = vunpack.c.l.b16 %v2010
        %v3564 = vunpack.c.h.b16 %v2010
        %v3565 = vunpack.c.l.b16 %v2011
        %v3566 = vunpack.c.h.b16 %v2011
        %v3567 = vunpack.c.l.b16 %v2012
        %v3568 = vunpack.c.h.b16 %v2012
        %v3569 = vunpack.c.l.b16 %v2013
        %v3570 = vunpack.c.h.b16 %v2013
        %v3571 = vunpack.c.l.b16 %v2014
        %v3572 = vunpack.c.h.b16 %v2014
        %v3573 = vunpack.c.l.b16 %v2015
        %v3574 = vunpack.c.h.b16 %v2015
        %v3575 = vunpack.c.l.b16 %v2016
        %v3576 = vunpack.c.h.b16 %v2016
        %v3577 = vunpack.c.l.b16 %v2017
        %v3578 = vunpack.c.h.b16 %v2017
        %v3579 = vunpack.c.l.b16 %v2018
        %v3580 = vunpack.c.h.b16 %v2018
        %v3581 = vunpack.c.l.b16 %v2019
        %v3582 = vunpack.c.h.b16 %v2019
        %v3583 = vunpack.c.l.b16 %v2020
        %v3584 = vunpack.c.h.b16 %v2020
        %v3585 = vunpack.c.l.b16 %v2021
        %v3586 = vunpack.c.h.b16 %v2021
        %v3587 = vunpack.c.l.b16 %v2022
        %v3588 = vunpack.c.h.b16 %v2022
        %v3589 = vunpack.c.l.b16 %v2023
        %v3590 = vunpack.c.h.b16 %v2023
        %v3591 = vunpack.c.l.b16 %v2024
        %v3592 = vunpack.c.h.b16 %v2024
        %v3593 = vunpack.c.l.b16 %v2025
        %v3594 = vunpack.c.h.b16 %v2025
        %v3595 = vunpack.c.l.b16 %v2026
        %v3596 = vunpack.c.h.b16 %v2026
        %v3597 = vunpack.c.l.b16 %v2027
        %v3598 = vunpack.c.h.b16 %v2027
        %v3599 = vunpack.c.l.b16 %v2028
        %v3600 = vunpack.c.h.b16 %v2028
        %v3601 = vunpack.c.l.b16 %v2029
        %v3602 = vunpack.c.h.b16 %v2029
        %v3603 = vunpack.c.l.b16 %v2030
        %v3604 = vunpack.c.h.b16 %v2030
        %v3605 = vunpack.c.l.b16 %v2031
        %v3606 = vunpack.c.h.b16 %v2031
        %v3607 = vunpack.c.l.b16 %v2032
        %v3608 = vunpack.c.h.b16 %v2032
        %v3609 = vunpack.c.l.b16 %v2033
        %v3610 = vunpack.c.h.b16 %v2033
        %v3611 = vunpack.c.l.b16 %v2034
        %v3612 = vunpack.c.h.b16 %v2034
        %v3613 = vunpack.c.l.b16 %v2035
        %v3614 = vunpack.c.h.b16 %v2035
        %v3615 = vunpack.c.l.b16 %v2036
        %v3616 = vunpack.c.h.b16 %v2036
        %v3617 = vunpack.c.l.b16 %v2037
        %v3618 = vunpack.c.h.b16 %v2037
        %v3619 = vunpack.c.l.b16 %v2038
        %v3620 = vunpack.c.h.b16 %v2038
        %v3621 = vunpack.c.l.b16 %v2039
        %v3622 = vunpack.c.h.b16 %v2039
        %v3623 = vunpack.c.l.b16 %v2040
        %v3624 = vunpack.c.h.b16 %v2040
        %v3625 = vunpack.c.l.b16 %v2041
        %v3626 = vunpack.c.h.b16 %v2041
        %v3627 = vunpack.c.l.b16 %v2042
        %v3628 = vunpack.c.h.b16 %v2042
        %v3629 = vunpack.c.l.b16 %v2043
        %v3630 = vunpack.c.h.b16 %v2043
        %v3631 = vunpack.c.l.b16 %v2044
        %v3632 = vunpack.c.h.b16 %v2044
        %v3633 = vunpack.c.l.b16 %v2045
        %v3634 = vunpack.c.h.b16 %v2045
        %v3635 = vunpack.c.l.b16 %v2046
        %v3636 = vunpack.c.h.b16 %v2046
        %v3637 = vunpack.c.l.b16 %v2047
        %v3638 = vunpack.c.h.b16 %v2047
        %v3639 = vunpack.c.l.b16 %v2048
        %v3640 = vunpack.c.h.b16 %v2048
        %v3641 = vunpack.c.l.b16 %v2049
        %v3642 = vunpack.c.h.b16 %v2049
        %v3643 = vunpack.c.l.b16 %v2050
        %v3644 = vunpack.c.h.b16 %v2050
        %v3645 = vunpack.c.l.b16 %v2051
        %v3646 = vunpack.c.h.b16 %v2051
        %v3647 = vunpack.c.l.b16 %v2052
        %v3648 = vunpack.c.h.b16 %v2052
        %v3649 = vunpack.c.l.b16 %v2053
        %v3650 = vunpack.c.h.b16 %v2053
        %v3651 = vunpack.c.l.b16 %v2054
        %v3652 = vunpack.c.h.b16 %v2054
        %v3653 = vunpack.c.l.b16 %v2055
        %v3654 = vunpack.c.h.b16 %v2055
        %v3655 = vunpack.c.l.b16 %v2056
        %v3656 = vunpack.c.h.b16 %v2056
        %v3657 = vunpack.c.l.b16 %v2057
        %v3658 = vunpack.c.h.b16 %v2057
        %v3659 = vunpack.c.l.b16 %v2058
        %v3660 = vunpack.c.h.b16 %v2058
        %v3661 = vunpack.c.l.b16 %v2059
        %v3662 = vunpack.c.h.b16 %v2059
        %v3663 = vunpack.c.l.b16 %v2060
        %v3664 = vunpack.c.h.b16 %v2060
        %v3665 = vunpack.c.l.b16 %v2061
        %v3666 = vunpack.c.h.b16 %v2061
        %v3667 = vunpack.c.l.b16 %v2062
        %v3668 = vunpack.c.h.b16 %v2062
        %v3669 = vunpack.c.l.b16 %v2063
        %v3670 = vunpack.c.h.b16 %v2063
        %v3671 = vunpack.c.l.b16 %v2064
        %v3672 = vunpack.c.h.b16 %v2064
        %v3673 = vunpack.c.l.b16 %v2065
        %v3674 = vunpack.c.h.b16 %v2065
        %v3675 = vunpack.c.l.b16 %v2066
        %v3676 = vunpack.c.h.b16 %v2066
        %v3677 = vunpack.c.l.b16 %v2067
        %v3678 = vunpack.c.h.b16 %v2067
        %v3679 = vunpack.c.l.b16 %v2068
        %v3680 = vunpack.c.h.b16 %v2068
        %v3681 = vunpack.c.l.b16 %v2069
        %v3682 = vunpack.c.h.b16 %v2069
        %v3683 = vunpack.c.l.b16 %v2070
        %v3684 = vunpack.c.h.b16 %v2070
        %v3685 = vunpack.c.l.b16 %v2071
        %v3686 = vunpack.c.h.b16 %v2071
        %v3687 = vunpack.c.l.b16 %v2072
        %v3688 = vunpack.c.h.b16 %v2072
        %v3689 = vunpack.c.l.b16 %v2073
        %v3690 = vunpack.c.h.b16 %v2073
        %v3691 = vunpack.c.l.b16 %v2074
        %v3692 = vunpack.c.h.b16 %v2074
        %v3693 = vunpack.c.l.b16 %v2075
        %v3694 = vunpack.c.h.b16 %v2075
        %v3695 = vunpack.c.l.b16 %v2076
        %v3696 = vunpack.c.h.b16 %v2076
        %v3697 = vunpack.c.l.b16 %v2077
        %v3698 = vunpack.c.h.b16 %v2077
        %v3699 = vunpack.c.l.b16 %v2078
        %v3700 = vunpack.c.h.b16 %v2078
        %v3701 = vunpack.c.l.b16 %v2079
        %v3702 = vunpack.c.h.b16 %v2079
        %v3703 = vunpack.c.l.b16 %v2080
        %v3704 = vunpack.c.h.b16 %v2080
        %v3705 = vunpack.c.l.b16 %v2081
        %v3706 = vunpack.c.h.b16 %v2081
        %v3707 = vunpack.c.l.b16 %v2082
        %v3708 = vunpack.c.h.b16 %v2082
        %v3709 = vunpack.c.l.b16 %v2083
        %v3710 = vunpack.c.h.b16 %v2083
        %v3711 = vunpack.c.l.b16 %v2084
        %v3712 = vunpack.c.h.b16 %v2084
        %v3713 = vunpack.c.l.b16 %v2085
        %v3714 = vunpack.c.h.b16 %v2085
        %v3715 = vunpack.c.l.b16 %v2086
        %v3716 = vunpack.c.h.b16 %v2086
        %v3717 = vunpack.c.l.b16 %v2087
        %v3718 = vunpack.c.h.b16 %v2087
        %v3719 = vunpack.c.l.b16 %v2088
        %v3720 = vunpack.c.h.b16 %v2088
        %v3721 = vunpack.c.l.b16 %v2089
        %v3722 = vunpack.c.h.b16 %v2089
        %v3723 = vunpack.c.l.b16 %v2090
        %v3724 = vunpack.c.h.b16 %v2090
        %v3725 = vunpack.c.l.b16 %v2091
        %v3726 = vunpack.c.h.b16 %v2091
        %v3727 = vunpack.c.l.b16 %v2092
        %v3728 = vunpack.c.h.b16 %v2092
        %v3729 = vunpack.c.l.b16 %v2093
        %v3730 = vunpack.c.h.b16 %v2093
        %v3731 = vunpack.c.l.b16 %v2094
        %v3732 = vunpack.c.h.b16 %v2094
        %v3733 = vunpack.c.l.b16 %v2095
        %v3734 = vunpack.c.h.b16 %v2095
        %v3735 = vunpack.c.l.b16 %v2096
        %v3736 = vunpack.c.h.b16 %v2096
        %v3737 = vunpack.c.l.b16 %v2097
        %v3738 = vunpack.c.h.b16 %v2097
        %v3739 = vunpack.c.l.b16 %v2098
        %v3740 = vunpack.c.h.b16 %v2098
        %v3741 = vunpack.c.l.b16 %v2099
        %v3742 = vunpack.c.h.b16 %v2099
        %v3743 = vunpack.c.l.b16 %v2100
        %v3744 = vunpack.c.h.b16 %v2100
        %v3745 = vunpack.c.l.b16 %v2101
        %v3746 = vunpack.c.h.b16 %v2101
        %v3747 = vunpack.c.l.b16 %v2102
        %v3748 = vunpack.c.h.b16 %v2102
        %v3749 = vunpack.c.l.b16 %v2103
        %v3750 = vunpack.c.h.b16 %v2103
        %v3751 = vunpack.c.l.b16 %v2104
        %v3752 = vunpack.c.h.b16 %v2104
        %v3753 = vunpack.c.l.b16 %v2105
        %v3754 = vunpack.c.h.b16 %v2105
        %v3755 = vunpack.c.l.b16 %v2106
        %v3756 = vunpack.c.h.b16 %v2106
        %v3757 = vunpack.c.l.b16 %v2107
        %v3758 = vunpack.c.h.b16 %v2107
        %v3759 = vunpack.c.l.b16 %v2108
        %v3760 = vunpack.c.h.b16 %v2108
        %v3761 = vunpack.c.l.b16 %v2109
        %v3762 = vunpack.c.h.b16 %v2109
        %v3763 = vunpack.c.l.b16 %v2110
        %v3764 = vunpack.c.h.b16 %v2110
        %v3765 = vunpack.c.l.b16 %v2111
        %v3766 = vunpack.c.h.b16 %v2111
        %v3767 = vunpack.c.l.b16 %v2112
        %v3768 = vunpack.c.h.b16 %v2112
        %v3769 = vunpack.c.l.b16 %v2113
        %v3770 = vunpack.c.h.b16 %v2113
        %v3771 = vunpack.c.l.b16 %v2114
        %v3772 = vunpack.c.h.b16 %v2114
        %v3773 = vunpack.c.l.b16 %v2115
        %v3774 = vunpack.c.h.b16 %v2115
        %v3775 = vunpack.c.l.b16 %v2116
        %v3776 = vunpack.c.h.b16 %v2116
        %v3777 = vunpack.c.l.b16 %v2117
        %v3778 = vunpack.c.h.b16 %v2117
        %v3779 = vunpack.c.l.b16 %v2118
        %v3780 = vunpack.c.h.b16 %v2118
        %v3781 = vunpack.c.l.b16 %v2119
        %v3782 = vunpack.c.h.b16 %v2119
        %v3783 = vunpack.c.l.b16 %v2120
        %v3784 = vunpack.c.h.b16 %v2120
        %v3785 = vunpack.c.l.b16 %v2121
        %v3786 = vunpack.c.h.b16 %v2121
        %v3787 = vunpack.c.l.b16 %v2122
        %v3788 = vunpack.c.h.b16 %v2122
        %v3789 = vunpack.c.l.b16 %v2123
        %v3790 = vunpack.c.h.b16 %v2123
        %v3791 = vunpack.c.l.b16 %v2124
        %v3792 = vunpack.c.h.b16 %v2124
        %v3793 = vunpack.c.l.b16 %v2125
        %v3794 = vunpack.c.h.b16 %v2125
        %v3795 = vunpack.c.l.b16 %v2126
        %v3796 = vunpack.c.h.b16 %v2126
        %v3797 = vunpack.c.l.b16 %v2127
        %v3798 = vunpack.c.h.b16 %v2127
        %v3799 = vunpack.c.l.b16 %v2128
        %v3800 = vunpack.c.h.b16 %v2128
        %v3801 = vunpack.c.l.b16 %v2129
        %v3802 = vunpack.c.h.b16 %v2129
        %v3803 = vunpack.c.l.b16 %v2130
        %v3804 = vunpack.c.h.b16 %v2130
        %v3805 = vunpack.c.l.b16 %v2131
        %v3806 = vunpack.c.h.b16 %v2131
        %v3807 = vunpack.c.l.b16 %v2132
        %v3808 = vunpack.c.h.b16 %v2132
        %v3809 = vunpack.c.l.b16 %v2133
        %v3810 = vunpack.c.h.b16 %v2133
        %v3811 = vunpack.c.l.b16 %v2134
        %v3812 = vunpack.c.h.b16 %v2134
        %v3813 = vunpack.c.l.b16 %v2135
        %v3814 = vunpack.c.h.b16 %v2135
        %v3815 = vunpack.c.l.b16 %v2136
        %v3816 = vunpack.c.h.b16 %v2136
        %v3817 = vunpack.c.l.b16 %v2137
        %v3818 = vunpack.c.h.b16 %v2137
        %v3819 = vunpack.c.l.b16 %v2138
        %v3820 = vunpack.c.h.b16 %v2138
        %v3821 = vunpack.c.l.b16 %v2139
        %v3822 = vunpack.c.h.b16 %v2139
        %v3823 = vunpack.c.l.b16 %v2140
        %v3824 = vunpack.c.h.b16 %v2140
        %v3825 = vunpack.c.l.b16 %v2141
        %v3826 = vunpack.c.h.b16 %v2141
        %v3827 = vunpack.c.l.b16 %v2142
        %v3828 = vunpack.c.h.b16 %v2142
        %v3829 = vunpack.c.l.b16 %v2143
        %v3830 = vunpack.c.h.b16 %v2143
        %v3831 = vunpack.c.l.b16 %v2144
        %v3832 = vunpack.c.h.b16 %v2144
        %v3833 = vunpack.c.l.b16 %v2145
        %v3834 = vunpack.c.h.b16 %v2145
        %v3835 = vunpack.c.l.b16 %v2146
        %v3836 = vunpack.c.h.b16 %v2146
        %v3837 = vunpack.c.l.b16 %v2147
        %v3838 = vunpack.c.h.b16 %v2147
        %v3839 = vunpack.c.l.b16 %v2148
        %v3840 = vunpack.c.h.b16 %v2148
        %v3841 = vunpack.c.l.b16 %v2149
        %v3842 = vunpack.c.h.b16 %v2149
        %v3843 = vunpack.c.l.b16 %v2150
        %v3844 = vunpack.c.h.b16 %v2150
        %v3845 = vunpack.c.l.b16 %v2151
        %v3846 = vunpack.c.h.b16 %v2151
        %v3847 = vunpack.c.l.b16 %v2152
        %v3848 = vunpack.c.h.b16 %v2152
        %v3849 = vunpack.c.l.b16 %v2153
        %v3850 = vunpack.c.h.b16 %v2153
        %v3851 = vunpack.c.l.b16 %v2154
        %v3852 = vunpack.c.h.b16 %v2154
        %v3853 = vunpack.c.l.b16 %v2155
        %v3854 = vunpack.c.h.b16 %v2155
        %v3855 = vunpack.c.l.b16 %v2156
        %v3856 = vunpack.c.h.b16 %v2156
        %v3857 = vunpack.c.l.b16 %v2157
        %v3858 = vunpack.c.h.b16 %v2157
        %v3859 = vunpack.c.l.b16 %v2158
        %v3860 = vunpack.c.h.b16 %v2158
        %v3861 = vunpack.c.l.b16 %v2159
        %v3862 = vunpack.c.h.b16 %v2159
        %v3863 = vunpack.c.l.b16 %v2160
        %v3864 = vunpack.c.h.b16 %v2160
        %v3865 = vunpack.c.l.b16 %v2161
        %v3866 = vunpack.c.h.b16 %v2161
        %v3867 = vunpack.c.l.b16 %v2162
        %v3868 = vunpack.c.h.b16 %v2162
        %v3869 = vunpack.c.l.b16 %v2163
        %v3870 = vunpack.c.h.b16 %v2163
        %v3871 = vunpack.c.l.b16 %v2164
        %v3872 = vunpack.c.h.b16 %v2164
        %v3873 = vunpack.c.l.b16 %v2165
        %v3874 = vunpack.c.h.b16 %v2165
        %v3875 = vunpack.c.l.b16 %v2166
        %v3876 = vunpack.c.h.b16 %v2166
        %v3877 = vunpack.c.l.b16 %v2167
        %v3878 = vunpack.c.h.b16 %v2167
        %v3879 = vunpack.c.l.b16 %v2168
        %v3880 = vunpack.c.h.b16 %v2168
        %v3881 = vunpack.c.l.b16 %v2169
        %v3882 = vunpack.c.h.b16 %v2169
        %v3883 = vunpack.c.l.b16 %v2170
        %v3884 = vunpack.c.h.b16 %v2170
        %v3885 = vunpack.c.l.b16 %v2171
        %v3886 = vunpack.c.h.b16 %v2171
        %v3887 = vunpack.c.l.b16 %v2172
        %v3888 = vunpack.c.h.b16 %v2172
        %v3889 = vunpack.c.l.b16 %v2173
        %v3890 = vunpack.c.h.b16 %v2173
        %v3891 = vunpack.c.l.b16 %v2174
        %v3892 = vunpack.c.h.b16 %v2174
        %v3893 = vunpack.c.l.b16 %v2175
        %v3894 = vunpack.c.h.b16 %v2175
        %v3895 = vunpack.c.l.b16 %v2176
        %v3896 = vunpack.c.h.b16 %v2176
        %v3897 = vunpack.c.l.b16 %v2177
        %v3898 = vunpack.c.h.b16 %v2177
        %v3899 = vunpack.c.l.b16 %v2178
        %v3900 = vunpack.c.h.b16 %v2178
        %v3901 = vunpack.c.l.b16 %v2179
        %v3902 = vunpack.c.h.b16 %v2179
        %v3903 = vunpack.c.l.b16 %v2180
        %v3904 = vunpack.c.h.b16 %v2180
        %v3905 = vunpack.c.l.b16 %v2181
        %v3906 = vunpack.c.h.b16 %v2181
        %v3907 = vunpack.c.l.b16 %v2182
        %v3908 = vunpack.c.h.b16 %v2182
        %v3909 = vunpack.c.l.b16 %v2183
        %v3910 = vunpack.c.h.b16 %v2183
        %v3911 = vunpack.c.l.b16 %v2184
        %v3912 = vunpack.c.h.b16 %v2184
        %v3913 = vunpack.c.l.b16 %v2185
        %v3914 = vunpack.c.h.b16 %v2185
        %v3915 = vunpack.c.l.b16 %v2186
        %v3916 = vunpack.c.h.b16 %v2186
        %v3917 = vunpack.c.l.b16 %v2187
        %v3918 = vunpack.c.h.b16 %v2187
        %v3919 = vunpack.c.l.b16 %v2188
        %v3920 = vunpack.c.h.b16 %v2188
        %v3921 = vunpack.c.l.b16 %v2189
        %v3922 = vunpack.c.h.b16 %v2189
        %v3923 = vunpack.c.l.b16 %v2190
        %v3924 = vunpack.c.h.b16 %v2190
        %v3925 = vunpack.c.l.b16 %v2191
        %v3926 = vunpack.c.h.b16 %v2191
        %v3927 = vunpack.c.l.b16 %v2192
        %v3928 = vunpack.c.h.b16 %v2192
        %v3929 = vunpack.c.l.b16 %v2193
        %v3930 = vunpack.c.h.b16 %v2193
        %v3931 = vunpack.c.l.b16 %v2194
        %v3932 = vunpack.c.h.b16 %v2194
        %v3933 = vunpack.c.l.b16 %v2195
        %v3934 = vunpack.c.h.b16 %v2195
        %v3935 = vunpack.c.l.b16 %v2196
        %v3936 = vunpack.c.h.b16 %v2196
        %v3937 = vunpack.c.l.b16 %v2197
        %v3938 = vunpack.c.h.b16 %v2197
        %v3939 = vunpack.c.l.b16 %v2198
        %v3940 = vunpack.c.h.b16 %v2198
        %v3941 = vunpack.c.l.b16 %v2199
        %v3942 = vunpack.c.h.b16 %v2199
        %v3943 = vunpack.c.l.b16 %v2200
        %v3944 = vunpack.c.h.b16 %v2200
        %v3945 = vunpack.c.l.b16 %v2201
        %v3946 = vunpack.c.h.b16 %v2201
        %v3947 = vunpack.c.l.b16 %v2202
        %v3948 = vunpack.c.h.b16 %v2202
        %v3949 = vunpack.c.l.b16 %v2203
        %v3950 = vunpack.c.h.b16 %v2203
        %v3951 = vunpack.c.l.b16 %v2204
        %v3952 = vunpack.c.h.b16 %v2204
        %v3953 = vunpack.c.l.b16 %v2205
        %v3954 = vunpack.c.h.b16 %v2205
        %v3955 = vunpack.c.l.b16 %v2206
        %v3956 = vunpack.c.h.b16 %v2206
        %v3957 = vunpack.c.l.b16 %v2207
        %v3958 = vunpack.c.h.b16 %v2207
        %v3959 = vunpack.c.l.b16 %v2208
        %v3960 = vunpack.c.h.b16 %v2208
        %v3961 = vunpack.c.l.b16 %v2209
        %v3962 = vunpack.c.h.b16 %v2209
        %v3963 = vunpack.c.l.b16 %v2210
        %v3964 = vunpack.c.h.b16 %v2210
        %v3965 = vunpack.c.l.b16 %v2211
        %v3966 = vunpack.c.h.b16 %v2211
        %v3967 = vunpack.c.l.b16 %v2212
        %v3968 = vunpack.c.h.b16 %v2212
        %v3969 = vunpack.c.l.b16 %v2213
        %v3970 = vunpack.c.h.b16 %v2213
        %v3971 = vunpack.c.l.b16 %v2214
        %v3972 = vunpack.c.h.b16 %v2214
        %v3973 = vunpack.c.l.b16 %v2215
        %v3974 = vunpack.c.h.b16 %v2215
        %v3975 = vunpack.c.l.b16 %v2216
        %v3976 = vunpack.c.h.b16 %v2216
        %v3977 = vunpack.c.l.b16 %v2217
        %v3978 = vunpack.c.h.b16 %v2217
        %v3979 = vunpack.c.l.b16 %v2218
        %v3980 = vunpack.c.h.b16 %v2218
        %v3981 = vunpack.c.l.b16 %v2219
        %v3982 = vunpack.c.h.b16 %v2219
        %v3983 = vunpack.c.l.b16 %v2220
        %v3984 = vunpack.c.h.b16 %v2220
        %v3985 = vunpack.c.l.b16 %v2221
        %v3986 = vunpack.c.h.b16 %v2221
        %v3987 = vunpack.c.l.b16 %v2222
        %v3988 = vunpack.c.h.b16 %v2222
        %v3989 = vunpack.c.l.b16 %v2223
        %v3990 = vunpack.c.h.b16 %v2223
        %v3991 = vunpack.c.l.b16 %v2224
        %v3992 = vunpack.c.h.b16 %v2224
        %v3993 = vunpack.c.l.b16 %v2225
        %v3994 = vunpack.c.h.b16 %v2225
        %v3995 = vunpack.c.l.b16 %v2226
        %v3996 = vunpack.c.h.b16 %v2226
        %v3997 = vunpack.c.l.b16 %v2227
        %v3998 = vunpack.c.h.b16 %v2227
        %v3999 = vunpack.c.l.b16 %v2228
        %v4000 = vunpack.c.h.b16 %v2228
        %v4001 = vunpack.c.l.b16 %v2229
        %v4002 = vunpack.c.h.b16 %v2229
        %v4003 = vunpack.c.l.b16 %v2230
        %v4004 = vunpack.c.h.b16 %v2230
        %v4005 = vunpack.c.l.b16 %v2231
        %v4006 = vunpack.c.h.b16 %v2231
        %v4007 = vunpack.c.l.b16 %v2232
        %v4008 = vunpack.c.h.b16 %v2232
        %v4009 = vunpack.c.l.b16 %v2233
        %v4010 = vunpack.c.h.b16 %v2233
        %v4011 = vunpack.c.l.b16 %v2234
        %v4012 = vunpack.c.h.b16 %v2234
        %v4013 = vunpack.c.l.b16 %v2235
        %v4014 = vunpack.c.h.b16 %v2235
        %v4015 = vunpack.c.l.b16 %v2236
        %v4016 = vunpack.c.h.b16 %v2236
        %v4017 = vunpack.c.l.b16 %v2237
        %v4018 = vunpack.c.h.b16 %v2237
        %v4019 = vunpack.c.l.b16 %v2238
        %v4020 = vunpack.c.h.b16 %v2238
        %v4021 = vunpack.c.l.b16 %v2239
        %v4022 = vunpack.c.h.b16 %v2239
        %v4023 = vunpack.c.l.b16 %v2240
        %v4024 = vunpack.c.h.b16 %v2240
        %v4025 = vunpack.c.l.b16 %v2241
        %v4026 = vunpack.c.h.b16 %v2241
        %v4027 = vunpack.c.l.b16 %v2242
        %v4028 = vunpack.c.h.b16 %v2242
        %v4029 = vunpack.c.l.b16 %v2243
        %v4030 = vunpack.c.h.b16 %v2243
        %v4031 = vunpack.c.l.b16 %v2244
        %v4032 = vunpack.c.h.b16 %v2244
        %v4033 = vunpack.c.l.b16 %v2245
        %v4034 = vunpack.c.h.b16 %v2245
        %v4035 = vunpack.c.l.b16 %v2246
        %v4036 = vunpack.c.h.b16 %v2246
        %v4037 = vunpack.c.l.b16 %v2247
        %v4038 = vunpack.c.h.b16 %v2247
        %v4039 = vunpack.c.l.b16 %v2248
        %v4040 = vunpack.c.h.b16 %v2248
        %v4041 = vpack.c.b16 %v3033, %v3017
        %v4042 = vpack.c.b16 %v3034, %v3018
        %v4043 = vpack.c.b16 %v3035, %v3019
        %v4044 = vpack.c.b16 %v3036, %v3020
        %v4045 = vpack.c.b16 %v3037, %v3021
        %v4046 = vpack.c.b16 %v3038, %v3022
        %v4047 = vpack.c.b16 %v3039, %v3023
        %v4048 = vpack.c.b16 %v3040, %v3024
        %v4049 = vpack.c.b16 %v3041, %v3025
        %v4050 = vpack.c.b16 %v3042, %v3026
        %v4051 = vpack.c.b16 %v3043, %v3027
        %v4052 = vpack.c.b16 %v3044, %v3028
        %v4053 = vpack.c.b16 %v3045, %v3029
        %v4054 = vpack.c.b16 %v3046, %v3030
        %v4055 = vpack.c.b16 %v3047, %v3031
        %v4056 = vpack.c.b16 %v3048, %v3032
        %v4057 = vpack.c.b16 %v3065, %v3049
        %v4058 = vpack.c.b16 %v3066, %v3050
        %v4059 = vpack.c.b16 %v3067, %v3051
        %v4060 = vpack.c.b16 %v3068, %v3052
        %v4061 = vpack.c.b16 %v3069, %v3053
        %v4062 = vpack.c.b16 %v3070, %v3054
        %v4063 = vpack.c.b16 %v3071, %v3055
        %v4064 = vpack.c.b16 %v3072, %v3056
        %v4065 = vpack.c.b16 %v3073, %v3057
        %v4066 = vpack.c.b16 %v3074, %v3058
        %v4067 = vpack.c.b16 %v3075, %v3059
        %v4068 = vpack.c.b16 %v3076, %v3060
        %v4069 = vpack.c.b16 %v3077, %v3061
        %v4070 = vpack.c.b16 %v3078, %v3062
        %v4071 = vpack.c.b16 %v3079, %v3063
        %v4072 = vpack.c.b16 %v3080, %v3064
        %v4073 = vpack.c.b16 %v3097, %v3081
        %v4074 = vpack.c.b16 %v3098, %v3082
        %v4075 = vpack.c.b16 %v3099, %v3083
        %v4076 = vpack.c.b16 %v3100, %v3084
        %v4077 = vpack.c.b16 %v3101, %v3085
        %v4078 = vpack.c.b16 %v3102, %v3086
        %v4079 = vpack.c.b16 %v3103, %v3087
        %v4080 = vpack.c.b16 %v3104, %v3088
        %v4081 = vpack.c.b16 %v3105, %v3089
        %v4082 = vpack.c.b16 %v3106, %v3090
        %v4083 = vpack.c.b16 %v3107, %v3091
        %v4084 = vpack.c.b16 %v3108, %v3092
        %v4085 = vpack.c.b16 %v3109, %v3093
        %v4086 = vpack.c.b16 %v3110, %v3094
        %v4087 = vpack.c.b16 %v3111, %v3095
        %v4088 = vpack.c.b16 %v3112, %v3096
        %v4089 = vpack.c.b16 %v3129, %v3113
        %v4090 = vpack.c.b16 %v3130, %v3114
        %v4091 = vpack.c.b16 %v3131, %v3115
        %v4092 = vpack.c.b16 %v3132, %v3116
        %v4093 = vpack.c.b16 %v3133, %v3117
        %v4094 = vpack.c.b16 %v3134, %v3118
        %v4095 = vpack.c.b16 %v3135, %v3119
        %v4096 = vpack.c.b16 %v3136, %v3120
        %v4097 = vpack.c.b16 %v3137, %v3121
        %v4098 = vpack.c.b16 %v3138, %v3122
        %v4099 = vpack.c.b16 %v3139, %v3123
        %v4100 = vpack.c.b16 %v3140, %v3124
        %v4101 = vpack.c.b16 %v3141, %v3125
        %v4102 = vpack.c.b16 %v3142, %v3126
        %v4103 = vpack.c.b16 %v3143, %v3127
        %v4104 = vpack.c.b16 %v3144, %v3128
        %v4105 = vpack.c.b16 %v3161, %v3145
        %v4106 = vpack.c.b16 %v3162, %v3146
        %v4107 = vpack.c.b16 %v3163, %v3147
        %v4108 = vpack.c.b16 %v3164, %v3148
        %v4109 = vpack.c.b16 %v3165, %v3149
        %v4110 = vpack.c.b16 %v3166, %v3150
        %v4111 = vpack.c.b16 %v3167, %v3151
        %v4112 = vpack.c.b16 %v3168, %v3152
        %v4113 = vpack.c.b16 %v3169, %v3153
        %v4114 = vpack.c.b16 %v3170, %v3154
        %v4115 = vpack.c.b16 %v3171, %v3155
        %v4116 = vpack.c.b16 %v3172, %v3156
        %v4117 = vpack.c.b16 %v3173, %v3157
        %v4118 = vpack.c.b16 %v3174, %v3158
        %v4119 = vpack.c.b16 %v3175, %v3159
        %v4120 = vpack.c.b16 %v3176, %v3160
        %v4121 = vpack.c.b16 %v3193, %v3177
        %v4122 = vpack.c.b16 %v3194, %v3178
        %v4123 = vpack.c.b16 %v3195, %v3179
        %v4124 = vpack.c.b16 %v3196, %v3180
        %v4125 = vpack.c.b16 %v3197, %v3181
        %v4126 = vpack.c.b16 %v3198, %v3182
        %v4127 = vpack.c.b16 %v3199, %v3183
        %v4128 = vpack.c.b16 %v3200, %v3184
        %v4129 = vpack.c.b16 %v3201, %v3185
        %v4130 = vpack.c.b16 %v3202, %v3186
        %v4131 = vpack.c.b16 %v3203, %v3187
        %v4132 = vpack.c.b16 %v3204, %v3188
        %v4133 = vpack.c.b16 %v3205, %v3189
        %v4134 = vpack.c.b16 %v3206, %v3190
        %v4135 = vpack.c.b16 %v3207, %v3191
        %v4136 = vpack.c.b16 %v3208, %v3192
        %v4137 = vpack.c.b16 %v3225, %v3209
        %v4138 = vpack.c.b16 %v3226, %v3210
        %v4139 = vpack.c.b16 %v3227, %v3211
        %v4140 = vpack.c.b16 %v3228, %v3212
        %v4141 = vpack.c.b16 %v3229, %v3213
        %v4142 = vpack.c.b16 %v3230, %v3214
        %v4143 = vpack.c.b16 %v3231, %v3215
        %v4144 = vpack.c.b16 %v3232, %v3216
        %v4145 = vpack.c.b16 %v3233, %v3217
        %v4146 = vpack.c.b16 %v3234, %v3218
        %v4147 = vpack.c.b16 %v3235, %v3219
        %v4148 = vpack.c.b16 %v3236, %v3220
        %v4149 = vpack.c.b16 %v3237, %v3221
        %v4150 = vpack.c.b16 %v3238, %v3222
        %v4151 = vpack.c.b16 %v3239, %v3223
        %v4152 = vpack.c.b16 %v3240, %v3224
        %v4153 = vpack.c.b16 %v3257, %v3241
        %v4154 = vpack.c.b16 %v3258, %v3242
        %v4155 = vpack.c.b16 %v3259, %v3243
        %v4156 = vpack.c.b16 %v3260, %v3244
        %v4157 = vpack.c.b16 %v3261, %v3245
        %v4158 = vpack.c.b16 %v3262, %v3246
        %v4159 = vpack.c.b16 %v3263, %v3247
        %v4160 = vpack.c.b16 %v3264, %v3248
        %v4161 = vpack.c.b16 %v3265, %v3249
        %v4162 = vpack.c.b16 %v3266, %v3250
        %v4163 = vpack.c.b16 %v3267, %v3251
        %v4164 = vpack.c.b16 %v3268, %v3252
        %v4165 = vpack.c.b16 %v3269, %v3253
        %v4166 = vpack.c.b16 %v3270, %v3254
        %v4167 = vpack.c.b16 %v3271, %v3255
        %v4168 = vpack.c.b16 %v3272, %v3256
        %v4169 = vpack.c.b16 %v3289, %v3273
        %v4170 = vpack.c.b16 %v3290, %v3274
        %v4171 = vpack.c.b16 %v3291, %v3275
        %v4172 = vpack.c.b16 %v3292, %v3276
        %v4173 = vpack.c.b16 %v3293, %v3277
        %v4174 = vpack.c.b16 %v3294, %v3278
        %v4175 = vpack.c.b16 %v3295, %v3279
        %v4176 = vpack.c.b16 %v3296, %v3280
        %v4177 = vpack.c.b16 %v3297, %v3281
        %v4178 = vpack.c.b16 %v3298, %v3282
        %v4179 = vpack.c.b16 %v3299, %v3283
        %v4180 = vpack.c.b16 %v3300, %v3284
        %v4181 = vpack.c.b16 %v3301, %v3285
        %v4182 = vpack.c.b16 %v3302, %v3286
        %v4183 = vpack.c.b16 %v3303, %v3287
        %v4184 = vpack.c.b16 %v3304, %v3288
        %v4185 = vpack.c.b16 %v3321, %v3305
        %v4186 = vpack.c.b16 %v3322, %v3306
        %v4187 = vpack.c.b16 %v3323, %v3307
        %v4188 = vpack.c.b16 %v3324, %v3308
        %v4189 = vpack.c.b16 %v3325, %v3309
        %v4190 = vpack.c.b16 %v3326, %v3310
        %v4191 = vpack.c.b16 %v3327, %v3311
        %v4192 = vpack.c.b16 %v3328, %v3312
        %v4193 = vpack.c.b16 %v3329, %v3313
        %v4194 = vpack.c.b16 %v3330, %v3314
        %v4195 = vpack.c.b16 %v3331, %v3315
        %v4196 = vpack.c.b16 %v3332, %v3316
        %v4197 = vpack.c.b16 %v3333, %v3317
        %v4198 = vpack.c.b16 %v3334, %v3318
        %v4199 = vpack.c.b16 %v3335, %v3319
        %v4200 = vpack.c.b16 %v3336, %v3320
        %v4201 = vpack.c.b16 %v3353, %v3337
        %v4202 = vpack.c.b16 %v3354, %v3338
        %v4203 = vpack.c.b16 %v3355, %v3339
        %v4204 = vpack.c.b16 %v3356, %v3340
        %v4205 = vpack.c.b16 %v3357, %v3341
        %v4206 = vpack.c.b16 %v3358, %v3342
        %v4207 = vpack.c.b16 %v3359, %v3343
        %v4208 = vpack.c.b16 %v3360, %v3344
        %v4209 = vpack.c.b16 %v3361, %v3345
        %v4210 = vpack.c.b16 %v3362, %v3346
        %v4211 = vpack.c.b16 %v3363, %v3347
        %v4212 = vpack.c.b16 %v3364, %v3348
        %v4213 = vpack.c.b16 %v3365, %v3349
        %v4214 = vpack.c.b16 %v3366, %v3350
        %v4215 = vpack.c.b16 %v3367, %v3351
        %v4216 = vpack.c.b16 %v3368, %v3352
        %v4217 = vpack.c.b16 %v3385, %v3369
        %v4218 = vpack.c.b16 %v3386, %v3370
        %v4219 = vpack.c.b16 %v3387, %v3371
        %v4220 = vpack.c.b16 %v3388, %v3372
        %v4221 = vpack.c.b16 %v3389, %v3373
        %v4222 = vpack.c.b16 %v3390, %v3374
        %v4223 = vpack.c.b16 %v3391, %v3375
        %v4224 = vpack.c.b16 %v3392, %v3376
        %v4225 = vpack.c.b16 %v3393, %v3377
        %v4226 = vpack.c.b16 %v3394, %v3378
        %v4227 = vpack.c.b16 %v3395, %v3379
        %v4228 = vpack.c.b16 %v3396, %v3380
        %v4229 = vpack.c.b16 %v3397, %v3381
        %v4230 = vpack.c.b16 %v3398, %v3382
        %v4231 = vpack.c.b16 %v3399, %v3383
        %v4232 = vpack.c.b16 %v3400, %v3384
        %v4233 = vpack.c.b16 %v3417, %v3401
        %v4234 = vpack.c.b16 %v3418, %v3402
        %v4235 = vpack.c.b16 %v3419, %v3403
        %v4236 = vpack.c.b16 %v3420, %v3404
        %v4237 = vpack.c.b16 %v3421, %v3405
        %v4238 = vpack.c.b16 %v3422, %v3406
        %v4239 = vpack.c.b16 %v3423, %v3407
        %v4240 = vpack.c.b16 %v3424, %v3408
        %v4241 = vpack.c.b16 %v3425, %v3409
        %v4242 = vpack.c.b16 %v3426, %v3410
        %v4243 = vpack.c.b16 %v3427, %v3411
        %v4244 = vpack.c.b16 %v3428, %v3412
        %v4245 = vpack.c.b16 %v3429, %v3413
        %v4246 = vpack.c.b16 %v3430, %v3414
        %v4247 = vpack.c.b16 %v3431, %v3415
        %v4248 = vpack.c.b16 %v3432, %v3416
        %v4249 = vpack.c.b16 %v3449, %v3433
        %v4250 = vpack.c.b16 %v3450, %v3434
        %v4251 = vpack.c.b16 %v3451, %v3435
        %v4252 = vpack.c.b16 %v3452, %v3436
        %v4253 = vpack.c.b16 %v3453, %v3437
        %v4254 = vpack.c.b16 %v3454, %v3438
        %v4255 = vpack.c.b16 %v3455, %v3439
        %v4256 = vpack.c.b16 %v3456, %v3440
        %v4257 = vpack.c.b16 %v3457, %v3441
        %v4258 = vpack.c.b16 %v3458, %v3442
        %v4259 = vpack.c.b16 %v3459, %v3443
        %v4260 = vpack.c.b16 %v3460, %v3444
        %v4261 = vpack.c.b16 %v3461, %v3445
        %v4262 = vpack.c.b16 %v3462, %v3446
        %v4263 = vpack.c.b16 %v3463, %v3447
        %v4264 = vpack.c.b16 %v3464, %v3448
        %v4265 = vpack.c.b16 %v3481, %v3465
        %v4266 = vpack.c.b16 %v3482, %v3466
        %v4267 = vpack.c.b16 %v3483, %v3467
        %v4268 = vpack.c.b16 %v3484, %v3468
        %v4269 = vpack.c.b16 %v3485, %v3469
        %v4270 = vpack.c.b16 %v3486, %v3470
        %v4271 = vpack.c.b16 %v3487, %v3471
        %v4272 = vpack.c.b16 %v3488, %v3472
        %v4273 = vpack.c.b16 %v3489, %v3473
        %v4274 = vpack.c.b16 %v3490, %v3474
        %v4275 = vpack.c.b16 %v3491, %v3475
        %v4276 = vpack.c.b16 %v3492, %v3476
        %v4277 = vpack.c.b16 %v3493, %v3477
        %v4278 = vpack.c.b16 %v3494, %v3478
        %v4279 = vpack.c.b16 %v3495, %v3479
        %v4280 = vpack.c.b16 %v3496, %v3480
        %v4281 = vpack.c.b16 %v3513, %v3497
        %v4282 = vpack.c.b16 %v3514, %v3498
        %v4283 = vpack.c.b16 %v3515, %v3499
        %v4284 = vpack.c.b16 %v3516, %v3500
        %v4285 = vpack.c.b16 %v3517, %v3501
        %v4286 = vpack.c.b16 %v3518, %v3502
        %v4287 = vpack.c.b16 %v3519, %v3503
        %v4288 = vpack.c.b16 %v3520, %v3504
        %v4289 = vpack.c.b16 %v3521, %v3505
        %v4290 = vpack.c.b16 %v3522, %v3506
        %v4291 = vpack.c.b16 %v3523, %v3507
        %v4292 = vpack.c.b16 %v3524, %v3508
        %v4293 = vpack.c.b16 %v3525, %v3509
        %v4294 = vpack.c.b16 %v3526, %v3510
        %v4295 = vpack.c.b16 %v3527, %v3511
        %v4296 = vpack.c.b16 %v3528, %v3512
        %v4297 = vpack.c.b16 %v3545, %v3529
        %v4298 = vpack.c.b16 %v3546, %v3530
        %v4299 = vpack.c.b16 %v3547, %v3531
        %v4300 = vpack.c.b16 %v3548, %v3532
        %v4301 = vpack.c.b16 %v3549, %v3533
        %v4302 = vpack.c.b16 %v3550, %v3534
        %v4303 = vpack.c.b16 %v3551, %v3535
        %v4304 = vpack.c.b16 %v3552, %v3536
        %v4305 = vpack.c.b16 %v3553, %v3537
        %v4306 = vpack.c.b16 %v3554, %v3538
        %v4307 = vpack.c.b16 %v3555, %v3539
        %v4308 = vpack.c.b16 %v3556, %v3540
        %v4309 = vpack.c.b16 %v3557, %v3541
        %v4310 = vpack.c.b16 %v3558, %v3542
        %v4311 = vpack.c.b16 %v3559, %v3543
        %v4312 = vpack.c.b16 %v3560, %v3544
        %v4313 = vpack.c.b16 %v3577, %v3561
        %v4314 = vpack.c.b16 %v3578, %v3562
        %v4315 = vpack.c.b16 %v3579, %v3563
        %v4316 = vpack.c.b16 %v3580, %v3564
        %v4317 = vpack.c.b16 %v3581, %v3565
        %v4318 = vpack.c.b16 %v3582, %v3566
        %v4319 = vpack.c.b16 %v3583, %v3567
        %v4320 = vpack.c.b16 %v3584, %v3568
        %v4321 = vpack.c.b16 %v3585, %v3569
        %v4322 = vpack.c.b16 %v3586, %v3570
        %v4323 = vpack.c.b16 %v3587, %v3571
        %v4324 = vpack.c.b16 %v3588, %v3572
        %v4325 = vpack.c.b16 %v3589, %v3573
        %v4326 = vpack.c.b16 %v3590, %v3574
        %v4327 = vpack.c.b16 %v3591, %v3575
        %v4328 = vpack.c.b16 %v3592, %v3576
        %v4329 = vpack.c.b16 %v3609, %v3593
        %v4330 = vpack.c.b16 %v3610, %v3594
        %v4331 = vpack.c.b16 %v3611, %v3595
        %v4332 = vpack.c.b16 %v3612, %v3596
        %v4333 = vpack.c.b16 %v3613, %v3597
        %v4334 = vpack.c.b16 %v3614, %v3598
        %v4335 = vpack.c.b16 %v3615, %v3599
        %v4336 = vpack.c.b16 %v3616, %v3600
        %v4337 = vpack.c.b16 %v3617, %v3601
        %v4338 = vpack.c.b16 %v3618, %v3602
        %v4339 = vpack.c.b16 %v3619, %v3603
        %v4340 = vpack.c.b16 %v3620, %v3604
        %v4341 = vpack.c.b16 %v3621, %v3605
        %v4342 = vpack.c.b16 %v3622, %v3606
        %v4343 = vpack.c.b16 %v3623, %v3607
        %v4344 = vpack.c.b16 %v3624, %v3608
        %v4345 = vpack.c.b16 %v3641, %v3625
        %v4346 = vpack.c.b16 %v3642, %v3626
        %v4347 = vpack.c.b16 %v3643, %v3627
        %v4348 = vpack.c.b16 %v3644, %v3628
        %v4349 = vpack.c.b16 %v3645, %v3629
        %v4350 = vpack.c.b16 %v3646, %v3630
        %v4351 = vpack.c.b16 %v3647, %v3631
        %v4352 = vpack.c.b16 %v3648, %v3632
        %v4353 = vpack.c.b16 %v3649, %v3633
        %v4354 = vpack.c.b16 %v3650, %v3634
        %v4355 = vpack.c.b16 %v3651, %v3635
        %v4356 = vpack.c.b16 %v3652, %v3636
        %v4357 = vpack.c.b16 %v3653, %v3637
        %v4358 = vpack.c.b16 %v3654, %v3638
        %v4359 = vpack.c.b16 %v3655, %v3639
        %v4360 = vpack.c.b16 %v3656, %v3640
        %v4361 = vpack.c.b16 %v3673, %v3657
        %v4362 = vpack.c.b16 %v3674, %v3658
        %v4363 = vpack.c.b16 %v3675, %v3659
        %v4364 = vpack.c.b16 %v3676, %v3660
        %v4365 = vpack.c.b16 %v3677, %v3661
        %v4366 = vpack.c.b16 %v3678, %v3662
        %v4367 = vpack.c.b16 %v3679, %v3663
        %v4368 = vpack.c.b16 %v3680, %v3664
        %v4369 = vpack.c.b16 %v3681, %v3665
        %v4370 = vpack.c.b16 %v3682, %v3666
        %v4371 = vpack.c.b16 %v3683, %v3667
        %v4372 = vpack.c.b16 %v3684, %v3668
        %v4373 = vpack.c.b16 %v3685, %v3669
        %v4374 = vpack.c.b16 %v3686, %v3670
        %v4375 = vpack.c.b16 %v3687, %v3671
        %v4376 = vpack.c.b16 %v3688, %v3672
        %v4377 = vpack.c.b16 %v3705, %v3689
        %v4378 = vpack.c.b16 %v3706, %v3690
        %v4379 = vpack.c.b16 %v3707, %v3691
        %v4380 = vpack.c.b16 %v3708, %v3692
        %v4381 = vpack.c.b16 %v3709, %v3693
        %v4382 = vpack.c.b16 %v3710, %v3694
        %v4383 = vpack.c.b16 %v3711, %v3695
        %v4384 = vpack.c.b16 %v3712, %v3696
        %v4385 = vpack.c.b16 %v3713, %v3697
        %v4386 = vpack.c.b16 %v3714, %v3698
        %v4387 = vpack.c.b16 %v3715, %v3699
        %v4388 = vpack.c.b16 %v3716, %v3700
        %v4389 = vpack.c.b16 %v3717, %v3701
        %v4390 = vpack.c.b16 %v3718, %v3702
        %v4391 = vpack.c.b16 %v3719, %v3703
        %v4392 = vpack.c.b16 %v3720, %v3704
        %v4393 = vpack.c.b16 %v3737, %v3721
        %v4394 = vpack.c.b16 %v3738, %v3722
        %v4395 = vpack.c.b16 %v3739, %v3723
        %v4396 = vpack.c.b16 %v3740, %v3724
        %v4397 = vpack.c.b16 %v3741, %v3725
        %v4398 = vpack.c.b16 %v3742, %v3726
        %v4399 = vpack.c.b16 %v3743, %v3727
        %v4400 = vpack.c.b16 %v3744, %v3728
        %v4401 = vpack.c.b16 %v3745, %v3729
        %v4402 = vpack.c.b16 %v3746, %v3730
        %v4403 = vpack.c.b16 %v3747, %v3731
        %v4404 = vpack.c.b16 %v3748, %v3732
        %v4405 = vpack.c.b16 %v3749, %v3733
        %v4406 = vpack.c.b16 %v3750, %v3734
        %v4407 = vpack.c.b16 %v3751, %v3735
        %v4408 = vpack.c.b16 %v3752, %v3736
        %v4409 = vpack.c.b16 %v3769, %v3753
        %v4410 = vpack.c.b16 %v3770, %v3754
        %v4411 = vpack.c.b16 %v3771, %v3755
        %v4412 = vpack.c.b16 %v3772, %v3756
        %v4413 = vpack.c.b16 %v3773, %v3757
        %v4414 = vpack.c.b16 %v3774, %v3758
        %v4415 = vpack.c.b16 %v3775, %v3759
        %v4416 = vpack.c.b16 %v3776, %v3760
        %v4417 = vpack.c.b16 %v3777, %v3761
        %v4418 = vpack.c.b16 %v3778, %v3762
        %v4419 = vpack.c.b16 %v3779, %v3763
        %v4420 = vpack.c.b16 %v3780, %v3764
        %v4421 = vpack.c.b16 %v3781, %v3765
        %v4422 = vpack.c.b16 %v3782, %v3766
        %v4423 = vpack.c.b16 %v3783, %v3767
        %v4424 = vpack.c.b16 %v3784, %v3768
        %v4425 = vpack.c.b16 %v3801, %v3785
        %v4426 = vpack.c.b16 %v3802, %v3786
        %v4427 = vpack.c.b16 %v3803, %v3787
        %v4428 = vpack.c.b16 %v3804, %v3788
        %v4429 = vpack.c.b16 %v3805, %v3789
        %v4430 = vpack.c.b16 %v3806, %v3790
        %v4431 = vpack.c.b16 %v3807, %v3791
        %v4432 = vpack.c.b16 %v3808, %v3792
        %v4433 = vpack.c.b16 %v3809, %v3793
        %v4434 = vpack.c.b16 %v3810, %v3794
        %v4435 = vpack.c.b16 %v3811, %v3795
        %v4436 = vpack.c.b16 %v3812, %v3796
        %v4437 = vpack.c.b16 %v3813, %v3797
        %v4438 = vpack.c.b16 %v3814, %v3798
        %v4439 = vpack.c.b16 %v3815, %v3799
        %v4440 = vpack.c.b16 %v3816, %v3800
        %v4441 = vpack.c.b16 %v3833, %v3817
        %v4442 = vpack.c.b16 %v3834, %v3818
        %v4443 = vpack.c.b16 %v3835, %v3819
        %v4444 = vpack.c.b16 %v3836, %v3820
        %v4445 = vpack.c.b16 %v3837, %v3821
        %v4446 = vpack.c.b16 %v3838, %v3822
        %v4447 = vpack.c.b16 %v3839, %v3823
        %v4448 = vpack.c.b16 %v3840, %v3824
        %v4449 = vpack.c.b16 %v3841, %v3825
        %v4450 = vpack.c.b16 %v3842, %v3826
        %v4451 = vpack.c.b16 %v3843, %v3827
        %v4452 = vpack.c.b16 %v3844, %v3828
        %v4453 = vpack.c.b16 %v3845, %v3829
        %v4454 = vpack.c.b16 %v3846, %v3830
        %v4455 = vpack.c.b16 %v3847, %v3831
        %v4456 = vpack.c.b16 %v3848, %v3832
        %v4457 = vpack.c.b16 %v3865, %v3849
        %v4458 = vpack.c.b16 %v3866, %v3850
        %v4459 = vpack.c.b16 %v3867, %v3851
        %v4460 = vpack.c.b16 %v3868, %v3852
        %v4461 = vpack.c.b16 %v3869, %v3853
        %v4462 = vpack.c.b16 %v3870, %v3854
        %v4463 = vpack.c.b16 %v3871, %v3855
        %v4464 = vpack.c.b16 %v3872, %v3856
        %v4465 = vpack.c.b16 %v3873, %v3857
        %v4466 = vpack.c.b16 %v3874, %v3858
        %v4467 = vpack.c.b16 %v3875, %v3859
        %v4468 = vpack.c.b16 %v3876, %v3860
        %v4469 = vpack.c.b16 %v3877, %v3861
        %v4470 = vpack.c.b16 %v3878, %v3862
        %v4471 = vpack.c.b16 %v3879, %v3863
        %v4472 = vpack.c.b16 %v3880, %v3864
        %v4473 = vpack.c.b16 %v3897, %v3881
        %v4474 = vpack.c.b16 %v3898, %v3882
        %v4475 = vpack.c.b16 %v3899, %v3883
        %v4476 = vpack.c.b16 %v3900, %v3884
        %v4477 = vpack.c.b16 %v3901, %v3885
        %v4478 = vpack.c.b16 %v3902, %v3886
        %v4479 = vpack.c.b16 %v3903, %v3887
        %v4480 = vpack.c.b16 %v3904, %v3888
        %v4481 = vpack.c.b16 %v3905, %v3889
        %v4482 = vpack.c.b16 %v3906, %v3890
        %v4483 = vpack.c.b16 %v3907, %v3891
        %v4484 = vpack.c.b16 %v3908, %v3892
        %v4485 = vpack.c.b16 %v3909, %v3893
        %v4486 = vpack.c.b16 %v3910, %v3894
        %v4487 = vpack.c.b16 %v3911, %v3895
        %v4488 = vpack.c.b16 %v3912, %v3896
        %v4489 = vpack.c.b16 %v3929, %v3913
        %v4490 = vpack.c.b16 %v3930, %v3914
        %v4491 = vpack.c.b16 %v3931, %v3915
        %v4492 = vpack.c.b16 %v3932, %v3916
        %v4493 = vpack.c.b16 %v3933, %v3917
        %v4494 = vpack.c.b16 %v3934, %v3918
        %v4495 = vpack.c.b16 %v3935, %v3919
        %v4496 = vpack.c.b16 %v3936, %v3920
        %v4497 = vpack.c.b16 %v3937, %v3921
        %v4498 = vpack.c.b16 %v3938, %v3922
        %v4499 = vpack.c.b16 %v3939, %v3923
        %v4500 = vpack.c.b16 %v3940, %v3924
        %v4501 = vpack.c.b16 %v3941, %v3925
        %v4502 = vpack.c.b16 %v3942, %v3926
        %v4503 = vpack.c.b16 %v3943, %v3927
        %v4504 = vpack.c.b16 %v3944, %v3928
        %v4505 = vpack.c.b16 %v3961, %v3945
        %v4506 = vpack.c.b16 %v3962, %v3946
        %v4507 = vpack.c.b16 %v3963, %v3947
        %v4508 = vpack.c.b16 %v3964, %v3948
        %v4509 = vpack.c.b16 %v3965, %v3949
        %v4510 = vpack.c.b16 %v3966, %v3950
        %v4511 = vpack.c.b16 %v3967, %v3951
        %v4512 = vpack.c.b16 %v3968, %v3952
        %v4513 = vpack.c.b16 %v3969, %v3953
        %v4514 = vpack.c.b16 %v3970, %v3954
        %v4515 = vpack.c.b16 %v3971, %v3955
        %v4516 = vpack.c.b16 %v3972, %v3956
        %v4517 = vpack.c.b16 %v3973, %v3957
        %v4518 = vpack.c.b16 %v3974, %v3958
        %v4519 = vpack.c.b16 %v3975, %v3959
        %v4520 = vpack.c.b16 %v3976, %v3960
        %v4521 = vpack.c.b16 %v3993, %v3977
        %v4522 = vpack.c.b16 %v3994, %v3978
        %v4523 = vpack.c.b16 %v3995, %v3979
        %v4524 = vpack.c.b16 %v3996, %v3980
        %v4525 = vpack.c.b16 %v3997, %v3981
        %v4526 = vpack.c.b16 %v3998, %v3982
        %v4527 = vpack.c.b16 %v3999, %v3983
        %v4528 = vpack.c.b16 %v4000, %v3984
        %v4529 = vpack.c.b16 %v4001, %v3985
        %v4530 = vpack.c.b16 %v4002, %v3986
        %v4531 = vpack.c.b16 %v4003, %v3987
        %v4532 = vpack.c.b16 %v4004, %v3988
        %v4533 = vpack.c.b16 %v4005, %v3989
        %v4534 = vpack.c.b16 %v4006, %v3990
        %v4535 = vpack.c.b16 %v4007, %v3991
        %v4536 = vpack.c.b16 %v4008, %v3992
        %v4537 = vpack.c.b16 %v4025, %v4009
        %v4538 = vpack.c.b16 %v4026, %v4010
        %v4539 = vpack.c.b16 %v4027, %v4011
        %v4540 = vpack.c.b16 %v4028, %v4012
        %v4541 = vpack.c.b16 %v4029, %v4013
        %v4542 = vpack.c.b16 %v4030, %v4014
        %v4543 = vpack.c.b16 %v4031, %v4015
        %v4544 = vpack.c.b16 %v4032, %v4016
        %v4545 = vpack.c.b16 %v4033, %v4017
        %v4546 = vpack.c.b16 %v4034, %v4018
        %v4547 = vpack.c.b16 %v4035, %v4019
        %v4548 = vpack.c.b16 %v4036, %v4020
        %v4549 = vpack.c.b16 %v4037, %v4021
        %v4550 = vpack.c.b16 %v4038, %v4022
        %v4551 = vpack.c.b16 %v4039, %v4023
        %v4552 = vpack.c.b16 %v4040, %v4024
        %v5321 = vunpack.c.l.b16 %v2249
        %v5322 = vunpack.c.l.b16 %v2250
        %v5323 = vunpack.c.l.b16 %v2251
        %v5324 = vunpack.c.l.b16 %v2252
        %v5325 = vunpack.c.l.b16 %v2253
        %v5326 = vunpack.c.l.b16 %v2254
        %v5327 = vunpack.c.l.b16 %v2255
        %v5328 = vunpack.c.l.b16 %v2256
        %v5329 = vunpack.c.l.b16 %v2257
        %v5330 = vunpack.c.l.b16 %v2258
        %v5331 = vunpack.c.l.b16 %v2259
        %v5332 = vunpack.c.l.b16 %v2260
        %v5333 = vunpack.c.l.b16 %v2261
        %v5334 = vunpack.c.l.b16 %v2262
        %v5335 = vunpack.c.l.b16 %v2263
        %v5336 = vunpack.c.l.b16 %v2264
        %v5337 = vunpack.c.l.b16 %v2265
        %v5338 = vunpack.c.l.b16 %v2266
        %v5339 = vunpack.c.l.b16 %v2267
        %v5340 = vunpack.c.l.b16 %v2268
        %v5341 = vunpack.c.l.b16 %v2269
        %v5342 = vunpack.c.l.b16 %v2270
        %v5343 = vunpack.c.l.b16 %v2271
        %v5344 = vunpack.c.l.b16 %v2272
        %v5345 = vunpack.c.l.b16 %v2273
        %v5346 = vunpack.c.l.b16 %v2274
        %v5347 = vunpack.c.l.b16 %v2275
        %v5348 = vunpack.c.l.b16 %v2276
        %v5349 = vunpack.c.l.b16 %v2277
        %v5350 = vunpack.c.l.b16 %v2278
        %v5351 = vunpack.c.l.b16 %v2279
        %v5352 = vunpack.c.l.b16 %v2280
        %v5353 = vunpack.c.l.b16 %v2281
        %v5354 = vunpack.c.l.b16 %v2282
        %v5355 = vunpack.c.l.b16 %v2283
        %v5356 = vunpack.c.l.b16 %v2284
        %v5357 = vunpack.c.l.b16 %v2285
        %v5358 = vunpack.c.l.b16 %v2286
        %v5359 = vunpack.c.l.b16 %v2287
        %v5360 = vunpack.c.l.b16 %v2288
        %v5361 = vunpack.c.l.b16 %v2289
        %v5362 = vunpack.c.l.b16 %v2290
        %v5363 = vunpack.c.l.b16 %v2291
        %v5364 = vunpack.c.l.b16 %v2292
        %v5365 = vunpack.c.l.b16 %v2293
        %v5366 = vunpack.c.l.b16 %v2294
        %v5367 = vunpack.c.l.b16 %v2295
        %v5368 = vunpack.c.l.b16 %v2296
        %v5369 = vunpack.c.l.b16 %v2297
        %v5370 = vunpack.c.l.b16 %v2298
        %v5371 = vunpack.c.l.b16 %v2299
        %v5372 = vunpack.c.l.b16 %v2300
        %v5373 = vunpack.c.l.b16 %v2301
        %v5374 = vunpack.c.l.b16 %v2302
        %v5375 = vunpack.c.l.b16 %v2303
        %v5376 = vunpack.c.l.b16 %v2304
        %v5377 = vunpack.c.l.b16 %v2305
        %v5378 = vunpack.c.l.b16 %v2306
        %v5379 = vunpack.c.l.b16 %v2307
        %v5380 = vunpack.c.l.b16 %v2308
        %v5381 = vunpack.c.l.b16 %v2309
        %v5382 = vunpack.c.l.b16 %v2310
        %v5383 = vunpack.c.l.b16 %v2311
        %v5384 = vunpack.c.l.b16 %v2312
        %v5385 = vunpack.c.l.b16 %v2313
        %v5386 = vunpack.c.l.b16 %v2314
        %v5387 = vunpack.c.l.b16 %v2315
        %v5388 = vunpack.c.l.b16 %v2316
        %v5389 = vunpack.c.l.b16 %v2317
        %v5390 = vunpack.c.l.b16 %v2318
        %v5391 = vunpack.c.l.b16 %v2319
        %v5392 = vunpack.c.l.b16 %v2320
        %v5393 = vunpack.c.l.b16 %v2321
        %v5394 = vunpack.c.l.b16 %v2322
        %v5395 = vunpack.c.l.b16 %v2323
        %v5396 = vunpack.c.l.b16 %v2324
        %v5397 = vunpack.c.l.b16 %v2325
        %v5398 = vunpack.c.l.b16 %v2326
        %v5399 = vunpack.c.l.b16 %v2327
        %v5400 = vunpack.c.l.b16 %v2328
        %v5401 = vunpack.c.l.b16 %v2329
        %v5402 = vunpack.c.l.b16 %v2330
        %v5403 = vunpack.c.l.b16 %v2331
        %v5404 = vunpack.c.l.b16 %v2332
        %v5405 = vunpack.c.l.b16 %v2333
        %v5406 = vunpack.c.l.b16 %v2334
        %v5407 = vunpack.c.l.b16 %v2335
        %v5408 = vunpack.c.l.b16 %v2336
        %v5409 = vunpack.c.l.b16 %v2337
        %v5410 = vunpack.c.l.b16 %v2338
        %v5411 = vunpack.c.l.b16 %v2339
        %v5412 = vunpack.c.l.b16 %v2340
        %v5413 = vunpack.c.l.b16 %v2341
        %v5414 = vunpack.c.l.b16 %v2342
        %v5415 = vunpack.c.l.b16 %v2343
        %v5416 = vunpack.c.l.b16 %v2344
        %v5417 = vunpack.c.l.b16 %v2345
        %v5418 = vunpack.c.l.b16 %v2346
        %v5419 = vunpack.c.l.b16 %v2347
        %v5420 = vunpack.c.l.b16 %v2348
        %v5421 = vunpack.c.l.b16 %v2349
        %v5422 = vunpack.c.l.b16 %v2350
        %v5423 = vunpack.c.l.b16 %v2351
        %v5424 = vunpack.c.l.b16 %v2352
        %v5425 = vunpack.c.l.b16 %v2353
        %v5426 = vunpack.c.l.b16 %v2354
        %v5427 = vunpack.c.l.b16 %v2355
        %v5428 = vunpack.c.l.b16 %v2356
        %v5429 = vunpack.c.l.b16 %v2357
        %v5430 = vunpack.c.l.b16 %v2358
        %v5431 = vunpack.c.l.b16 %v2359
        %v5432 = vunpack.c.l.b16 %v2360
        %v5433 = vunpack.c.l.b16 %v2361
        %v5434 = vunpack.c.l.b16 %v2362
        %v5435 = vunpack.c.l.b16 %v2363
        %v5436 = vunpack.c.l.b16 %v2364
        %v5437 = vunpack.c.l.b16 %v2365
        %v5438 = vunpack.c.l.b16 %v2366
        %v5439 = vunpack.c.l.b16 %v2367
        %v5440 = vunpack.c.l.b16 %v2368
        %v5441 = vunpack.c.l.b16 %v2369
        %v5442 = vunpack.c.l.b16 %v2370
        %v5443 = vunpack.c.l.b16 %v2371
        %v5444 = vunpack.c.l.b16 %v2372
        %v5445 = vunpack.c.l.b16 %v2373
        %v5446 = vunpack.c.l.b16 %v2374
        %v5447 = vunpack.c.l.b16 %v2375
        %v5448 = vunpack.c.l.b16 %v2376
        %v5449 = vunpack.c.l.b16 %v2377
        %v5450 = vunpack.c.l.b16 %v2378
        %v5451 = vunpack.c.l.b16 %v2379
        %v5452 = vunpack.c.l.b16 %v2380
        %v5453 = vunpack.c.l.b16 %v2381
        %v5454 = vunpack.c.l.b16 %v2382
        %v5455 = vunpack.c.l.b16 %v2383
        %v5456 = vunpack.c.l.b16 %v2384
        %v5457 = vunpack.c.l.b16 %v2385
        %v5458 = vunpack.c.l.b16 %v2386
        %v5459 = vunpack.c.l.b16 %v2387
        %v5460 = vunpack.c.l.b16 %v2388
        %v5461 = vunpack.c.l.b16 %v2389
        %v5462 = vunpack.c.l.b16 %v2390
        %v5463 = vunpack.c.l.b16 %v2391
        %v5464 = vunpack.c.l.b16 %v2392
        %v5465 = vunpack.c.l.b16 %v2393
        %v5466 = vunpack.c.l.b16 %v2394
        %v5467 = vunpack.c.l.b16 %v2395
        %v5468 = vunpack.c.l.b16 %v2396
        %v5469 = vunpack.c.l.b16 %v2397
        %v5470 = vunpack.c.l.b16 %v2398
        %v5471 = vunpack.c.l.b16 %v2399
        %v5472 = vunpack.c.l.b16 %v2400
        %v5473 = vunpack.c.l.b16 %v2401
        %v5474 = vunpack.c.l.b16 %v2402
        %v5475 = vunpack.c.l.b16 %v2403
        %v5476 = vunpack.c.l.b16 %v2404
        %v5477 = vunpack.c.l.b16 %v2405
        %v5478 = vunpack.c.l.b16 %v2406
        %v5479 = vunpack.c.l.b16 %v2407
        %v5480 = vunpack.c.l.b16 %v2408
        %v5481 = vunpack.c.l.b16 %v2409
        %v5482 = vunpack.c.l.b16 %v2410
        %v5483 = vunpack.c.l.b16 %v2411
        %v5484 = vunpack.c.l.b16 %v2412
        %v5485 = vunpack.c.l.b16 %v2413
        %v5486 = vunpack.c.l.b16 %v2414
        %v5487 = vunpack.c.l.b16 %v2415
        %v5488 = vunpack.c.l.b16 %v2416
        %v5489 = vunpack.c.l.b16 %v2417
        %v5490 = vunpack.c.l.b16 %v2418
        %v5491 = vunpack.c.l.b16 %v2419
        %v5492 = vunpack.c.l.b16 %v2420
        %v5493 = vunpack.c.l.b16 %v2421
        %v5494 = vunpack.c.l.b16 %v2422
        %v5495 = vunpack.c.l.b16 %v2423
        %v5496 = vunpack.c.l.b16 %v2424
        %v5497 = vunpack.c.l.b16 %v2425
        %v5498 = vunpack.c.l.b16 %v2426
        %v5499 = vunpack.c.l.b16 %v2427
        %v5500 = vunpack.c.l.b16 %v2428
        %v5501 = vunpack.c.l.b16 %v2429
        %v5502 = vunpack.c.l.b16 %v2430
        %v5503 = vunpack.c.l.b16 %v2431
        %v5504 = vunpack.c.l.b16 %v2432
        %v5505 = vunpack.c.l.b16 %v2433
        %v5506 = vunpack.c.l.b16 %v2434
        %v5507 = vunpack.c.l.b16 %v2435
        %v5508 = vunpack.c.l.b16 %v2436
        %v5509 = vunpack.c.l.b16 %v2437
        %v5510 = vunpack.c.l.b16 %v2438
        %v5511 = vunpack.c.l.b16 %v2439
        %v5512 = vunpack.c.l.b16 %v2440
        %v5513 = vunpack.c.l.b16 %v2441
        %v5514 = vunpack.c.l.b16 %v2442
        %v5515 = vunpack.c.l.b16 %v2443
        %v5516 = vunpack.c.l.b16 %v2444
        %v5517 = vunpack.c.l.b16 %v2445
        %v5518 = vunpack.c.l.b16 %v2446
        %v5519 = vunpack.c.l.b16 %v2447
        %v5520 = vunpack.c.l.b16 %v2448
        %v5521 = vunpack.c.l.b16 %v2449
        %v5522 = vunpack.c.l.b16 %v2450
        %v5523 = vunpack.c.l.b16 %v2451
        %v5524 = vunpack.c.l.b16 %v2452
        %v5525 = vunpack.c.l.b16 %v2453
        %v5526 = vunpack.c.l.b16 %v2454
        %v5527 = vunpack.c.l.b16 %v2455
        %v5528 = vunpack.c.l.b16 %v2456
        %v5529 = vunpack.c.l.b16 %v2457
        %v5530 = vunpack.c.l.b16 %v2458
        %v5531 = vunpack.c.l.b16 %v2459
        %v5532 = vunpack.c.l.b16 %v2460
        %v5533 = vunpack.c.l.b16 %v2461
        %v5534 = vunpack.c.l.b16 %v2462
        %v5535 = vunpack.c.l.b16 %v2463
        %v5536 = vunpack.c.l.b16 %v2464
        %v5537 = vunpack.c.l.b16 %v2465
        %v5538 = vunpack.c.l.b16 %v2466
        %v5539 = vunpack.c.l.b16 %v2467
        %v5540 = vunpack.c.l.b16 %v2468
        %v5541 = vunpack.c.l.b16 %v2469
        %v5542 = vunpack.c.l.b16 %v2470
        %v5543 = vunpack.c.l.b16 %v2471
        %v5544 = vunpack.c.l.b16 %v2472
        %v5545 = vunpack.c.l.b16 %v2473
        %v5546 = vunpack.c.l.b16 %v2474
        %v5547 = vunpack.c.l.b16 %v2475
        %v5548 = vunpack.c.l.b16 %v2476
        %v5549 = vunpack.c.l.b16 %v2477
        %v5550 = vunpack.c.l.b16 %v2478
        %v5551 = vunpack.c.l.b16 %v2479
        %v5552 = vunpack.c.l.b16 %v2480
        %v5553 = vunpack.c.l.b16 %v2481
        %v5554 = vunpack.c.l.b16 %v2482
        %v5555 = vunpack.c.l.b16 %v2483
        %v5556 = vunpack.c.l.b16 %v2484
        %v5557 = vunpack.c.l.b16 %v2485
        %v5558 = vunpack.c.l.b16 %v2486
        %v5559 = vunpack.c.l.b16 %v2487
        %v5560 = vunpack.c.l.b16 %v2488
        %v5561 = vunpack.c.l.b16 %v2489
        %v5562 = vunpack.c.l.b16 %v2490
        %v5563 = vunpack.c.l.b16 %v2491
        %v5564 = vunpack.c.l.b16 %v2492
        %v5565 = vunpack.c.l.b16 %v2493
        %v5566 = vunpack.c.l.b16 %v2494
        %v5567 = vunpack.c.l.b16 %v2495
        %v5568 = vunpack.c.l.b16 %v2496
        %v5569 = vunpack.c.l.b16 %v2497
        %v5570 = vunpack.c.l.b16 %v2498
        %v5571 = vunpack.c.l.b16 %v2499
        %v5572 = vunpack.c.l.b16 %v2500
        %v5573 = vunpack.c.l.b16 %v2501
        %v5574 = vunpack.c.l.b16 %v2502
        %v5575 = vunpack.c.l.b16 %v2503
        %v5576 = vunpack.c.l.b16 %v2504
        %v5577 = vpack.c.b16 %v5322, %v5321
        %v5578 = vpack.c.b16 %v5324, %v5323
        %v5579 = vpack.c.b16 %v5326, %v5325
        %v5580 = vpack.c.b16 %v5328, %v5327
        %v5581 = vpack.c.b16 %v5330, %v5329
        %v5582 = vpack.c.b16 %v5332, %v5331
        %v5583 = vpack.c.b16 %v5334, %v5333
        %v5584 = vpack.c.b16 %v5336, %v5335
        %v5585 = vpack.c.b16 %v5338, %v5337
        %v5586 = vpack.c.b16 %v5340, %v5339
        %v5587 = vpack.c.b16 %v5342, %v5341
        %v5588 = vpack.c.b16 %v5344, %v5343
        %v5589 = vpack.c.b16 %v5346, %v5345
        %v5590 = vpack.c.b16 %v5348, %v5347
        %v5591 = vpack.c.b16 %v5350, %v5349
        %v5592 = vpack.c.b16 %v5352, %v5351
        %v5593 = vpack.c.b16 %v5354, %v5353
        %v5594 = vpack.c.b16 %v5356, %v5355
        %v5595 = vpack.c.b16 %v5358, %v5357
        %v5596 = vpack.c.b16 %v5360, %v5359
        %v5597 = vpack.c.b16 %v5362, %v5361
        %v5598 = vpack.c.b16 %v5364, %v5363
        %v5599 = vpack.c.b16 %v5366, %v5365
        %v5600 = vpack.c.b16 %v5368, %v5367
        %v5601 = vpack.c.b16 %v5370, %v5369
        %v5602 = vpack.c.b16 %v5372, %v5371
        %v5603 = vpack.c.b16 %v5374, %v5373
        %v5604 = vpack.c.b16 %v5376, %v5375
        %v5605 = vpack.c.b16 %v5378, %v5377
        %v5606 = vpack.c.b16 %v5380, %v5379
        %v5607 = vpack.c.b16 %v5382, %v5381
        %v5608 = vpack.c.b16 %v5384, %v5383
        %v5609 = vpack.c.b16 %v5386, %v5385
        %v5610 = vpack.c.b16 %v5388, %v5387
        %v5611 = vpack.c.b16 %v5390, %v5389
        %v5612 = vpack.c.b16 %v5392, %v5391
        %v5613 = vpack.c.b16 %v5394, %v5393
        %v5614 = vpack.c.b16 %v5396, %v5395
        %v5615 = vpack.c.b16 %v5398, %v5397
        %v5616 = vpack.c.b16 %v5400, %v5399
        %v5617 = vpack.c.b16 %v5402, %v5401
        %v5618 = vpack.c.b16 %v5404, %v5403
        %v5619 = vpack.c.b16 %v5406, %v5405
        %v5620 = vpack.c.b16 %v5408, %v5407
        %v5621 = vpack.c.b16 %v5410, %v5409
        %v5622 = vpack.c.b16 %v5412, %v5411
        %v5623 = vpack.c.b16 %v5414, %v5413
        %v5624 = vpack.c.b16 %v5416, %v5415
        %v5625 = vpack.c.b16 %v5418, %v5417
        %v5626 = vpack.c.b16 %v5420, %v5419
        %v5627 = vpack.c.b16 %v5422, %v5421
        %v5628 = vpack.c.b16 %v5424, %v5423
        %v5629 = vpack.c.b16 %v5426, %v5425
        %v5630 = vpack.c.b16 %v5428, %v5427
        %v5631 = vpack.c.b16 %v5430, %v5429
        %v5632 = vpack.c.b16 %v5432, %v5431
        %v5633 = vpack.c.b16 %v5434, %v5433
        %v5634 = vpack.c.b16 %v5436, %v5435
        %v5635 = vpack.c.b16 %v5438, %v5437
        %v5636 = vpack.c.b16 %v5440, %v5439
        %v5637 = vpack.c.b16 %v5442, %v5441
        %v5638 = vpack.c.b16 %v5444, %v5443
        %v5639 = vpack.c.b16 %v5446, %v5445
        %v5640 = vpack.c.b16 %v5448, %v5447
        %v5641 = vpack.c.b16 %v5450, %v5449
        %v5642 = vpack.c.b16 %v5452, %v5451
        %v5643 = vpack.c.b16 %v5454, %v5453
        %v5644 = vpack.c.b16 %v5456, %v5455
        %v5645 = vpack.c.b16 %v5458, %v5457
        %v5646 = vpack.c.b16 %v5460, %v5459
        %v5647 = vpack.c.b16 %v5462, %v5461
        %v5648 = vpack.c.b16 %v5464, %v5463
        %v5649 = vpack.c.b16 %v5466, %v5465
        %v5650 = vpack.c.b16 %v5468, %v5467
        %v5651 = vpack.c.b16 %v5470, %v5469
        %v5652 = vpack.c.b16 %v5472, %v5471
        %v5653 = vpack.c.b16 %v5474, %v5473
        %v5654 = vpack.c.b16 %v5476, %v5475
        %v5655 = vpack.c.b16 %v5478, %v5477
        %v5656 = vpack.c.b16 %v5480, %v5479
        %v5657 = vpack.c.b16 %v5482, %v5481
        %v5658 = vpack.c.b16 %v5484, %v5483
        %v5659 = vpack.c.b16 %v5486, %v5485
        %v5660 = vpack.c.b16 %v5488, %v5487
        %v5661 = vpack.c.b16 %v5490, %v5489
        %v5662 = vpack.c.b16 %v5492, %v5491
        %v5663 = vpack.c.b16 %v5494, %v5493
        %v5664 = vpack.c.b16 %v5496, %v5495
        %v5665 = vpack.c.b16 %v5498, %v5497
        %v5666 = vpack.c.b16 %v5500, %v5499
        %v5667 = vpack.c.b16 %v5502, %v5501
        %v5668 = vpack.c.b16 %v5504, %v5503
        %v5669 = vpack.c.b16 %v5506, %v5505
        %v5670 = vpack.c.b16 %v5508, %v5507
        %v5671 = vpack.c.b16 %v5510, %v5509
        %v5672 = vpack.c.b16 %v5512, %v5511
        %v5673 = vpack.c.b16 %v5514, %v5513
        %v5674 = vpack.c.b16 %v5516, %v5515
        %v5675 = vpack.c.b16 %v5518, %v5517
        %v5676 = vpack.c.b16 %v5520, %v5519
        %v5677 = vpack.c.b16 %v5522, %v5521
        %v5678 = vpack.c.b16 %v5524, %v5523
        %v5679 = vpack.c.b16 %v5526, %v5525
        %v5680 = vpack.c.b16 %v5528, %v5527
        %v5681 = vpack.c.b16 %v5530, %v5529
        %v5682 = vpack.c.b16 %v5532, %v5531
        %v5683 = vpack.c.b16 %v5534, %v5533
        %v5684 = vpack.c.b16 %v5536, %v5535
        %v5685 = vpack.c.b16 %v5538, %v5537
        %v5686 = vpack.c.b16 %v5540, %v5539
        %v5687 = vpack.c.b16 %v5542, %v5541
        %v5688 = vpack.c.b16 %v5544, %v5543
        %v5689 = vpack.c.b16 %v5546, %v5545
        %v5690 = vpack.c.b16 %v5548, %v5547
        %v5691 = vpack.c.b16 %v5550, %v5549
        %v5692 = vpack.c.b16 %v5552, %v5551
        %v5693 = vpack.c.b16 %v5554, %v5553
        %v5694 = vpack.c.b16 %v5556, %v5555
        %v5695 = vpack.c.b16 %v5558, %v5557
        %v5696 = vpack.c.b16 %v5560, %v5559
        %v5697 = vpack.c.b16 %v5562, %v5561
        %v5698 = vpack.c.b16 %v5564, %v5563
        %v5699 = vpack.c.b16 %v5566, %v5565
        %v5700 = vpack.c.b16 %v5568, %v5567
        %v5701 = vpack.c.b16 %v5570, %v5569
        %v5702 = vpack.c.b16 %v5572, %v5571
        %v5703 = vpack.c.b16 %v5574, %v5573
        %v5704 = vpack.c.b16 %v5576, %v5575
        %5833 = vmatpush.bf16.msra.mxu0 %v5584
        %5834 = vmatpush.bf16.msra.mxu0 %v5583
        %5835 = vmatpush.bf16.msra.mxu0 %v5582
        %5836 = vmatpush.bf16.msra.mxu0 %v5581
        %5837 = vmatpush.bf16.msra.mxu0 %v5580
        %5838 = vmatpush.bf16.msra.mxu0 %v5579
        %5839 = vmatpush.bf16.msra.mxu0 %v5578
        %5840 = vmatpush.bf16.msra.mxu0 %v5577
        %5841 = vmatmul.bf16.gmra.mxu0 %v4041
        %v5842 = vpop.f32.mrf.mxu0
        %v5843 = vadd.f32 0.0, %v5842
        %v5844 = vpop.f32.mrf.mxu0
        %v5845 = vadd.f32 0.0, %v5844
        %5846 = vmatmul.bf16.gmra.mxu0 %v4057
        %v5847 = vpop.f32.mrf.mxu0
        %v5848 = vadd.f32 0.0, %v5847
        %v5849 = vpop.f32.mrf.mxu0
        %v5850 = vadd.f32 0.0, %v5849
        %5851 = vmatmul.bf16.gmra.mxu0 %v4073
        %v5852 = vpop.f32.mrf.mxu0
        %v5853 = vadd.f32 0.0, %v5852
        %v5854 = vpop.f32.mrf.mxu0
        %v5855 = vadd.f32 0.0, %v5854
        %5856 = vmatmul.bf16.gmra.mxu0 %v4089
        %v5857 = vpop.f32.mrf.mxu0
        %v5858 = vadd.f32 0.0, %v5857
        %v5859 = vpop.f32.mrf.mxu0
        %v5860 = vadd.f32 0.0, %v5859
        %5861 = vmatmul.bf16.gmra.mxu0 %v4105
        %v5862 = vpop.f32.mrf.mxu0
        %v5863 = vadd.f32 0.0, %v5862
        %v5864 = vpop.f32.mrf.mxu0
        %v5865 = vadd.f32 0.0, %v5864
        %5866 = vmatmul.bf16.gmra.mxu0 %v4121
        %v5867 = vpop.f32.mrf.mxu0
        %v5868 = vadd.f32 0.0, %v5867
        %v5869 = vpop.f32.mrf.mxu0
        %v5870 = vadd.f32 0.0, %v5869
        %5871 = vmatmul.bf16.gmra.mxu0 %v4137
        %v5872 = vpop.f32.mrf.mxu0
        %v5873 = vadd.f32 0.0, %v5872
        %v5874 = vpop.f32.mrf.mxu0
        %v5875 = vadd.f32 0.0, %v5874
        %5876 = vmatmul.bf16.gmra.mxu0 %v4153
        %v5877 = vpop.f32.mrf.mxu0
        %v5878 = vadd.f32 0.0, %v5877
        %v5879 = vpop.f32.mrf.mxu0
        %v5880 = vadd.f32 0.0, %v5879
        %5881 = vmatmul.bf16.gmra.mxu0 %v4169
        %v5882 = vpop.f32.mrf.mxu0
        %v5883 = vadd.f32 0.0, %v5882
        %v5884 = vpop.f32.mrf.mxu0
        %v5885 = vadd.f32 0.0, %v5884
        %5886 = vmatmul.bf16.gmra.mxu0 %v4185
        %v5887 = vpop.f32.mrf.mxu0
        %v5888 = vadd.f32 0.0, %v5887
        %v5889 = vpop.f32.mrf.mxu0
        %v5890 = vadd.f32 0.0, %v5889
        %5891 = vmatmul.bf16.gmra.mxu0 %v4201
        %v5892 = vpop.f32.mrf.mxu0
        %v5893 = vadd.f32 0.0, %v5892
        %v5894 = vpop.f32.mrf.mxu0
        %v5895 = vadd.f32 0.0, %v5894
        %5896 = vmatmul.bf16.gmra.mxu0 %v4217
        %v5897 = vpop.f32.mrf.mxu0
        %v5898 = vadd.f32 0.0, %v5897
        %v5899 = vpop.f32.mrf.mxu0
        %v5900 = vadd.f32 0.0, %v5899
        %5901 = vmatmul.bf16.gmra.mxu0 %v4233
        %v5902 = vpop.f32.mrf.mxu0
        %v5903 = vadd.f32 0.0, %v5902
        %v5904 = vpop.f32.mrf.mxu0
        %v5905 = vadd.f32 0.0, %v5904
        %5906 = vmatmul.bf16.gmra.mxu0 %v4249
        %v5907 = vpop.f32.mrf.mxu0
        %v5908 = vadd.f32 0.0, %v5907
        %v5909 = vpop.f32.mrf.mxu0
        %v5910 = vadd.f32 0.0, %v5909
        %5911 = vmatmul.bf16.gmra.mxu0 %v4265
        %v5912 = vpop.f32.mrf.mxu0
        %v5913 = vadd.f32 0.0, %v5912
        %v5914 = vpop.f32.mrf.mxu0
        %v5915 = vadd.f32 0.0, %v5914
        %5916 = vmatmul.bf16.gmra.mxu0 %v4281
        %v5917 = vpop.f32.mrf.mxu0
        %v5918 = vadd.f32 0.0, %v5917
        %v5919 = vpop.f32.mrf.mxu0
        %v5920 = vadd.f32 0.0, %v5919
        %5921 = vmatmul.bf16.gmra.mxu0 %v4297
        %v5922 = vpop.f32.mrf.mxu0
        %v5923 = vadd.f32 0.0, %v5922
        %v5924 = vpop.f32.mrf.mxu0
        %v5925 = vadd.f32 0.0, %v5924
        %5926 = vmatmul.bf16.gmra.mxu0 %v4313
        %v5927 = vpop.f32.mrf.mxu0
        %v5928 = vadd.f32 0.0, %v5927
        %v5929 = vpop.f32.mrf.mxu0
        %v5930 = vadd.f32 0.0, %v5929
        %5931 = vmatmul.bf16.gmra.mxu0 %v4329
        %v5932 = vpop.f32.mrf.mxu0
        %v5933 = vadd.f32 0.0, %v5932
        %v5934 = vpop.f32.mrf.mxu0
        %v5935 = vadd.f32 0.0, %v5934
        %5936 = vmatmul.bf16.gmra.mxu0 %v4345
        %v5937 = vpop.f32.mrf.mxu0
        %v5938 = vadd.f32 0.0, %v5937
        %v5939 = vpop.f32.mrf.mxu0
        %v5940 = vadd.f32 0.0, %v5939
        %5941 = vmatmul.bf16.gmra.mxu0 %v4361
        %v5942 = vpop.f32.mrf.mxu0
        %v5943 = vadd.f32 0.0, %v5942
        %v5944 = vpop.f32.mrf.mxu0
        %v5945 = vadd.f32 0.0, %v5944
        %5946 = vmatmul.bf16.gmra.mxu0 %v4377
        %v5947 = vpop.f32.mrf.mxu0
        %v5948 = vadd.f32 0.0, %v5947
        %v5949 = vpop.f32.mrf.mxu0
        %v5950 = vadd.f32 0.0, %v5949
        %5951 = vmatmul.bf16.gmra.mxu0 %v4393
        %v5952 = vpop.f32.mrf.mxu0
        %v5953 = vadd.f32 0.0, %v5952
        %v5954 = vpop.f32.mrf.mxu0
        %v5955 = vadd.f32 0.0, %v5954
        %5956 = vmatmul.bf16.gmra.mxu0 %v4409
        %v5957 = vpop.f32.mrf.mxu0
        %v5958 = vadd.f32 0.0, %v5957
        %v5959 = vpop.f32.mrf.mxu0
        %v5960 = vadd.f32 0.0, %v5959
        %5961 = vmatmul.bf16.gmra.mxu0 %v4425
        %v5962 = vpop.f32.mrf.mxu0
        %v5963 = vadd.f32 0.0, %v5962
        %v5964 = vpop.f32.mrf.mxu0
        %v5965 = vadd.f32 0.0, %v5964
        %5966 = vmatmul.bf16.gmra.mxu0 %v4441
        %v5967 = vpop.f32.mrf.mxu0
        %v5968 = vadd.f32 0.0, %v5967
        %v5969 = vpop.f32.mrf.mxu0
        %v5970 = vadd.f32 0.0, %v5969
        %5971 = vmatmul.bf16.gmra.mxu0 %v4457
        %v5972 = vpop.f32.mrf.mxu0
        %v5973 = vadd.f32 0.0, %v5972
        %v5974 = vpop.f32.mrf.mxu0
        %v5975 = vadd.f32 0.0, %v5974
        %5976 = vmatmul.bf16.gmra.mxu0 %v4473
        %v5977 = vpop.f32.mrf.mxu0
        %v5978 = vadd.f32 0.0, %v5977
        %v5979 = vpop.f32.mrf.mxu0
        %v5980 = vadd.f32 0.0, %v5979
        %5981 = vmatmul.bf16.gmra.mxu0 %v4489
        %v5982 = vpop.f32.mrf.mxu0
        %v5983 = vadd.f32 0.0, %v5982
        %v5984 = vpop.f32.mrf.mxu0
        %v5985 = vadd.f32 0.0, %v5984
        %5986 = vmatmul.bf16.gmra.mxu0 %v4505
        %v5987 = vpop.f32.mrf.mxu0
        %v5988 = vadd.f32 0.0, %v5987
        %v5989 = vpop.f32.mrf.mxu0
        %v5990 = vadd.f32 0.0, %v5989
        %5991 = vmatmul.bf16.gmra.mxu0 %v4521
        %v5992 = vpop.f32.mrf.mxu0
        %v5993 = vadd.f32 0.0, %v5992
        %v5994 = vpop.f32.mrf.mxu0
        %v5995 = vadd.f32 0.0, %v5994
        %5996 = vmatmul.bf16.gmra.mxu0 %v4537
        %v5997 = vpop.f32.mrf.mxu0
        %v5998 = vadd.f32 0.0, %v5997
        %v5999 = vpop.f32.mrf.mxu0
        %v6000 = vadd.f32 0.0, %v5999
        %6001 = vdwg.mxu0
        %6002 = vmatpush.bf16.msra.mxu0 %v5592
        %6003 = vmatpush.bf16.msra.mxu0 %v5591
        %6004 = vmatpush.bf16.msra.mxu0 %v5590
        %6005 = vmatpush.bf16.msra.mxu0 %v5589
        %6006 = vmatpush.bf16.msra.mxu0 %v5588
        %6007 = vmatpush.bf16.msra.mxu0 %v5587
        %6008 = vmatpush.bf16.msra.mxu0 %v5586
        %6009 = vmatpush.bf16.msra.mxu0 %v5585
        %6010 = vmatmul.bf16.gmra.mxu0 %v4042
        %v6011 = vpop.f32.mrf.mxu0
        %v6012 = vadd.f32 %v5843, %v6011
        %v6013 = vpop.f32.mrf.mxu0
        %v6014 = vadd.f32 %v5845, %v6013
        %6015 = vmatmul.bf16.gmra.mxu0 %v4058
        %v6016 = vpop.f32.mrf.mxu0
        %v6017 = vadd.f32 %v5848, %v6016
        %v6018 = vpop.f32.mrf.mxu0
        %v6019 = vadd.f32 %v5850, %v6018
        %6020 = vmatmul.bf16.gmra.mxu0 %v4074
        %v6021 = vpop.f32.mrf.mxu0
        %v6022 = vadd.f32 %v5853, %v6021
        %v6023 = vpop.f32.mrf.mxu0
        %v6024 = vadd.f32 %v5855, %v6023
        %6025 = vmatmul.bf16.gmra.mxu0 %v4090
        %v6026 = vpop.f32.mrf.mxu0
        %v6027 = vadd.f32 %v5858, %v6026
        %v6028 = vpop.f32.mrf.mxu0
        %v6029 = vadd.f32 %v5860, %v6028
        %6030 = vmatmul.bf16.gmra.mxu0 %v4106
        %v6031 = vpop.f32.mrf.mxu0
        %v6032 = vadd.f32 %v5863, %v6031
        %v6033 = vpop.f32.mrf.mxu0
        %v6034 = vadd.f32 %v5865, %v6033
        %6035 = vmatmul.bf16.gmra.mxu0 %v4122
        %v6036 = vpop.f32.mrf.mxu0
        %v6037 = vadd.f32 %v5868, %v6036
        %v6038 = vpop.f32.mrf.mxu0
        %v6039 = vadd.f32 %v5870, %v6038
        %6040 = vmatmul.bf16.gmra.mxu0 %v4138
        %v6041 = vpop.f32.mrf.mxu0
        %v6042 = vadd.f32 %v5873, %v6041
        %v6043 = vpop.f32.mrf.mxu0
        %v6044 = vadd.f32 %v5875, %v6043
        %6045 = vmatmul.bf16.gmra.mxu0 %v4154
        %v6046 = vpop.f32.mrf.mxu0
        %v6047 = vadd.f32 %v5878, %v6046
        %v6048 = vpop.f32.mrf.mxu0
        %v6049 = vadd.f32 %v5880, %v6048
        %6050 = vmatmul.bf16.gmra.mxu0 %v4170
        %v6051 = vpop.f32.mrf.mxu0
        %v6052 = vadd.f32 %v5883, %v6051
        %v6053 = vpop.f32.mrf.mxu0
        %v6054 = vadd.f32 %v5885, %v6053
        %6055 = vmatmul.bf16.gmra.mxu0 %v4186
        %v6056 = vpop.f32.mrf.mxu0
        %v6057 = vadd.f32 %v5888, %v6056
        %v6058 = vpop.f32.mrf.mxu0
        %v6059 = vadd.f32 %v5890, %v6058
        %6060 = vmatmul.bf16.gmra.mxu0 %v4202
        %v6061 = vpop.f32.mrf.mxu0
        %v6062 = vadd.f32 %v5893, %v6061
        %v6063 = vpop.f32.mrf.mxu0
        %v6064 = vadd.f32 %v5895, %v6063
        %6065 = vmatmul.bf16.gmra.mxu0 %v4218
        %v6066 = vpop.f32.mrf.mxu0
        %v6067 = vadd.f32 %v5898, %v6066
        %v6068 = vpop.f32.mrf.mxu0
        %v6069 = vadd.f32 %v5900, %v6068
        %6070 = vmatmul.bf16.gmra.mxu0 %v4234
        %v6071 = vpop.f32.mrf.mxu0
        %v6072 = vadd.f32 %v5903, %v6071
        %v6073 = vpop.f32.mrf.mxu0
        %v6074 = vadd.f32 %v5905, %v6073
        %6075 = vmatmul.bf16.gmra.mxu0 %v4250
        %v6076 = vpop.f32.mrf.mxu0
        %v6077 = vadd.f32 %v5908, %v6076
        %v6078 = vpop.f32.mrf.mxu0
        %v6079 = vadd.f32 %v5910, %v6078
        %6080 = vmatmul.bf16.gmra.mxu0 %v4266
        %v6081 = vpop.f32.mrf.mxu0
        %v6082 = vadd.f32 %v5913, %v6081
        %v6083 = vpop.f32.mrf.mxu0
        %v6084 = vadd.f32 %v5915, %v6083
        %6085 = vmatmul.bf16.gmra.mxu0 %v4282
        %v6086 = vpop.f32.mrf.mxu0
        %v6087 = vadd.f32 %v5918, %v6086
        %v6088 = vpop.f32.mrf.mxu0
        %v6089 = vadd.f32 %v5920, %v6088
        %6090 = vmatmul.bf16.gmra.mxu0 %v4298
        %v6091 = vpop.f32.mrf.mxu0
        %v6092 = vadd.f32 %v5923, %v6091
        %v6093 = vpop.f32.mrf.mxu0
        %v6094 = vadd.f32 %v5925, %v6093
        %6095 = vmatmul.bf16.gmra.mxu0 %v4314
        %v6096 = vpop.f32.mrf.mxu0
        %v6097 = vadd.f32 %v5928, %v6096
        %v6098 = vpop.f32.mrf.mxu0
        %v6099 = vadd.f32 %v5930, %v6098
        %6100 = vmatmul.bf16.gmra.mxu0 %v4330
        %v6101 = vpop.f32.mrf.mxu0
        %v6102 = vadd.f32 %v5933, %v6101
        %v6103 = vpop.f32.mrf.mxu0
        %v6104 = vadd.f32 %v5935, %v6103
        %6105 = vmatmul.bf16.gmra.mxu0 %v4346
        %v6106 = vpop.f32.mrf.mxu0
        %v6107 = vadd.f32 %v5938, %v6106
        %v6108 = vpop.f32.mrf.mxu0
        %v6109 = vadd.f32 %v5940, %v6108
        %6110 = vmatmul.bf16.gmra.mxu0 %v4362
        %v6111 = vpop.f32.mrf.mxu0
        %v6112 = vadd.f32 %v5943, %v6111
        %v6113 = vpop.f32.mrf.mxu0
        %v6114 = vadd.f32 %v5945, %v6113
        %6115 = vmatmul.bf16.gmra.mxu0 %v4378
        %v6116 = vpop.f32.mrf.mxu0
        %v6117 = vadd.f32 %v5948, %v6116
        %v6118 = vpop.f32.mrf.mxu0
        %v6119 = vadd.f32 %v5950, %v6118
        %6120 = vmatmul.bf16.gmra.mxu0 %v4394
        %v6121 = vpop.f32.mrf.mxu0
        %v6122 = vadd.f32 %v5953, %v6121
        %v6123 = vpop.f32.mrf.mxu0
        %v6124 = vadd.f32 %v5955, %v6123
        %6125 = vmatmul.bf16.gmra.mxu0 %v4410
        %v6126 = vpop.f32.mrf.mxu0
        %v6127 = vadd.f32 %v5958, %v6126
        %v6128 = vpop.f32.mrf.mxu0
        %v6129 = vadd.f32 %v5960, %v6128
        %6130 = vmatmul.bf16.gmra.mxu0 %v4426
        %v6131 = vpop.f32.mrf.mxu0
        %v6132 = vadd.f32 %v5963, %v6131
        %v6133 = vpop.f32.mrf.mxu0
        %v6134 = vadd.f32 %v5965, %v6133
        %6135 = vmatmul.bf16.gmra.mxu0 %v4442
        %v6136 = vpop.f32.mrf.mxu0
        %v6137 = vadd.f32 %v5968, %v6136
        %v6138 = vpop.f32.mrf.mxu0
        %v6139 = vadd.f32 %v5970, %v6138
        %6140 = vmatmul.bf16.gmra.mxu0 %v4458
        %v6141 = vpop.f32.mrf.mxu0
        %v6142 = vadd.f32 %v5973, %v6141
        %v6143 = vpop.f32.mrf.mxu0
        %v6144 = vadd.f32 %v5975, %v6143
        %6145 = vmatmul.bf16.gmra.mxu0 %v4474
        %v6146 = vpop.f32.mrf.mxu0
        %v6147 = vadd.f32 %v5978, %v6146
        %v6148 = vpop.f32.mrf.mxu0
        %v6149 = vadd.f32 %v5980, %v6148
        %6150 = vmatmul.bf16.gmra.mxu0 %v4490
        %v6151 = vpop.f32.mrf.mxu0
        %v6152 = vadd.f32 %v5983, %v6151
        %v6153 = vpop.f32.mrf.mxu0
        %v6154 = vadd.f32 %v5985, %v6153
        %6155 = vmatmul.bf16.gmra.mxu0 %v4506
        %v6156 = vpop.f32.mrf.mxu0
        %v6157 = vadd.f32 %v5988, %v6156
        %v6158 = vpop.f32.mrf.mxu0
        %v6159 = vadd.f32 %v5990, %v6158
        %6160 = vmatmul.bf16.gmra.mxu0 %v4522
        %v6161 = vpop.f32.mrf.mxu0
        %v6162 = vadd.f32 %v5993, %v6161
        %v6163 = vpop.f32.mrf.mxu0
        %v6164 = vadd.f32 %v5995, %v6163
        %6165 = vmatmul.bf16.gmra.mxu0 %v4538
        %v6166 = vpop.f32.mrf.mxu0
        %v6167 = vadd.f32 %v5998, %v6166
        %v6168 = vpop.f32.mrf.mxu0
        %v6169 = vadd.f32 %v6000, %v6168
        %6170 = vdwg.mxu0
        %6171 = vmatpush.bf16.msra.mxu0 %v5600
        %6172 = vmatpush.bf16.msra.mxu0 %v5599
        %6173 = vmatpush.bf16.msra.mxu0 %v5598
        %6174 = vmatpush.bf16.msra.mxu0 %v5597
        %6175 = vmatpush.bf16.msra.mxu0 %v5596
        %6176 = vmatpush.bf16.msra.mxu0 %v5595
        %6177 = vmatpush.bf16.msra.mxu0 %v5594
        %6178 = vmatpush.bf16.msra.mxu0 %v5593
        %6179 = vmatmul.bf16.gmra.mxu0 %v4043
        %v6180 = vpop.f32.mrf.mxu0
        %v6181 = vadd.f32 %v6012, %v6180
        %v6182 = vpop.f32.mrf.mxu0
        %v6183 = vadd.f32 %v6014, %v6182
        %6184 = vmatmul.bf16.gmra.mxu0 %v4059
        %v6185 = vpop.f32.mrf.mxu0
        %v6186 = vadd.f32 %v6017, %v6185
        %v6187 = vpop.f32.mrf.mxu0
        %v6188 = vadd.f32 %v6019, %v6187
        %6189 = vmatmul.bf16.gmra.mxu0 %v4075
        %v6190 = vpop.f32.mrf.mxu0
        %v6191 = vadd.f32 %v6022, %v6190
        %v6192 = vpop.f32.mrf.mxu0
        %v6193 = vadd.f32 %v6024, %v6192
        %6194 = vmatmul.bf16.gmra.mxu0 %v4091
        %v6195 = vpop.f32.mrf.mxu0
        %v6196 = vadd.f32 %v6027, %v6195
        %v6197 = vpop.f32.mrf.mxu0
        %v6198 = vadd.f32 %v6029, %v6197
        %6199 = vmatmul.bf16.gmra.mxu0 %v4107
        %v6200 = vpop.f32.mrf.mxu0
        %v6201 = vadd.f32 %v6032, %v6200
        %v6202 = vpop.f32.mrf.mxu0
        %v6203 = vadd.f32 %v6034, %v6202
        %6204 = vmatmul.bf16.gmra.mxu0 %v4123
        %v6205 = vpop.f32.mrf.mxu0
        %v6206 = vadd.f32 %v6037, %v6205
        %v6207 = vpop.f32.mrf.mxu0
        %v6208 = vadd.f32 %v6039, %v6207
        %6209 = vmatmul.bf16.gmra.mxu0 %v4139
        %v6210 = vpop.f32.mrf.mxu0
        %v6211 = vadd.f32 %v6042, %v6210
        %v6212 = vpop.f32.mrf.mxu0
        %v6213 = vadd.f32 %v6044, %v6212
        %6214 = vmatmul.bf16.gmra.mxu0 %v4155
        %v6215 = vpop.f32.mrf.mxu0
        %v6216 = vadd.f32 %v6047, %v6215
        %v6217 = vpop.f32.mrf.mxu0
        %v6218 = vadd.f32 %v6049, %v6217
        %6219 = vmatmul.bf16.gmra.mxu0 %v4171
        %v6220 = vpop.f32.mrf.mxu0
        %v6221 = vadd.f32 %v6052, %v6220
        %v6222 = vpop.f32.mrf.mxu0
        %v6223 = vadd.f32 %v6054, %v6222
        %6224 = vmatmul.bf16.gmra.mxu0 %v4187
        %v6225 = vpop.f32.mrf.mxu0
        %v6226 = vadd.f32 %v6057, %v6225
        %v6227 = vpop.f32.mrf.mxu0
        %v6228 = vadd.f32 %v6059, %v6227
        %6229 = vmatmul.bf16.gmra.mxu0 %v4203
        %v6230 = vpop.f32.mrf.mxu0
        %v6231 = vadd.f32 %v6062, %v6230
        %v6232 = vpop.f32.mrf.mxu0
        %v6233 = vadd.f32 %v6064, %v6232
        %6234 = vmatmul.bf16.gmra.mxu0 %v4219
        %v6235 = vpop.f32.mrf.mxu0
        %v6236 = vadd.f32 %v6067, %v6235
        %v6237 = vpop.f32.mrf.mxu0
        %v6238 = vadd.f32 %v6069, %v6237
        %6239 = vmatmul.bf16.gmra.mxu0 %v4235
        %v6240 = vpop.f32.mrf.mxu0
        %v6241 = vadd.f32 %v6072, %v6240
        %v6242 = vpop.f32.mrf.mxu0
        %v6243 = vadd.f32 %v6074, %v6242
        %6244 = vmatmul.bf16.gmra.mxu0 %v4251
        %v6245 = vpop.f32.mrf.mxu0
        %v6246 = vadd.f32 %v6077, %v6245
        %v6247 = vpop.f32.mrf.mxu0
        %v6248 = vadd.f32 %v6079, %v6247
        %6249 = vmatmul.bf16.gmra.mxu0 %v4267
        %v6250 = vpop.f32.mrf.mxu0
        %v6251 = vadd.f32 %v6082, %v6250
        %v6252 = vpop.f32.mrf.mxu0
        %v6253 = vadd.f32 %v6084, %v6252
        %6254 = vmatmul.bf16.gmra.mxu0 %v4283
        %v6255 = vpop.f32.mrf.mxu0
        %v6256 = vadd.f32 %v6087, %v6255
        %v6257 = vpop.f32.mrf.mxu0
        %v6258 = vadd.f32 %v6089, %v6257
        %6259 = vmatmul.bf16.gmra.mxu0 %v4299
        %v6260 = vpop.f32.mrf.mxu0
        %v6261 = vadd.f32 %v6092, %v6260
        %v6262 = vpop.f32.mrf.mxu0
        %v6263 = vadd.f32 %v6094, %v6262
        %6264 = vmatmul.bf16.gmra.mxu0 %v4315
        %v6265 = vpop.f32.mrf.mxu0
        %v6266 = vadd.f32 %v6097, %v6265
        %v6267 = vpop.f32.mrf.mxu0
        %v6268 = vadd.f32 %v6099, %v6267
        %6269 = vmatmul.bf16.gmra.mxu0 %v4331
        %v6270 = vpop.f32.mrf.mxu0
        %v6271 = vadd.f32 %v6102, %v6270
        %v6272 = vpop.f32.mrf.mxu0
        %v6273 = vadd.f32 %v6104, %v6272
        %6274 = vmatmul.bf16.gmra.mxu0 %v4347
        %v6275 = vpop.f32.mrf.mxu0
        %v6276 = vadd.f32 %v6107, %v6275
        %v6277 = vpop.f32.mrf.mxu0
        %v6278 = vadd.f32 %v6109, %v6277
        %6279 = vmatmul.bf16.gmra.mxu0 %v4363
        %v6280 = vpop.f32.mrf.mxu0
        %v6281 = vadd.f32 %v6112, %v6280
        %v6282 = vpop.f32.mrf.mxu0
        %v6283 = vadd.f32 %v6114, %v6282
        %6284 = vmatmul.bf16.gmra.mxu0 %v4379
        %v6285 = vpop.f32.mrf.mxu0
        %v6286 = vadd.f32 %v6117, %v6285
        %v6287 = vpop.f32.mrf.mxu0
        %v6288 = vadd.f32 %v6119, %v6287
        %6289 = vmatmul.bf16.gmra.mxu0 %v4395
        %v6290 = vpop.f32.mrf.mxu0
        %v6291 = vadd.f32 %v6122, %v6290
        %v6292 = vpop.f32.mrf.mxu0
        %v6293 = vadd.f32 %v6124, %v6292
        %6294 = vmatmul.bf16.gmra.mxu0 %v4411
        %v6295 = vpop.f32.mrf.mxu0
        %v6296 = vadd.f32 %v6127, %v6295
        %v6297 = vpop.f32.mrf.mxu0
        %v6298 = vadd.f32 %v6129, %v6297
        %6299 = vmatmul.bf16.gmra.mxu0 %v4427
        %v6300 = vpop.f32.mrf.mxu0
        %v6301 = vadd.f32 %v6132, %v6300
        %v6302 = vpop.f32.mrf.mxu0
        %v6303 = vadd.f32 %v6134, %v6302
        %6304 = vmatmul.bf16.gmra.mxu0 %v4443
        %v6305 = vpop.f32.mrf.mxu0
        %v6306 = vadd.f32 %v6137, %v6305
        %v6307 = vpop.f32.mrf.mxu0
        %v6308 = vadd.f32 %v6139, %v6307
        %6309 = vmatmul.bf16.gmra.mxu0 %v4459
        %v6310 = vpop.f32.mrf.mxu0
        %v6311 = vadd.f32 %v6142, %v6310
        %v6312 = vpop.f32.mrf.mxu0
        %v6313 = vadd.f32 %v6144, %v6312
        %6314 = vmatmul.bf16.gmra.mxu0 %v4475
        %v6315 = vpop.f32.mrf.mxu0
        %v6316 = vadd.f32 %v6147, %v6315
        %v6317 = vpop.f32.mrf.mxu0
        %v6318 = vadd.f32 %v6149, %v6317
        %6319 = vmatmul.bf16.gmra.mxu0 %v4491
        %v6320 = vpop.f32.mrf.mxu0
        %v6321 = vadd.f32 %v6152, %v6320
        %v6322 = vpop.f32.mrf.mxu0
        %v6323 = vadd.f32 %v6154, %v6322
        %6324 = vmatmul.bf16.gmra.mxu0 %v4507
        %v6325 = vpop.f32.mrf.mxu0
        %v6326 = vadd.f32 %v6157, %v6325
        %v6327 = vpop.f32.mrf.mxu0
        %v6328 = vadd.f32 %v6159, %v6327
        %6329 = vmatmul.bf16.gmra.mxu0 %v4523
        %v6330 = vpop.f32.mrf.mxu0
        %v6331 = vadd.f32 %v6162, %v6330
        %v6332 = vpop.f32.mrf.mxu0
        %v6333 = vadd.f32 %v6164, %v6332
        %6334 = vmatmul.bf16.gmra.mxu0 %v4539
        %v6335 = vpop.f32.mrf.mxu0
        %v6336 = vadd.f32 %v6167, %v6335
        %v6337 = vpop.f32.mrf.mxu0
        %v6338 = vadd.f32 %v6169, %v6337
        %6339 = vdwg.mxu0
        %6340 = vmatpush.bf16.msra.mxu0 %v5608
        %6341 = vmatpush.bf16.msra.mxu0 %v5607
        %6342 = vmatpush.bf16.msra.mxu0 %v5606
        %6343 = vmatpush.bf16.msra.mxu0 %v5605
        %6344 = vmatpush.bf16.msra.mxu0 %v5604
        %6345 = vmatpush.bf16.msra.mxu0 %v5603
        %6346 = vmatpush.bf16.msra.mxu0 %v5602
        %6347 = vmatpush.bf16.msra.mxu0 %v5601
        %6348 = vmatmul.bf16.gmra.mxu0 %v4044
        %v6349 = vpop.f32.mrf.mxu0
        %v6350 = vadd.f32 %v6181, %v6349
        %v6351 = vpop.f32.mrf.mxu0
        %v6352 = vadd.f32 %v6183, %v6351
        %6353 = vmatmul.bf16.gmra.mxu0 %v4060
        %v6354 = vpop.f32.mrf.mxu0
        %v6355 = vadd.f32 %v6186, %v6354
        %v6356 = vpop.f32.mrf.mxu0
        %v6357 = vadd.f32 %v6188, %v6356
        %6358 = vmatmul.bf16.gmra.mxu0 %v4076
        %v6359 = vpop.f32.mrf.mxu0
        %v6360 = vadd.f32 %v6191, %v6359
        %v6361 = vpop.f32.mrf.mxu0
        %v6362 = vadd.f32 %v6193, %v6361
        %6363 = vmatmul.bf16.gmra.mxu0 %v4092
        %v6364 = vpop.f32.mrf.mxu0
        %v6365 = vadd.f32 %v6196, %v6364
        %v6366 = vpop.f32.mrf.mxu0
        %v6367 = vadd.f32 %v6198, %v6366
        %6368 = vmatmul.bf16.gmra.mxu0 %v4108
        %v6369 = vpop.f32.mrf.mxu0
        %v6370 = vadd.f32 %v6201, %v6369
        %v6371 = vpop.f32.mrf.mxu0
        %v6372 = vadd.f32 %v6203, %v6371
        %6373 = vmatmul.bf16.gmra.mxu0 %v4124
        %v6374 = vpop.f32.mrf.mxu0
        %v6375 = vadd.f32 %v6206, %v6374
        %v6376 = vpop.f32.mrf.mxu0
        %v6377 = vadd.f32 %v6208, %v6376
        %6378 = vmatmul.bf16.gmra.mxu0 %v4140
        %v6379 = vpop.f32.mrf.mxu0
        %v6380 = vadd.f32 %v6211, %v6379
        %v6381 = vpop.f32.mrf.mxu0
        %v6382 = vadd.f32 %v6213, %v6381
        %6383 = vmatmul.bf16.gmra.mxu0 %v4156
        %v6384 = vpop.f32.mrf.mxu0
        %v6385 = vadd.f32 %v6216, %v6384
        %v6386 = vpop.f32.mrf.mxu0
        %v6387 = vadd.f32 %v6218, %v6386
        %6388 = vmatmul.bf16.gmra.mxu0 %v4172
        %v6389 = vpop.f32.mrf.mxu0
        %v6390 = vadd.f32 %v6221, %v6389
        %v6391 = vpop.f32.mrf.mxu0
        %v6392 = vadd.f32 %v6223, %v6391
        %6393 = vmatmul.bf16.gmra.mxu0 %v4188
        %v6394 = vpop.f32.mrf.mxu0
        %v6395 = vadd.f32 %v6226, %v6394
        %v6396 = vpop.f32.mrf.mxu0
        %v6397 = vadd.f32 %v6228, %v6396
        %6398 = vmatmul.bf16.gmra.mxu0 %v4204
        %v6399 = vpop.f32.mrf.mxu0
        %v6400 = vadd.f32 %v6231, %v6399
        %v6401 = vpop.f32.mrf.mxu0
        %v6402 = vadd.f32 %v6233, %v6401
        %6403 = vmatmul.bf16.gmra.mxu0 %v4220
        %v6404 = vpop.f32.mrf.mxu0
        %v6405 = vadd.f32 %v6236, %v6404
        %v6406 = vpop.f32.mrf.mxu0
        %v6407 = vadd.f32 %v6238, %v6406
        %6408 = vmatmul.bf16.gmra.mxu0 %v4236
        %v6409 = vpop.f32.mrf.mxu0
        %v6410 = vadd.f32 %v6241, %v6409
        %v6411 = vpop.f32.mrf.mxu0
        %v6412 = vadd.f32 %v6243, %v6411
        %6413 = vmatmul.bf16.gmra.mxu0 %v4252
        %v6414 = vpop.f32.mrf.mxu0
        %v6415 = vadd.f32 %v6246, %v6414
        %v6416 = vpop.f32.mrf.mxu0
        %v6417 = vadd.f32 %v6248, %v6416
        %6418 = vmatmul.bf16.gmra.mxu0 %v4268
        %v6419 = vpop.f32.mrf.mxu0
        %v6420 = vadd.f32 %v6251, %v6419
        %v6421 = vpop.f32.mrf.mxu0
        %v6422 = vadd.f32 %v6253, %v6421
        %6423 = vmatmul.bf16.gmra.mxu0 %v4284
        %v6424 = vpop.f32.mrf.mxu0
        %v6425 = vadd.f32 %v6256, %v6424
        %v6426 = vpop.f32.mrf.mxu0
        %v6427 = vadd.f32 %v6258, %v6426
        %6428 = vmatmul.bf16.gmra.mxu0 %v4300
        %v6429 = vpop.f32.mrf.mxu0
        %v6430 = vadd.f32 %v6261, %v6429
        %v6431 = vpop.f32.mrf.mxu0
        %v6432 = vadd.f32 %v6263, %v6431
        %6433 = vmatmul.bf16.gmra.mxu0 %v4316
        %v6434 = vpop.f32.mrf.mxu0
        %v6435 = vadd.f32 %v6266, %v6434
        %v6436 = vpop.f32.mrf.mxu0
        %v6437 = vadd.f32 %v6268, %v6436
        %6438 = vmatmul.bf16.gmra.mxu0 %v4332
        %v6439 = vpop.f32.mrf.mxu0
        %v6440 = vadd.f32 %v6271, %v6439
        %v6441 = vpop.f32.mrf.mxu0
        %v6442 = vadd.f32 %v6273, %v6441
        %6443 = vmatmul.bf16.gmra.mxu0 %v4348
        %v6444 = vpop.f32.mrf.mxu0
        %v6445 = vadd.f32 %v6276, %v6444
        %v6446 = vpop.f32.mrf.mxu0
        %v6447 = vadd.f32 %v6278, %v6446
        %6448 = vmatmul.bf16.gmra.mxu0 %v4364
        %v6449 = vpop.f32.mrf.mxu0
        %v6450 = vadd.f32 %v6281, %v6449
        %v6451 = vpop.f32.mrf.mxu0
        %v6452 = vadd.f32 %v6283, %v6451
        %6453 = vmatmul.bf16.gmra.mxu0 %v4380
        %v6454 = vpop.f32.mrf.mxu0
        %v6455 = vadd.f32 %v6286, %v6454
        %v6456 = vpop.f32.mrf.mxu0
        %v6457 = vadd.f32 %v6288, %v6456
        %6458 = vmatmul.bf16.gmra.mxu0 %v4396
        %v6459 = vpop.f32.mrf.mxu0
        %v6460 = vadd.f32 %v6291, %v6459
        %v6461 = vpop.f32.mrf.mxu0
        %v6462 = vadd.f32 %v6293, %v6461
        %6463 = vmatmul.bf16.gmra.mxu0 %v4412
        %v6464 = vpop.f32.mrf.mxu0
        %v6465 = vadd.f32 %v6296, %v6464
        %v6466 = vpop.f32.mrf.mxu0
        %v6467 = vadd.f32 %v6298, %v6466
        %6468 = vmatmul.bf16.gmra.mxu0 %v4428
        %v6469 = vpop.f32.mrf.mxu0
        %v6470 = vadd.f32 %v6301, %v6469
        %v6471 = vpop.f32.mrf.mxu0
        %v6472 = vadd.f32 %v6303, %v6471
        %6473 = vmatmul.bf16.gmra.mxu0 %v4444
        %v6474 = vpop.f32.mrf.mxu0
        %v6475 = vadd.f32 %v6306, %v6474
        %v6476 = vpop.f32.mrf.mxu0
        %v6477 = vadd.f32 %v6308, %v6476
        %6478 = vmatmul.bf16.gmra.mxu0 %v4460
        %v6479 = vpop.f32.mrf.mxu0
        %v6480 = vadd.f32 %v6311, %v6479
        %v6481 = vpop.f32.mrf.mxu0
        %v6482 = vadd.f32 %v6313, %v6481
        %6483 = vmatmul.bf16.gmra.mxu0 %v4476
        %v6484 = vpop.f32.mrf.mxu0
        %v6485 = vadd.f32 %v6316, %v6484
        %v6486 = vpop.f32.mrf.mxu0
        %v6487 = vadd.f32 %v6318, %v6486
        %6488 = vmatmul.bf16.gmra.mxu0 %v4492
        %v6489 = vpop.f32.mrf.mxu0
        %v6490 = vadd.f32 %v6321, %v6489
        %v6491 = vpop.f32.mrf.mxu0
        %v6492 = vadd.f32 %v6323, %v6491
        %6493 = vmatmul.bf16.gmra.mxu0 %v4508
        %v6494 = vpop.f32.mrf.mxu0
        %v6495 = vadd.f32 %v6326, %v6494
        %v6496 = vpop.f32.mrf.mxu0
        %v6497 = vadd.f32 %v6328, %v6496
        %6498 = vmatmul.bf16.gmra.mxu0 %v4524
        %v6499 = vpop.f32.mrf.mxu0
        %v6500 = vadd.f32 %v6331, %v6499
        %v6501 = vpop.f32.mrf.mxu0
        %v6502 = vadd.f32 %v6333, %v6501
        %6503 = vmatmul.bf16.gmra.mxu0 %v4540
        %v6504 = vpop.f32.mrf.mxu0
        %v6505 = vadd.f32 %v6336, %v6504
        %v6506 = vpop.f32.mrf.mxu0
        %v6507 = vadd.f32 %v6338, %v6506
        %6508 = vdwg.mxu0
        %6509 = vmatpush.bf16.msra.mxu0 %v5616
        %6510 = vmatpush.bf16.msra.mxu0 %v5615
        %6511 = vmatpush.bf16.msra.mxu0 %v5614
        %6512 = vmatpush.bf16.msra.mxu0 %v5613
        %6513 = vmatpush.bf16.msra.mxu0 %v5612
        %6514 = vmatpush.bf16.msra.mxu0 %v5611
        %6515 = vmatpush.bf16.msra.mxu0 %v5610
        %6516 = vmatpush.bf16.msra.mxu0 %v5609
        %6517 = vmatmul.bf16.gmra.mxu0 %v4045
        %v6518 = vpop.f32.mrf.mxu0
        %v6519 = vadd.f32 %v6350, %v6518
        %v6520 = vpop.f32.mrf.mxu0
        %v6521 = vadd.f32 %v6352, %v6520
        %6522 = vmatmul.bf16.gmra.mxu0 %v4061
        %v6523 = vpop.f32.mrf.mxu0
        %v6524 = vadd.f32 %v6355, %v6523
        %v6525 = vpop.f32.mrf.mxu0
        %v6526 = vadd.f32 %v6357, %v6525
        %6527 = vmatmul.bf16.gmra.mxu0 %v4077
        %v6528 = vpop.f32.mrf.mxu0
        %v6529 = vadd.f32 %v6360, %v6528
        %v6530 = vpop.f32.mrf.mxu0
        %v6531 = vadd.f32 %v6362, %v6530
        %6532 = vmatmul.bf16.gmra.mxu0 %v4093
        %v6533 = vpop.f32.mrf.mxu0
        %v6534 = vadd.f32 %v6365, %v6533
        %v6535 = vpop.f32.mrf.mxu0
        %v6536 = vadd.f32 %v6367, %v6535
        %6537 = vmatmul.bf16.gmra.mxu0 %v4109
        %v6538 = vpop.f32.mrf.mxu0
        %v6539 = vadd.f32 %v6370, %v6538
        %v6540 = vpop.f32.mrf.mxu0
        %v6541 = vadd.f32 %v6372, %v6540
        %6542 = vmatmul.bf16.gmra.mxu0 %v4125
        %v6543 = vpop.f32.mrf.mxu0
        %v6544 = vadd.f32 %v6375, %v6543
        %v6545 = vpop.f32.mrf.mxu0
        %v6546 = vadd.f32 %v6377, %v6545
        %6547 = vmatmul.bf16.gmra.mxu0 %v4141
        %v6548 = vpop.f32.mrf.mxu0
        %v6549 = vadd.f32 %v6380, %v6548
        %v6550 = vpop.f32.mrf.mxu0
        %v6551 = vadd.f32 %v6382, %v6550
        %6552 = vmatmul.bf16.gmra.mxu0 %v4157
        %v6553 = vpop.f32.mrf.mxu0
        %v6554 = vadd.f32 %v6385, %v6553
        %v6555 = vpop.f32.mrf.mxu0
        %v6556 = vadd.f32 %v6387, %v6555
        %6557 = vmatmul.bf16.gmra.mxu0 %v4173
        %v6558 = vpop.f32.mrf.mxu0
        %v6559 = vadd.f32 %v6390, %v6558
        %v6560 = vpop.f32.mrf.mxu0
        %v6561 = vadd.f32 %v6392, %v6560
        %6562 = vmatmul.bf16.gmra.mxu0 %v4189
        %v6563 = vpop.f32.mrf.mxu0
        %v6564 = vadd.f32 %v6395, %v6563
        %v6565 = vpop.f32.mrf.mxu0
        %v6566 = vadd.f32 %v6397, %v6565
        %6567 = vmatmul.bf16.gmra.mxu0 %v4205
        %v6568 = vpop.f32.mrf.mxu0
        %v6569 = vadd.f32 %v6400, %v6568
        %v6570 = vpop.f32.mrf.mxu0
        %v6571 = vadd.f32 %v6402, %v6570
        %6572 = vmatmul.bf16.gmra.mxu0 %v4221
        %v6573 = vpop.f32.mrf.mxu0
        %v6574 = vadd.f32 %v6405, %v6573
        %v6575 = vpop.f32.mrf.mxu0
        %v6576 = vadd.f32 %v6407, %v6575
        %6577 = vmatmul.bf16.gmra.mxu0 %v4237
        %v6578 = vpop.f32.mrf.mxu0
        %v6579 = vadd.f32 %v6410, %v6578
        %v6580 = vpop.f32.mrf.mxu0
        %v6581 = vadd.f32 %v6412, %v6580
        %6582 = vmatmul.bf16.gmra.mxu0 %v4253
        %v6583 = vpop.f32.mrf.mxu0
        %v6584 = vadd.f32 %v6415, %v6583
        %v6585 = vpop.f32.mrf.mxu0
        %v6586 = vadd.f32 %v6417, %v6585
        %6587 = vmatmul.bf16.gmra.mxu0 %v4269
        %v6588 = vpop.f32.mrf.mxu0
        %v6589 = vadd.f32 %v6420, %v6588
        %v6590 = vpop.f32.mrf.mxu0
        %v6591 = vadd.f32 %v6422, %v6590
        %6592 = vmatmul.bf16.gmra.mxu0 %v4285
        %v6593 = vpop.f32.mrf.mxu0
        %v6594 = vadd.f32 %v6425, %v6593
        %v6595 = vpop.f32.mrf.mxu0
        %v6596 = vadd.f32 %v6427, %v6595
        %6597 = vmatmul.bf16.gmra.mxu0 %v4301
        %v6598 = vpop.f32.mrf.mxu0
        %v6599 = vadd.f32 %v6430, %v6598
        %v6600 = vpop.f32.mrf.mxu0
        %v6601 = vadd.f32 %v6432, %v6600
        %6602 = vmatmul.bf16.gmra.mxu0 %v4317
        %v6603 = vpop.f32.mrf.mxu0
        %v6604 = vadd.f32 %v6435, %v6603
        %v6605 = vpop.f32.mrf.mxu0
        %v6606 = vadd.f32 %v6437, %v6605
        %6607 = vmatmul.bf16.gmra.mxu0 %v4333
        %v6608 = vpop.f32.mrf.mxu0
        %v6609 = vadd.f32 %v6440, %v6608
        %v6610 = vpop.f32.mrf.mxu0
        %v6611 = vadd.f32 %v6442, %v6610
        %6612 = vmatmul.bf16.gmra.mxu0 %v4349
        %v6613 = vpop.f32.mrf.mxu0
        %v6614 = vadd.f32 %v6445, %v6613
        %v6615 = vpop.f32.mrf.mxu0
        %v6616 = vadd.f32 %v6447, %v6615
        %6617 = vmatmul.bf16.gmra.mxu0 %v4365
        %v6618 = vpop.f32.mrf.mxu0
        %v6619 = vadd.f32 %v6450, %v6618
        %v6620 = vpop.f32.mrf.mxu0
        %v6621 = vadd.f32 %v6452, %v6620
        %6622 = vmatmul.bf16.gmra.mxu0 %v4381
        %v6623 = vpop.f32.mrf.mxu0
        %v6624 = vadd.f32 %v6455, %v6623
        %v6625 = vpop.f32.mrf.mxu0
        %v6626 = vadd.f32 %v6457, %v6625
        %6627 = vmatmul.bf16.gmra.mxu0 %v4397
        %v6628 = vpop.f32.mrf.mxu0
        %v6629 = vadd.f32 %v6460, %v6628
        %v6630 = vpop.f32.mrf.mxu0
        %v6631 = vadd.f32 %v6462, %v6630
        %6632 = vmatmul.bf16.gmra.mxu0 %v4413
        %v6633 = vpop.f32.mrf.mxu0
        %v6634 = vadd.f32 %v6465, %v6633
        %v6635 = vpop.f32.mrf.mxu0
        %v6636 = vadd.f32 %v6467, %v6635
        %6637 = vmatmul.bf16.gmra.mxu0 %v4429
        %v6638 = vpop.f32.mrf.mxu0
        %v6639 = vadd.f32 %v6470, %v6638
        %v6640 = vpop.f32.mrf.mxu0
        %v6641 = vadd.f32 %v6472, %v6640
        %6642 = vmatmul.bf16.gmra.mxu0 %v4445
        %v6643 = vpop.f32.mrf.mxu0
        %v6644 = vadd.f32 %v6475, %v6643
        %v6645 = vpop.f32.mrf.mxu0
        %v6646 = vadd.f32 %v6477, %v6645
        %6647 = vmatmul.bf16.gmra.mxu0 %v4461
        %v6648 = vpop.f32.mrf.mxu0
        %v6649 = vadd.f32 %v6480, %v6648
        %v6650 = vpop.f32.mrf.mxu0
        %v6651 = vadd.f32 %v6482, %v6650
        %6652 = vmatmul.bf16.gmra.mxu0 %v4477
        %v6653 = vpop.f32.mrf.mxu0
        %v6654 = vadd.f32 %v6485, %v6653
        %v6655 = vpop.f32.mrf.mxu0
        %v6656 = vadd.f32 %v6487, %v6655
        %6657 = vmatmul.bf16.gmra.mxu0 %v4493
        %v6658 = vpop.f32.mrf.mxu0
        %v6659 = vadd.f32 %v6490, %v6658
        %v6660 = vpop.f32.mrf.mxu0
        %v6661 = vadd.f32 %v6492, %v6660
        %6662 = vmatmul.bf16.gmra.mxu0 %v4509
        %v6663 = vpop.f32.mrf.mxu0
        %v6664 = vadd.f32 %v6495, %v6663
        %v6665 = vpop.f32.mrf.mxu0
        %v6666 = vadd.f32 %v6497, %v6665
        %6667 = vmatmul.bf16.gmra.mxu0 %v4525
        %v6668 = vpop.f32.mrf.mxu0
        %v6669 = vadd.f32 %v6500, %v6668
        %v6670 = vpop.f32.mrf.mxu0
        %v6671 = vadd.f32 %v6502, %v6670
        %6672 = vmatmul.bf16.gmra.mxu0 %v4541
        %v6673 = vpop.f32.mrf.mxu0
        %v6674 = vadd.f32 %v6505, %v6673
        %v6675 = vpop.f32.mrf.mxu0
        %v6676 = vadd.f32 %v6507, %v6675
        %6677 = vdwg.mxu0
        %6678 = vmatpush.bf16.msra.mxu0 %v5624
        %6679 = vmatpush.bf16.msra.mxu0 %v5623
        %6680 = vmatpush.bf16.msra.mxu0 %v5622
        %6681 = vmatpush.bf16.msra.mxu0 %v5621
        %6682 = vmatpush.bf16.msra.mxu0 %v5620
        %6683 = vmatpush.bf16.msra.mxu0 %v5619
        %6684 = vmatpush.bf16.msra.mxu0 %v5618
        %6685 = vmatpush.bf16.msra.mxu0 %v5617
        %6686 = vmatmul.bf16.gmra.mxu0 %v4046
        %v6687 = vpop.f32.mrf.mxu0
        %v6688 = vadd.f32 %v6519, %v6687
        %v6689 = vpop.f32.mrf.mxu0
        %v6690 = vadd.f32 %v6521, %v6689
        %6691 = vmatmul.bf16.gmra.mxu0 %v4062
        %v6692 = vpop.f32.mrf.mxu0
        %v6693 = vadd.f32 %v6524, %v6692
        %v6694 = vpop.f32.mrf.mxu0
        %v6695 = vadd.f32 %v6526, %v6694
        %6696 = vmatmul.bf16.gmra.mxu0 %v4078
        %v6697 = vpop.f32.mrf.mxu0
        %v6698 = vadd.f32 %v6529, %v6697
        %v6699 = vpop.f32.mrf.mxu0
        %v6700 = vadd.f32 %v6531, %v6699
        %6701 = vmatmul.bf16.gmra.mxu0 %v4094
        %v6702 = vpop.f32.mrf.mxu0
        %v6703 = vadd.f32 %v6534, %v6702
        %v6704 = vpop.f32.mrf.mxu0
        %v6705 = vadd.f32 %v6536, %v6704
        %6706 = vmatmul.bf16.gmra.mxu0 %v4110
        %v6707 = vpop.f32.mrf.mxu0
        %v6708 = vadd.f32 %v6539, %v6707
        %v6709 = vpop.f32.mrf.mxu0
        %v6710 = vadd.f32 %v6541, %v6709
        %6711 = vmatmul.bf16.gmra.mxu0 %v4126
        %v6712 = vpop.f32.mrf.mxu0
        %v6713 = vadd.f32 %v6544, %v6712
        %v6714 = vpop.f32.mrf.mxu0
        %v6715 = vadd.f32 %v6546, %v6714
        %6716 = vmatmul.bf16.gmra.mxu0 %v4142
        %v6717 = vpop.f32.mrf.mxu0
        %v6718 = vadd.f32 %v6549, %v6717
        %v6719 = vpop.f32.mrf.mxu0
        %v6720 = vadd.f32 %v6551, %v6719
        %6721 = vmatmul.bf16.gmra.mxu0 %v4158
        %v6722 = vpop.f32.mrf.mxu0
        %v6723 = vadd.f32 %v6554, %v6722
        %v6724 = vpop.f32.mrf.mxu0
        %v6725 = vadd.f32 %v6556, %v6724
        %6726 = vmatmul.bf16.gmra.mxu0 %v4174
        %v6727 = vpop.f32.mrf.mxu0
        %v6728 = vadd.f32 %v6559, %v6727
        %v6729 = vpop.f32.mrf.mxu0
        %v6730 = vadd.f32 %v6561, %v6729
        %6731 = vmatmul.bf16.gmra.mxu0 %v4190
        %v6732 = vpop.f32.mrf.mxu0
        %v6733 = vadd.f32 %v6564, %v6732
        %v6734 = vpop.f32.mrf.mxu0
        %v6735 = vadd.f32 %v6566, %v6734
        %6736 = vmatmul.bf16.gmra.mxu0 %v4206
        %v6737 = vpop.f32.mrf.mxu0
        %v6738 = vadd.f32 %v6569, %v6737
        %v6739 = vpop.f32.mrf.mxu0
        %v6740 = vadd.f32 %v6571, %v6739
        %6741 = vmatmul.bf16.gmra.mxu0 %v4222
        %v6742 = vpop.f32.mrf.mxu0
        %v6743 = vadd.f32 %v6574, %v6742
        %v6744 = vpop.f32.mrf.mxu0
        %v6745 = vadd.f32 %v6576, %v6744
        %6746 = vmatmul.bf16.gmra.mxu0 %v4238
        %v6747 = vpop.f32.mrf.mxu0
        %v6748 = vadd.f32 %v6579, %v6747
        %v6749 = vpop.f32.mrf.mxu0
        %v6750 = vadd.f32 %v6581, %v6749
        %6751 = vmatmul.bf16.gmra.mxu0 %v4254
        %v6752 = vpop.f32.mrf.mxu0
        %v6753 = vadd.f32 %v6584, %v6752
        %v6754 = vpop.f32.mrf.mxu0
        %v6755 = vadd.f32 %v6586, %v6754
        %6756 = vmatmul.bf16.gmra.mxu0 %v4270
        %v6757 = vpop.f32.mrf.mxu0
        %v6758 = vadd.f32 %v6589, %v6757
        %v6759 = vpop.f32.mrf.mxu0
        %v6760 = vadd.f32 %v6591, %v6759
        %6761 = vmatmul.bf16.gmra.mxu0 %v4286
        %v6762 = vpop.f32.mrf.mxu0
        %v6763 = vadd.f32 %v6594, %v6762
        %v6764 = vpop.f32.mrf.mxu0
        %v6765 = vadd.f32 %v6596, %v6764
        %6766 = vmatmul.bf16.gmra.mxu0 %v4302
        %v6767 = vpop.f32.mrf.mxu0
        %v6768 = vadd.f32 %v6599, %v6767
        %v6769 = vpop.f32.mrf.mxu0
        %v6770 = vadd.f32 %v6601, %v6769
        %6771 = vmatmul.bf16.gmra.mxu0 %v4318
        %v6772 = vpop.f32.mrf.mxu0
        %v6773 = vadd.f32 %v6604, %v6772
        %v6774 = vpop.f32.mrf.mxu0
        %v6775 = vadd.f32 %v6606, %v6774
        %6776 = vmatmul.bf16.gmra.mxu0 %v4334
        %v6777 = vpop.f32.mrf.mxu0
        %v6778 = vadd.f32 %v6609, %v6777
        %v6779 = vpop.f32.mrf.mxu0
        %v6780 = vadd.f32 %v6611, %v6779
        %6781 = vmatmul.bf16.gmra.mxu0 %v4350
        %v6782 = vpop.f32.mrf.mxu0
        %v6783 = vadd.f32 %v6614, %v6782
        %v6784 = vpop.f32.mrf.mxu0
        %v6785 = vadd.f32 %v6616, %v6784
        %6786 = vmatmul.bf16.gmra.mxu0 %v4366
        %v6787 = vpop.f32.mrf.mxu0
        %v6788 = vadd.f32 %v6619, %v6787
        %v6789 = vpop.f32.mrf.mxu0
        %v6790 = vadd.f32 %v6621, %v6789
        %6791 = vmatmul.bf16.gmra.mxu0 %v4382
        %v6792 = vpop.f32.mrf.mxu0
        %v6793 = vadd.f32 %v6624, %v6792
        %v6794 = vpop.f32.mrf.mxu0
        %v6795 = vadd.f32 %v6626, %v6794
        %6796 = vmatmul.bf16.gmra.mxu0 %v4398
        %v6797 = vpop.f32.mrf.mxu0
        %v6798 = vadd.f32 %v6629, %v6797
        %v6799 = vpop.f32.mrf.mxu0
        %v6800 = vadd.f32 %v6631, %v6799
        %6801 = vmatmul.bf16.gmra.mxu0 %v4414
        %v6802 = vpop.f32.mrf.mxu0
        %v6803 = vadd.f32 %v6634, %v6802
        %v6804 = vpop.f32.mrf.mxu0
        %v6805 = vadd.f32 %v6636, %v6804
        %6806 = vmatmul.bf16.gmra.mxu0 %v4430
        %v6807 = vpop.f32.mrf.mxu0
        %v6808 = vadd.f32 %v6639, %v6807
        %v6809 = vpop.f32.mrf.mxu0
        %v6810 = vadd.f32 %v6641, %v6809
        %6811 = vmatmul.bf16.gmra.mxu0 %v4446
        %v6812 = vpop.f32.mrf.mxu0
        %v6813 = vadd.f32 %v6644, %v6812
        %v6814 = vpop.f32.mrf.mxu0
        %v6815 = vadd.f32 %v6646, %v6814
        %6816 = vmatmul.bf16.gmra.mxu0 %v4462
        %v6817 = vpop.f32.mrf.mxu0
        %v6818 = vadd.f32 %v6649, %v6817
        %v6819 = vpop.f32.mrf.mxu0
        %v6820 = vadd.f32 %v6651, %v6819
        %6821 = vmatmul.bf16.gmra.mxu0 %v4478
        %v6822 = vpop.f32.mrf.mxu0
        %v6823 = vadd.f32 %v6654, %v6822
        %v6824 = vpop.f32.mrf.mxu0
        %v6825 = vadd.f32 %v6656, %v6824
        %6826 = vmatmul.bf16.gmra.mxu0 %v4494
        %v6827 = vpop.f32.mrf.mxu0
        %v6828 = vadd.f32 %v6659, %v6827
        %v6829 = vpop.f32.mrf.mxu0
        %v6830 = vadd.f32 %v6661, %v6829
        %6831 = vmatmul.bf16.gmra.mxu0 %v4510
        %v6832 = vpop.f32.mrf.mxu0
        %v6833 = vadd.f32 %v6664, %v6832
        %v6834 = vpop.f32.mrf.mxu0
        %v6835 = vadd.f32 %v6666, %v6834
        %6836 = vmatmul.bf16.gmra.mxu0 %v4526
        %v6837 = vpop.f32.mrf.mxu0
        %v6838 = vadd.f32 %v6669, %v6837
        %v6839 = vpop.f32.mrf.mxu0
        %v6840 = vadd.f32 %v6671, %v6839
        %6841 = vmatmul.bf16.gmra.mxu0 %v4542
        %v6842 = vpop.f32.mrf.mxu0
        %v6843 = vadd.f32 %v6674, %v6842
        %v6844 = vpop.f32.mrf.mxu0
        %v6845 = vadd.f32 %v6676, %v6844
        %6846 = vdwg.mxu0
        %6847 = vmatpush.bf16.msra.mxu0 %v5632
        %6848 = vmatpush.bf16.msra.mxu0 %v5631
        %6849 = vmatpush.bf16.msra.mxu0 %v5630
        %6850 = vmatpush.bf16.msra.mxu0 %v5629
        %6851 = vmatpush.bf16.msra.mxu0 %v5628
        %6852 = vmatpush.bf16.msra.mxu0 %v5627
        %6853 = vmatpush.bf16.msra.mxu0 %v5626
        %6854 = vmatpush.bf16.msra.mxu0 %v5625
        %6855 = vmatmul.bf16.gmra.mxu0 %v4047
        %v6856 = vpop.f32.mrf.mxu0
        %v6857 = vadd.f32 %v6688, %v6856
        %v6858 = vpop.f32.mrf.mxu0
        %v6859 = vadd.f32 %v6690, %v6858
        %6860 = vmatmul.bf16.gmra.mxu0 %v4063
        %v6861 = vpop.f32.mrf.mxu0
        %v6862 = vadd.f32 %v6693, %v6861
        %v6863 = vpop.f32.mrf.mxu0
        %v6864 = vadd.f32 %v6695, %v6863
        %6865 = vmatmul.bf16.gmra.mxu0 %v4079
        %v6866 = vpop.f32.mrf.mxu0
        %v6867 = vadd.f32 %v6698, %v6866
        %v6868 = vpop.f32.mrf.mxu0
        %v6869 = vadd.f32 %v6700, %v6868
        %6870 = vmatmul.bf16.gmra.mxu0 %v4095
        %v6871 = vpop.f32.mrf.mxu0
        %v6872 = vadd.f32 %v6703, %v6871
        %v6873 = vpop.f32.mrf.mxu0
        %v6874 = vadd.f32 %v6705, %v6873
        %6875 = vmatmul.bf16.gmra.mxu0 %v4111
        %v6876 = vpop.f32.mrf.mxu0
        %v6877 = vadd.f32 %v6708, %v6876
        %v6878 = vpop.f32.mrf.mxu0
        %v6879 = vadd.f32 %v6710, %v6878
        %6880 = vmatmul.bf16.gmra.mxu0 %v4127
        %v6881 = vpop.f32.mrf.mxu0
        %v6882 = vadd.f32 %v6713, %v6881
        %v6883 = vpop.f32.mrf.mxu0
        %v6884 = vadd.f32 %v6715, %v6883
        %6885 = vmatmul.bf16.gmra.mxu0 %v4143
        %v6886 = vpop.f32.mrf.mxu0
        %v6887 = vadd.f32 %v6718, %v6886
        %v6888 = vpop.f32.mrf.mxu0
        %v6889 = vadd.f32 %v6720, %v6888
        %6890 = vmatmul.bf16.gmra.mxu0 %v4159
        %v6891 = vpop.f32.mrf.mxu0
        %v6892 = vadd.f32 %v6723, %v6891
        %v6893 = vpop.f32.mrf.mxu0
        %v6894 = vadd.f32 %v6725, %v6893
        %6895 = vmatmul.bf16.gmra.mxu0 %v4175
        %v6896 = vpop.f32.mrf.mxu0
        %v6897 = vadd.f32 %v6728, %v6896
        %v6898 = vpop.f32.mrf.mxu0
        %v6899 = vadd.f32 %v6730, %v6898
        %6900 = vmatmul.bf16.gmra.mxu0 %v4191
        %v6901 = vpop.f32.mrf.mxu0
        %v6902 = vadd.f32 %v6733, %v6901
        %v6903 = vpop.f32.mrf.mxu0
        %v6904 = vadd.f32 %v6735, %v6903
        %6905 = vmatmul.bf16.gmra.mxu0 %v4207
        %v6906 = vpop.f32.mrf.mxu0
        %v6907 = vadd.f32 %v6738, %v6906
        %v6908 = vpop.f32.mrf.mxu0
        %v6909 = vadd.f32 %v6740, %v6908
        %6910 = vmatmul.bf16.gmra.mxu0 %v4223
        %v6911 = vpop.f32.mrf.mxu0
        %v6912 = vadd.f32 %v6743, %v6911
        %v6913 = vpop.f32.mrf.mxu0
        %v6914 = vadd.f32 %v6745, %v6913
        %6915 = vmatmul.bf16.gmra.mxu0 %v4239
        %v6916 = vpop.f32.mrf.mxu0
        %v6917 = vadd.f32 %v6748, %v6916
        %v6918 = vpop.f32.mrf.mxu0
        %v6919 = vadd.f32 %v6750, %v6918
        %6920 = vmatmul.bf16.gmra.mxu0 %v4255
        %v6921 = vpop.f32.mrf.mxu0
        %v6922 = vadd.f32 %v6753, %v6921
        %v6923 = vpop.f32.mrf.mxu0
        %v6924 = vadd.f32 %v6755, %v6923
        %6925 = vmatmul.bf16.gmra.mxu0 %v4271
        %v6926 = vpop.f32.mrf.mxu0
        %v6927 = vadd.f32 %v6758, %v6926
        %v6928 = vpop.f32.mrf.mxu0
        %v6929 = vadd.f32 %v6760, %v6928
        %6930 = vmatmul.bf16.gmra.mxu0 %v4287
        %v6931 = vpop.f32.mrf.mxu0
        %v6932 = vadd.f32 %v6763, %v6931
        %v6933 = vpop.f32.mrf.mxu0
        %v6934 = vadd.f32 %v6765, %v6933
        %6935 = vmatmul.bf16.gmra.mxu0 %v4303
        %v6936 = vpop.f32.mrf.mxu0
        %v6937 = vadd.f32 %v6768, %v6936
        %v6938 = vpop.f32.mrf.mxu0
        %v6939 = vadd.f32 %v6770, %v6938
        %6940 = vmatmul.bf16.gmra.mxu0 %v4319
        %v6941 = vpop.f32.mrf.mxu0
        %v6942 = vadd.f32 %v6773, %v6941
        %v6943 = vpop.f32.mrf.mxu0
        %v6944 = vadd.f32 %v6775, %v6943
        %6945 = vmatmul.bf16.gmra.mxu0 %v4335
        %v6946 = vpop.f32.mrf.mxu0
        %v6947 = vadd.f32 %v6778, %v6946
        %v6948 = vpop.f32.mrf.mxu0
        %v6949 = vadd.f32 %v6780, %v6948
        %6950 = vmatmul.bf16.gmra.mxu0 %v4351
        %v6951 = vpop.f32.mrf.mxu0
        %v6952 = vadd.f32 %v6783, %v6951
        %v6953 = vpop.f32.mrf.mxu0
        %v6954 = vadd.f32 %v6785, %v6953
        %6955 = vmatmul.bf16.gmra.mxu0 %v4367
        %v6956 = vpop.f32.mrf.mxu0
        %v6957 = vadd.f32 %v6788, %v6956
        %v6958 = vpop.f32.mrf.mxu0
        %v6959 = vadd.f32 %v6790, %v6958
        %6960 = vmatmul.bf16.gmra.mxu0 %v4383
        %v6961 = vpop.f32.mrf.mxu0
        %v6962 = vadd.f32 %v6793, %v6961
        %v6963 = vpop.f32.mrf.mxu0
        %v6964 = vadd.f32 %v6795, %v6963
        %6965 = vmatmul.bf16.gmra.mxu0 %v4399
        %v6966 = vpop.f32.mrf.mxu0
        %v6967 = vadd.f32 %v6798, %v6966
        %v6968 = vpop.f32.mrf.mxu0
        %v6969 = vadd.f32 %v6800, %v6968
        %6970 = vmatmul.bf16.gmra.mxu0 %v4415
        %v6971 = vpop.f32.mrf.mxu0
        %v6972 = vadd.f32 %v6803, %v6971
        %v6973 = vpop.f32.mrf.mxu0
        %v6974 = vadd.f32 %v6805, %v6973
        %6975 = vmatmul.bf16.gmra.mxu0 %v4431
        %v6976 = vpop.f32.mrf.mxu0
        %v6977 = vadd.f32 %v6808, %v6976
        %v6978 = vpop.f32.mrf.mxu0
        %v6979 = vadd.f32 %v6810, %v6978
        %6980 = vmatmul.bf16.gmra.mxu0 %v4447
        %v6981 = vpop.f32.mrf.mxu0
        %v6982 = vadd.f32 %v6813, %v6981
        %v6983 = vpop.f32.mrf.mxu0
        %v6984 = vadd.f32 %v6815, %v6983
        %6985 = vmatmul.bf16.gmra.mxu0 %v4463
        %v6986 = vpop.f32.mrf.mxu0
        %v6987 = vadd.f32 %v6818, %v6986
        %v6988 = vpop.f32.mrf.mxu0
        %v6989 = vadd.f32 %v6820, %v6988
        %6990 = vmatmul.bf16.gmra.mxu0 %v4479
        %v6991 = vpop.f32.mrf.mxu0
        %v6992 = vadd.f32 %v6823, %v6991
        %v6993 = vpop.f32.mrf.mxu0
        %v6994 = vadd.f32 %v6825, %v6993
        %6995 = vmatmul.bf16.gmra.mxu0 %v4495
        %v6996 = vpop.f32.mrf.mxu0
        %v6997 = vadd.f32 %v6828, %v6996
        %v6998 = vpop.f32.mrf.mxu0
        %v6999 = vadd.f32 %v6830, %v6998
        %7000 = vmatmul.bf16.gmra.mxu0 %v4511
        %v7001 = vpop.f32.mrf.mxu0
        %v7002 = vadd.f32 %v6833, %v7001
        %v7003 = vpop.f32.mrf.mxu0
        %v7004 = vadd.f32 %v6835, %v7003
        %7005 = vmatmul.bf16.gmra.mxu0 %v4527
        %v7006 = vpop.f32.mrf.mxu0
        %v7007 = vadd.f32 %v6838, %v7006
        %v7008 = vpop.f32.mrf.mxu0
        %v7009 = vadd.f32 %v6840, %v7008
        %7010 = vmatmul.bf16.gmra.mxu0 %v4543
        %v7011 = vpop.f32.mrf.mxu0
        %v7012 = vadd.f32 %v6843, %v7011
        %v7013 = vpop.f32.mrf.mxu0
        %v7014 = vadd.f32 %v6845, %v7013
        %7015 = vdwg.mxu0
        %7016 = vmatpush.bf16.msra.mxu0 %v5640
        %7017 = vmatpush.bf16.msra.mxu0 %v5639
        %7018 = vmatpush.bf16.msra.mxu0 %v5638
        %7019 = vmatpush.bf16.msra.mxu0 %v5637
        %7020 = vmatpush.bf16.msra.mxu0 %v5636
        %7021 = vmatpush.bf16.msra.mxu0 %v5635
        %7022 = vmatpush.bf16.msra.mxu0 %v5634
        %7023 = vmatpush.bf16.msra.mxu0 %v5633
        %7024 = vmatmul.bf16.gmra.mxu0 %v4048
        %v7025 = vpop.f32.mrf.mxu0
        %v7026 = vadd.f32 %v6857, %v7025
        %v7027 = vpop.f32.mrf.mxu0
        %v7028 = vadd.f32 %v6859, %v7027
        %7029 = vmatmul.bf16.gmra.mxu0 %v4064
        %v7030 = vpop.f32.mrf.mxu0
        %v7031 = vadd.f32 %v6862, %v7030
        %v7032 = vpop.f32.mrf.mxu0
        %v7033 = vadd.f32 %v6864, %v7032
        %7034 = vmatmul.bf16.gmra.mxu0 %v4080
        %v7035 = vpop.f32.mrf.mxu0
        %v7036 = vadd.f32 %v6867, %v7035
        %v7037 = vpop.f32.mrf.mxu0
        %v7038 = vadd.f32 %v6869, %v7037
        %7039 = vmatmul.bf16.gmra.mxu0 %v4096
        %v7040 = vpop.f32.mrf.mxu0
        %v7041 = vadd.f32 %v6872, %v7040
        %v7042 = vpop.f32.mrf.mxu0
        %v7043 = vadd.f32 %v6874, %v7042
        %7044 = vmatmul.bf16.gmra.mxu0 %v4112
        %v7045 = vpop.f32.mrf.mxu0
        %v7046 = vadd.f32 %v6877, %v7045
        %v7047 = vpop.f32.mrf.mxu0
        %v7048 = vadd.f32 %v6879, %v7047
        %7049 = vmatmul.bf16.gmra.mxu0 %v4128
        %v7050 = vpop.f32.mrf.mxu0
        %v7051 = vadd.f32 %v6882, %v7050
        %v7052 = vpop.f32.mrf.mxu0
        %v7053 = vadd.f32 %v6884, %v7052
        %7054 = vmatmul.bf16.gmra.mxu0 %v4144
        %v7055 = vpop.f32.mrf.mxu0
        %v7056 = vadd.f32 %v6887, %v7055
        %v7057 = vpop.f32.mrf.mxu0
        %v7058 = vadd.f32 %v6889, %v7057
        %7059 = vmatmul.bf16.gmra.mxu0 %v4160
        %v7060 = vpop.f32.mrf.mxu0
        %v7061 = vadd.f32 %v6892, %v7060
        %v7062 = vpop.f32.mrf.mxu0
        %v7063 = vadd.f32 %v6894, %v7062
        %7064 = vmatmul.bf16.gmra.mxu0 %v4176
        %v7065 = vpop.f32.mrf.mxu0
        %v7066 = vadd.f32 %v6897, %v7065
        %v7067 = vpop.f32.mrf.mxu0
        %v7068 = vadd.f32 %v6899, %v7067
        %7069 = vmatmul.bf16.gmra.mxu0 %v4192
        %v7070 = vpop.f32.mrf.mxu0
        %v7071 = vadd.f32 %v6902, %v7070
        %v7072 = vpop.f32.mrf.mxu0
        %v7073 = vadd.f32 %v6904, %v7072
        %7074 = vmatmul.bf16.gmra.mxu0 %v4208
        %v7075 = vpop.f32.mrf.mxu0
        %v7076 = vadd.f32 %v6907, %v7075
        %v7077 = vpop.f32.mrf.mxu0
        %v7078 = vadd.f32 %v6909, %v7077
        %7079 = vmatmul.bf16.gmra.mxu0 %v4224
        %v7080 = vpop.f32.mrf.mxu0
        %v7081 = vadd.f32 %v6912, %v7080
        %v7082 = vpop.f32.mrf.mxu0
        %v7083 = vadd.f32 %v6914, %v7082
        %7084 = vmatmul.bf16.gmra.mxu0 %v4240
        %v7085 = vpop.f32.mrf.mxu0
        %v7086 = vadd.f32 %v6917, %v7085
        %v7087 = vpop.f32.mrf.mxu0
        %v7088 = vadd.f32 %v6919, %v7087
        %7089 = vmatmul.bf16.gmra.mxu0 %v4256
        %v7090 = vpop.f32.mrf.mxu0
        %v7091 = vadd.f32 %v6922, %v7090
        %v7092 = vpop.f32.mrf.mxu0
        %v7093 = vadd.f32 %v6924, %v7092
        %7094 = vmatmul.bf16.gmra.mxu0 %v4272
        %v7095 = vpop.f32.mrf.mxu0
        %v7096 = vadd.f32 %v6927, %v7095
        %v7097 = vpop.f32.mrf.mxu0
        %v7098 = vadd.f32 %v6929, %v7097
        %7099 = vmatmul.bf16.gmra.mxu0 %v4288
        %v7100 = vpop.f32.mrf.mxu0
        %v7101 = vadd.f32 %v6932, %v7100
        %v7102 = vpop.f32.mrf.mxu0
        %v7103 = vadd.f32 %v6934, %v7102
        %7104 = vmatmul.bf16.gmra.mxu0 %v4304
        %v7105 = vpop.f32.mrf.mxu0
        %v7106 = vadd.f32 %v6937, %v7105
        %v7107 = vpop.f32.mrf.mxu0
        %v7108 = vadd.f32 %v6939, %v7107
        %7109 = vmatmul.bf16.gmra.mxu0 %v4320
        %v7110 = vpop.f32.mrf.mxu0
        %v7111 = vadd.f32 %v6942, %v7110
        %v7112 = vpop.f32.mrf.mxu0
        %v7113 = vadd.f32 %v6944, %v7112
        %7114 = vmatmul.bf16.gmra.mxu0 %v4336
        %v7115 = vpop.f32.mrf.mxu0
        %v7116 = vadd.f32 %v6947, %v7115
        %v7117 = vpop.f32.mrf.mxu0
        %v7118 = vadd.f32 %v6949, %v7117
        %7119 = vmatmul.bf16.gmra.mxu0 %v4352
        %v7120 = vpop.f32.mrf.mxu0
        %v7121 = vadd.f32 %v6952, %v7120
        %v7122 = vpop.f32.mrf.mxu0
        %v7123 = vadd.f32 %v6954, %v7122
        %7124 = vmatmul.bf16.gmra.mxu0 %v4368
        %v7125 = vpop.f32.mrf.mxu0
        %v7126 = vadd.f32 %v6957, %v7125
        %v7127 = vpop.f32.mrf.mxu0
        %v7128 = vadd.f32 %v6959, %v7127
        %7129 = vmatmul.bf16.gmra.mxu0 %v4384
        %v7130 = vpop.f32.mrf.mxu0
        %v7131 = vadd.f32 %v6962, %v7130
        %v7132 = vpop.f32.mrf.mxu0
        %v7133 = vadd.f32 %v6964, %v7132
        %7134 = vmatmul.bf16.gmra.mxu0 %v4400
        %v7135 = vpop.f32.mrf.mxu0
        %v7136 = vadd.f32 %v6967, %v7135
        %v7137 = vpop.f32.mrf.mxu0
        %v7138 = vadd.f32 %v6969, %v7137
        %7139 = vmatmul.bf16.gmra.mxu0 %v4416
        %v7140 = vpop.f32.mrf.mxu0
        %v7141 = vadd.f32 %v6972, %v7140
        %v7142 = vpop.f32.mrf.mxu0
        %v7143 = vadd.f32 %v6974, %v7142
        %7144 = vmatmul.bf16.gmra.mxu0 %v4432
        %v7145 = vpop.f32.mrf.mxu0
        %v7146 = vadd.f32 %v6977, %v7145
        %v7147 = vpop.f32.mrf.mxu0
        %v7148 = vadd.f32 %v6979, %v7147
        %7149 = vmatmul.bf16.gmra.mxu0 %v4448
        %v7150 = vpop.f32.mrf.mxu0
        %v7151 = vadd.f32 %v6982, %v7150
        %v7152 = vpop.f32.mrf.mxu0
        %v7153 = vadd.f32 %v6984, %v7152
        %7154 = vmatmul.bf16.gmra.mxu0 %v4464
        %v7155 = vpop.f32.mrf.mxu0
        %v7156 = vadd.f32 %v6987, %v7155
        %v7157 = vpop.f32.mrf.mxu0
        %v7158 = vadd.f32 %v6989, %v7157
        %7159 = vmatmul.bf16.gmra.mxu0 %v4480
        %v7160 = vpop.f32.mrf.mxu0
        %v7161 = vadd.f32 %v6992, %v7160
        %v7162 = vpop.f32.mrf.mxu0
        %v7163 = vadd.f32 %v6994, %v7162
        %7164 = vmatmul.bf16.gmra.mxu0 %v4496
        %v7165 = vpop.f32.mrf.mxu0
        %v7166 = vadd.f32 %v6997, %v7165
        %v7167 = vpop.f32.mrf.mxu0
        %v7168 = vadd.f32 %v6999, %v7167
        %7169 = vmatmul.bf16.gmra.mxu0 %v4512
        %v7170 = vpop.f32.mrf.mxu0
        %v7171 = vadd.f32 %v7002, %v7170
        %v7172 = vpop.f32.mrf.mxu0
        %v7173 = vadd.f32 %v7004, %v7172
        %7174 = vmatmul.bf16.gmra.mxu0 %v4528
        %v7175 = vpop.f32.mrf.mxu0
        %v7176 = vadd.f32 %v7007, %v7175
        %v7177 = vpop.f32.mrf.mxu0
        %v7178 = vadd.f32 %v7009, %v7177
        %7179 = vmatmul.bf16.gmra.mxu0 %v4544
        %v7180 = vpop.f32.mrf.mxu0
        %v7181 = vadd.f32 %v7012, %v7180
        %v7182 = vpop.f32.mrf.mxu0
        %v7183 = vadd.f32 %v7014, %v7182
        %7184 = vdwg.mxu0
        %7185 = vmatpush.bf16.msra.mxu0 %v5648
        %7186 = vmatpush.bf16.msra.mxu0 %v5647
        %7187 = vmatpush.bf16.msra.mxu0 %v5646
        %7188 = vmatpush.bf16.msra.mxu0 %v5645
        %7189 = vmatpush.bf16.msra.mxu0 %v5644
        %7190 = vmatpush.bf16.msra.mxu0 %v5643
        %7191 = vmatpush.bf16.msra.mxu0 %v5642
        %7192 = vmatpush.bf16.msra.mxu0 %v5641
        %7193 = vmatmul.bf16.gmra.mxu0 %v4049
        %v7194 = vpop.f32.mrf.mxu0
        %v7195 = vadd.f32 %v7026, %v7194
        %v7196 = vpop.f32.mrf.mxu0
        %v7197 = vadd.f32 %v7028, %v7196
        %7198 = vmatmul.bf16.gmra.mxu0 %v4065
        %v7199 = vpop.f32.mrf.mxu0
        %v7200 = vadd.f32 %v7031, %v7199
        %v7201 = vpop.f32.mrf.mxu0
        %v7202 = vadd.f32 %v7033, %v7201
        %7203 = vmatmul.bf16.gmra.mxu0 %v4081
        %v7204 = vpop.f32.mrf.mxu0
        %v7205 = vadd.f32 %v7036, %v7204
        %v7206 = vpop.f32.mrf.mxu0
        %v7207 = vadd.f32 %v7038, %v7206
        %7208 = vmatmul.bf16.gmra.mxu0 %v4097
        %v7209 = vpop.f32.mrf.mxu0
        %v7210 = vadd.f32 %v7041, %v7209
        %v7211 = vpop.f32.mrf.mxu0
        %v7212 = vadd.f32 %v7043, %v7211
        %7213 = vmatmul.bf16.gmra.mxu0 %v4113
        %v7214 = vpop.f32.mrf.mxu0
        %v7215 = vadd.f32 %v7046, %v7214
        %v7216 = vpop.f32.mrf.mxu0
        %v7217 = vadd.f32 %v7048, %v7216
        %7218 = vmatmul.bf16.gmra.mxu0 %v4129
        %v7219 = vpop.f32.mrf.mxu0
        %v7220 = vadd.f32 %v7051, %v7219
        %v7221 = vpop.f32.mrf.mxu0
        %v7222 = vadd.f32 %v7053, %v7221
        %7223 = vmatmul.bf16.gmra.mxu0 %v4145
        %v7224 = vpop.f32.mrf.mxu0
        %v7225 = vadd.f32 %v7056, %v7224
        %v7226 = vpop.f32.mrf.mxu0
        %v7227 = vadd.f32 %v7058, %v7226
        %7228 = vmatmul.bf16.gmra.mxu0 %v4161
        %v7229 = vpop.f32.mrf.mxu0
        %v7230 = vadd.f32 %v7061, %v7229
        %v7231 = vpop.f32.mrf.mxu0
        %v7232 = vadd.f32 %v7063, %v7231
        %7233 = vmatmul.bf16.gmra.mxu0 %v4177
        %v7234 = vpop.f32.mrf.mxu0
        %v7235 = vadd.f32 %v7066, %v7234
        %v7236 = vpop.f32.mrf.mxu0
        %v7237 = vadd.f32 %v7068, %v7236
        %7238 = vmatmul.bf16.gmra.mxu0 %v4193
        %v7239 = vpop.f32.mrf.mxu0
        %v7240 = vadd.f32 %v7071, %v7239
        %v7241 = vpop.f32.mrf.mxu0
        %v7242 = vadd.f32 %v7073, %v7241
        %7243 = vmatmul.bf16.gmra.mxu0 %v4209
        %v7244 = vpop.f32.mrf.mxu0
        %v7245 = vadd.f32 %v7076, %v7244
        %v7246 = vpop.f32.mrf.mxu0
        %v7247 = vadd.f32 %v7078, %v7246
        %7248 = vmatmul.bf16.gmra.mxu0 %v4225
        %v7249 = vpop.f32.mrf.mxu0
        %v7250 = vadd.f32 %v7081, %v7249
        %v7251 = vpop.f32.mrf.mxu0
        %v7252 = vadd.f32 %v7083, %v7251
        %7253 = vmatmul.bf16.gmra.mxu0 %v4241
        %v7254 = vpop.f32.mrf.mxu0
        %v7255 = vadd.f32 %v7086, %v7254
        %v7256 = vpop.f32.mrf.mxu0
        %v7257 = vadd.f32 %v7088, %v7256
        %7258 = vmatmul.bf16.gmra.mxu0 %v4257
        %v7259 = vpop.f32.mrf.mxu0
        %v7260 = vadd.f32 %v7091, %v7259
        %v7261 = vpop.f32.mrf.mxu0
        %v7262 = vadd.f32 %v7093, %v7261
        %7263 = vmatmul.bf16.gmra.mxu0 %v4273
        %v7264 = vpop.f32.mrf.mxu0
        %v7265 = vadd.f32 %v7096, %v7264
        %v7266 = vpop.f32.mrf.mxu0
        %v7267 = vadd.f32 %v7098, %v7266
        %7268 = vmatmul.bf16.gmra.mxu0 %v4289
        %v7269 = vpop.f32.mrf.mxu0
        %v7270 = vadd.f32 %v7101, %v7269
        %v7271 = vpop.f32.mrf.mxu0
        %v7272 = vadd.f32 %v7103, %v7271
        %7273 = vmatmul.bf16.gmra.mxu0 %v4305
        %v7274 = vpop.f32.mrf.mxu0
        %v7275 = vadd.f32 %v7106, %v7274
        %v7276 = vpop.f32.mrf.mxu0
        %v7277 = vadd.f32 %v7108, %v7276
        %7278 = vmatmul.bf16.gmra.mxu0 %v4321
        %v7279 = vpop.f32.mrf.mxu0
        %v7280 = vadd.f32 %v7111, %v7279
        %v7281 = vpop.f32.mrf.mxu0
        %v7282 = vadd.f32 %v7113, %v7281
        %7283 = vmatmul.bf16.gmra.mxu0 %v4337
        %v7284 = vpop.f32.mrf.mxu0
        %v7285 = vadd.f32 %v7116, %v7284
        %v7286 = vpop.f32.mrf.mxu0
        %v7287 = vadd.f32 %v7118, %v7286
        %7288 = vmatmul.bf16.gmra.mxu0 %v4353
        %v7289 = vpop.f32.mrf.mxu0
        %v7290 = vadd.f32 %v7121, %v7289
        %v7291 = vpop.f32.mrf.mxu0
        %v7292 = vadd.f32 %v7123, %v7291
        %7293 = vmatmul.bf16.gmra.mxu0 %v4369
        %v7294 = vpop.f32.mrf.mxu0
        %v7295 = vadd.f32 %v7126, %v7294
        %v7296 = vpop.f32.mrf.mxu0
        %v7297 = vadd.f32 %v7128, %v7296
        %7298 = vmatmul.bf16.gmra.mxu0 %v4385
        %v7299 = vpop.f32.mrf.mxu0
        %v7300 = vadd.f32 %v7131, %v7299
        %v7301 = vpop.f32.mrf.mxu0
        %v7302 = vadd.f32 %v7133, %v7301
        %7303 = vmatmul.bf16.gmra.mxu0 %v4401
        %v7304 = vpop.f32.mrf.mxu0
        %v7305 = vadd.f32 %v7136, %v7304
        %v7306 = vpop.f32.mrf.mxu0
        %v7307 = vadd.f32 %v7138, %v7306
        %7308 = vmatmul.bf16.gmra.mxu0 %v4417
        %v7309 = vpop.f32.mrf.mxu0
        %v7310 = vadd.f32 %v7141, %v7309
        %v7311 = vpop.f32.mrf.mxu0
        %v7312 = vadd.f32 %v7143, %v7311
        %7313 = vmatmul.bf16.gmra.mxu0 %v4433
        %v7314 = vpop.f32.mrf.mxu0
        %v7315 = vadd.f32 %v7146, %v7314
        %v7316 = vpop.f32.mrf.mxu0
        %v7317 = vadd.f32 %v7148, %v7316
        %7318 = vmatmul.bf16.gmra.mxu0 %v4449
        %v7319 = vpop.f32.mrf.mxu0
        %v7320 = vadd.f32 %v7151, %v7319
        %v7321 = vpop.f32.mrf.mxu0
        %v7322 = vadd.f32 %v7153, %v7321
        %7323 = vmatmul.bf16.gmra.mxu0 %v4465
        %v7324 = vpop.f32.mrf.mxu0
        %v7325 = vadd.f32 %v7156, %v7324
        %v7326 = vpop.f32.mrf.mxu0
        %v7327 = vadd.f32 %v7158, %v7326
        %7328 = vmatmul.bf16.gmra.mxu0 %v4481
        %v7329 = vpop.f32.mrf.mxu0
        %v7330 = vadd.f32 %v7161, %v7329
        %v7331 = vpop.f32.mrf.mxu0
        %v7332 = vadd.f32 %v7163, %v7331
        %7333 = vmatmul.bf16.gmra.mxu0 %v4497
        %v7334 = vpop.f32.mrf.mxu0
        %v7335 = vadd.f32 %v7166, %v7334
        %v7336 = vpop.f32.mrf.mxu0
        %v7337 = vadd.f32 %v7168, %v7336
        %7338 = vmatmul.bf16.gmra.mxu0 %v4513
        %v7339 = vpop.f32.mrf.mxu0
        %v7340 = vadd.f32 %v7171, %v7339
        %v7341 = vpop.f32.mrf.mxu0
        %v7342 = vadd.f32 %v7173, %v7341
        %7343 = vmatmul.bf16.gmra.mxu0 %v4529
        %v7344 = vpop.f32.mrf.mxu0
        %v7345 = vadd.f32 %v7176, %v7344
        %v7346 = vpop.f32.mrf.mxu0
        %v7347 = vadd.f32 %v7178, %v7346
        %7348 = vmatmul.bf16.gmra.mxu0 %v4545
        %v7349 = vpop.f32.mrf.mxu0
        %v7350 = vadd.f32 %v7181, %v7349
        %v7351 = vpop.f32.mrf.mxu0
        %v7352 = vadd.f32 %v7183, %v7351
        %7353 = vdwg.mxu0
        %7354 = vmatpush.bf16.msra.mxu0 %v5656
        %7355 = vmatpush.bf16.msra.mxu0 %v5655
        %7356 = vmatpush.bf16.msra.mxu0 %v5654
        %7357 = vmatpush.bf16.msra.mxu0 %v5653
        %7358 = vmatpush.bf16.msra.mxu0 %v5652
        %7359 = vmatpush.bf16.msra.mxu0 %v5651
        %7360 = vmatpush.bf16.msra.mxu0 %v5650
        %7361 = vmatpush.bf16.msra.mxu0 %v5649
        %7362 = vmatmul.bf16.gmra.mxu0 %v4050
        %v7363 = vpop.f32.mrf.mxu0
        %v7364 = vadd.f32 %v7195, %v7363
        %v7365 = vpop.f32.mrf.mxu0
        %v7366 = vadd.f32 %v7197, %v7365
        %7367 = vmatmul.bf16.gmra.mxu0 %v4066
        %v7368 = vpop.f32.mrf.mxu0
        %v7369 = vadd.f32 %v7200, %v7368
        %v7370 = vpop.f32.mrf.mxu0
        %v7371 = vadd.f32 %v7202, %v7370
        %7372 = vmatmul.bf16.gmra.mxu0 %v4082
        %v7373 = vpop.f32.mrf.mxu0
        %v7374 = vadd.f32 %v7205, %v7373
        %v7375 = vpop.f32.mrf.mxu0
        %v7376 = vadd.f32 %v7207, %v7375
        %7377 = vmatmul.bf16.gmra.mxu0 %v4098
        %v7378 = vpop.f32.mrf.mxu0
        %v7379 = vadd.f32 %v7210, %v7378
        %v7380 = vpop.f32.mrf.mxu0
        %v7381 = vadd.f32 %v7212, %v7380
        %7382 = vmatmul.bf16.gmra.mxu0 %v4114
        %v7383 = vpop.f32.mrf.mxu0
        %v7384 = vadd.f32 %v7215, %v7383
        %v7385 = vpop.f32.mrf.mxu0
        %v7386 = vadd.f32 %v7217, %v7385
        %7387 = vmatmul.bf16.gmra.mxu0 %v4130
        %v7388 = vpop.f32.mrf.mxu0
        %v7389 = vadd.f32 %v7220, %v7388
        %v7390 = vpop.f32.mrf.mxu0
        %v7391 = vadd.f32 %v7222, %v7390
        %7392 = vmatmul.bf16.gmra.mxu0 %v4146
        %v7393 = vpop.f32.mrf.mxu0
        %v7394 = vadd.f32 %v7225, %v7393
        %v7395 = vpop.f32.mrf.mxu0
        %v7396 = vadd.f32 %v7227, %v7395
        %7397 = vmatmul.bf16.gmra.mxu0 %v4162
        %v7398 = vpop.f32.mrf.mxu0
        %v7399 = vadd.f32 %v7230, %v7398
        %v7400 = vpop.f32.mrf.mxu0
        %v7401 = vadd.f32 %v7232, %v7400
        %7402 = vmatmul.bf16.gmra.mxu0 %v4178
        %v7403 = vpop.f32.mrf.mxu0
        %v7404 = vadd.f32 %v7235, %v7403
        %v7405 = vpop.f32.mrf.mxu0
        %v7406 = vadd.f32 %v7237, %v7405
        %7407 = vmatmul.bf16.gmra.mxu0 %v4194
        %v7408 = vpop.f32.mrf.mxu0
        %v7409 = vadd.f32 %v7240, %v7408
        %v7410 = vpop.f32.mrf.mxu0
        %v7411 = vadd.f32 %v7242, %v7410
        %7412 = vmatmul.bf16.gmra.mxu0 %v4210
        %v7413 = vpop.f32.mrf.mxu0
        %v7414 = vadd.f32 %v7245, %v7413
        %v7415 = vpop.f32.mrf.mxu0
        %v7416 = vadd.f32 %v7247, %v7415
        %7417 = vmatmul.bf16.gmra.mxu0 %v4226
        %v7418 = vpop.f32.mrf.mxu0
        %v7419 = vadd.f32 %v7250, %v7418
        %v7420 = vpop.f32.mrf.mxu0
        %v7421 = vadd.f32 %v7252, %v7420
        %7422 = vmatmul.bf16.gmra.mxu0 %v4242
        %v7423 = vpop.f32.mrf.mxu0
        %v7424 = vadd.f32 %v7255, %v7423
        %v7425 = vpop.f32.mrf.mxu0
        %v7426 = vadd.f32 %v7257, %v7425
        %7427 = vmatmul.bf16.gmra.mxu0 %v4258
        %v7428 = vpop.f32.mrf.mxu0
        %v7429 = vadd.f32 %v7260, %v7428
        %v7430 = vpop.f32.mrf.mxu0
        %v7431 = vadd.f32 %v7262, %v7430
        %7432 = vmatmul.bf16.gmra.mxu0 %v4274
        %v7433 = vpop.f32.mrf.mxu0
        %v7434 = vadd.f32 %v7265, %v7433
        %v7435 = vpop.f32.mrf.mxu0
        %v7436 = vadd.f32 %v7267, %v7435
        %7437 = vmatmul.bf16.gmra.mxu0 %v4290
        %v7438 = vpop.f32.mrf.mxu0
        %v7439 = vadd.f32 %v7270, %v7438
        %v7440 = vpop.f32.mrf.mxu0
        %v7441 = vadd.f32 %v7272, %v7440
        %7442 = vmatmul.bf16.gmra.mxu0 %v4306
        %v7443 = vpop.f32.mrf.mxu0
        %v7444 = vadd.f32 %v7275, %v7443
        %v7445 = vpop.f32.mrf.mxu0
        %v7446 = vadd.f32 %v7277, %v7445
        %7447 = vmatmul.bf16.gmra.mxu0 %v4322
        %v7448 = vpop.f32.mrf.mxu0
        %v7449 = vadd.f32 %v7280, %v7448
        %v7450 = vpop.f32.mrf.mxu0
        %v7451 = vadd.f32 %v7282, %v7450
        %7452 = vmatmul.bf16.gmra.mxu0 %v4338
        %v7453 = vpop.f32.mrf.mxu0
        %v7454 = vadd.f32 %v7285, %v7453
        %v7455 = vpop.f32.mrf.mxu0
        %v7456 = vadd.f32 %v7287, %v7455
        %7457 = vmatmul.bf16.gmra.mxu0 %v4354
        %v7458 = vpop.f32.mrf.mxu0
        %v7459 = vadd.f32 %v7290, %v7458
        %v7460 = vpop.f32.mrf.mxu0
        %v7461 = vadd.f32 %v7292, %v7460
        %7462 = vmatmul.bf16.gmra.mxu0 %v4370
        %v7463 = vpop.f32.mrf.mxu0
        %v7464 = vadd.f32 %v7295, %v7463
        %v7465 = vpop.f32.mrf.mxu0
        %v7466 = vadd.f32 %v7297, %v7465
        %7467 = vmatmul.bf16.gmra.mxu0 %v4386
        %v7468 = vpop.f32.mrf.mxu0
        %v7469 = vadd.f32 %v7300, %v7468
        %v7470 = vpop.f32.mrf.mxu0
        %v7471 = vadd.f32 %v7302, %v7470
        %7472 = vmatmul.bf16.gmra.mxu0 %v4402
        %v7473 = vpop.f32.mrf.mxu0
        %v7474 = vadd.f32 %v7305, %v7473
        %v7475 = vpop.f32.mrf.mxu0
        %v7476 = vadd.f32 %v7307, %v7475
        %7477 = vmatmul.bf16.gmra.mxu0 %v4418
        %v7478 = vpop.f32.mrf.mxu0
        %v7479 = vadd.f32 %v7310, %v7478
        %v7480 = vpop.f32.mrf.mxu0
        %v7481 = vadd.f32 %v7312, %v7480
        %7482 = vmatmul.bf16.gmra.mxu0 %v4434
        %v7483 = vpop.f32.mrf.mxu0
        %v7484 = vadd.f32 %v7315, %v7483
        %v7485 = vpop.f32.mrf.mxu0
        %v7486 = vadd.f32 %v7317, %v7485
        %7487 = vmatmul.bf16.gmra.mxu0 %v4450
        %v7488 = vpop.f32.mrf.mxu0
        %v7489 = vadd.f32 %v7320, %v7488
        %v7490 = vpop.f32.mrf.mxu0
        %v7491 = vadd.f32 %v7322, %v7490
        %7492 = vmatmul.bf16.gmra.mxu0 %v4466
        %v7493 = vpop.f32.mrf.mxu0
        %v7494 = vadd.f32 %v7325, %v7493
        %v7495 = vpop.f32.mrf.mxu0
        %v7496 = vadd.f32 %v7327, %v7495
        %7497 = vmatmul.bf16.gmra.mxu0 %v4482
        %v7498 = vpop.f32.mrf.mxu0
        %v7499 = vadd.f32 %v7330, %v7498
        %v7500 = vpop.f32.mrf.mxu0
        %v7501 = vadd.f32 %v7332, %v7500
        %7502 = vmatmul.bf16.gmra.mxu0 %v4498
        %v7503 = vpop.f32.mrf.mxu0
        %v7504 = vadd.f32 %v7335, %v7503
        %v7505 = vpop.f32.mrf.mxu0
        %v7506 = vadd.f32 %v7337, %v7505
        %7507 = vmatmul.bf16.gmra.mxu0 %v4514
        %v7508 = vpop.f32.mrf.mxu0
        %v7509 = vadd.f32 %v7340, %v7508
        %v7510 = vpop.f32.mrf.mxu0
        %v7511 = vadd.f32 %v7342, %v7510
        %7512 = vmatmul.bf16.gmra.mxu0 %v4530
        %v7513 = vpop.f32.mrf.mxu0
        %v7514 = vadd.f32 %v7345, %v7513
        %v7515 = vpop.f32.mrf.mxu0
        %v7516 = vadd.f32 %v7347, %v7515
        %7517 = vmatmul.bf16.gmra.mxu0 %v4546
        %v7518 = vpop.f32.mrf.mxu0
        %v7519 = vadd.f32 %v7350, %v7518
        %v7520 = vpop.f32.mrf.mxu0
        %v7521 = vadd.f32 %v7352, %v7520
        %7522 = vdwg.mxu0
        %7523 = vmatpush.bf16.msra.mxu0 %v5664
        %7524 = vmatpush.bf16.msra.mxu0 %v5663
        %7525 = vmatpush.bf16.msra.mxu0 %v5662
        %7526 = vmatpush.bf16.msra.mxu0 %v5661
        %7527 = vmatpush.bf16.msra.mxu0 %v5660
        %7528 = vmatpush.bf16.msra.mxu0 %v5659
        %7529 = vmatpush.bf16.msra.mxu0 %v5658
        %7530 = vmatpush.bf16.msra.mxu0 %v5657
        %7531 = vmatmul.bf16.gmra.mxu0 %v4051
        %v7532 = vpop.f32.mrf.mxu0
        %v7533 = vadd.f32 %v7364, %v7532
        %v7534 = vpop.f32.mrf.mxu0
        %v7535 = vadd.f32 %v7366, %v7534
        %7536 = vmatmul.bf16.gmra.mxu0 %v4067
        %v7537 = vpop.f32.mrf.mxu0
        %v7538 = vadd.f32 %v7369, %v7537
        %v7539 = vpop.f32.mrf.mxu0
        %v7540 = vadd.f32 %v7371, %v7539
        %7541 = vmatmul.bf16.gmra.mxu0 %v4083
        %v7542 = vpop.f32.mrf.mxu0
        %v7543 = vadd.f32 %v7374, %v7542
        %v7544 = vpop.f32.mrf.mxu0
        %v7545 = vadd.f32 %v7376, %v7544
        %7546 = vmatmul.bf16.gmra.mxu0 %v4099
        %v7547 = vpop.f32.mrf.mxu0
        %v7548 = vadd.f32 %v7379, %v7547
        %v7549 = vpop.f32.mrf.mxu0
        %v7550 = vadd.f32 %v7381, %v7549
        %7551 = vmatmul.bf16.gmra.mxu0 %v4115
        %v7552 = vpop.f32.mrf.mxu0
        %v7553 = vadd.f32 %v7384, %v7552
        %v7554 = vpop.f32.mrf.mxu0
        %v7555 = vadd.f32 %v7386, %v7554
        %7556 = vmatmul.bf16.gmra.mxu0 %v4131
        %v7557 = vpop.f32.mrf.mxu0
        %v7558 = vadd.f32 %v7389, %v7557
        %v7559 = vpop.f32.mrf.mxu0
        %v7560 = vadd.f32 %v7391, %v7559
        %7561 = vmatmul.bf16.gmra.mxu0 %v4147
        %v7562 = vpop.f32.mrf.mxu0
        %v7563 = vadd.f32 %v7394, %v7562
        %v7564 = vpop.f32.mrf.mxu0
        %v7565 = vadd.f32 %v7396, %v7564
        %7566 = vmatmul.bf16.gmra.mxu0 %v4163
        %v7567 = vpop.f32.mrf.mxu0
        %v7568 = vadd.f32 %v7399, %v7567
        %v7569 = vpop.f32.mrf.mxu0
        %v7570 = vadd.f32 %v7401, %v7569
        %7571 = vmatmul.bf16.gmra.mxu0 %v4179
        %v7572 = vpop.f32.mrf.mxu0
        %v7573 = vadd.f32 %v7404, %v7572
        %v7574 = vpop.f32.mrf.mxu0
        %v7575 = vadd.f32 %v7406, %v7574
        %7576 = vmatmul.bf16.gmra.mxu0 %v4195
        %v7577 = vpop.f32.mrf.mxu0
        %v7578 = vadd.f32 %v7409, %v7577
        %v7579 = vpop.f32.mrf.mxu0
        %v7580 = vadd.f32 %v7411, %v7579
        %7581 = vmatmul.bf16.gmra.mxu0 %v4211
        %v7582 = vpop.f32.mrf.mxu0
        %v7583 = vadd.f32 %v7414, %v7582
        %v7584 = vpop.f32.mrf.mxu0
        %v7585 = vadd.f32 %v7416, %v7584
        %7586 = vmatmul.bf16.gmra.mxu0 %v4227
        %v7587 = vpop.f32.mrf.mxu0
        %v7588 = vadd.f32 %v7419, %v7587
        %v7589 = vpop.f32.mrf.mxu0
        %v7590 = vadd.f32 %v7421, %v7589
        %7591 = vmatmul.bf16.gmra.mxu0 %v4243
        %v7592 = vpop.f32.mrf.mxu0
        %v7593 = vadd.f32 %v7424, %v7592
        %v7594 = vpop.f32.mrf.mxu0
        %v7595 = vadd.f32 %v7426, %v7594
        %7596 = vmatmul.bf16.gmra.mxu0 %v4259
        %v7597 = vpop.f32.mrf.mxu0
        %v7598 = vadd.f32 %v7429, %v7597
        %v7599 = vpop.f32.mrf.mxu0
        %v7600 = vadd.f32 %v7431, %v7599
        %7601 = vmatmul.bf16.gmra.mxu0 %v4275
        %v7602 = vpop.f32.mrf.mxu0
        %v7603 = vadd.f32 %v7434, %v7602
        %v7604 = vpop.f32.mrf.mxu0
        %v7605 = vadd.f32 %v7436, %v7604
        %7606 = vmatmul.bf16.gmra.mxu0 %v4291
        %v7607 = vpop.f32.mrf.mxu0
        %v7608 = vadd.f32 %v7439, %v7607
        %v7609 = vpop.f32.mrf.mxu0
        %v7610 = vadd.f32 %v7441, %v7609
        %7611 = vmatmul.bf16.gmra.mxu0 %v4307
        %v7612 = vpop.f32.mrf.mxu0
        %v7613 = vadd.f32 %v7444, %v7612
        %v7614 = vpop.f32.mrf.mxu0
        %v7615 = vadd.f32 %v7446, %v7614
        %7616 = vmatmul.bf16.gmra.mxu0 %v4323
        %v7617 = vpop.f32.mrf.mxu0
        %v7618 = vadd.f32 %v7449, %v7617
        %v7619 = vpop.f32.mrf.mxu0
        %v7620 = vadd.f32 %v7451, %v7619
        %7621 = vmatmul.bf16.gmra.mxu0 %v4339
        %v7622 = vpop.f32.mrf.mxu0
        %v7623 = vadd.f32 %v7454, %v7622
        %v7624 = vpop.f32.mrf.mxu0
        %v7625 = vadd.f32 %v7456, %v7624
        %7626 = vmatmul.bf16.gmra.mxu0 %v4355
        %v7627 = vpop.f32.mrf.mxu0
        %v7628 = vadd.f32 %v7459, %v7627
        %v7629 = vpop.f32.mrf.mxu0
        %v7630 = vadd.f32 %v7461, %v7629
        %7631 = vmatmul.bf16.gmra.mxu0 %v4371
        %v7632 = vpop.f32.mrf.mxu0
        %v7633 = vadd.f32 %v7464, %v7632
        %v7634 = vpop.f32.mrf.mxu0
        %v7635 = vadd.f32 %v7466, %v7634
        %7636 = vmatmul.bf16.gmra.mxu0 %v4387
        %v7637 = vpop.f32.mrf.mxu0
        %v7638 = vadd.f32 %v7469, %v7637
        %v7639 = vpop.f32.mrf.mxu0
        %v7640 = vadd.f32 %v7471, %v7639
        %7641 = vmatmul.bf16.gmra.mxu0 %v4403
        %v7642 = vpop.f32.mrf.mxu0
        %v7643 = vadd.f32 %v7474, %v7642
        %v7644 = vpop.f32.mrf.mxu0
        %v7645 = vadd.f32 %v7476, %v7644
        %7646 = vmatmul.bf16.gmra.mxu0 %v4419
        %v7647 = vpop.f32.mrf.mxu0
        %v7648 = vadd.f32 %v7479, %v7647
        %v7649 = vpop.f32.mrf.mxu0
        %v7650 = vadd.f32 %v7481, %v7649
        %7651 = vmatmul.bf16.gmra.mxu0 %v4435
        %v7652 = vpop.f32.mrf.mxu0
        %v7653 = vadd.f32 %v7484, %v7652
        %v7654 = vpop.f32.mrf.mxu0
        %v7655 = vadd.f32 %v7486, %v7654
        %7656 = vmatmul.bf16.gmra.mxu0 %v4451
        %v7657 = vpop.f32.mrf.mxu0
        %v7658 = vadd.f32 %v7489, %v7657
        %v7659 = vpop.f32.mrf.mxu0
        %v7660 = vadd.f32 %v7491, %v7659
        %7661 = vmatmul.bf16.gmra.mxu0 %v4467
        %v7662 = vpop.f32.mrf.mxu0
        %v7663 = vadd.f32 %v7494, %v7662
        %v7664 = vpop.f32.mrf.mxu0
        %v7665 = vadd.f32 %v7496, %v7664
        %7666 = vmatmul.bf16.gmra.mxu0 %v4483
        %v7667 = vpop.f32.mrf.mxu0
        %v7668 = vadd.f32 %v7499, %v7667
        %v7669 = vpop.f32.mrf.mxu0
        %v7670 = vadd.f32 %v7501, %v7669
        %7671 = vmatmul.bf16.gmra.mxu0 %v4499
        %v7672 = vpop.f32.mrf.mxu0
        %v7673 = vadd.f32 %v7504, %v7672
        %v7674 = vpop.f32.mrf.mxu0
        %v7675 = vadd.f32 %v7506, %v7674
        %7676 = vmatmul.bf16.gmra.mxu0 %v4515
        %v7677 = vpop.f32.mrf.mxu0
        %v7678 = vadd.f32 %v7509, %v7677
        %v7679 = vpop.f32.mrf.mxu0
        %v7680 = vadd.f32 %v7511, %v7679
        %7681 = vmatmul.bf16.gmra.mxu0 %v4531
        %v7682 = vpop.f32.mrf.mxu0
        %v7683 = vadd.f32 %v7514, %v7682
        %v7684 = vpop.f32.mrf.mxu0
        %v7685 = vadd.f32 %v7516, %v7684
        %7686 = vmatmul.bf16.gmra.mxu0 %v4547
        %v7687 = vpop.f32.mrf.mxu0
        %v7688 = vadd.f32 %v7519, %v7687
        %v7689 = vpop.f32.mrf.mxu0
        %v7690 = vadd.f32 %v7521, %v7689
        %7691 = vdwg.mxu0
        %7692 = vmatpush.bf16.msra.mxu0 %v5672
        %7693 = vmatpush.bf16.msra.mxu0 %v5671
        %7694 = vmatpush.bf16.msra.mxu0 %v5670
        %7695 = vmatpush.bf16.msra.mxu0 %v5669
        %7696 = vmatpush.bf16.msra.mxu0 %v5668
        %7697 = vmatpush.bf16.msra.mxu0 %v5667
        %7698 = vmatpush.bf16.msra.mxu0 %v5666
        %7699 = vmatpush.bf16.msra.mxu0 %v5665
        %7700 = vmatmul.bf16.gmra.mxu0 %v4052
        %v7701 = vpop.f32.mrf.mxu0
        %v7702 = vadd.f32 %v7533, %v7701
        %v7703 = vpop.f32.mrf.mxu0
        %v7704 = vadd.f32 %v7535, %v7703
        %7705 = vmatmul.bf16.gmra.mxu0 %v4068
        %v7706 = vpop.f32.mrf.mxu0
        %v7707 = vadd.f32 %v7538, %v7706
        %v7708 = vpop.f32.mrf.mxu0
        %v7709 = vadd.f32 %v7540, %v7708
        %7710 = vmatmul.bf16.gmra.mxu0 %v4084
        %v7711 = vpop.f32.mrf.mxu0
        %v7712 = vadd.f32 %v7543, %v7711
        %v7713 = vpop.f32.mrf.mxu0
        %v7714 = vadd.f32 %v7545, %v7713
        %7715 = vmatmul.bf16.gmra.mxu0 %v4100
        %v7716 = vpop.f32.mrf.mxu0
        %v7717 = vadd.f32 %v7548, %v7716
        %v7718 = vpop.f32.mrf.mxu0
        %v7719 = vadd.f32 %v7550, %v7718
        %7720 = vmatmul.bf16.gmra.mxu0 %v4116
        %v7721 = vpop.f32.mrf.mxu0
        %v7722 = vadd.f32 %v7553, %v7721
        %v7723 = vpop.f32.mrf.mxu0
        %v7724 = vadd.f32 %v7555, %v7723
        %7725 = vmatmul.bf16.gmra.mxu0 %v4132
        %v7726 = vpop.f32.mrf.mxu0
        %v7727 = vadd.f32 %v7558, %v7726
        %v7728 = vpop.f32.mrf.mxu0
        %v7729 = vadd.f32 %v7560, %v7728
        %7730 = vmatmul.bf16.gmra.mxu0 %v4148
        %v7731 = vpop.f32.mrf.mxu0
        %v7732 = vadd.f32 %v7563, %v7731
        %v7733 = vpop.f32.mrf.mxu0
        %v7734 = vadd.f32 %v7565, %v7733
        %7735 = vmatmul.bf16.gmra.mxu0 %v4164
        %v7736 = vpop.f32.mrf.mxu0
        %v7737 = vadd.f32 %v7568, %v7736
        %v7738 = vpop.f32.mrf.mxu0
        %v7739 = vadd.f32 %v7570, %v7738
        %7740 = vmatmul.bf16.gmra.mxu0 %v4180
        %v7741 = vpop.f32.mrf.mxu0
        %v7742 = vadd.f32 %v7573, %v7741
        %v7743 = vpop.f32.mrf.mxu0
        %v7744 = vadd.f32 %v7575, %v7743
        %7745 = vmatmul.bf16.gmra.mxu0 %v4196
        %v7746 = vpop.f32.mrf.mxu0
        %v7747 = vadd.f32 %v7578, %v7746
        %v7748 = vpop.f32.mrf.mxu0
        %v7749 = vadd.f32 %v7580, %v7748
        %7750 = vmatmul.bf16.gmra.mxu0 %v4212
        %v7751 = vpop.f32.mrf.mxu0
        %v7752 = vadd.f32 %v7583, %v7751
        %v7753 = vpop.f32.mrf.mxu0
        %v7754 = vadd.f32 %v7585, %v7753
        %7755 = vmatmul.bf16.gmra.mxu0 %v4228
        %v7756 = vpop.f32.mrf.mxu0
        %v7757 = vadd.f32 %v7588, %v7756
        %v7758 = vpop.f32.mrf.mxu0
        %v7759 = vadd.f32 %v7590, %v7758
        %7760 = vmatmul.bf16.gmra.mxu0 %v4244
        %v7761 = vpop.f32.mrf.mxu0
        %v7762 = vadd.f32 %v7593, %v7761
        %v7763 = vpop.f32.mrf.mxu0
        %v7764 = vadd.f32 %v7595, %v7763
        %7765 = vmatmul.bf16.gmra.mxu0 %v4260
        %v7766 = vpop.f32.mrf.mxu0
        %v7767 = vadd.f32 %v7598, %v7766
        %v7768 = vpop.f32.mrf.mxu0
        %v7769 = vadd.f32 %v7600, %v7768
        %7770 = vmatmul.bf16.gmra.mxu0 %v4276
        %v7771 = vpop.f32.mrf.mxu0
        %v7772 = vadd.f32 %v7603, %v7771
        %v7773 = vpop.f32.mrf.mxu0
        %v7774 = vadd.f32 %v7605, %v7773
        %7775 = vmatmul.bf16.gmra.mxu0 %v4292
        %v7776 = vpop.f32.mrf.mxu0
        %v7777 = vadd.f32 %v7608, %v7776
        %v7778 = vpop.f32.mrf.mxu0
        %v7779 = vadd.f32 %v7610, %v7778
        %7780 = vmatmul.bf16.gmra.mxu0 %v4308
        %v7781 = vpop.f32.mrf.mxu0
        %v7782 = vadd.f32 %v7613, %v7781
        %v7783 = vpop.f32.mrf.mxu0
        %v7784 = vadd.f32 %v7615, %v7783
        %7785 = vmatmul.bf16.gmra.mxu0 %v4324
        %v7786 = vpop.f32.mrf.mxu0
        %v7787 = vadd.f32 %v7618, %v7786
        %v7788 = vpop.f32.mrf.mxu0
        %v7789 = vadd.f32 %v7620, %v7788
        %7790 = vmatmul.bf16.gmra.mxu0 %v4340
        %v7791 = vpop.f32.mrf.mxu0
        %v7792 = vadd.f32 %v7623, %v7791
        %v7793 = vpop.f32.mrf.mxu0
        %v7794 = vadd.f32 %v7625, %v7793
        %7795 = vmatmul.bf16.gmra.mxu0 %v4356
        %v7796 = vpop.f32.mrf.mxu0
        %v7797 = vadd.f32 %v7628, %v7796
        %v7798 = vpop.f32.mrf.mxu0
        %v7799 = vadd.f32 %v7630, %v7798
        %7800 = vmatmul.bf16.gmra.mxu0 %v4372
        %v7801 = vpop.f32.mrf.mxu0
        %v7802 = vadd.f32 %v7633, %v7801
        %v7803 = vpop.f32.mrf.mxu0
        %v7804 = vadd.f32 %v7635, %v7803
        %7805 = vmatmul.bf16.gmra.mxu0 %v4388
        %v7806 = vpop.f32.mrf.mxu0
        %v7807 = vadd.f32 %v7638, %v7806
        %v7808 = vpop.f32.mrf.mxu0
        %v7809 = vadd.f32 %v7640, %v7808
        %7810 = vmatmul.bf16.gmra.mxu0 %v4404
        %v7811 = vpop.f32.mrf.mxu0
        %v7812 = vadd.f32 %v7643, %v7811
        %v7813 = vpop.f32.mrf.mxu0
        %v7814 = vadd.f32 %v7645, %v7813
        %7815 = vmatmul.bf16.gmra.mxu0 %v4420
        %v7816 = vpop.f32.mrf.mxu0
        %v7817 = vadd.f32 %v7648, %v7816
        %v7818 = vpop.f32.mrf.mxu0
        %v7819 = vadd.f32 %v7650, %v7818
        %7820 = vmatmul.bf16.gmra.mxu0 %v4436
        %v7821 = vpop.f32.mrf.mxu0
        %v7822 = vadd.f32 %v7653, %v7821
        %v7823 = vpop.f32.mrf.mxu0
        %v7824 = vadd.f32 %v7655, %v7823
        %7825 = vmatmul.bf16.gmra.mxu0 %v4452
        %v7826 = vpop.f32.mrf.mxu0
        %v7827 = vadd.f32 %v7658, %v7826
        %v7828 = vpop.f32.mrf.mxu0
        %v7829 = vadd.f32 %v7660, %v7828
        %7830 = vmatmul.bf16.gmra.mxu0 %v4468
        %v7831 = vpop.f32.mrf.mxu0
        %v7832 = vadd.f32 %v7663, %v7831
        %v7833 = vpop.f32.mrf.mxu0
        %v7834 = vadd.f32 %v7665, %v7833
        %7835 = vmatmul.bf16.gmra.mxu0 %v4484
        %v7836 = vpop.f32.mrf.mxu0
        %v7837 = vadd.f32 %v7668, %v7836
        %v7838 = vpop.f32.mrf.mxu0
        %v7839 = vadd.f32 %v7670, %v7838
        %7840 = vmatmul.bf16.gmra.mxu0 %v4500
        %v7841 = vpop.f32.mrf.mxu0
        %v7842 = vadd.f32 %v7673, %v7841
        %v7843 = vpop.f32.mrf.mxu0
        %v7844 = vadd.f32 %v7675, %v7843
        %7845 = vmatmul.bf16.gmra.mxu0 %v4516
        %v7846 = vpop.f32.mrf.mxu0
        %v7847 = vadd.f32 %v7678, %v7846
        %v7848 = vpop.f32.mrf.mxu0
        %v7849 = vadd.f32 %v7680, %v7848
        %7850 = vmatmul.bf16.gmra.mxu0 %v4532
        %v7851 = vpop.f32.mrf.mxu0
        %v7852 = vadd.f32 %v7683, %v7851
        %v7853 = vpop.f32.mrf.mxu0
        %v7854 = vadd.f32 %v7685, %v7853
        %7855 = vmatmul.bf16.gmra.mxu0 %v4548
        %v7856 = vpop.f32.mrf.mxu0
        %v7857 = vadd.f32 %v7688, %v7856
        %v7858 = vpop.f32.mrf.mxu0
        %v7859 = vadd.f32 %v7690, %v7858
        %7860 = vdwg.mxu0
        %7861 = vmatpush.bf16.msra.mxu0 %v5680
        %7862 = vmatpush.bf16.msra.mxu0 %v5679
        %7863 = vmatpush.bf16.msra.mxu0 %v5678
        %7864 = vmatpush.bf16.msra.mxu0 %v5677
        %7865 = vmatpush.bf16.msra.mxu0 %v5676
        %7866 = vmatpush.bf16.msra.mxu0 %v5675
        %7867 = vmatpush.bf16.msra.mxu0 %v5674
        %7868 = vmatpush.bf16.msra.mxu0 %v5673
        %7869 = vmatmul.bf16.gmra.mxu0 %v4053
        %v7870 = vpop.f32.mrf.mxu0
        %v7871 = vadd.f32 %v7702, %v7870
        %v7872 = vpop.f32.mrf.mxu0
        %v7873 = vadd.f32 %v7704, %v7872
        %7874 = vmatmul.bf16.gmra.mxu0 %v4069
        %v7875 = vpop.f32.mrf.mxu0
        %v7876 = vadd.f32 %v7707, %v7875
        %v7877 = vpop.f32.mrf.mxu0
        %v7878 = vadd.f32 %v7709, %v7877
        %7879 = vmatmul.bf16.gmra.mxu0 %v4085
        %v7880 = vpop.f32.mrf.mxu0
        %v7881 = vadd.f32 %v7712, %v7880
        %v7882 = vpop.f32.mrf.mxu0
        %v7883 = vadd.f32 %v7714, %v7882
        %7884 = vmatmul.bf16.gmra.mxu0 %v4101
        %v7885 = vpop.f32.mrf.mxu0
        %v7886 = vadd.f32 %v7717, %v7885
        %v7887 = vpop.f32.mrf.mxu0
        %v7888 = vadd.f32 %v7719, %v7887
        %7889 = vmatmul.bf16.gmra.mxu0 %v4117
        %v7890 = vpop.f32.mrf.mxu0
        %v7891 = vadd.f32 %v7722, %v7890
        %v7892 = vpop.f32.mrf.mxu0
        %v7893 = vadd.f32 %v7724, %v7892
        %7894 = vmatmul.bf16.gmra.mxu0 %v4133
        %v7895 = vpop.f32.mrf.mxu0
        %v7896 = vadd.f32 %v7727, %v7895
        %v7897 = vpop.f32.mrf.mxu0
        %v7898 = vadd.f32 %v7729, %v7897
        %7899 = vmatmul.bf16.gmra.mxu0 %v4149
        %v7900 = vpop.f32.mrf.mxu0
        %v7901 = vadd.f32 %v7732, %v7900
        %v7902 = vpop.f32.mrf.mxu0
        %v7903 = vadd.f32 %v7734, %v7902
        %7904 = vmatmul.bf16.gmra.mxu0 %v4165
        %v7905 = vpop.f32.mrf.mxu0
        %v7906 = vadd.f32 %v7737, %v7905
        %v7907 = vpop.f32.mrf.mxu0
        %v7908 = vadd.f32 %v7739, %v7907
        %7909 = vmatmul.bf16.gmra.mxu0 %v4181
        %v7910 = vpop.f32.mrf.mxu0
        %v7911 = vadd.f32 %v7742, %v7910
        %v7912 = vpop.f32.mrf.mxu0
        %v7913 = vadd.f32 %v7744, %v7912
        %7914 = vmatmul.bf16.gmra.mxu0 %v4197
        %v7915 = vpop.f32.mrf.mxu0
        %v7916 = vadd.f32 %v7747, %v7915
        %v7917 = vpop.f32.mrf.mxu0
        %v7918 = vadd.f32 %v7749, %v7917
        %7919 = vmatmul.bf16.gmra.mxu0 %v4213
        %v7920 = vpop.f32.mrf.mxu0
        %v7921 = vadd.f32 %v7752, %v7920
        %v7922 = vpop.f32.mrf.mxu0
        %v7923 = vadd.f32 %v7754, %v7922
        %7924 = vmatmul.bf16.gmra.mxu0 %v4229
        %v7925 = vpop.f32.mrf.mxu0
        %v7926 = vadd.f32 %v7757, %v7925
        %v7927 = vpop.f32.mrf.mxu0
        %v7928 = vadd.f32 %v7759, %v7927
        %7929 = vmatmul.bf16.gmra.mxu0 %v4245
        %v7930 = vpop.f32.mrf.mxu0
        %v7931 = vadd.f32 %v7762, %v7930
        %v7932 = vpop.f32.mrf.mxu0
        %v7933 = vadd.f32 %v7764, %v7932
        %7934 = vmatmul.bf16.gmra.mxu0 %v4261
        %v7935 = vpop.f32.mrf.mxu0
        %v7936 = vadd.f32 %v7767, %v7935
        %v7937 = vpop.f32.mrf.mxu0
        %v7938 = vadd.f32 %v7769, %v7937
        %7939 = vmatmul.bf16.gmra.mxu0 %v4277
        %v7940 = vpop.f32.mrf.mxu0
        %v7941 = vadd.f32 %v7772, %v7940
        %v7942 = vpop.f32.mrf.mxu0
        %v7943 = vadd.f32 %v7774, %v7942
        %7944 = vmatmul.bf16.gmra.mxu0 %v4293
        %v7945 = vpop.f32.mrf.mxu0
        %v7946 = vadd.f32 %v7777, %v7945
        %v7947 = vpop.f32.mrf.mxu0
        %v7948 = vadd.f32 %v7779, %v7947
        %7949 = vmatmul.bf16.gmra.mxu0 %v4309
        %v7950 = vpop.f32.mrf.mxu0
        %v7951 = vadd.f32 %v7782, %v7950
        %v7952 = vpop.f32.mrf.mxu0
        %v7953 = vadd.f32 %v7784, %v7952
        %7954 = vmatmul.bf16.gmra.mxu0 %v4325
        %v7955 = vpop.f32.mrf.mxu0
        %v7956 = vadd.f32 %v7787, %v7955
        %v7957 = vpop.f32.mrf.mxu0
        %v7958 = vadd.f32 %v7789, %v7957
        %7959 = vmatmul.bf16.gmra.mxu0 %v4341
        %v7960 = vpop.f32.mrf.mxu0
        %v7961 = vadd.f32 %v7792, %v7960
        %v7962 = vpop.f32.mrf.mxu0
        %v7963 = vadd.f32 %v7794, %v7962
        %7964 = vmatmul.bf16.gmra.mxu0 %v4357
        %v7965 = vpop.f32.mrf.mxu0
        %v7966 = vadd.f32 %v7797, %v7965
        %v7967 = vpop.f32.mrf.mxu0
        %v7968 = vadd.f32 %v7799, %v7967
        %7969 = vmatmul.bf16.gmra.mxu0 %v4373
        %v7970 = vpop.f32.mrf.mxu0
        %v7971 = vadd.f32 %v7802, %v7970
        %v7972 = vpop.f32.mrf.mxu0
        %v7973 = vadd.f32 %v7804, %v7972
        %7974 = vmatmul.bf16.gmra.mxu0 %v4389
        %v7975 = vpop.f32.mrf.mxu0
        %v7976 = vadd.f32 %v7807, %v7975
        %v7977 = vpop.f32.mrf.mxu0
        %v7978 = vadd.f32 %v7809, %v7977
        %7979 = vmatmul.bf16.gmra.mxu0 %v4405
        %v7980 = vpop.f32.mrf.mxu0
        %v7981 = vadd.f32 %v7812, %v7980
        %v7982 = vpop.f32.mrf.mxu0
        %v7983 = vadd.f32 %v7814, %v7982
        %7984 = vmatmul.bf16.gmra.mxu0 %v4421
        %v7985 = vpop.f32.mrf.mxu0
        %v7986 = vadd.f32 %v7817, %v7985
        %v7987 = vpop.f32.mrf.mxu0
        %v7988 = vadd.f32 %v7819, %v7987
        %7989 = vmatmul.bf16.gmra.mxu0 %v4437
        %v7990 = vpop.f32.mrf.mxu0
        %v7991 = vadd.f32 %v7822, %v7990
        %v7992 = vpop.f32.mrf.mxu0
        %v7993 = vadd.f32 %v7824, %v7992
        %7994 = vmatmul.bf16.gmra.mxu0 %v4453
        %v7995 = vpop.f32.mrf.mxu0
        %v7996 = vadd.f32 %v7827, %v7995
        %v7997 = vpop.f32.mrf.mxu0
        %v7998 = vadd.f32 %v7829, %v7997
        %7999 = vmatmul.bf16.gmra.mxu0 %v4469
        %v8000 = vpop.f32.mrf.mxu0
        %v8001 = vadd.f32 %v7832, %v8000
        %v8002 = vpop.f32.mrf.mxu0
        %v8003 = vadd.f32 %v7834, %v8002
        %8004 = vmatmul.bf16.gmra.mxu0 %v4485
        %v8005 = vpop.f32.mrf.mxu0
        %v8006 = vadd.f32 %v7837, %v8005
        %v8007 = vpop.f32.mrf.mxu0
        %v8008 = vadd.f32 %v7839, %v8007
        %8009 = vmatmul.bf16.gmra.mxu0 %v4501
        %v8010 = vpop.f32.mrf.mxu0
        %v8011 = vadd.f32 %v7842, %v8010
        %v8012 = vpop.f32.mrf.mxu0
        %v8013 = vadd.f32 %v7844, %v8012
        %8014 = vmatmul.bf16.gmra.mxu0 %v4517
        %v8015 = vpop.f32.mrf.mxu0
        %v8016 = vadd.f32 %v7847, %v8015
        %v8017 = vpop.f32.mrf.mxu0
        %v8018 = vadd.f32 %v7849, %v8017
        %8019 = vmatmul.bf16.gmra.mxu0 %v4533
        %v8020 = vpop.f32.mrf.mxu0
        %v8021 = vadd.f32 %v7852, %v8020
        %v8022 = vpop.f32.mrf.mxu0
        %v8023 = vadd.f32 %v7854, %v8022
        %8024 = vmatmul.bf16.gmra.mxu0 %v4549
        %v8025 = vpop.f32.mrf.mxu0
        %v8026 = vadd.f32 %v7857, %v8025
        %v8027 = vpop.f32.mrf.mxu0
        %v8028 = vadd.f32 %v7859, %v8027
        %8029 = vdwg.mxu0
        %8030 = vmatpush.bf16.msra.mxu0 %v5688
        %8031 = vmatpush.bf16.msra.mxu0 %v5687
        %8032 = vmatpush.bf16.msra.mxu0 %v5686
        %8033 = vmatpush.bf16.msra.mxu0 %v5685
        %8034 = vmatpush.bf16.msra.mxu0 %v5684
        %8035 = vmatpush.bf16.msra.mxu0 %v5683
        %8036 = vmatpush.bf16.msra.mxu0 %v5682
        %8037 = vmatpush.bf16.msra.mxu0 %v5681
        %8038 = vmatmul.bf16.gmra.mxu0 %v4054
        %v8039 = vpop.f32.mrf.mxu0
        %v8040 = vadd.f32 %v7871, %v8039
        %v8041 = vpop.f32.mrf.mxu0
        %v8042 = vadd.f32 %v7873, %v8041
        %8043 = vmatmul.bf16.gmra.mxu0 %v4070
        %v8044 = vpop.f32.mrf.mxu0
        %v8045 = vadd.f32 %v7876, %v8044
        %v8046 = vpop.f32.mrf.mxu0
        %v8047 = vadd.f32 %v7878, %v8046
        %8048 = vmatmul.bf16.gmra.mxu0 %v4086
        %v8049 = vpop.f32.mrf.mxu0
        %v8050 = vadd.f32 %v7881, %v8049
        %v8051 = vpop.f32.mrf.mxu0
        %v8052 = vadd.f32 %v7883, %v8051
        %8053 = vmatmul.bf16.gmra.mxu0 %v4102
        %v8054 = vpop.f32.mrf.mxu0
        %v8055 = vadd.f32 %v7886, %v8054
        %v8056 = vpop.f32.mrf.mxu0
        %v8057 = vadd.f32 %v7888, %v8056
        %8058 = vmatmul.bf16.gmra.mxu0 %v4118
        %v8059 = vpop.f32.mrf.mxu0
        %v8060 = vadd.f32 %v7891, %v8059
        %v8061 = vpop.f32.mrf.mxu0
        %v8062 = vadd.f32 %v7893, %v8061
        %8063 = vmatmul.bf16.gmra.mxu0 %v4134
        %v8064 = vpop.f32.mrf.mxu0
        %v8065 = vadd.f32 %v7896, %v8064
        %v8066 = vpop.f32.mrf.mxu0
        %v8067 = vadd.f32 %v7898, %v8066
        %8068 = vmatmul.bf16.gmra.mxu0 %v4150
        %v8069 = vpop.f32.mrf.mxu0
        %v8070 = vadd.f32 %v7901, %v8069
        %v8071 = vpop.f32.mrf.mxu0
        %v8072 = vadd.f32 %v7903, %v8071
        %8073 = vmatmul.bf16.gmra.mxu0 %v4166
        %v8074 = vpop.f32.mrf.mxu0
        %v8075 = vadd.f32 %v7906, %v8074
        %v8076 = vpop.f32.mrf.mxu0
        %v8077 = vadd.f32 %v7908, %v8076
        %8078 = vmatmul.bf16.gmra.mxu0 %v4182
        %v8079 = vpop.f32.mrf.mxu0
        %v8080 = vadd.f32 %v7911, %v8079
        %v8081 = vpop.f32.mrf.mxu0
        %v8082 = vadd.f32 %v7913, %v8081
        %8083 = vmatmul.bf16.gmra.mxu0 %v4198
        %v8084 = vpop.f32.mrf.mxu0
        %v8085 = vadd.f32 %v7916, %v8084
        %v8086 = vpop.f32.mrf.mxu0
        %v8087 = vadd.f32 %v7918, %v8086
        %8088 = vmatmul.bf16.gmra.mxu0 %v4214
        %v8089 = vpop.f32.mrf.mxu0
        %v8090 = vadd.f32 %v7921, %v8089
        %v8091 = vpop.f32.mrf.mxu0
        %v8092 = vadd.f32 %v7923, %v8091
        %8093 = vmatmul.bf16.gmra.mxu0 %v4230
        %v8094 = vpop.f32.mrf.mxu0
        %v8095 = vadd.f32 %v7926, %v8094
        %v8096 = vpop.f32.mrf.mxu0
        %v8097 = vadd.f32 %v7928, %v8096
        %8098 = vmatmul.bf16.gmra.mxu0 %v4246
        %v8099 = vpop.f32.mrf.mxu0
        %v8100 = vadd.f32 %v7931, %v8099
        %v8101 = vpop.f32.mrf.mxu0
        %v8102 = vadd.f32 %v7933, %v8101
        %8103 = vmatmul.bf16.gmra.mxu0 %v4262
        %v8104 = vpop.f32.mrf.mxu0
        %v8105 = vadd.f32 %v7936, %v8104
        %v8106 = vpop.f32.mrf.mxu0
        %v8107 = vadd.f32 %v7938, %v8106
        %8108 = vmatmul.bf16.gmra.mxu0 %v4278
        %v8109 = vpop.f32.mrf.mxu0
        %v8110 = vadd.f32 %v7941, %v8109
        %v8111 = vpop.f32.mrf.mxu0
        %v8112 = vadd.f32 %v7943, %v8111
        %8113 = vmatmul.bf16.gmra.mxu0 %v4294
        %v8114 = vpop.f32.mrf.mxu0
        %v8115 = vadd.f32 %v7946, %v8114
        %v8116 = vpop.f32.mrf.mxu0
        %v8117 = vadd.f32 %v7948, %v8116
        %8118 = vmatmul.bf16.gmra.mxu0 %v4310
        %v8119 = vpop.f32.mrf.mxu0
        %v8120 = vadd.f32 %v7951, %v8119
        %v8121 = vpop.f32.mrf.mxu0
        %v8122 = vadd.f32 %v7953, %v8121
        %8123 = vmatmul.bf16.gmra.mxu0 %v4326
        %v8124 = vpop.f32.mrf.mxu0
        %v8125 = vadd.f32 %v7956, %v8124
        %v8126 = vpop.f32.mrf.mxu0
        %v8127 = vadd.f32 %v7958, %v8126
        %8128 = vmatmul.bf16.gmra.mxu0 %v4342
        %v8129 = vpop.f32.mrf.mxu0
        %v8130 = vadd.f32 %v7961, %v8129
        %v8131 = vpop.f32.mrf.mxu0
        %v8132 = vadd.f32 %v7963, %v8131
        %8133 = vmatmul.bf16.gmra.mxu0 %v4358
        %v8134 = vpop.f32.mrf.mxu0
        %v8135 = vadd.f32 %v7966, %v8134
        %v8136 = vpop.f32.mrf.mxu0
        %v8137 = vadd.f32 %v7968, %v8136
        %8138 = vmatmul.bf16.gmra.mxu0 %v4374
        %v8139 = vpop.f32.mrf.mxu0
        %v8140 = vadd.f32 %v7971, %v8139
        %v8141 = vpop.f32.mrf.mxu0
        %v8142 = vadd.f32 %v7973, %v8141
        %8143 = vmatmul.bf16.gmra.mxu0 %v4390
        %v8144 = vpop.f32.mrf.mxu0
        %v8145 = vadd.f32 %v7976, %v8144
        %v8146 = vpop.f32.mrf.mxu0
        %v8147 = vadd.f32 %v7978, %v8146
        %8148 = vmatmul.bf16.gmra.mxu0 %v4406
        %v8149 = vpop.f32.mrf.mxu0
        %v8150 = vadd.f32 %v7981, %v8149
        %v8151 = vpop.f32.mrf.mxu0
        %v8152 = vadd.f32 %v7983, %v8151
        %8153 = vmatmul.bf16.gmra.mxu0 %v4422
        %v8154 = vpop.f32.mrf.mxu0
        %v8155 = vadd.f32 %v7986, %v8154
        %v8156 = vpop.f32.mrf.mxu0
        %v8157 = vadd.f32 %v7988, %v8156
        %8158 = vmatmul.bf16.gmra.mxu0 %v4438
        %v8159 = vpop.f32.mrf.mxu0
        %v8160 = vadd.f32 %v7991, %v8159
        %v8161 = vpop.f32.mrf.mxu0
        %v8162 = vadd.f32 %v7993, %v8161
        %8163 = vmatmul.bf16.gmra.mxu0 %v4454
        %v8164 = vpop.f32.mrf.mxu0
        %v8165 = vadd.f32 %v7996, %v8164
        %v8166 = vpop.f32.mrf.mxu0
        %v8167 = vadd.f32 %v7998, %v8166
        %8168 = vmatmul.bf16.gmra.mxu0 %v4470
        %v8169 = vpop.f32.mrf.mxu0
        %v8170 = vadd.f32 %v8001, %v8169
        %v8171 = vpop.f32.mrf.mxu0
        %v8172 = vadd.f32 %v8003, %v8171
        %8173 = vmatmul.bf16.gmra.mxu0 %v4486
        %v8174 = vpop.f32.mrf.mxu0
        %v8175 = vadd.f32 %v8006, %v8174
        %v8176 = vpop.f32.mrf.mxu0
        %v8177 = vadd.f32 %v8008, %v8176
        %8178 = vmatmul.bf16.gmra.mxu0 %v4502
        %v8179 = vpop.f32.mrf.mxu0
        %v8180 = vadd.f32 %v8011, %v8179
        %v8181 = vpop.f32.mrf.mxu0
        %v8182 = vadd.f32 %v8013, %v8181
        %8183 = vmatmul.bf16.gmra.mxu0 %v4518
        %v8184 = vpop.f32.mrf.mxu0
        %v8185 = vadd.f32 %v8016, %v8184
        %v8186 = vpop.f32.mrf.mxu0
        %v8187 = vadd.f32 %v8018, %v8186
        %8188 = vmatmul.bf16.gmra.mxu0 %v4534
        %v8189 = vpop.f32.mrf.mxu0
        %v8190 = vadd.f32 %v8021, %v8189
        %v8191 = vpop.f32.mrf.mxu0
        %v8192 = vadd.f32 %v8023, %v8191
        %8193 = vmatmul.bf16.gmra.mxu0 %v4550
        %v8194 = vpop.f32.mrf.mxu0
        %v8195 = vadd.f32 %v8026, %v8194
        %v8196 = vpop.f32.mrf.mxu0
        %v8197 = vadd.f32 %v8028, %v8196
        %8198 = vdwg.mxu0
        %8199 = vmatpush.bf16.msra.mxu0 %v5696
        %8200 = vmatpush.bf16.msra.mxu0 %v5695
        %8201 = vmatpush.bf16.msra.mxu0 %v5694
        %8202 = vmatpush.bf16.msra.mxu0 %v5693
        %8203 = vmatpush.bf16.msra.mxu0 %v5692
        %8204 = vmatpush.bf16.msra.mxu0 %v5691
        %8205 = vmatpush.bf16.msra.mxu0 %v5690
        %8206 = vmatpush.bf16.msra.mxu0 %v5689
        %8207 = vmatmul.bf16.gmra.mxu0 %v4055
        %v8208 = vpop.f32.mrf.mxu0
        %v8209 = vadd.f32 %v8040, %v8208
        %v8210 = vpop.f32.mrf.mxu0
        %v8211 = vadd.f32 %v8042, %v8210
        %8212 = vmatmul.bf16.gmra.mxu0 %v4071
        %v8213 = vpop.f32.mrf.mxu0
        %v8214 = vadd.f32 %v8045, %v8213
        %v8215 = vpop.f32.mrf.mxu0
        %v8216 = vadd.f32 %v8047, %v8215
        %8217 = vmatmul.bf16.gmra.mxu0 %v4087
        %v8218 = vpop.f32.mrf.mxu0
        %v8219 = vadd.f32 %v8050, %v8218
        %v8220 = vpop.f32.mrf.mxu0
        %v8221 = vadd.f32 %v8052, %v8220
        %8222 = vmatmul.bf16.gmra.mxu0 %v4103
        %v8223 = vpop.f32.mrf.mxu0
        %v8224 = vadd.f32 %v8055, %v8223
        %v8225 = vpop.f32.mrf.mxu0
        %v8226 = vadd.f32 %v8057, %v8225
        %8227 = vmatmul.bf16.gmra.mxu0 %v4119
        %v8228 = vpop.f32.mrf.mxu0
        %v8229 = vadd.f32 %v8060, %v8228
        %v8230 = vpop.f32.mrf.mxu0
        %v8231 = vadd.f32 %v8062, %v8230
        %8232 = vmatmul.bf16.gmra.mxu0 %v4135
        %v8233 = vpop.f32.mrf.mxu0
        %v8234 = vadd.f32 %v8065, %v8233
        %v8235 = vpop.f32.mrf.mxu0
        %v8236 = vadd.f32 %v8067, %v8235
        %8237 = vmatmul.bf16.gmra.mxu0 %v4151
        %v8238 = vpop.f32.mrf.mxu0
        %v8239 = vadd.f32 %v8070, %v8238
        %v8240 = vpop.f32.mrf.mxu0
        %v8241 = vadd.f32 %v8072, %v8240
        %8242 = vmatmul.bf16.gmra.mxu0 %v4167
        %v8243 = vpop.f32.mrf.mxu0
        %v8244 = vadd.f32 %v8075, %v8243
        %v8245 = vpop.f32.mrf.mxu0
        %v8246 = vadd.f32 %v8077, %v8245
        %8247 = vmatmul.bf16.gmra.mxu0 %v4183
        %v8248 = vpop.f32.mrf.mxu0
        %v8249 = vadd.f32 %v8080, %v8248
        %v8250 = vpop.f32.mrf.mxu0
        %v8251 = vadd.f32 %v8082, %v8250
        %8252 = vmatmul.bf16.gmra.mxu0 %v4199
        %v8253 = vpop.f32.mrf.mxu0
        %v8254 = vadd.f32 %v8085, %v8253
        %v8255 = vpop.f32.mrf.mxu0
        %v8256 = vadd.f32 %v8087, %v8255
        %8257 = vmatmul.bf16.gmra.mxu0 %v4215
        %v8258 = vpop.f32.mrf.mxu0
        %v8259 = vadd.f32 %v8090, %v8258
        %v8260 = vpop.f32.mrf.mxu0
        %v8261 = vadd.f32 %v8092, %v8260
        %8262 = vmatmul.bf16.gmra.mxu0 %v4231
        %v8263 = vpop.f32.mrf.mxu0
        %v8264 = vadd.f32 %v8095, %v8263
        %v8265 = vpop.f32.mrf.mxu0
        %v8266 = vadd.f32 %v8097, %v8265
        %8267 = vmatmul.bf16.gmra.mxu0 %v4247
        %v8268 = vpop.f32.mrf.mxu0
        %v8269 = vadd.f32 %v8100, %v8268
        %v8270 = vpop.f32.mrf.mxu0
        %v8271 = vadd.f32 %v8102, %v8270
        %8272 = vmatmul.bf16.gmra.mxu0 %v4263
        %v8273 = vpop.f32.mrf.mxu0
        %v8274 = vadd.f32 %v8105, %v8273
        %v8275 = vpop.f32.mrf.mxu0
        %v8276 = vadd.f32 %v8107, %v8275
        %8277 = vmatmul.bf16.gmra.mxu0 %v4279
        %v8278 = vpop.f32.mrf.mxu0
        %v8279 = vadd.f32 %v8110, %v8278
        %v8280 = vpop.f32.mrf.mxu0
        %v8281 = vadd.f32 %v8112, %v8280
        %8282 = vmatmul.bf16.gmra.mxu0 %v4295
        %v8283 = vpop.f32.mrf.mxu0
        %v8284 = vadd.f32 %v8115, %v8283
        %v8285 = vpop.f32.mrf.mxu0
        %v8286 = vadd.f32 %v8117, %v8285
        %8287 = vmatmul.bf16.gmra.mxu0 %v4311
        %v8288 = vpop.f32.mrf.mxu0
        %v8289 = vadd.f32 %v8120, %v8288
        %v8290 = vpop.f32.mrf.mxu0
        %v8291 = vadd.f32 %v8122, %v8290
        %8292 = vmatmul.bf16.gmra.mxu0 %v4327
        %v8293 = vpop.f32.mrf.mxu0
        %v8294 = vadd.f32 %v8125, %v8293
        %v8295 = vpop.f32.mrf.mxu0
        %v8296 = vadd.f32 %v8127, %v8295
        %8297 = vmatmul.bf16.gmra.mxu0 %v4343
        %v8298 = vpop.f32.mrf.mxu0
        %v8299 = vadd.f32 %v8130, %v8298
        %v8300 = vpop.f32.mrf.mxu0
        %v8301 = vadd.f32 %v8132, %v8300
        %8302 = vmatmul.bf16.gmra.mxu0 %v4359
        %v8303 = vpop.f32.mrf.mxu0
        %v8304 = vadd.f32 %v8135, %v8303
        %v8305 = vpop.f32.mrf.mxu0
        %v8306 = vadd.f32 %v8137, %v8305
        %8307 = vmatmul.bf16.gmra.mxu0 %v4375
        %v8308 = vpop.f32.mrf.mxu0
        %v8309 = vadd.f32 %v8140, %v8308
        %v8310 = vpop.f32.mrf.mxu0
        %v8311 = vadd.f32 %v8142, %v8310
        %8312 = vmatmul.bf16.gmra.mxu0 %v4391
        %v8313 = vpop.f32.mrf.mxu0
        %v8314 = vadd.f32 %v8145, %v8313
        %v8315 = vpop.f32.mrf.mxu0
        %v8316 = vadd.f32 %v8147, %v8315
        %8317 = vmatmul.bf16.gmra.mxu0 %v4407
        %v8318 = vpop.f32.mrf.mxu0
        %v8319 = vadd.f32 %v8150, %v8318
        %v8320 = vpop.f32.mrf.mxu0
        %v8321 = vadd.f32 %v8152, %v8320
        %8322 = vmatmul.bf16.gmra.mxu0 %v4423
        %v8323 = vpop.f32.mrf.mxu0
        %v8324 = vadd.f32 %v8155, %v8323
        %v8325 = vpop.f32.mrf.mxu0
        %v8326 = vadd.f32 %v8157, %v8325
        %8327 = vmatmul.bf16.gmra.mxu0 %v4439
        %v8328 = vpop.f32.mrf.mxu0
        %v8329 = vadd.f32 %v8160, %v8328
        %v8330 = vpop.f32.mrf.mxu0
        %v8331 = vadd.f32 %v8162, %v8330
        %8332 = vmatmul.bf16.gmra.mxu0 %v4455
        %v8333 = vpop.f32.mrf.mxu0
        %v8334 = vadd.f32 %v8165, %v8333
        %v8335 = vpop.f32.mrf.mxu0
        %v8336 = vadd.f32 %v8167, %v8335
        %8337 = vmatmul.bf16.gmra.mxu0 %v4471
        %v8338 = vpop.f32.mrf.mxu0
        %v8339 = vadd.f32 %v8170, %v8338
        %v8340 = vpop.f32.mrf.mxu0
        %v8341 = vadd.f32 %v8172, %v8340
        %8342 = vmatmul.bf16.gmra.mxu0 %v4487
        %v8343 = vpop.f32.mrf.mxu0
        %v8344 = vadd.f32 %v8175, %v8343
        %v8345 = vpop.f32.mrf.mxu0
        %v8346 = vadd.f32 %v8177, %v8345
        %8347 = vmatmul.bf16.gmra.mxu0 %v4503
        %v8348 = vpop.f32.mrf.mxu0
        %v8349 = vadd.f32 %v8180, %v8348
        %v8350 = vpop.f32.mrf.mxu0
        %v8351 = vadd.f32 %v8182, %v8350
        %8352 = vmatmul.bf16.gmra.mxu0 %v4519
        %v8353 = vpop.f32.mrf.mxu0
        %v8354 = vadd.f32 %v8185, %v8353
        %v8355 = vpop.f32.mrf.mxu0
        %v8356 = vadd.f32 %v8187, %v8355
        %8357 = vmatmul.bf16.gmra.mxu0 %v4535
        %v8358 = vpop.f32.mrf.mxu0
        %v8359 = vadd.f32 %v8190, %v8358
        %v8360 = vpop.f32.mrf.mxu0
        %v8361 = vadd.f32 %v8192, %v8360
        %8362 = vmatmul.bf16.gmra.mxu0 %v4551
        %v8363 = vpop.f32.mrf.mxu0
        %v8364 = vadd.f32 %v8195, %v8363
        %v8365 = vpop.f32.mrf.mxu0
        %v8366 = vadd.f32 %v8197, %v8365
        %8367 = vdwg.mxu0
        %8368 = vmatpush.bf16.msra.mxu0 %v5704
        %8369 = vmatpush.bf16.msra.mxu0 %v5703
        %8370 = vmatpush.bf16.msra.mxu0 %v5702
        %8371 = vmatpush.bf16.msra.mxu0 %v5701
        %8372 = vmatpush.bf16.msra.mxu0 %v5700
        %8373 = vmatpush.bf16.msra.mxu0 %v5699
        %8374 = vmatpush.bf16.msra.mxu0 %v5698
        %8375 = vmatpush.bf16.msra.mxu0 %v5697
        %8376 = vmatmul.bf16.gmra.mxu0 %v4056
        %v8377 = vpop.f32.mrf.mxu0
        %v8378 = vadd.f32 %v8209, %v8377
        %v8379 = vpop.f32.mrf.mxu0
        %v8380 = vadd.f32 %v8211, %v8379
        %8381 = vmatmul.bf16.gmra.mxu0 %v4072
        %v8382 = vpop.f32.mrf.mxu0
        %v8383 = vadd.f32 %v8214, %v8382
        %v8384 = vpop.f32.mrf.mxu0
        %v8385 = vadd.f32 %v8216, %v8384
        %8386 = vmatmul.bf16.gmra.mxu0 %v4088
        %v8387 = vpop.f32.mrf.mxu0
        %v8388 = vadd.f32 %v8219, %v8387
        %v8389 = vpop.f32.mrf.mxu0
        %v8390 = vadd.f32 %v8221, %v8389
        %8391 = vmatmul.bf16.gmra.mxu0 %v4104
        %v8392 = vpop.f32.mrf.mxu0
        %v8393 = vadd.f32 %v8224, %v8392
        %v8394 = vpop.f32.mrf.mxu0
        %v8395 = vadd.f32 %v8226, %v8394
        %8396 = vmatmul.bf16.gmra.mxu0 %v4120
        %v8397 = vpop.f32.mrf.mxu0
        %v8398 = vadd.f32 %v8229, %v8397
        %v8399 = vpop.f32.mrf.mxu0
        %v8400 = vadd.f32 %v8231, %v8399
        %8401 = vmatmul.bf16.gmra.mxu0 %v4136
        %v8402 = vpop.f32.mrf.mxu0
        %v8403 = vadd.f32 %v8234, %v8402
        %v8404 = vpop.f32.mrf.mxu0
        %v8405 = vadd.f32 %v8236, %v8404
        %8406 = vmatmul.bf16.gmra.mxu0 %v4152
        %v8407 = vpop.f32.mrf.mxu0
        %v8408 = vadd.f32 %v8239, %v8407
        %v8409 = vpop.f32.mrf.mxu0
        %v8410 = vadd.f32 %v8241, %v8409
        %8411 = vmatmul.bf16.gmra.mxu0 %v4168
        %v8412 = vpop.f32.mrf.mxu0
        %v8413 = vadd.f32 %v8244, %v8412
        %v8414 = vpop.f32.mrf.mxu0
        %v8415 = vadd.f32 %v8246, %v8414
        %8416 = vmatmul.bf16.gmra.mxu0 %v4184
        %v8417 = vpop.f32.mrf.mxu0
        %v8418 = vadd.f32 %v8249, %v8417
        %v8419 = vpop.f32.mrf.mxu0
        %v8420 = vadd.f32 %v8251, %v8419
        %8421 = vmatmul.bf16.gmra.mxu0 %v4200
        %v8422 = vpop.f32.mrf.mxu0
        %v8423 = vadd.f32 %v8254, %v8422
        %v8424 = vpop.f32.mrf.mxu0
        %v8425 = vadd.f32 %v8256, %v8424
        %8426 = vmatmul.bf16.gmra.mxu0 %v4216
        %v8427 = vpop.f32.mrf.mxu0
        %v8428 = vadd.f32 %v8259, %v8427
        %v8429 = vpop.f32.mrf.mxu0
        %v8430 = vadd.f32 %v8261, %v8429
        %8431 = vmatmul.bf16.gmra.mxu0 %v4232
        %v8432 = vpop.f32.mrf.mxu0
        %v8433 = vadd.f32 %v8264, %v8432
        %v8434 = vpop.f32.mrf.mxu0
        %v8435 = vadd.f32 %v8266, %v8434
        %8436 = vmatmul.bf16.gmra.mxu0 %v4248
        %v8437 = vpop.f32.mrf.mxu0
        %v8438 = vadd.f32 %v8269, %v8437
        %v8439 = vpop.f32.mrf.mxu0
        %v8440 = vadd.f32 %v8271, %v8439
        %8441 = vmatmul.bf16.gmra.mxu0 %v4264
        %v8442 = vpop.f32.mrf.mxu0
        %v8443 = vadd.f32 %v8274, %v8442
        %v8444 = vpop.f32.mrf.mxu0
        %v8445 = vadd.f32 %v8276, %v8444
        %8446 = vmatmul.bf16.gmra.mxu0 %v4280
        %v8447 = vpop.f32.mrf.mxu0
        %v8448 = vadd.f32 %v8279, %v8447
        %v8449 = vpop.f32.mrf.mxu0
        %v8450 = vadd.f32 %v8281, %v8449
        %8451 = vmatmul.bf16.gmra.mxu0 %v4296
        %v8452 = vpop.f32.mrf.mxu0
        %v8453 = vadd.f32 %v8284, %v8452
        %v8454 = vpop.f32.mrf.mxu0
        %v8455 = vadd.f32 %v8286, %v8454
        %8456 = vmatmul.bf16.gmra.mxu0 %v4312
        %v8457 = vpop.f32.mrf.mxu0
        %v8458 = vadd.f32 %v8289, %v8457
        %v8459 = vpop.f32.mrf.mxu0
        %v8460 = vadd.f32 %v8291, %v8459
        %8461 = vmatmul.bf16.gmra.mxu0 %v4328
        %v8462 = vpop.f32.mrf.mxu0
        %v8463 = vadd.f32 %v8294, %v8462
        %v8464 = vpop.f32.mrf.mxu0
        %v8465 = vadd.f32 %v8296, %v8464
        %8466 = vmatmul.bf16.gmra.mxu0 %v4344
        %v8467 = vpop.f32.mrf.mxu0
        %v8468 = vadd.f32 %v8299, %v8467
        %v8469 = vpop.f32.mrf.mxu0
        %v8470 = vadd.f32 %v8301, %v8469
        %8471 = vmatmul.bf16.gmra.mxu0 %v4360
        %v8472 = vpop.f32.mrf.mxu0
        %v8473 = vadd.f32 %v8304, %v8472
        %v8474 = vpop.f32.mrf.mxu0
        %v8475 = vadd.f32 %v8306, %v8474
        %8476 = vmatmul.bf16.gmra.mxu0 %v4376
        %v8477 = vpop.f32.mrf.mxu0
        %v8478 = vadd.f32 %v8309, %v8477
        %v8479 = vpop.f32.mrf.mxu0
        %v8480 = vadd.f32 %v8311, %v8479
        %8481 = vmatmul.bf16.gmra.mxu0 %v4392
        %v8482 = vpop.f32.mrf.mxu0
        %v8483 = vadd.f32 %v8314, %v8482
        %v8484 = vpop.f32.mrf.mxu0
        %v8485 = vadd.f32 %v8316, %v8484
        %8486 = vmatmul.bf16.gmra.mxu0 %v4408
        %v8487 = vpop.f32.mrf.mxu0
        %v8488 = vadd.f32 %v8319, %v8487
        %v8489 = vpop.f32.mrf.mxu0
        %v8490 = vadd.f32 %v8321, %v8489
        %8491 = vmatmul.bf16.gmra.mxu0 %v4424
        %v8492 = vpop.f32.mrf.mxu0
        %v8493 = vadd.f32 %v8324, %v8492
        %v8494 = vpop.f32.mrf.mxu0
        %v8495 = vadd.f32 %v8326, %v8494
        %8496 = vmatmul.bf16.gmra.mxu0 %v4440
        %v8497 = vpop.f32.mrf.mxu0
        %v8498 = vadd.f32 %v8329, %v8497
        %v8499 = vpop.f32.mrf.mxu0
        %v8500 = vadd.f32 %v8331, %v8499
        %8501 = vmatmul.bf16.gmra.mxu0 %v4456
        %v8502 = vpop.f32.mrf.mxu0
        %v8503 = vadd.f32 %v8334, %v8502
        %v8504 = vpop.f32.mrf.mxu0
        %v8505 = vadd.f32 %v8336, %v8504
        %8506 = vmatmul.bf16.gmra.mxu0 %v4472
        %v8507 = vpop.f32.mrf.mxu0
        %v8508 = vadd.f32 %v8339, %v8507
        %v8509 = vpop.f32.mrf.mxu0
        %v8510 = vadd.f32 %v8341, %v8509
        %8511 = vmatmul.bf16.gmra.mxu0 %v4488
        %v8512 = vpop.f32.mrf.mxu0
        %v8513 = vadd.f32 %v8344, %v8512
        %v8514 = vpop.f32.mrf.mxu0
        %v8515 = vadd.f32 %v8346, %v8514
        %8516 = vmatmul.bf16.gmra.mxu0 %v4504
        %v8517 = vpop.f32.mrf.mxu0
        %v8518 = vadd.f32 %v8349, %v8517
        %v8519 = vpop.f32.mrf.mxu0
        %v8520 = vadd.f32 %v8351, %v8519
        %8521 = vmatmul.bf16.gmra.mxu0 %v4520
        %v8522 = vpop.f32.mrf.mxu0
        %v8523 = vadd.f32 %v8354, %v8522
        %v8524 = vpop.f32.mrf.mxu0
        %v8525 = vadd.f32 %v8356, %v8524
        %8526 = vmatmul.bf16.gmra.mxu0 %v4536
        %v8527 = vpop.f32.mrf.mxu0
        %v8528 = vadd.f32 %v8359, %v8527
        %v8529 = vpop.f32.mrf.mxu0
        %v8530 = vadd.f32 %v8361, %v8529
        %8531 = vmatmul.bf16.gmra.mxu0 %v4552
        %v8532 = vpop.f32.mrf.mxu0
        %v8533 = vadd.f32 %v8364, %v8532
        %v8534 = vpop.f32.mrf.mxu0
        %v8535 = vadd.f32 %v8366, %v8534
        %8536 = vdwg.mxu0
        %vm8537 = vcmask 400384
        %8538 = vst.msk [vmem:[%s194] sm:$0xff] %vm8537, %v8378
        %8539 = vst.msk [vmem:[%s194 + $0x8] sm:$0xff] %vm8537, %v8380
        %8540 = vst.msk [vmem:[%s194 + $0x10] sm:$0xff] %vm8537, %v8383
        %8541 = vst.msk [vmem:[%s194 + $0x18] sm:$0xff] %vm8537, %v8385
        %8542 = vst.msk [vmem:[%s194 + $0x20] sm:$0xff] %vm8537, %v8388
        %8543 = vst.msk [vmem:[%s194 + $0x28] sm:$0xff] %vm8537, %v8390
        %8544 = vst.msk [vmem:[%s194 + $0x30] sm:$0xff] %vm8537, %v8393
        %8545 = vst.msk [vmem:[%s194 + $0x38] sm:$0xff] %vm8537, %v8395
        %8546 = vst.msk [vmem:[%s194 + $0x40] sm:$0xff] %vm8537, %v8398
        %8547 = vst.msk [vmem:[%s194 + $0x48] sm:$0xff] %vm8537, %v8400
        %8548 = vst.msk [vmem:[%s194 + $0x50] sm:$0xff] %vm8537, %v8403
        %8549 = vst.msk [vmem:[%s194 + $0x58] sm:$0xff] %vm8537, %v8405
        %8550 = vst.msk [vmem:[%s194 + $0x60] sm:$0xff] %vm8537, %v8408
        %8551 = vst.msk [vmem:[%s194 + $0x68] sm:$0xff] %vm8537, %v8410
        %8552 = vst.msk [vmem:[%s194 + $0x70] sm:$0xff] %vm8537, %v8413
        %8553 = vst.msk [vmem:[%s194 + $0x78] sm:$0xff] %vm8537, %v8415
        %8554 = vst.msk [vmem:[%s194 + $0x80] sm:$0xff] %vm8537, %v8418
        %8555 = vst.msk [vmem:[%s194 + $0x88] sm:$0xff] %vm8537, %v8420
        %8556 = vst.msk [vmem:[%s194 + $0x90] sm:$0xff] %vm8537, %v8423
        %8557 = vst.msk [vmem:[%s194 + $0x98] sm:$0xff] %vm8537, %v8425
        %8558 = vst.msk [vmem:[%s194 + $0xa0] sm:$0xff] %vm8537, %v8428
        %8559 = vst.msk [vmem:[%s194 + $0xa8] sm:$0xff] %vm8537, %v8430
        %8560 = vst.msk [vmem:[%s194 + $0xb0] sm:$0xff] %vm8537, %v8433
        %8561 = vst.msk [vmem:[%s194 + $0xb8] sm:$0xff] %vm8537, %v8435
        %8562 = vst.msk [vmem:[%s194 + $0xc0] sm:$0xff] %vm8537, %v8438
        %8563 = vst.msk [vmem:[%s194 + $0xc8] sm:$0xff] %vm8537, %v8440
        %8564 = vst.msk [vmem:[%s194 + $0xd0] sm:$0xff] %vm8537, %v8443
        %8565 = vst.msk [vmem:[%s194 + $0xd8] sm:$0xff] %vm8537, %v8445
        %8566 = vst.msk [vmem:[%s194 + $0xe0] sm:$0xff] %vm8537, %v8448
        %8567 = vst.msk [vmem:[%s194 + $0xe8] sm:$0xff] %vm8537, %v8450
        %8568 = vst.msk [vmem:[%s194 + $0xf0] sm:$0xff] %vm8537, %v8453
        %8569 = vst.msk [vmem:[%s194 + $0xf8] sm:$0xff] %vm8537, %v8455
        %8570 = vst.msk [vmem:[%s194 + $0x100] sm:$0xff] %vm8537, %v8458
        %8571 = vst.msk [vmem:[%s194 + $0x108] sm:$0xff] %vm8537, %v8460
        %8572 = vst.msk [vmem:[%s194 + $0x110] sm:$0xff] %vm8537, %v8463
        %8573 = vst.msk [vmem:[%s194 + $0x118] sm:$0xff] %vm8537, %v8465
        %8574 = vst.msk [vmem:[%s194 + $0x120] sm:$0xff] %vm8537, %v8468
        %8575 = vst.msk [vmem:[%s194 + $0x128] sm:$0xff] %vm8537, %v8470
        %8576 = vst.msk [vmem:[%s194 + $0x130] sm:$0xff] %vm8537, %v8473
        %8577 = vst.msk [vmem:[%s194 + $0x138] sm:$0xff] %vm8537, %v8475
        %8578 = vst.msk [vmem:[%s194 + $0x140] sm:$0xff] %vm8537, %v8478
        %8579 = vst.msk [vmem:[%s194 + $0x148] sm:$0xff] %vm8537, %v8480
        %8580 = vst.msk [vmem:[%s194 + $0x150] sm:$0xff] %vm8537, %v8483
        %8581 = vst.msk [vmem:[%s194 + $0x158] sm:$0xff] %vm8537, %v8485
        %8582 = vst.msk [vmem:[%s194 + $0x160] sm:$0xff] %vm8537, %v8488
        %8583 = vst.msk [vmem:[%s194 + $0x168] sm:$0xff] %vm8537, %v8490
        %8584 = vst.msk [vmem:[%s194 + $0x170] sm:$0xff] %vm8537, %v8493
        %8585 = vst.msk [vmem:[%s194 + $0x178] sm:$0xff] %vm8537, %v8495
        %8586 = vst.msk [vmem:[%s194 + $0x180] sm:$0xff] %vm8537, %v8498
        %8587 = vst.msk [vmem:[%s194 + $0x188] sm:$0xff] %vm8537, %v8500
        %8588 = vst.msk [vmem:[%s194 + $0x190] sm:$0xff] %vm8537, %v8503
        %8589 = vst.msk [vmem:[%s194 + $0x198] sm:$0xff] %vm8537, %v8505
        %8590 = vst.msk [vmem:[%s194 + $0x1a0] sm:$0xff] %vm8537, %v8508
        %8591 = vst.msk [vmem:[%s194 + $0x1a8] sm:$0xff] %vm8537, %v8510
        %8592 = vst.msk [vmem:[%s194 + $0x1b0] sm:$0xff] %vm8537, %v8513
        %8593 = vst.msk [vmem:[%s194 + $0x1b8] sm:$0xff] %vm8537, %v8515
        %8594 = vst.msk [vmem:[%s194 + $0x1c0] sm:$0xff] %vm8537, %v8518
        %8595 = vst.msk [vmem:[%s194 + $0x1c8] sm:$0xff] %vm8537, %v8520
        %8596 = vst.msk [vmem:[%s194 + $0x1d0] sm:$0xff] %vm8537, %v8523
        %8597 = vst.msk [vmem:[%s194 + $0x1d8] sm:$0xff] %vm8537, %v8525
        %8598 = vst.msk [vmem:[%s194 + $0x1e0] sm:$0xff] %vm8537, %v8528
        %8599 = vst.msk [vmem:[%s194 + $0x1e8] sm:$0xff] %vm8537, %v8530
        %8600 = vst.msk [vmem:[%s194 + $0x1f0] sm:$0xff] %vm8537, %v8533
        %8601 = vst.msk [vmem:[%s194 + $0x1f8] sm:$0xff] %vm8537, %v8535
        %s8602 = smul.u32 64, %s17
        %p8603 = scmp.lt.s32.totalorder %s8602, 127
        %s8604 = scalar_select %p8603, %s8602, 127
        %s8605 = smul.addr %s8604, 8
        %s8606 = scalar_lea.vmem %s3, %s8605
        // Predicated region
        $region41: #{tpu_custom_call.1} parent=31 // pred_check
          %p8607 = pneg %p103
        $region42: #{tpu_custom_call.1} parent=31 // pred_check_branch
          %8609 = sbr.rel (%p8607) target = $region44
        $region43: #{tpu_custom_call.1} parent=31 // pred_region
          %s8610 = smul.u32 64, %s17
        $region44: #{tpu_custom_call.1} parent=31 // pred_fallthru
          _
      $region32: #{tpu_custom_call.1} parent=5 // pred_fallthru
        _
      %p8611 = scmp.le.s32.totalorder 2, %s12
      // Predicated region
      $region45: #{tpu_custom_call.1} parent=5 // pred_check
        %p8612 = pneg %p8611
      $region46: #{tpu_custom_call.1} parent=5 // pred_check_branch
        %8614 = sbr.rel (%p8612) target = $region48
      $region47: #{tpu_custom_call.1} parent=5 // pred_region
        %s8615 = ssub.s32 %s12, 2
        // Predicated region
        $region49: #{tpu_custom_call.1} parent=47 // pred_check
          %p8616 = pneg %p109
        $region50: #{tpu_custom_call.1} parent=47 // pred_check_branch
          %8618 = sbr.rel (%p8616) target = $region52
        $region51: #{tpu_custom_call.1} parent=47 // pred_region
          %s8619 = smul.u32 64, %s18
          %p8620 = scmp.lt.s32.totalorder %s8619, 127
          %s8621 = scalar_select %p8620, %s8619, 127
          %s8622 = smul.addr %s8621, 8
          %s8623 = scalar_lea.vmem %s3, %s8622
        $region52: #{tpu_custom_call.1} parent=47 // pred_fallthru
          _
      $region48: #{tpu_custom_call.1} parent=5 // pred_fallthru
        _
    $region6: #{tpu_custom_call.1} parent=1 // loop_footer
      %s16 = sadd.s32 1, %s12
    $region7: #{tpu_custom_call.1} parent=1 // loop_footer_branch
      %11 = sbr.rel target = $region3
    $region8: #{tpu_custom_call.1} parent=1 // loop_exit
      _
    %8624 = vsyncpa [#allocation4], 1
    %s8625 = scalar_lea.sflag [#allocation4], 1
    %8626 = vsyncpa %s8625, 1

</llo_original>
